<compile_context>
chip_gen: v6e
topology: v6e:2x2x1
jax: 0.10.0
libtpu: 0.0.40
codegen_flags: <defaults>
</compile_context>

<pallas_src>
import jax
import jax.numpy as jnp
from jax.experimental import pallas as pl
from jax.experimental.pallas import tpu as pltpu


def _downsample_conv_kernel(x_ref, w_ref, b_ref, o_ref):
    """One image per grid step.

    x_ref : [2, 2, Hq, Wq, Cin]  parity-split, zero-padded input
                                 (h-parity, w-parity, row-pair, col-pair, C)
    w_ref : [3, 3, Cin, Cp]      conv weight, tap-major, VMEM-resident
    b_ref : [1, Cp]              bias (f32)
    o_ref : [Ho, Wo, Cp]         output tile for this image
    """
    ho, wo, cp = o_ref.shape
    bias = b_ref[...].astype(jnp.float32)  # [1, Cp]

    # Static unroll over output rows and the 9 taps: every slice below is a
    # static VMEM window and every dot is a 2-D MXU matmul accumulated in f32.
    for oh in range(ho):
        acc = jnp.zeros((wo, cp), dtype=jnp.float32)
        for kh in range(3):
            rh, dh = kh % 2, kh // 2
            for kw in range(3):
                rw, dw = kw % 2, kw // 2
                # padded-input row 2*oh+kh, cols 2*ow+kw for ow in [0, Wo)
                lhs = x_ref[rh, rw, oh + dh, pl.ds(dw, wo), :]  # [Wo, Cin]
                acc = acc + jnp.dot(lhs, w_ref[kh, kw],
                                    preferred_element_type=jnp.float32)
        o_ref[oh, :, :] = (acc + bias).astype(o_ref.dtype)


def downsample_forward(x_nchw, weight, bias, *, compute_dtype=None,
                       lane_pad=True):
    """Conv2d(C, C, kernel_size=3, stride=2, padding=1) == DownSample.forward.

    x_nchw : [N, C, H, W]   (PyTorch NCHW layout, H and W even)
    weight : [C, C, 3, 3]   (PyTorch OIHW layout)
    bias   : [C]
    returns [N, C, H//2, W//2]
    """
    N, C, H, W = x_nchw.shape
    if H % 2 or W % 2:
        raise ValueError("DownSample expects even spatial dims")
    Ho, Wo = H // 2, W // 2
    Hq, Wq = Ho + 1, Wo + 1
    out_dtype = x_nchw.dtype
    if compute_dtype is None:
        compute_dtype = x_nchw.dtype

    # Lane-align the output-channel dim (avoids masked stores / idle MXU
    # columns) only when the padding overhead is modest.
    if lane_pad and C >= 64 and C % 128 != 0:
        Cp = ((C + 127) // 128) * 128
    else:
        Cp = C

    # --- glue: one pad pass + one transpose pass; the reshapes are free. ---
    # padded row r = 2*a + p, padded col c = 2*d + q   (p, q = parities)
    xp = jnp.pad(x_nchw, ((0, 0), (0, 0), (1, 1), (1, 1)))   # [N, C, H+2, W+2]
    xr = xp.reshape(N, C, Hq, 2, Wq, 2)
    xt = jnp.transpose(xr, (0, 3, 5, 2, 4, 1))               # [N, 2, 2, Hq, Wq, C]
    xt = xt.astype(compute_dtype)

    # OIHW -> [kh, kw, Cin, Cout]  (+ zero-pad Cout to Cp)
    wt = jnp.transpose(weight, (2, 3, 1, 0))
    b2 = bias.reshape(1, C)
    if Cp != C:
        wt = jnp.pad(wt, ((0, 0), (0, 0), (0, 0), (0, Cp - C)))
        b2 = jnp.pad(b2, ((0, 0), (0, Cp - C)))
    wt = wt.astype(compute_dtype)
    b2 = b2.astype(jnp.float32)

    # Explicit VMEM budget: double-buffered image/output blocks + resident
    # weights/bias + slack.
    in_bytes = 2 * 2 * Hq * Wq * C * jnp.dtype(compute_dtype).itemsize
    out_bytes = Ho * Wo * Cp * jnp.dtype(out_dtype).itemsize
    w_bytes = 9 * C * Cp * jnp.dtype(compute_dtype).itemsize + 4 * Cp
    vmem_limit = int(min(max(2 * (in_bytes + out_bytes) + 2 * w_bytes
                             + (4 << 20), 32 << 20), 100 << 20))

    out_nhwc = pl.pallas_call(
        _downsample_conv_kernel,
        out_shape=jax.ShapeDtypeStruct((N, Ho, Wo, Cp), out_dtype),
        grid=(N,),
        in_specs=[
            pl.BlockSpec((None, 2, 2, Hq, Wq, C),
                         lambda n: (n, 0, 0, 0, 0, 0)),
            pl.BlockSpec((3, 3, C, Cp), lambda n: (0, 0, 0, 0)),   # resident
            pl.BlockSpec((1, Cp), lambda n: (0, 0)),               # resident
        ],
        out_specs=pl.BlockSpec((None, Ho, Wo, Cp), lambda n: (n, 0, 0, 0)),
        compiler_params=pltpu.CompilerParams(
            dimension_semantics=("parallel",),   # megacore split on v7x
            vmem_limit_bytes=vmem_limit,
        ),
    )(xt, wt, b2)

    if Cp != C:
        out_nhwc = out_nhwc[..., :C]
    return jnp.transpose(out_nhwc, (0, 3, 1, 2))                  # back to NCHW


def _ref_conv(x, w, b):
    return jax.lax.conv_general_dilated(
        x, w, window_strides=(2, 2), padding=((1, 1), (1, 1)),
        dimension_numbers=("NCHW", "OIHW", "NCHW"),
    ) + b.reshape(1, -1, 1, 1)


if __name__ == "__main__":
    key = jax.random.PRNGKey(0)
    kx, kw, kb = jax.random.split(key, 3)

    fwd = jax.jit(downsample_forward,
                  static_argnames=("compute_dtype", "lane_pad"))

    # --- test 1: small channels, f32 end-to-end -----------------------------
    N, C, H, W = 2, 4, 16, 16
    x = jax.random.normal(kx, (N, C, H, W), dtype=jnp.float32)
    weight = 0.1 * jax.random.normal(kw, (C, C, 3, 3), dtype=jnp.float32)
    bias = 0.1 * jax.random.normal(kb, (C,), dtype=jnp.float32)

    out = jax.block_until_ready(fwd(x, weight, bias))
    assert out.shape == (N, C, H // 2, W // 2), out.shape
    ref = jax.block_until_ready(_ref_conv(x, weight, bias))
    assert jnp.allclose(out, ref, rtol=5e-3, atol=5e-3), \
        float(jnp.max(jnp.abs(out - ref)))

    # --- test 2: bf16 MXU inputs (f32 accumulation) + 128-lane padded C_out --
    C2 = 64
    x2 = jax.random.normal(kx, (N, C2, H, W), dtype=jnp.float32)
    w2 = 0.1 * jax.random.normal(kw, (C2, C2, 3, 3), dtype=jnp.float32)
    b2 = 0.1 * jax.random.normal(kb, (C2,), dtype=jnp.float32)

    out2 = jax.block_until_ready(fwd(x2, w2, b2, compute_dtype=jnp.bfloat16))
    assert out2.shape == (N, C2, H // 2, W // 2), out2.shape
    ref2 = jax.block_until_ready(_ref_conv(x2, w2, b2))
    assert jnp.allclose(out2, ref2, rtol=1e-1, atol=1e-1), \
        float(jnp.max(jnp.abs(out2 - ref2)))

    print("KERNEL_OK")
</pallas_src>

<mosaic_0001>
module attributes {stable_mosaic.version = 11 : i64} {
  func.func @_downsample_conv_kernel(%arg0: i32, %arg1: memref<1x2x2x9x9x4xf32, #tpu.memory_space<vmem>>, %arg2: memref<3x3x4x4xf32, #tpu.memory_space<vmem>>, %arg3: memref<1x4xf32, #tpu.memory_space<vmem>>, %arg4: memref<1x8x8x4xf32, #tpu.memory_space<vmem>>) attributes {dimension_semantics = [#tpu.dimension_semantics<parallel>], iteration_bounds = array<i64: 2>, scalar_prefetch = 0 : i64, scratch_operands = 0 : i64, tpu.core_type = #tpu.core_type<tc>, window_params = [{transform_indices = @transform_0, window_bounds = array<i64: 1, 2, 2, 9, 9, 4>}, {pipeline_mode = #tpu.pipeline_mode<synchronous>, transform_indices = @transform_1, window_bounds = array<i64: 3, 3, 4, 4>}, {pipeline_mode = #tpu.pipeline_mode<synchronous>, transform_indices = @transform_2, window_bounds = array<i64: 1, 4>}, {transform_indices = @transform_3, window_bounds = array<i64: 1, 8, 8, 4>}]} {
    %c0 = arith.constant 0 : index
    %c0_0 = arith.constant 0 : index
    %0 = vector.load %arg3[%c0, %c0_0] : memref<1x4xf32, #tpu.memory_space<vmem>>, vector<1x4xf32>
    %cst = arith.constant 0.000000e+00 : f32
    %1 = vector.broadcast %cst : f32 to vector<8x4xf32>
    %c0_1 = arith.constant 0 : index
    %c0_2 = arith.constant 0 : index
    %c0_3 = arith.constant 0 : index
    %c0_4 = arith.constant 0 : index
    %c0_5 = arith.constant 0 : index
    %c0_6 = arith.constant 0 : index
    %2 = vector.load %arg1[%c0_1, %c0_2, %c0_3, %c0_4, %c0_5, %c0_6] : memref<1x2x2x9x9x4xf32, #tpu.memory_space<vmem>>, vector<1x1x1x1x8x4xf32>
    %3 = vector.shape_cast %2 : vector<1x1x1x1x8x4xf32> to vector<8x4xf32>
    %c0_7 = arith.constant 0 : index
    %c0_8 = arith.constant 0 : index
    %c0_9 = arith.constant 0 : index
    %c0_10 = arith.constant 0 : index
    %4 = vector.load %arg2[%c0_7, %c0_8, %c0_9, %c0_10] : memref<3x3x4x4xf32, #tpu.memory_space<vmem>>, vector<1x1x4x4xf32>
    %5 = vector.shape_cast %4 : vector<1x1x4x4xf32> to vector<4x4xf32>
    %cst_11 = arith.constant dense<0.000000e+00> : vector<8x4xf32>
    %6 = tpu.matmul %3, %5, %cst_11 {dimension_numbers = #tpu.dot_dimension_numbers<[1], [0], [0], [1], [0, 0, 1, 1], [], []>} : vector<8x4xf32>, vector<4x4xf32>, vector<8x4xf32> -> vector<8x4xf32>
    %7 = arith.addf %1, %6 : vector<8x4xf32>
    %c0_12 = arith.constant 0 : index
    %c0_13 = arith.constant 0 : index
    %c1 = arith.constant 1 : index
    %c0_14 = arith.constant 0 : index
    %c0_15 = arith.constant 0 : index
    %c0_16 = arith.constant 0 : index
    %8 = vector.load %arg1[%c0_12, %c0_13, %c1, %c0_14, %c0_15, %c0_16] : memref<1x2x2x9x9x4xf32, #tpu.memory_space<vmem>>, vector<1x1x1x1x8x4xf32>
    %9 = vector.shape_cast %8 : vector<1x1x1x1x8x4xf32> to vector<8x4xf32>
    %c0_17 = arith.constant 0 : index
    %c1_18 = arith.constant 1 : index
    %c0_19 = arith.constant 0 : index
    %c0_20 = arith.constant 0 : index
    %10 = vector.load %arg2[%c0_17, %c1_18, %c0_19, %c0_20] : memref<3x3x4x4xf32, #tpu.memory_space<vmem>>, vector<1x1x4x4xf32>
    %11 = vector.shape_cast %10 : vector<1x1x4x4xf32> to vector<4x4xf32>
    %cst_21 = arith.constant dense<0.000000e+00> : vector<8x4xf32>
    %12 = tpu.matmul %9, %11, %cst_21 {dimension_numbers = #tpu.dot_dimension_numbers<[1], [0], [0], [1], [0, 0, 1, 1], [], []>} : vector<8x4xf32>, vector<4x4xf32>, vector<8x4xf32> -> vector<8x4xf32>
    %13 = arith.addf %7, %12 : vector<8x4xf32>
    %c0_22 = arith.constant 0 : index
    %c0_23 = arith.constant 0 : index
    %c0_24 = arith.constant 0 : index
    %c0_25 = arith.constant 0 : index
    %c1_26 = arith.constant 1 : index
    %c0_27 = arith.constant 0 : index
    %14 = vector.load %arg1[%c0_22, %c0_23, %c0_24, %c0_25, %c1_26, %c0_27] : memref<1x2x2x9x9x4xf32, #tpu.memory_space<vmem>>, vector<1x1x1x1x8x4xf32>
    %15 = vector.shape_cast %14 : vector<1x1x1x1x8x4xf32> to vector<8x4xf32>
    %c0_28 = arith.constant 0 : index
    %c2 = arith.constant 2 : index
    %c0_29 = arith.constant 0 : index
    %c0_30 = arith.constant 0 : index
    %16 = vector.load %arg2[%c0_28, %c2, %c0_29, %c0_30] : memref<3x3x4x4xf32, #tpu.memory_space<vmem>>, vector<1x1x4x4xf32>
    %17 = vector.shape_cast %16 : vector<1x1x4x4xf32> to vector<4x4xf32>
    %cst_31 = arith.constant dense<0.000000e+00> : vector<8x4xf32>
    %18 = tpu.matmul %15, %17, %cst_31 {dimension_numbers = #tpu.dot_dimension_numbers<[1], [0], [0], [1], [0, 0, 1, 1], [], []>} : vector<8x4xf32>, vector<4x4xf32>, vector<8x4xf32> -> vector<8x4xf32>
    %19 = arith.addf %13, %18 : vector<8x4xf32>
    %c0_32 = arith.constant 0 : index
    %c1_33 = arith.constant 1 : index
    %c0_34 = arith.constant 0 : index
    %c0_35 = arith.constant 0 : index
    %c0_36 = arith.constant 0 : index
    %c0_37 = arith.constant 0 : index
    %20 = vector.load %arg1[%c0_32, %c1_33, %c0_34, %c0_35, %c0_36, %c0_37] : memref<1x2x2x9x9x4xf32, #tpu.memory_space<vmem>>, vector<1x1x1x1x8x4xf32>
    %21 = vector.shape_cast %20 : vector<1x1x1x1x8x4xf32> to vector<8x4xf32>
    %c1_38 = arith.constant 1 : index
    %c0_39 = arith.constant 0 : index
    %c0_40 = arith.constant 0 : index
    %c0_41 = arith.constant 0 : index
    %22 = vector.load %arg2[%c1_38, %c0_39, %c0_40, %c0_41] : memref<3x3x4x4xf32, #tpu.memory_space<vmem>>, vector<1x1x4x4xf32>
    %23 = vector.shape_cast %22 : vector<1x1x4x4xf32> to vector<4x4xf32>
    %cst_42 = arith.constant dense<0.000000e+00> : vector<8x4xf32>
    %24 = tpu.matmul %21, %23, %cst_42 {dimension_numbers = #tpu.dot_dimension_numbers<[1], [0], [0], [1], [0, 0, 1, 1], [], []>} : vector<8x4xf32>, vector<4x4xf32>, vector<8x4xf32> -> vector<8x4xf32>
    %25 = arith.addf %19, %24 : vector<8x4xf32>
    %c0_43 = arith.constant 0 : index
    %c1_44 = arith.constant 1 : index
    %c1_45 = arith.constant 1 : index
    %c0_46 = arith.constant 0 : index
    %c0_47 = arith.constant 0 : index
    %c0_48 = arith.constant 0 : index
    %26 = vector.load %arg1[%c0_43, %c1_44, %c1_45, %c0_46, %c0_47, %c0_48] : memref<1x2x2x9x9x4xf32, #tpu.memory_space<vmem>>, vector<1x1x1x1x8x4xf32>
    %27 = vector.shape_cast %26 : vector<1x1x1x1x8x4xf32> to vector<8x4xf32>
    %c1_49 = arith.constant 1 : index
    %c1_50 = arith.constant 1 : index
    %c0_51 = arith.constant 0 : index
    %c0_52 = arith.constant 0 : index
    %28 = vector.load %arg2[%c1_49, %c1_50, %c0_51, %c0_52] : memref<3x3x4x4xf32, #tpu.memory_space<vmem>>, vector<1x1x4x4xf32>
    %29 = vector.shape_cast %28 : vector<1x1x4x4xf32> to vector<4x4xf32>
    %cst_53 = arith.constant dense<0.000000e+00> : vector<8x4xf32>
    %30 = tpu.matmul %27, %29, %cst_53 {dimension_numbers = #tpu.dot_dimension_numbers<[1], [0], [0], [1], [0, 0, 1, 1], [], []>} : vector<8x4xf32>, vector<4x4xf32>, vector<8x4xf32> -> vector<8x4xf32>
    %31 = arith.addf %25, %30 : vector<8x4xf32>
    %c0_54 = arith.constant 0 : index
    %c1_55 = arith.constant 1 : index
    %c0_56 = arith.constant 0 : index
    %c0_57 = arith.constant 0 : index
    %c1_58 = arith.constant 1 : index
    %c0_59 = arith.constant 0 : index
    %32 = vector.load %arg1[%c0_54, %c1_55, %c0_56, %c0_57, %c1_58, %c0_59] : memref<1x2x2x9x9x4xf32, #tpu.memory_space<vmem>>, vector<1x1x1x1x8x4xf32>
    %33 = vector.shape_cast %32 : vector<1x1x1x1x8x4xf32> to vector<8x4xf32>
    %c1_60 = arith.constant 1 : index
    %c2_61 = arith.constant 2 : index
    %c0_62 = arith.constant 0 : index
    %c0_63 = arith.constant 0 : index
    %34 = vector.load %arg2[%c1_60, %c2_61, %c0_62, %c0_63] : memref<3x3x4x4xf32, #tpu.memory_space<vmem>>, vector<1x1x4x4xf32>
    %35 = vector.shape_cast %34 : vector<1x1x4x4xf32> to vector<4x4xf32>
    %cst_64 = arith.constant dense<0.000000e+00> : vector<8x4xf32>
    %36 = tpu.matmul %33, %35, %cst_64 {dimension_numbers = #tpu.dot_dimension_numbers<[1], [0], [0], [1], [0, 0, 1, 1], [], []>} : vector<8x4xf32>, vector<4x4xf32>, vector<8x4xf32> -> vector<8x4xf32>
    %37 = arith.addf %31, %36 : vector<8x4xf32>
    %c0_65 = arith.constant 0 : index
    %c0_66 = arith.constant 0 : index
    %c0_67 = arith.constant 0 : index
    %c1_68 = arith.constant 1 : index
    %c0_69 = arith.constant 0 : index
    %c0_70 = arith.constant 0 : index
    %38 = vector.load %arg1[%c0_65, %c0_66, %c0_67, %c1_68, %c0_69, %c0_70] : memref<1x2x2x9x9x4xf32, #tpu.memory_space<vmem>>, vector<1x1x1x1x8x4xf32>
    %39 = vector.shape_cast %38 : vector<1x1x1x1x8x4xf32> to vector<8x4xf32>
    %c2_71 = arith.constant 2 : index
    %c0_72 = arith.constant 0 : index
    %c0_73 = arith.constant 0 : index
    %c0_74 = arith.constant 0 : index
    %40 = vector.load %arg2[%c2_71, %c0_72, %c0_73, %c0_74] : memref<3x3x4x4xf32, #tpu.memory_space<vmem>>, vector<1x1x4x4xf32>
    %41 = vector.shape_cast %40 : vector<1x1x4x4xf32> to vector<4x4xf32>
    %cst_75 = arith.constant dense<0.000000e+00> : vector<8x4xf32>
    %42 = tpu.matmul %39, %41, %cst_75 {dimension_numbers = #tpu.dot_dimension_numbers<[1], [0], [0], [1], [0, 0, 1, 1], [], []>} : vector<8x4xf32>, vector<4x4xf32>, vector<8x4xf32> -> vector<8x4xf32>
    %43 = arith.addf %37, %42 : vector<8x4xf32>
    %c0_76 = arith.constant 0 : index
    %c0_77 = arith.constant 0 : index
    %c1_78 = arith.constant 1 : index
    %c1_79 = arith.constant 1 : index
    %c0_80 = arith.constant 0 : index
    %c0_81 = arith.constant 0 : index
    %44 = vector.load %arg1[%c0_76, %c0_77, %c1_78, %c1_79, %c0_80, %c0_81] : memref<1x2x2x9x9x4xf32, #tpu.memory_space<vmem>>, vector<1x1x1x1x8x4xf32>
    %45 = vector.shape_cast %44 : vector<1x1x1x1x8x4xf32> to vector<8x4xf32>
    %c2_82 = arith.constant 2 : index
    %c1_83 = arith.constant 1 : index
    %c0_84 = arith.constant 0 : index
    %c0_85 = arith.constant 0 : index
    %46 = vector.load %arg2[%c2_82, %c1_83, %c0_84, %c0_85] : memref<3x3x4x4xf32, #tpu.memory_space<vmem>>, vector<1x1x4x4xf32>
    %47 = vector.shape_cast %46 : vector<1x1x4x4xf32> to vector<4x4xf32>
    %cst_86 = arith.constant dense<0.000000e+00> : vector<8x4xf32>
    %48 = tpu.matmul %45, %47, %cst_86 {dimension_numbers = #tpu.dot_dimension_numbers<[1], [0], [0], [1], [0, 0, 1, 1], [], []>} : vector<8x4xf32>, vector<4x4xf32>, vector<8x4xf32> -> vector<8x4xf32>
    %49 = arith.addf %43, %48 : vector<8x4xf32>
    %c0_87 = arith.constant 0 : index
    %c0_88 = arith.constant 0 : index
    %c0_89 = arith.constant 0 : index
    %c1_90 = arith.constant 1 : index
    %c1_91 = arith.constant 1 : index
    %c0_92 = arith.constant 0 : index
    %50 = vector.load %arg1[%c0_87, %c0_88, %c0_89, %c1_90, %c1_91, %c0_92] : memref<1x2x2x9x9x4xf32, #tpu.memory_space<vmem>>, vector<1x1x1x1x8x4xf32>
    %51 = vector.shape_cast %50 : vector<1x1x1x1x8x4xf32> to vector<8x4xf32>
    %c2_93 = arith.constant 2 : index
    %c2_94 = arith.constant 2 : index
    %c0_95 = arith.constant 0 : index
    %c0_96 = arith.constant 0 : index
    %52 = vector.load %arg2[%c2_93, %c2_94, %c0_95, %c0_96] : memref<3x3x4x4xf32, #tpu.memory_space<vmem>>, vector<1x1x4x4xf32>
    %53 = vector.shape_cast %52 : vector<1x1x4x4xf32> to vector<4x4xf32>
    %cst_97 = arith.constant dense<0.000000e+00> : vector<8x4xf32>
    %54 = tpu.matmul %51, %53, %cst_97 {dimension_numbers = #tpu.dot_dimension_numbers<[1], [0], [0], [1], [0, 0, 1, 1], [], []>} : vector<8x4xf32>, vector<4x4xf32>, vector<8x4xf32> -> vector<8x4xf32>
    %55 = arith.addf %49, %54 : vector<8x4xf32>
    %56 = vector.broadcast %0 : vector<1x4xf32> to vector<8x4xf32>
    %57 = arith.addf %55, %56 : vector<8x4xf32>
    %c0_98 = arith.constant 0 : index
    %c0_99 = arith.constant 0 : index
    %c0_100 = arith.constant 0 : index
    %c0_101 = arith.constant 0 : index
    %58 = vector.load %arg4[%c0_98, %c0_99, %c0_100, %c0_101] : memref<1x8x8x4xf32, #tpu.memory_space<vmem>>, vector<1x1x8x4xf32>
    %59 = vector.shape_cast %58 : vector<1x1x8x4xf32> to vector<8x4xf32>
    %60 = vector.shape_cast %57 : vector<8x4xf32> to vector<1x1x8x4xf32>
    tpu.vector_store %arg4[%c0_98, %c0_99, %c0_100, %c0_101], %60 {strides = array<i32>} : memref<1x8x8x4xf32, #tpu.memory_space<vmem>>, vector<1x1x8x4xf32>,
    %cst_102 = arith.constant 0.000000e+00 : f32
    %61 = vector.broadcast %cst_102 : f32 to vector<8x4xf32>
    %c0_103 = arith.constant 0 : index
    %c0_104 = arith.constant 0 : index
    %c0_105 = arith.constant 0 : index
    %c1_106 = arith.constant 1 : index
    %c0_107 = arith.constant 0 : index
    %c0_108 = arith.constant 0 : index
    %62 = vector.load %arg1[%c0_103, %c0_104, %c0_105, %c1_106, %c0_107, %c0_108] : memref<1x2x2x9x9x4xf32, #tpu.memory_space<vmem>>, vector<1x1x1x1x8x4xf32>
    %63 = vector.shape_cast %62 : vector<1x1x1x1x8x4xf32> to vector<8x4xf32>
    %c0_109 = arith.constant 0 : index
    %c0_110 = arith.constant 0 : index
    %c0_111 = arith.constant 0 : index
    %c0_112 = arith.constant 0 : index
    %64 = vector.load %arg2[%c0_109, %c0_110, %c0_111, %c0_112] : memref<3x3x4x4xf32, #tpu.memory_space<vmem>>, vector<1x1x4x4xf32>
    %65 = vector.shape_cast %64 : vector<1x1x4x4xf32> to vector<4x4xf32>
    %cst_113 = arith.constant dense<0.000000e+00> : vector<8x4xf32>
    %66 = tpu.matmul %63, %65, %cst_113 {dimension_numbers = #tpu.dot_dimension_numbers<[1], [0], [0], [1], [0, 0, 1, 1], [], []>} : vector<8x4xf32>, vector<4x4xf32>, vector<8x4xf32> -> vector<8x4xf32>
    %67 = arith.addf %61, %66 : vector<8x4xf32>
    %c0_114 = arith.constant 0 : index
    %c0_115 = arith.constant 0 : index
    %c1_116 = arith.constant 1 : index
    %c1_117 = arith.constant 1 : index
    %c0_118 = arith.constant 0 : index
    %c0_119 = arith.constant 0 : index
    %68 = vector.load %arg1[%c0_114, %c0_115, %c1_116, %c1_117, %c0_118, %c0_119] : memref<1x2x2x9x9x4xf32, #tpu.memory_space<vmem>>, vector<1x1x1x1x8x4xf32>
    %69 = vector.shape_cast %68 : vector<1x1x1x1x8x4xf32> to vector<8x4xf32>
    %c0_120 = arith.constant 0 : index
    %c1_121 = arith.constant 1 : index
    %c0_122 = arith.constant 0 : index
    %c0_123 = arith.constant 0 : index
    %70 = vector.load %arg2[%c0_120, %c1_121, %c0_122, %c0_123] : memref<3x3x4x4xf32, #tpu.memory_space<vmem>>, vector<1x1x4x4xf32>
    %71 = vector.shape_cast %70 : vector<1x1x4x4xf32> to vector<4x4xf32>
    %cst_124 = arith.constant dense<0.000000e+00> : vector<8x4xf32>
    %72 = tpu.matmul %69, %71, %cst_124 {dimension_numbers = #tpu.dot_dimension_numbers<[1], [0], [0], [1], [0, 0, 1, 1], [], []>} : vector<8x4xf32>, vector<4x4xf32>, vector<8x4xf32> -> vector<8x4xf32>
    %73 = arith.addf %67, %72 : vector<8x4xf32>
    %c0_125 = arith.constant 0 : index
    %c0_126 = arith.constant 0 : index
    %c0_127 = arith.constant 0 : index
    %c1_128 = arith.constant 1 : index
    %c1_129 = arith.constant 1 : index
    %c0_130 = arith.constant 0 : index
    %74 = vector.load %arg1[%c0_125, %c0_126, %c0_127, %c1_128, %c1_129, %c0_130] : memref<1x2x2x9x9x4xf32, #tpu.memory_space<vmem>>, vector<1x1x1x1x8x4xf32>
    %75 = vector.shape_cast %74 : vector<1x1x1x1x8x4xf32> to vector<8x4xf32>
    %c0_131 = arith.constant 0 : index
    %c2_132 = arith.constant 2 : index
    %c0_133 = arith.constant 0 : index
    %c0_134 = arith.constant 0 : index
    %76 = vector.load %arg2[%c0_131, %c2_132, %c0_133, %c0_134] : memref<3x3x4x4xf32, #tpu.memory_space<vmem>>, vector<1x1x4x4xf32>
    %77 = vector.shape_cast %76 : vector<1x1x4x4xf32> to vector<4x4xf32>
    %cst_135 = arith.constant dense<0.000000e+00> : vector<8x4xf32>
    %78 = tpu.matmul %75, %77, %cst_135 {dimension_numbers = #tpu.dot_dimension_numbers<[1], [0], [0], [1], [0, 0, 1, 1], [], []>} : vector<8x4xf32>, vector<4x4xf32>, vector<8x4xf32> -> vector<8x4xf32>
    %79 = arith.addf %73, %78 : vector<8x4xf32>
    %c0_136 = arith.constant 0 : index
    %c1_137 = arith.constant 1 : index
    %c0_138 = arith.constant 0 : index
    %c1_139 = arith.constant 1 : index
    %c0_140 = arith.constant 0 : index
    %c0_141 = arith.constant 0 : index
    %80 = vector.load %arg1[%c0_136, %c1_137, %c0_138, %c1_139, %c0_140, %c0_141] : memref<1x2x2x9x9x4xf32, #tpu.memory_space<vmem>>, vector<1x1x1x1x8x4xf32>
    %81 = vector.shape_cast %80 : vector<1x1x1x1x8x4xf32> to vector<8x4xf32>
    %c1_142 = arith.constant 1 : index
    %c0_143 = arith.constant 0 : index
    %c0_144 = arith.constant 0 : index
    %c0_145 = arith.constant 0 : index
    %82 = vector.load %arg2[%c1_142, %c0_143, %c0_144, %c0_145] : memref<3x3x4x4xf32, #tpu.memory_space<vmem>>, vector<1x1x4x4xf32>
    %83 = vector.shape_cast %82 : vector<1x1x4x4xf32> to vector<4x4xf32>
    %cst_146 = arith.constant dense<0.000000e+00> : vector<8x4xf32>
    %84 = tpu.matmul %81, %83, %cst_146 {dimension_numbers = #tpu.dot_dimension_numbers<[1], [0], [0], [1], [0, 0, 1, 1], [], []>} : vector<8x4xf32>, vector<4x4xf32>, vector<8x4xf32> -> vector<8x4xf32>
    %85 = arith.addf %79, %84 : vector<8x4xf32>
    %c0_147 = arith.constant 0 : index
    %c1_148 = arith.constant 1 : index
    %c1_149 = arith.constant 1 : index
    %c1_150 = arith.constant 1 : index
    %c0_151 = arith.constant 0 : index
    %c0_152 = arith.constant 0 : index
    %86 = vector.load %arg1[%c0_147, %c1_148, %c1_149, %c1_150, %c0_151, %c0_152] : memref<1x2x2x9x9x4xf32, #tpu.memory_space<vmem>>, vector<1x1x1x1x8x4xf32>
    %87 = vector.shape_cast %86 : vector<1x1x1x1x8x4xf32> to vector<8x4xf32>
    %c1_153 = arith.constant 1 : index
    %c1_154 = arith.constant 1 : index
    %c0_155 = arith.constant 0 : index
    %c0_156 = arith.constant 0 : index
    %88 = vector.load %arg2[%c1_153, %c1_154, %c0_155, %c0_156] : memref<3x3x4x4xf32, #tpu.memory_space<vmem>>, vector<1x1x4x4xf32>
    %89 = vector.shape_cast %88 : vector<1x1x4x4xf32> to vector<4x4xf32>
    %cst_157 = arith.constant dense<0.000000e+00> : vector<8x4xf32>
    %90 = tpu.matmul %87, %89, %cst_157 {dimension_numbers = #tpu.dot_dimension_numbers<[1], [0], [0], [1], [0, 0, 1, 1], [], []>} : vector<8x4xf32>, vector<4x4xf32>, vector<8x4xf32> -> vector<8x4xf32>
    %91 = arith.addf %85, %90 : vector<8x4xf32>
    %c0_158 = arith.constant 0 : index
    %c1_159 = arith.constant 1 : index
    %c0_160 = arith.constant 0 : index
    %c1_161 = arith.constant 1 : index
    %c1_162 = arith.constant 1 : index
    %c0_163 = arith.constant 0 : index
    %92 = vector.load %arg1[%c0_158, %c1_159, %c0_160, %c1_161, %c1_162, %c0_163] : memref<1x2x2x9x9x4xf32, #tpu.memory_space<vmem>>, vector<1x1x1x1x8x4xf32>
    %93 = vector.shape_cast %92 : vector<1x1x1x1x8x4xf32> to vector<8x4xf32>
    %c1_164 = arith.constant 1 : index
    %c2_165 = arith.constant 2 : index
    %c0_166 = arith.constant 0 : index
    %c0_167 = arith.constant 0 : index
    %94 = vector.load %arg2[%c1_164, %c2_165, %c0_166, %c0_167] : memref<3x3x4x4xf32, #tpu.memory_space<vmem>>, vector<1x1x4x4xf32>
    %95 = vector.shape_cast %94 : vector<1x1x4x4xf32> to vector<4x4xf32>
    %cst_168 = arith.constant dense<0.000000e+00> : vector<8x4xf32>
    %96 = tpu.matmul %93, %95, %cst_168 {dimension_numbers = #tpu.dot_dimension_numbers<[1], [0], [0], [1], [0, 0, 1, 1], [], []>} : vector<8x4xf32>, vector<4x4xf32>, vector<8x4xf32> -> vector<8x4xf32>
    %97 = arith.addf %91, %96 : vector<8x4xf32>
    %c0_169 = arith.constant 0 : index
    %c0_170 = arith.constant 0 : index
    %c0_171 = arith.constant 0 : index
    %c2_172 = arith.constant 2 : index
    %c0_173 = arith.constant 0 : index
    %c0_174 = arith.constant 0 : index
    %98 = vector.load %arg1[%c0_169, %c0_170, %c0_171, %c2_172, %c0_173, %c0_174] : memref<1x2x2x9x9x4xf32, #tpu.memory_space<vmem>>, vector<1x1x1x1x8x4xf32>
    %99 = vector.shape_cast %98 : vector<1x1x1x1x8x4xf32> to vector<8x4xf32>
    %c2_175 = arith.constant 2 : index
    %c0_176 = arith.constant 0 : index
    %c0_177 = arith.constant 0 : index
    %c0_178 = arith.constant 0 : index
    %100 = vector.load %arg2[%c2_175, %c0_176, %c0_177, %c0_178] : memref<3x3x4x4xf32, #tpu.memory_space<vmem>>, vector<1x1x4x4xf32>
    %101 = vector.shape_cast %100 : vector<1x1x4x4xf32> to vector<4x4xf32>
    %cst_179 = arith.constant dense<0.000000e+00> : vector<8x4xf32>
    %102 = tpu.matmul %99, %101, %cst_179 {dimension_numbers = #tpu.dot_dimension_numbers<[1], [0], [0], [1], [0, 0, 1, 1], [], []>} : vector<8x4xf32>, vector<4x4xf32>, vector<8x4xf32> -> vector<8x4xf32>
    %103 = arith.addf %97, %102 : vector<8x4xf32>
    %c0_180 = arith.constant 0 : index
    %c0_181 = arith.constant 0 : index
    %c1_182 = arith.constant 1 : index
    %c2_183 = arith.constant 2 : index
    %c0_184 = arith.constant 0 : index
    %c0_185 = arith.constant 0 : index
    %104 = vector.load %arg1[%c0_180, %c0_181, %c1_182, %c2_183, %c0_184, %c0_185] : memref<1x2x2x9x9x4xf32, #tpu.memory_space<vmem>>, vector<1x1x1x1x8x4xf32>
    %105 = vector.shape_cast %104 : vector<1x1x1x1x8x4xf32> to vector<8x4xf32>
    %c2_186 = arith.constant 2 : index
    %c1_187 = arith.constant 1 : index
    %c0_188 = arith.constant 0 : index
    %c0_189 = arith.constant 0 : index
    %106 = vector.load %arg2[%c2_186, %c1_187, %c0_188, %c0_189] : memref<3x3x4x4xf32, #tpu.memory_space<vmem>>, vector<1x1x4x4xf32>
    %107 = vector.shape_cast %106 : vector<1x1x4x4xf32> to vector<4x4xf32>
    %cst_190 = arith.constant dense<0.000000e+00> : vector<8x4xf32>
    %108 = tpu.matmul %105, %107, %cst_190 {dimension_numbers = #tpu.dot_dimension_numbers<[1], [0], [0], [1], [0, 0, 1, 1], [], []>} : vector<8x4xf32>, vector<4x4xf32>, vector<8x4xf32> -> vector<8x4xf32>
    %109 = arith.addf %103, %108 : vector<8x4xf32>
    %c0_191 = arith.constant 0 : index
    %c0_192 = arith.constant 0 : index
    %c0_193 = arith.constant 0 : index
    %c2_194 = arith.constant 2 : index
    %c1_195 = arith.constant 1 : index
    %c0_196 = arith.constant 0 : index
    %110 = vector.load %arg1[%c0_191, %c0_192, %c0_193, %c2_194, %c1_195, %c0_196] : memref<1x2x2x9x9x4xf32, #tpu.memory_space<vmem>>, vector<1x1x1x1x8x4xf32>
    %111 = vector.shape_cast %110 : vector<1x1x1x1x8x4xf32> to vector<8x4xf32>
    %c2_197 = arith.constant 2 : index
    %c2_198 = arith.constant 2 : index
    %c0_199 = arith.constant 0 : index
    %c0_200 = arith.constant 0 : index
    %112 = vector.load %arg2[%c2_197, %c2_198, %c0_199, %c0_200] : memref<3x3x4x4xf32, #tpu.memory_space<vmem>>, vector<1x1x4x4xf32>
    %113 = vector.shape_cast %112 : vector<1x1x4x4xf32> to vector<4x4xf32>
    %cst_201 = arith.constant dense<0.000000e+00> : vector<8x4xf32>
    %114 = tpu.matmul %111, %113, %cst_201 {dimension_numbers = #tpu.dot_dimension_numbers<[1], [0], [0], [1], [0, 0, 1, 1], [], []>} : vector<8x4xf32>, vector<4x4xf32>, vector<8x4xf32> -> vector<8x4xf32>
    %115 = arith.addf %109, %114 : vector<8x4xf32>
    %116 = vector.broadcast %0 : vector<1x4xf32> to vector<8x4xf32>
    %117 = arith.addf %115, %116 : vector<8x4xf32>
    %c0_202 = arith.constant 0 : index
    %c1_203 = arith.constant 1 : index
    %c0_204 = arith.constant 0 : index
    %c0_205 = arith.constant 0 : index
    %118 = vector.load %arg4[%c0_202, %c1_203, %c0_204, %c0_205] : memref<1x8x8x4xf32, #tpu.memory_space<vmem>>, vector<1x1x8x4xf32>
    %119 = vector.shape_cast %118 : vector<1x1x8x4xf32> to vector<8x4xf32>
    %120 = vector.shape_cast %117 : vector<8x4xf32> to vector<1x1x8x4xf32>
    tpu.vector_store %arg4[%c0_202, %c1_203, %c0_204, %c0_205], %120 {strides = array<i32>} : memref<1x8x8x4xf32, #tpu.memory_space<vmem>>, vector<1x1x8x4xf32>,
    %cst_206 = arith.constant 0.000000e+00 : f32
    %121 = vector.broadcast %cst_206 : f32 to vector<8x4xf32>
    %c0_207 = arith.constant 0 : index
    %c0_208 = arith.constant 0 : index
    %c0_209 = arith.constant 0 : index
    %c2_210 = arith.constant 2 : index
    %c0_211 = arith.constant 0 : index
    %c0_212 = arith.constant 0 : index
    %122 = vector.load %arg1[%c0_207, %c0_208, %c0_209, %c2_210, %c0_211, %c0_212] : memref<1x2x2x9x9x4xf32, #tpu.memory_space<vmem>>, vector<1x1x1x1x8x4xf32>
    %123 = vector.shape_cast %122 : vector<1x1x1x1x8x4xf32> to vector<8x4xf32>
    %c0_213 = arith.constant 0 : index
    %c0_214 = arith.constant 0 : index
    %c0_215 = arith.constant 0 : index
    %c0_216 = arith.constant 0 : index
    %124 = vector.load %arg2[%c0_213, %c0_214, %c0_215, %c0_216] : memref<3x3x4x4xf32, #tpu.memory_space<vmem>>, vector<1x1x4x4xf32>
    %125 = vector.shape_cast %124 : vector<1x1x4x4xf32> to vector<4x4xf32>
    %cst_217 = arith.constant dense<0.000000e+00> : vector<8x4xf32>
    %126 = tpu.matmul %123, %125, %cst_217 {dimension_numbers = #tpu.dot_dimension_numbers<[1], [0], [0], [1], [0, 0, 1, 1], [], []>} : vector<8x4xf32>, vector<4x4xf32>, vector<8x4xf32> -> vector<8x4xf32>
    %127 = arith.addf %121, %126 : vector<8x4xf32>
    %c0_218 = arith.constant 0 : index
    %c0_219 = arith.constant 0 : index
    %c1_220 = arith.constant 1 : index
    %c2_221 = arith.constant 2 : index
    %c0_222 = arith.constant 0 : index
    %c0_223 = arith.constant 0 : index
    %128 = vector.load %arg1[%c0_218, %c0_219, %c1_220, %c2_221, %c0_222, %c0_223] : memref<1x2x2x9x9x4xf32, #tpu.memory_space<vmem>>, vector<1x1x1x1x8x4xf32>
    %129 = vector.shape_cast %128 : vector<1x1x1x1x8x4xf32> to vector<8x4xf32>
    %c0_224 = arith.constant 0 : index
    %c1_225 = arith.constant 1 : index
    %c0_226 = arith.constant 0 : index
    %c0_227 = arith.constant 0 : index
    %130 = vector.load %arg2[%c0_224, %c1_225, %c0_226, %c0_227] : memref<3x3x4x4xf32, #tpu.memory_space<vmem>>, vector<1x1x4x4xf32>
    %131 = vector.shape_cast %130 : vector<1x1x4x4xf32> to vector<4x4xf32>
    %cst_228 = arith.constant dense<0.000000e+00> : vector<8x4xf32>
    %132 = tpu.matmul %129, %131, %cst_228 {dimension_numbers = #tpu.dot_dimension_numbers<[1], [0], [0], [1], [0, 0, 1, 1], [], []>} : vector<8x4xf32>, vector<4x4xf32>, vector<8x4xf32> -> vector<8x4xf32>
    %133 = arith.addf %127, %132 : vector<8x4xf32>
    %c0_229 = arith.constant 0 : index
    %c0_230 = arith.constant 0 : index
    %c0_231 = arith.constant 0 : index
    %c2_232 = arith.constant 2 : index
    %c1_233 = arith.constant 1 : index
    %c0_234 = arith.constant 0 : index
    %134 = vector.load %arg1[%c0_229, %c0_230, %c0_231, %c2_232, %c1_233, %c0_234] : memref<1x2x2x9x9x4xf32, #tpu.memory_space<vmem>>, vector<1x1x1x1x8x4xf32>
    %135 = vector.shape_cast %134 : vector<1x1x1x1x8x4xf32> to vector<8x4xf32>
    %c0_235 = arith.constant 0 : index
    %c2_236 = arith.constant 2 : index
    %c0_237 = arith.constant 0 : index
    %c0_238 = arith.constant 0 : index
    %136 = vector.load %arg2[%c0_235, %c2_236, %c0_237, %c0_238] : memref<3x3x4x4xf32, #tpu.memory_space<vmem>>, vector<1x1x4x4xf32>
    %137 = vector.shape_cast %136 : vector<1x1x4x4xf32> to vector<4x4xf32>
    %cst_239 = arith.constant dense<0.000000e+00> : vector<8x4xf32>
    %138 = tpu.matmul %135, %137, %cst_239 {dimension_numbers = #tpu.dot_dimension_numbers<[1], [0], [0], [1], [0, 0, 1, 1], [], []>} : vector<8x4xf32>, vector<4x4xf32>, vector<8x4xf32> -> vector<8x4xf32>
    %139 = arith.addf %133, %138 : vector<8x4xf32>
    %c0_240 = arith.constant 0 : index
    %c1_241 = arith.constant 1 : index
    %c0_242 = arith.constant 0 : index
    %c2_243 = arith.constant 2 : index
    %c0_244 = arith.constant 0 : index
    %c0_245 = arith.constant 0 : index
    %140 = vector.load %arg1[%c0_240, %c1_241, %c0_242, %c2_243, %c0_244, %c0_245] : memref<1x2x2x9x9x4xf32, #tpu.memory_space<vmem>>, vector<1x1x1x1x8x4xf32>
    %141 = vector.shape_cast %140 : vector<1x1x1x1x8x4xf32> to vector<8x4xf32>
    %c1_246 = arith.constant 1 : index
    %c0_247 = arith.constant 0 : index
    %c0_248 = arith.constant 0 : index
    %c0_249 = arith.constant 0 : index
    %142 = vector.load %arg2[%c1_246, %c0_247, %c0_248, %c0_249] : memref<3x3x4x4xf32, #tpu.memory_space<vmem>>, vector<1x1x4x4xf32>
    %143 = vector.shape_cast %142 : vector<1x1x4x4xf32> to vector<4x4xf32>
    %cst_250 = arith.constant dense<0.000000e+00> : vector<8x4xf32>
    %144 = tpu.matmul %141, %143, %cst_250 {dimension_numbers = #tpu.dot_dimension_numbers<[1], [0], [0], [1], [0, 0, 1, 1], [], []>} : vector<8x4xf32>, vector<4x4xf32>, vector<8x4xf32> -> vector<8x4xf32>
    %145 = arith.addf %139, %144 : vector<8x4xf32>
    %c0_251 = arith.constant 0 : index
    %c1_252 = arith.constant 1 : index
    %c1_253 = arith.constant 1 : index
    %c2_254 = arith.constant 2 : index
    %c0_255 = arith.constant 0 : index
    %c0_256 = arith.constant 0 : index
    %146 = vector.load %arg1[%c0_251, %c1_252, %c1_253, %c2_254, %c0_255, %c0_256] : memref<1x2x2x9x9x4xf32, #tpu.memory_space<vmem>>, vector<1x1x1x1x8x4xf32>
    %147 = vector.shape_cast %146 : vector<1x1x1x1x8x4xf32> to vector<8x4xf32>
    %c1_257 = arith.constant 1 : index
    %c1_258 = arith.constant 1 : index
    %c0_259 = arith.constant 0 : index
    %c0_260 = arith.constant 0 : index
    %148 = vector.load %arg2[%c1_257, %c1_258, %c0_259, %c0_260] : memref<3x3x4x4xf32, #tpu.memory_space<vmem>>, vector<1x1x4x4xf32>
    %149 = vector.shape_cast %148 : vector<1x1x4x4xf32> to vector<4x4xf32>
    %cst_261 = arith.constant dense<0.000000e+00> : vector<8x4xf32>
    %150 = tpu.matmul %147, %149, %cst_261 {dimension_numbers = #tpu.dot_dimension_numbers<[1], [0], [0], [1], [0, 0, 1, 1], [], []>} : vector<8x4xf32>, vector<4x4xf32>, vector<8x4xf32> -> vector<8x4xf32>
    %151 = arith.addf %145, %150 : vector<8x4xf32>
    %c0_262 = arith.constant 0 : index
    %c1_263 = arith.constant 1 : index
    %c0_264 = arith.constant 0 : index
    %c2_265 = arith.constant 2 : index
    %c1_266 = arith.constant 1 : index
    %c0_267 = arith.constant 0 : index
    %152 = vector.load %arg1[%c0_262, %c1_263, %c0_264, %c2_265, %c1_266, %c0_267] : memref<1x2x2x9x9x4xf32, #tpu.memory_space<vmem>>, vector<1x1x1x1x8x4xf32>
    %153 = vector.shape_cast %152 : vector<1x1x1x1x8x4xf32> to vector<8x4xf32>
    %c1_268 = arith.constant 1 : index
    %c2_269 = arith.constant 2 : index
    %c0_270 = arith.constant 0 : index
    %c0_271 = arith.constant 0 : index
    %154 = vector.load %arg2[%c1_268, %c2_269, %c0_270, %c0_271] : memref<3x3x4x4xf32, #tpu.memory_space<vmem>>, vector<1x1x4x4xf32>
    %155 = vector.shape_cast %154 : vector<1x1x4x4xf32> to vector<4x4xf32>
    %cst_272 = arith.constant dense<0.000000e+00> : vector<8x4xf32>
    %156 = tpu.matmul %153, %155, %cst_272 {dimension_numbers = #tpu.dot_dimension_numbers<[1], [0], [0], [1], [0, 0, 1, 1], [], []>} : vector<8x4xf32>, vector<4x4xf32>, vector<8x4xf32> -> vector<8x4xf32>
    %157 = arith.addf %151, %156 : vector<8x4xf32>
    %c0_273 = arith.constant 0 : index
    %c0_274 = arith.constant 0 : index
    %c0_275 = arith.constant 0 : index
    %c3 = arith.constant 3 : index
    %c0_276 = arith.constant 0 : index
    %c0_277 = arith.constant 0 : index
    %158 = vector.load %arg1[%c0_273, %c0_274, %c0_275, %c3, %c0_276, %c0_277] : memref<1x2x2x9x9x4xf32, #tpu.memory_space<vmem>>, vector<1x1x1x1x8x4xf32>
    %159 = vector.shape_cast %158 : vector<1x1x1x1x8x4xf32> to vector<8x4xf32>
    %c2_278 = arith.constant 2 : index
    %c0_279 = arith.constant 0 : index
    %c0_280 = arith.constant 0 : index
    %c0_281 = arith.constant 0 : index
    %160 = vector.load %arg2[%c2_278, %c0_279, %c0_280, %c0_281] : memref<3x3x4x4xf32, #tpu.memory_space<vmem>>, vector<1x1x4x4xf32>
    %161 = vector.shape_cast %160 : vector<1x1x4x4xf32> to vector<4x4xf32>
    %cst_282 = arith.constant dense<0.000000e+00> : vector<8x4xf32>
    %162 = tpu.matmul %159, %161, %cst_282 {dimension_numbers = #tpu.dot_dimension_numbers<[1], [0], [0], [1], [0, 0, 1, 1], [], []>} : vector<8x4xf32>, vector<4x4xf32>, vector<8x4xf32> -> vector<8x4xf32>
    %163 = arith.addf %157, %162 : vector<8x4xf32>
    %c0_283 = arith.constant 0 : index
    %c0_284 = arith.constant 0 : index
    %c1_285 = arith.constant 1 : index
    %c3_286 = arith.constant 3 : index
    %c0_287 = arith.constant 0 : index
    %c0_288 = arith.constant 0 : index
    %164 = vector.load %arg1[%c0_283, %c0_284, %c1_285, %c3_286, %c0_287, %c0_288] : memref<1x2x2x9x9x4xf32, #tpu.memory_space<vmem>>, vector<1x1x1x1x8x4xf32>
    %165 = vector.shape_cast %164 : vector<1x1x1x1x8x4xf32> to vector<8x4xf32>
    %c2_289 = arith.constant 2 : index
    %c1_290 = arith.constant 1 : index
    %c0_291 = arith.constant 0 : index
    %c0_292 = arith.constant 0 : index
    %166 = vector.load %arg2[%c2_289, %c1_290, %c0_291, %c0_292] : memref<3x3x4x4xf32, #tpu.memory_space<vmem>>, vector<1x1x4x4xf32>
    %167 = vector.shape_cast %166 : vector<1x1x4x4xf32> to vector<4x4xf32>
    %cst_293 = arith.constant dense<0.000000e+00> : vector<8x4xf32>
    %168 = tpu.matmul %165, %167, %cst_293 {dimension_numbers = #tpu.dot_dimension_numbers<[1], [0], [0], [1], [0, 0, 1, 1], [], []>} : vector<8x4xf32>, vector<4x4xf32>, vector<8x4xf32> -> vector<8x4xf32>
    %169 = arith.addf %163, %168 : vector<8x4xf32>
    %c0_294 = arith.constant 0 : index
    %c0_295 = arith.constant 0 : index
    %c0_296 = arith.constant 0 : index
    %c3_297 = arith.constant 3 : index
    %c1_298 = arith.constant 1 : index
    %c0_299 = arith.constant 0 : index
    %170 = vector.load %arg1[%c0_294, %c0_295, %c0_296, %c3_297, %c1_298, %c0_299] : memref<1x2x2x9x9x4xf32, #tpu.memory_space<vmem>>, vector<1x1x1x1x8x4xf32>
    %171 = vector.shape_cast %170 : vector<1x1x1x1x8x4xf32> to vector<8x4xf32>
    %c2_300 = arith.constant 2 : index
    %c2_301 = arith.constant 2 : index
    %c0_302 = arith.constant 0 : index
    %c0_303 = arith.constant 0 : index
    %172 = vector.load %arg2[%c2_300, %c2_301, %c0_302, %c0_303] : memref<3x3x4x4xf32, #tpu.memory_space<vmem>>, vector<1x1x4x4xf32>
    %173 = vector.shape_cast %172 : vector<1x1x4x4xf32> to vector<4x4xf32>
    %cst_304 = arith.constant dense<0.000000e+00> : vector<8x4xf32>
    %174 = tpu.matmul %171, %173, %cst_304 {dimension_numbers = #tpu.dot_dimension_numbers<[1], [0], [0], [1], [0, 0, 1, 1], [], []>} : vector<8x4xf32>, vector<4x4xf32>, vector<8x4xf32> -> vector<8x4xf32>
    %175 = arith.addf %169, %174 : vector<8x4xf32>
    %176 = vector.broadcast %0 : vector<1x4xf32> to vector<8x4xf32>
    %177 = arith.addf %175, %176 : vector<8x4xf32>
    %c0_305 = arith.constant 0 : index
    %c2_306 = arith.constant 2 : index
    %c0_307 = arith.constant 0 : index
    %c0_308 = arith.constant 0 : index
    %178 = vector.load %arg4[%c0_305, %c2_306, %c0_307, %c0_308] : memref<1x8x8x4xf32, #tpu.memory_space<vmem>>, vector<1x1x8x4xf32>
    %179 = vector.shape_cast %178 : vector<1x1x8x4xf32> to vector<8x4xf32>
    %180 = vector.shape_cast %177 : vector<8x4xf32> to vector<1x1x8x4xf32>
    tpu.vector_store %arg4[%c0_305, %c2_306, %c0_307, %c0_308], %180 {strides = array<i32>} : memref<1x8x8x4xf32, #tpu.memory_space<vmem>>, vector<1x1x8x4xf32>,
    %cst_309 = arith.constant 0.000000e+00 : f32
    %181 = vector.broadcast %cst_309 : f32 to vector<8x4xf32>
    %c0_310 = arith.constant 0 : index
    %c0_311 = arith.constant 0 : index
    %c0_312 = arith.constant 0 : index
    %c3_313 = arith.constant 3 : index
    %c0_314 = arith.constant 0 : index
    %c0_315 = arith.constant 0 : index
    %182 = vector.load %arg1[%c0_310, %c0_311, %c0_312, %c3_313, %c0_314, %c0_315] : memref<1x2x2x9x9x4xf32, #tpu.memory_space<vmem>>, vector<1x1x1x1x8x4xf32>
    %183 = vector.shape_cast %182 : vector<1x1x1x1x8x4xf32> to vector<8x4xf32>
    %c0_316 = arith.constant 0 : index
    %c0_317 = arith.constant 0 : index
    %c0_318 = arith.constant 0 : index
    %c0_319 = arith.constant 0 : index
    %184 = vector.load %arg2[%c0_316, %c0_317, %c0_318, %c0_319] : memref<3x3x4x4xf32, #tpu.memory_space<vmem>>, vector<1x1x4x4xf32>
    %185 = vector.shape_cast %184 : vector<1x1x4x4xf32> to vector<4x4xf32>
    %cst_320 = arith.constant dense<0.000000e+00> : vector<8x4xf32>
    %186 = tpu.matmul %183, %185, %cst_320 {dimension_numbers = #tpu.dot_dimension_numbers<[1], [0], [0], [1], [0, 0, 1, 1], [], []>} : vector<8x4xf32>, vector<4x4xf32>, vector<8x4xf32> -> vector<8x4xf32>
    %187 = arith.addf %181, %186 : vector<8x4xf32>
    %c0_321 = arith.constant 0 : index
    %c0_322 = arith.constant 0 : index
    %c1_323 = arith.constant 1 : index
    %c3_324 = arith.constant 3 : index
    %c0_325 = arith.constant 0 : index
    %c0_326 = arith.constant 0 : index
    %188 = vector.load %arg1[%c0_321, %c0_322, %c1_323, %c3_324, %c0_325, %c0_326] : memref<1x2x2x9x9x4xf32, #tpu.memory_space<vmem>>, vector<1x1x1x1x8x4xf32>
    %189 = vector.shape_cast %188 : vector<1x1x1x1x8x4xf32> to vector<8x4xf32>
    %c0_327 = arith.constant 0 : index
    %c1_328 = arith.constant 1 : index
    %c0_329 = arith.constant 0 : index
    %c0_330 = arith.constant 0 : index
    %190 = vector.load %arg2[%c0_327, %c1_328, %c0_329, %c0_330] : memref<3x3x4x4xf32, #tpu.memory_space<vmem>>, vector<1x1x4x4xf32>
    %191 = vector.shape_cast %190 : vector<1x1x4x4xf32> to vector<4x4xf32>
    %cst_331 = arith.constant dense<0.000000e+00> : vector<8x4xf32>
    %192 = tpu.matmul %189, %191, %cst_331 {dimension_numbers = #tpu.dot_dimension_numbers<[1], [0], [0], [1], [0, 0, 1, 1], [], []>} : vector<8x4xf32>, vector<4x4xf32>, vector<8x4xf32> -> vector<8x4xf32>
    %193 = arith.addf %187, %192 : vector<8x4xf32>
    %c0_332 = arith.constant 0 : index
    %c0_333 = arith.constant 0 : index
    %c0_334 = arith.constant 0 : index
    %c3_335 = arith.constant 3 : index
    %c1_336 = arith.constant 1 : index
    %c0_337 = arith.constant 0 : index
    %194 = vector.load %arg1[%c0_332, %c0_333, %c0_334, %c3_335, %c1_336, %c0_337] : memref<1x2x2x9x9x4xf32, #tpu.memory_space<vmem>>, vector<1x1x1x1x8x4xf32>
    %195 = vector.shape_cast %194 : vector<1x1x1x1x8x4xf32> to vector<8x4xf32>
    %c0_338 = arith.constant 0 : index
    %c2_339 = arith.constant 2 : index
    %c0_340 = arith.constant 0 : index
    %c0_341 = arith.constant 0 : index
    %196 = vector.load %arg2[%c0_338, %c2_339, %c0_340, %c0_341] : memref<3x3x4x4xf32, #tpu.memory_space<vmem>>, vector<1x1x4x4xf32>
    %197 = vector.shape_cast %196 : vector<1x1x4x4xf32> to vector<4x4xf32>
    %cst_342 = arith.constant dense<0.000000e+00> : vector<8x4xf32>
    %198 = tpu.matmul %195, %197, %cst_342 {dimension_numbers = #tpu.dot_dimension_numbers<[1], [0], [0], [1], [0, 0, 1, 1], [], []>} : vector<8x4xf32>, vector<4x4xf32>, vector<8x4xf32> -> vector<8x4xf32>
    %199 = arith.addf %193, %198 : vector<8x4xf32>
    %c0_343 = arith.constant 0 : index
    %c1_344 = arith.constant 1 : index
    %c0_345 = arith.constant 0 : index
    %c3_346 = arith.constant 3 : index
    %c0_347 = arith.constant 0 : index
    %c0_348 = arith.constant 0 : index
    %200 = vector.load %arg1[%c0_343, %c1_344, %c0_345, %c3_346, %c0_347, %c0_348] : memref<1x2x2x9x9x4xf32, #tpu.memory_space<vmem>>, vector<1x1x1x1x8x4xf32>
    %201 = vector.shape_cast %200 : vector<1x1x1x1x8x4xf32> to vector<8x4xf32>
    %c1_349 = arith.constant 1 : index
    %c0_350 = arith.constant 0 : index
    %c0_351 = arith.constant 0 : index
    %c0_352 = arith.constant 0 : index
    %202 = vector.load %arg2[%c1_349, %c0_350, %c0_351, %c0_352] : memref<3x3x4x4xf32, #tpu.memory_space<vmem>>, vector<1x1x4x4xf32>
    %203 = vector.shape_cast %202 : vector<1x1x4x4xf32> to vector<4x4xf32>
    %cst_353 = arith.constant dense<0.000000e+00> : vector<8x4xf32>
    %204 = tpu.matmul %201, %203, %cst_353 {dimension_numbers = #tpu.dot_dimension_numbers<[1], [0], [0], [1], [0, 0, 1, 1], [], []>} : vector<8x4xf32>, vector<4x4xf32>, vector<8x4xf32> -> vector<8x4xf32>
    %205 = arith.addf %199, %204 : vector<8x4xf32>
    %c0_354 = arith.constant 0 : index
    %c1_355 = arith.constant 1 : index
    %c1_356 = arith.constant 1 : index
    %c3_357 = arith.constant 3 : index
    %c0_358 = arith.constant 0 : index
    %c0_359 = arith.constant 0 : index
    %206 = vector.load %arg1[%c0_354, %c1_355, %c1_356, %c3_357, %c0_358, %c0_359] : memref<1x2x2x9x9x4xf32, #tpu.memory_space<vmem>>, vector<1x1x1x1x8x4xf32>
    %207 = vector.shape_cast %206 : vector<1x1x1x1x8x4xf32> to vector<8x4xf32>
    %c1_360 = arith.constant 1 : index
    %c1_361 = arith.constant 1 : index
    %c0_362 = arith.constant 0 : index
    %c0_363 = arith.constant 0 : index
    %208 = vector.load %arg2[%c1_360, %c1_361, %c0_362, %c0_363] : memref<3x3x4x4xf32, #tpu.memory_space<vmem>>, vector<1x1x4x4xf32>
    %209 = vector.shape_cast %208 : vector<1x1x4x4xf32> to vector<4x4xf32>
    %cst_364 = arith.constant dense<0.000000e+00> : vector<8x4xf32>
    %210 = tpu.matmul %207, %209, %cst_364 {dimension_numbers = #tpu.dot_dimension_numbers<[1], [0], [0], [1], [0, 0, 1, 1], [], []>} : vector<8x4xf32>, vector<4x4xf32>, vector<8x4xf32> -> vector<8x4xf32>
    %211 = arith.addf %205, %210 : vector<8x4xf32>
    %c0_365 = arith.constant 0 : index
    %c1_366 = arith.constant 1 : index
    %c0_367 = arith.constant 0 : index
    %c3_368 = arith.constant 3 : index
    %c1_369 = arith.constant 1 : index
    %c0_370 = arith.constant 0 : index
    %212 = vector.load %arg1[%c0_365, %c1_366, %c0_367, %c3_368, %c1_369, %c0_370] : memref<1x2x2x9x9x4xf32, #tpu.memory_space<vmem>>, vector<1x1x1x1x8x4xf32>
    %213 = vector.shape_cast %212 : vector<1x1x1x1x8x4xf32> to vector<8x4xf32>
    %c1_371 = arith.constant 1 : index
    %c2_372 = arith.constant 2 : index
    %c0_373 = arith.constant 0 : index
    %c0_374 = arith.constant 0 : index
    %214 = vector.load %arg2[%c1_371, %c2_372, %c0_373, %c0_374] : memref<3x3x4x4xf32, #tpu.memory_space<vmem>>, vector<1x1x4x4xf32>
    %215 = vector.shape_cast %214 : vector<1x1x4x4xf32> to vector<4x4xf32>
    %cst_375 = arith.constant dense<0.000000e+00> : vector<8x4xf32>
    %216 = tpu.matmul %213, %215, %cst_375 {dimension_numbers = #tpu.dot_dimension_numbers<[1], [0], [0], [1], [0, 0, 1, 1], [], []>} : vector<8x4xf32>, vector<4x4xf32>, vector<8x4xf32> -> vector<8x4xf32>
    %217 = arith.addf %211, %216 : vector<8x4xf32>
    %c0_376 = arith.constant 0 : index
    %c0_377 = arith.constant 0 : index
    %c0_378 = arith.constant 0 : index
    %c4 = arith.constant 4 : index
    %c0_379 = arith.constant 0 : index
    %c0_380 = arith.constant 0 : index
    %218 = vector.load %arg1[%c0_376, %c0_377, %c0_378, %c4, %c0_379, %c0_380] : memref<1x2x2x9x9x4xf32, #tpu.memory_space<vmem>>, vector<1x1x1x1x8x4xf32>
    %219 = vector.shape_cast %218 : vector<1x1x1x1x8x4xf32> to vector<8x4xf32>
    %c2_381 = arith.constant 2 : index
    %c0_382 = arith.constant 0 : index
    %c0_383 = arith.constant 0 : index
    %c0_384 = arith.constant 0 : index
    %220 = vector.load %arg2[%c2_381, %c0_382, %c0_383, %c0_384] : memref<3x3x4x4xf32, #tpu.memory_space<vmem>>, vector<1x1x4x4xf32>
    %221 = vector.shape_cast %220 : vector<1x1x4x4xf32> to vector<4x4xf32>
    %cst_385 = arith.constant dense<0.000000e+00> : vector<8x4xf32>
    %222 = tpu.matmul %219, %221, %cst_385 {dimension_numbers = #tpu.dot_dimension_numbers<[1], [0], [0], [1], [0, 0, 1, 1], [], []>} : vector<8x4xf32>, vector<4x4xf32>, vector<8x4xf32> -> vector<8x4xf32>
    %223 = arith.addf %217, %222 : vector<8x4xf32>
    %c0_386 = arith.constant 0 : index
    %c0_387 = arith.constant 0 : index
    %c1_388 = arith.constant 1 : index
    %c4_389 = arith.constant 4 : index
    %c0_390 = arith.constant 0 : index
    %c0_391 = arith.constant 0 : index
    %224 = vector.load %arg1[%c0_386, %c0_387, %c1_388, %c4_389, %c0_390, %c0_391] : memref<1x2x2x9x9x4xf32, #tpu.memory_space<vmem>>, vector<1x1x1x1x8x4xf32>
    %225 = vector.shape_cast %224 : vector<1x1x1x1x8x4xf32> to vector<8x4xf32>
    %c2_392 = arith.constant 2 : index
    %c1_393 = arith.constant 1 : index
    %c0_394 = arith.constant 0 : index
    %c0_395 = arith.constant 0 : index
    %226 = vector.load %arg2[%c2_392, %c1_393, %c0_394, %c0_395] : memref<3x3x4x4xf32, #tpu.memory_space<vmem>>, vector<1x1x4x4xf32>
    %227 = vector.shape_cast %226 : vector<1x1x4x4xf32> to vector<4x4xf32>
    %cst_396 = arith.constant dense<0.000000e+00> : vector<8x4xf32>
    %228 = tpu.matmul %225, %227, %cst_396 {dimension_numbers = #tpu.dot_dimension_numbers<[1], [0], [0], [1], [0, 0, 1, 1], [], []>} : vector<8x4xf32>, vector<4x4xf32>, vector<8x4xf32> -> vector<8x4xf32>
    %229 = arith.addf %223, %228 : vector<8x4xf32>
    %c0_397 = arith.constant 0 : index
    %c0_398 = arith.constant 0 : index
    %c0_399 = arith.constant 0 : index
    %c4_400 = arith.constant 4 : index
    %c1_401 = arith.constant 1 : index
    %c0_402 = arith.constant 0 : index
    %230 = vector.load %arg1[%c0_397, %c0_398, %c0_399, %c4_400, %c1_401, %c0_402] : memref<1x2x2x9x9x4xf32, #tpu.memory_space<vmem>>, vector<1x1x1x1x8x4xf32>
    %231 = vector.shape_cast %230 : vector<1x1x1x1x8x4xf32> to vector<8x4xf32>
    %c2_403 = arith.constant 2 : index
    %c2_404 = arith.constant 2 : index
    %c0_405 = arith.constant 0 : index
    %c0_406 = arith.constant 0 : index
    %232 = vector.load %arg2[%c2_403, %c2_404, %c0_405, %c0_406] : memref<3x3x4x4xf32, #tpu.memory_space<vmem>>, vector<1x1x4x4xf32>
    %233 = vector.shape_cast %232 : vector<1x1x4x4xf32> to vector<4x4xf32>
    %cst_407 = arith.constant dense<0.000000e+00> : vector<8x4xf32>
    %234 = tpu.matmul %231, %233, %cst_407 {dimension_numbers = #tpu.dot_dimension_numbers<[1], [0], [0], [1], [0, 0, 1, 1], [], []>} : vector<8x4xf32>, vector<4x4xf32>, vector<8x4xf32> -> vector<8x4xf32>
    %235 = arith.addf %229, %234 : vector<8x4xf32>
    %236 = vector.broadcast %0 : vector<1x4xf32> to vector<8x4xf32>
    %237 = arith.addf %235, %236 : vector<8x4xf32>
    %c0_408 = arith.constant 0 : index
    %c3_409 = arith.constant 3 : index
    %c0_410 = arith.constant 0 : index
    %c0_411 = arith.constant 0 : index
    %238 = vector.load %arg4[%c0_408, %c3_409, %c0_410, %c0_411] : memref<1x8x8x4xf32, #tpu.memory_space<vmem>>, vector<1x1x8x4xf32>
    %239 = vector.shape_cast %238 : vector<1x1x8x4xf32> to vector<8x4xf32>
    %240 = vector.shape_cast %237 : vector<8x4xf32> to vector<1x1x8x4xf32>
    tpu.vector_store %arg4[%c0_408, %c3_409, %c0_410, %c0_411], %240 {strides = array<i32>} : memref<1x8x8x4xf32, #tpu.memory_space<vmem>>, vector<1x1x8x4xf32>,
    %cst_412 = arith.constant 0.000000e+00 : f32
    %241 = vector.broadcast %cst_412 : f32 to vector<8x4xf32>
    %c0_413 = arith.constant 0 : index
    %c0_414 = arith.constant 0 : index
    %c0_415 = arith.constant 0 : index
    %c4_416 = arith.constant 4 : index
    %c0_417 = arith.constant 0 : index
    %c0_418 = arith.constant 0 : index
    %242 = vector.load %arg1[%c0_413, %c0_414, %c0_415, %c4_416, %c0_417, %c0_418] : memref<1x2x2x9x9x4xf32, #tpu.memory_space<vmem>>, vector<1x1x1x1x8x4xf32>
    %243 = vector.shape_cast %242 : vector<1x1x1x1x8x4xf32> to vector<8x4xf32>
    %c0_419 = arith.constant 0 : index
    %c0_420 = arith.constant 0 : index
    %c0_421 = arith.constant 0 : index
    %c0_422 = arith.constant 0 : index
    %244 = vector.load %arg2[%c0_419, %c0_420, %c0_421, %c0_422] : memref<3x3x4x4xf32, #tpu.memory_space<vmem>>, vector<1x1x4x4xf32>
    %245 = vector.shape_cast %244 : vector<1x1x4x4xf32> to vector<4x4xf32>
    %cst_423 = arith.constant dense<0.000000e+00> : vector<8x4xf32>
    %246 = tpu.matmul %243, %245, %cst_423 {dimension_numbers = #tpu.dot_dimension_numbers<[1], [0], [0], [1], [0, 0, 1, 1], [], []>} : vector<8x4xf32>, vector<4x4xf32>, vector<8x4xf32> -> vector<8x4xf32>
    %247 = arith.addf %241, %246 : vector<8x4xf32>
    %c0_424 = arith.constant 0 : index
    %c0_425 = arith.constant 0 : index
    %c1_426 = arith.constant 1 : index
    %c4_427 = arith.constant 4 : index
    %c0_428 = arith.constant 0 : index
    %c0_429 = arith.constant 0 : index
    %248 = vector.load %arg1[%c0_424, %c0_425, %c1_426, %c4_427, %c0_428, %c0_429] : memref<1x2x2x9x9x4xf32, #tpu.memory_space<vmem>>, vector<1x1x1x1x8x4xf32>
    %249 = vector.shape_cast %248 : vector<1x1x1x1x8x4xf32> to vector<8x4xf32>
    %c0_430 = arith.constant 0 : index
    %c1_431 = arith.constant 1 : index
    %c0_432 = arith.constant 0 : index
    %c0_433 = arith.constant 0 : index
    %250 = vector.load %arg2[%c0_430, %c1_431, %c0_432, %c0_433] : memref<3x3x4x4xf32, #tpu.memory_space<vmem>>, vector<1x1x4x4xf32>
    %251 = vector.shape_cast %250 : vector<1x1x4x4xf32> to vector<4x4xf32>
    %cst_434 = arith.constant dense<0.000000e+00> : vector<8x4xf32>
    %252 = tpu.matmul %249, %251, %cst_434 {dimension_numbers = #tpu.dot_dimension_numbers<[1], [0], [0], [1], [0, 0, 1, 1], [], []>} : vector<8x4xf32>, vector<4x4xf32>, vector<8x4xf32> -> vector<8x4xf32>
    %253 = arith.addf %247, %252 : vector<8x4xf32>
    %c0_435 = arith.constant 0 : index
    %c0_436 = arith.constant 0 : index
    %c0_437 = arith.constant 0 : index
    %c4_438 = arith.constant 4 : index
    %c1_439 = arith.constant 1 : index
    %c0_440 = arith.constant 0 : index
    %254 = vector.load %arg1[%c0_435, %c0_436, %c0_437, %c4_438, %c1_439, %c0_440] : memref<1x2x2x9x9x4xf32, #tpu.memory_space<vmem>>, vector<1x1x1x1x8x4xf32>
    %255 = vector.shape_cast %254 : vector<1x1x1x1x8x4xf32> to vector<8x4xf32>
    %c0_441 = arith.constant 0 : index
    %c2_442 = arith.constant 2 : index
    %c0_443 = arith.constant 0 : index
    %c0_444 = arith.constant 0 : index
    %256 = vector.load %arg2[%c0_441, %c2_442, %c0_443, %c0_444] : memref<3x3x4x4xf32, #tpu.memory_space<vmem>>, vector<1x1x4x4xf32>
    %257 = vector.shape_cast %256 : vector<1x1x4x4xf32> to vector<4x4xf32>
    %cst_445 = arith.constant dense<0.000000e+00> : vector<8x4xf32>
    %258 = tpu.matmul %255, %257, %cst_445 {dimension_numbers = #tpu.dot_dimension_numbers<[1], [0], [0], [1], [0, 0, 1, 1], [], []>} : vector<8x4xf32>, vector<4x4xf32>, vector<8x4xf32> -> vector<8x4xf32>
    %259 = arith.addf %253, %258 : vector<8x4xf32>
    %c0_446 = arith.constant 0 : index
    %c1_447 = arith.constant 1 : index
    %c0_448 = arith.constant 0 : index
    %c4_449 = arith.constant 4 : index
    %c0_450 = arith.constant 0 : index
    %c0_451 = arith.constant 0 : index
    %260 = vector.load %arg1[%c0_446, %c1_447, %c0_448, %c4_449, %c0_450, %c0_451] : memref<1x2x2x9x9x4xf32, #tpu.memory_space<vmem>>, vector<1x1x1x1x8x4xf32>
    %261 = vector.shape_cast %260 : vector<1x1x1x1x8x4xf32> to vector<8x4xf32>
    %c1_452 = arith.constant 1 : index
    %c0_453 = arith.constant 0 : index
    %c0_454 = arith.constant 0 : index
    %c0_455 = arith.constant 0 : index
    %262 = vector.load %arg2[%c1_452, %c0_453, %c0_454, %c0_455] : memref<3x3x4x4xf32, #tpu.memory_space<vmem>>, vector<1x1x4x4xf32>
    %263 = vector.shape_cast %262 : vector<1x1x4x4xf32> to vector<4x4xf32>
    %cst_456 = arith.constant dense<0.000000e+00> : vector<8x4xf32>
    %264 = tpu.matmul %261, %263, %cst_456 {dimension_numbers = #tpu.dot_dimension_numbers<[1], [0], [0], [1], [0, 0, 1, 1], [], []>} : vector<8x4xf32>, vector<4x4xf32>, vector<8x4xf32> -> vector<8x4xf32>
    %265 = arith.addf %259, %264 : vector<8x4xf32>
    %c0_457 = arith.constant 0 : index
    %c1_458 = arith.constant 1 : index
    %c1_459 = arith.constant 1 : index
    %c4_460 = arith.constant 4 : index
    %c0_461 = arith.constant 0 : index
    %c0_462 = arith.constant 0 : index
    %266 = vector.load %arg1[%c0_457, %c1_458, %c1_459, %c4_460, %c0_461, %c0_462] : memref<1x2x2x9x9x4xf32, #tpu.memory_space<vmem>>, vector<1x1x1x1x8x4xf32>
    %267 = vector.shape_cast %266 : vector<1x1x1x1x8x4xf32> to vector<8x4xf32>
    %c1_463 = arith.constant 1 : index
    %c1_464 = arith.constant 1 : index
    %c0_465 = arith.constant 0 : index
    %c0_466 = arith.constant 0 : index
    %268 = vector.load %arg2[%c1_463, %c1_464, %c0_465, %c0_466] : memref<3x3x4x4xf32, #tpu.memory_space<vmem>>, vector<1x1x4x4xf32>
    %269 = vector.shape_cast %268 : vector<1x1x4x4xf32> to vector<4x4xf32>
    %cst_467 = arith.constant dense<0.000000e+00> : vector<8x4xf32>
    %270 = tpu.matmul %267, %269, %cst_467 {dimension_numbers = #tpu.dot_dimension_numbers<[1], [0], [0], [1], [0, 0, 1, 1], [], []>} : vector<8x4xf32>, vector<4x4xf32>, vector<8x4xf32> -> vector<8x4xf32>
    %271 = arith.addf %265, %270 : vector<8x4xf32>
    %c0_468 = arith.constant 0 : index
    %c1_469 = arith.constant 1 : index
    %c0_470 = arith.constant 0 : index
    %c4_471 = arith.constant 4 : index
    %c1_472 = arith.constant 1 : index
    %c0_473 = arith.constant 0 : index
    %272 = vector.load %arg1[%c0_468, %c1_469, %c0_470, %c4_471, %c1_472, %c0_473] : memref<1x2x2x9x9x4xf32, #tpu.memory_space<vmem>>, vector<1x1x1x1x8x4xf32>
    %273 = vector.shape_cast %272 : vector<1x1x1x1x8x4xf32> to vector<8x4xf32>
    %c1_474 = arith.constant 1 : index
    %c2_475 = arith.constant 2 : index
    %c0_476 = arith.constant 0 : index
    %c0_477 = arith.constant 0 : index
    %274 = vector.load %arg2[%c1_474, %c2_475, %c0_476, %c0_477] : memref<3x3x4x4xf32, #tpu.memory_space<vmem>>, vector<1x1x4x4xf32>
    %275 = vector.shape_cast %274 : vector<1x1x4x4xf32> to vector<4x4xf32>
    %cst_478 = arith.constant dense<0.000000e+00> : vector<8x4xf32>
    %276 = tpu.matmul %273, %275, %cst_478 {dimension_numbers = #tpu.dot_dimension_numbers<[1], [0], [0], [1], [0, 0, 1, 1], [], []>} : vector<8x4xf32>, vector<4x4xf32>, vector<8x4xf32> -> vector<8x4xf32>
    %277 = arith.addf %271, %276 : vector<8x4xf32>
    %c0_479 = arith.constant 0 : index
    %c0_480 = arith.constant 0 : index
    %c0_481 = arith.constant 0 : index
    %c5 = arith.constant 5 : index
    %c0_482 = arith.constant 0 : index
    %c0_483 = arith.constant 0 : index
    %278 = vector.load %arg1[%c0_479, %c0_480, %c0_481, %c5, %c0_482, %c0_483] : memref<1x2x2x9x9x4xf32, #tpu.memory_space<vmem>>, vector<1x1x1x1x8x4xf32>
    %279 = vector.shape_cast %278 : vector<1x1x1x1x8x4xf32> to vector<8x4xf32>
    %c2_484 = arith.constant 2 : index
    %c0_485 = arith.constant 0 : index
    %c0_486 = arith.constant 0 : index
    %c0_487 = arith.constant 0 : index
    %280 = vector.load %arg2[%c2_484, %c0_485, %c0_486, %c0_487] : memref<3x3x4x4xf32, #tpu.memory_space<vmem>>, vector<1x1x4x4xf32>
    %281 = vector.shape_cast %280 : vector<1x1x4x4xf32> to vector<4x4xf32>
    %cst_488 = arith.constant dense<0.000000e+00> : vector<8x4xf32>
    %282 = tpu.matmul %279, %281, %cst_488 {dimension_numbers = #tpu.dot_dimension_numbers<[1], [0], [0], [1], [0, 0, 1, 1], [], []>} : vector<8x4xf32>, vector<4x4xf32>, vector<8x4xf32> -> vector<8x4xf32>
    %283 = arith.addf %277, %282 : vector<8x4xf32>
    %c0_489 = arith.constant 0 : index
    %c0_490 = arith.constant 0 : index
    %c1_491 = arith.constant 1 : index
    %c5_492 = arith.constant 5 : index
    %c0_493 = arith.constant 0 : index
    %c0_494 = arith.constant 0 : index
    %284 = vector.load %arg1[%c0_489, %c0_490, %c1_491, %c5_492, %c0_493, %c0_494] : memref<1x2x2x9x9x4xf32, #tpu.memory_space<vmem>>, vector<1x1x1x1x8x4xf32>
    %285 = vector.shape_cast %284 : vector<1x1x1x1x8x4xf32> to vector<8x4xf32>
    %c2_495 = arith.constant 2 : index
    %c1_496 = arith.constant 1 : index
    %c0_497 = arith.constant 0 : index
    %c0_498 = arith.constant 0 : index
    %286 = vector.load %arg2[%c2_495, %c1_496, %c0_497, %c0_498] : memref<3x3x4x4xf32, #tpu.memory_space<vmem>>, vector<1x1x4x4xf32>
    %287 = vector.shape_cast %286 : vector<1x1x4x4xf32> to vector<4x4xf32>
    %cst_499 = arith.constant dense<0.000000e+00> : vector<8x4xf32>
    %288 = tpu.matmul %285, %287, %cst_499 {dimension_numbers = #tpu.dot_dimension_numbers<[1], [0], [0], [1], [0, 0, 1, 1], [], []>} : vector<8x4xf32>, vector<4x4xf32>, vector<8x4xf32> -> vector<8x4xf32>
    %289 = arith.addf %283, %288 : vector<8x4xf32>
    %c0_500 = arith.constant 0 : index
    %c0_501 = arith.constant 0 : index
    %c0_502 = arith.constant 0 : index
    %c5_503 = arith.constant 5 : index
    %c1_504 = arith.constant 1 : index
    %c0_505 = arith.constant 0 : index
    %290 = vector.load %arg1[%c0_500, %c0_501, %c0_502, %c5_503, %c1_504, %c0_505] : memref<1x2x2x9x9x4xf32, #tpu.memory_space<vmem>>, vector<1x1x1x1x8x4xf32>
    %291 = vector.shape_cast %290 : vector<1x1x1x1x8x4xf32> to vector<8x4xf32>
    %c2_506 = arith.constant 2 : index
    %c2_507 = arith.constant 2 : index
    %c0_508 = arith.constant 0 : index
    %c0_509 = arith.constant 0 : index
    %292 = vector.load %arg2[%c2_506, %c2_507, %c0_508, %c0_509] : memref<3x3x4x4xf32, #tpu.memory_space<vmem>>, vector<1x1x4x4xf32>
    %293 = vector.shape_cast %292 : vector<1x1x4x4xf32> to vector<4x4xf32>
    %cst_510 = arith.constant dense<0.000000e+00> : vector<8x4xf32>
    %294 = tpu.matmul %291, %293, %cst_510 {dimension_numbers = #tpu.dot_dimension_numbers<[1], [0], [0], [1], [0, 0, 1, 1], [], []>} : vector<8x4xf32>, vector<4x4xf32>, vector<8x4xf32> -> vector<8x4xf32>
    %295 = arith.addf %289, %294 : vector<8x4xf32>
    %296 = vector.broadcast %0 : vector<1x4xf32> to vector<8x4xf32>
    %297 = arith.addf %295, %296 : vector<8x4xf32>
    %c0_511 = arith.constant 0 : index
    %c4_512 = arith.constant 4 : index
    %c0_513 = arith.constant 0 : index
    %c0_514 = arith.constant 0 : index
    %298 = vector.load %arg4[%c0_511, %c4_512, %c0_513, %c0_514] : memref<1x8x8x4xf32, #tpu.memory_space<vmem>>, vector<1x1x8x4xf32>
    %299 = vector.shape_cast %298 : vector<1x1x8x4xf32> to vector<8x4xf32>
    %300 = vector.shape_cast %297 : vector<8x4xf32> to vector<1x1x8x4xf32>
    tpu.vector_store %arg4[%c0_511, %c4_512, %c0_513, %c0_514], %300 {strides = array<i32>} : memref<1x8x8x4xf32, #tpu.memory_space<vmem>>, vector<1x1x8x4xf32>,
    %cst_515 = arith.constant 0.000000e+00 : f32
    %301 = vector.broadcast %cst_515 : f32 to vector<8x4xf32>
    %c0_516 = arith.constant 0 : index
    %c0_517 = arith.constant 0 : index
    %c0_518 = arith.constant 0 : index
    %c5_519 = arith.constant 5 : index
    %c0_520 = arith.constant 0 : index
    %c0_521 = arith.constant 0 : index
    %302 = vector.load %arg1[%c0_516, %c0_517, %c0_518, %c5_519, %c0_520, %c0_521] : memref<1x2x2x9x9x4xf32, #tpu.memory_space<vmem>>, vector<1x1x1x1x8x4xf32>
    %303 = vector.shape_cast %302 : vector<1x1x1x1x8x4xf32> to vector<8x4xf32>
    %c0_522 = arith.constant 0 : index
    %c0_523 = arith.constant 0 : index
    %c0_524 = arith.constant 0 : index
    %c0_525 = arith.constant 0 : index
    %304 = vector.load %arg2[%c0_522, %c0_523, %c0_524, %c0_525] : memref<3x3x4x4xf32, #tpu.memory_space<vmem>>, vector<1x1x4x4xf32>
    %305 = vector.shape_cast %304 : vector<1x1x4x4xf32> to vector<4x4xf32>
    %cst_526 = arith.constant dense<0.000000e+00> : vector<8x4xf32>
    %306 = tpu.matmul %303, %305, %cst_526 {dimension_numbers = #tpu.dot_dimension_numbers<[1], [0], [0], [1], [0, 0, 1, 1], [], []>} : vector<8x4xf32>, vector<4x4xf32>, vector<8x4xf32> -> vector<8x4xf32>
    %307 = arith.addf %301, %306 : vector<8x4xf32>
    %c0_527 = arith.constant 0 : index
    %c0_528 = arith.constant 0 : index
    %c1_529 = arith.constant 1 : index
    %c5_530 = arith.constant 5 : index
    %c0_531 = arith.constant 0 : index
    %c0_532 = arith.constant 0 : index
    %308 = vector.load %arg1[%c0_527, %c0_528, %c1_529, %c5_530, %c0_531, %c0_532] : memref<1x2x2x9x9x4xf32, #tpu.memory_space<vmem>>, vector<1x1x1x1x8x4xf32>
    %309 = vector.shape_cast %308 : vector<1x1x1x1x8x4xf32> to vector<8x4xf32>
    %c0_533 = arith.constant 0 : index
    %c1_534 = arith.constant 1 : index
    %c0_535 = arith.constant 0 : index
    %c0_536 = arith.constant 0 : index
    %310 = vector.load %arg2[%c0_533, %c1_534, %c0_535, %c0_536] : memref<3x3x4x4xf32, #tpu.memory_space<vmem>>, vector<1x1x4x4xf32>
    %311 = vector.shape_cast %310 : vector<1x1x4x4xf32> to vector<4x4xf32>
    %cst_537 = arith.constant dense<0.000000e+00> : vector<8x4xf32>
    %312 = tpu.matmul %309, %311, %cst_537 {dimension_numbers = #tpu.dot_dimension_numbers<[1], [0], [0], [1], [0, 0, 1, 1], [], []>} : vector<8x4xf32>, vector<4x4xf32>, vector<8x4xf32> -> vector<8x4xf32>
    %313 = arith.addf %307, %312 : vector<8x4xf32>
    %c0_538 = arith.constant 0 : index
    %c0_539 = arith.constant 0 : index
    %c0_540 = arith.constant 0 : index
    %c5_541 = arith.constant 5 : index
    %c1_542 = arith.constant 1 : index
    %c0_543 = arith.constant 0 : index
    %314 = vector.load %arg1[%c0_538, %c0_539, %c0_540, %c5_541, %c1_542, %c0_543] : memref<1x2x2x9x9x4xf32, #tpu.memory_space<vmem>>, vector<1x1x1x1x8x4xf32>
    %315 = vector.shape_cast %314 : vector<1x1x1x1x8x4xf32> to vector<8x4xf32>
    %c0_544 = arith.constant 0 : index
    %c2_545 = arith.constant 2 : index
    %c0_546 = arith.constant 0 : index
    %c0_547 = arith.constant 0 : index
    %316 = vector.load %arg2[%c0_544, %c2_545, %c0_546, %c0_547] : memref<3x3x4x4xf32, #tpu.memory_space<vmem>>, vector<1x1x4x4xf32>
    %317 = vector.shape_cast %316 : vector<1x1x4x4xf32> to vector<4x4xf32>
    %cst_548 = arith.constant dense<0.000000e+00> : vector<8x4xf32>
    %318 = tpu.matmul %315, %317, %cst_548 {dimension_numbers = #tpu.dot_dimension_numbers<[1], [0], [0], [1], [0, 0, 1, 1], [], []>} : vector<8x4xf32>, vector<4x4xf32>, vector<8x4xf32> -> vector<8x4xf32>
    %319 = arith.addf %313, %318 : vector<8x4xf32>
    %c0_549 = arith.constant 0 : index
    %c1_550 = arith.constant 1 : index
    %c0_551 = arith.constant 0 : index
    %c5_552 = arith.constant 5 : index
    %c0_553 = arith.constant 0 : index
    %c0_554 = arith.constant 0 : index
    %320 = vector.load %arg1[%c0_549, %c1_550, %c0_551, %c5_552, %c0_553, %c0_554] : memref<1x2x2x9x9x4xf32, #tpu.memory_space<vmem>>, vector<1x1x1x1x8x4xf32>
    %321 = vector.shape_cast %320 : vector<1x1x1x1x8x4xf32> to vector<8x4xf32>
    %c1_555 = arith.constant 1 : index
    %c0_556 = arith.constant 0 : index
    %c0_557 = arith.constant 0 : index
    %c0_558 = arith.constant 0 : index
    %322 = vector.load %arg2[%c1_555, %c0_556, %c0_557, %c0_558] : memref<3x3x4x4xf32, #tpu.memory_space<vmem>>, vector<1x1x4x4xf32>
    %323 = vector.shape_cast %322 : vector<1x1x4x4xf32> to vector<4x4xf32>
    %cst_559 = arith.constant dense<0.000000e+00> : vector<8x4xf32>
    %324 = tpu.matmul %321, %323, %cst_559 {dimension_numbers = #tpu.dot_dimension_numbers<[1], [0], [0], [1], [0, 0, 1, 1], [], []>} : vector<8x4xf32>, vector<4x4xf32>, vector<8x4xf32> -> vector<8x4xf32>
    %325 = arith.addf %319, %324 : vector<8x4xf32>
    %c0_560 = arith.constant 0 : index
    %c1_561 = arith.constant 1 : index
    %c1_562 = arith.constant 1 : index
    %c5_563 = arith.constant 5 : index
    %c0_564 = arith.constant 0 : index
    %c0_565 = arith.constant 0 : index
    %326 = vector.load %arg1[%c0_560, %c1_561, %c1_562, %c5_563, %c0_564, %c0_565] : memref<1x2x2x9x9x4xf32, #tpu.memory_space<vmem>>, vector<1x1x1x1x8x4xf32>
    %327 = vector.shape_cast %326 : vector<1x1x1x1x8x4xf32> to vector<8x4xf32>
    %c1_566 = arith.constant 1 : index
    %c1_567 = arith.constant 1 : index
    %c0_568 = arith.constant 0 : index
    %c0_569 = arith.constant 0 : index
    %328 = vector.load %arg2[%c1_566, %c1_567, %c0_568, %c0_569] : memref<3x3x4x4xf32, #tpu.memory_space<vmem>>, vector<1x1x4x4xf32>
    %329 = vector.shape_cast %328 : vector<1x1x4x4xf32> to vector<4x4xf32>
    %cst_570 = arith.constant dense<0.000000e+00> : vector<8x4xf32>
    %330 = tpu.matmul %327, %329, %cst_570 {dimension_numbers = #tpu.dot_dimension_numbers<[1], [0], [0], [1], [0, 0, 1, 1], [], []>} : vector<8x4xf32>, vector<4x4xf32>, vector<8x4xf32> -> vector<8x4xf32>
    %331 = arith.addf %325, %330 : vector<8x4xf32>
    %c0_571 = arith.constant 0 : index
    %c1_572 = arith.constant 1 : index
    %c0_573 = arith.constant 0 : index
    %c5_574 = arith.constant 5 : index
    %c1_575 = arith.constant 1 : index
    %c0_576 = arith.constant 0 : index
    %332 = vector.load %arg1[%c0_571, %c1_572, %c0_573, %c5_574, %c1_575, %c0_576] : memref<1x2x2x9x9x4xf32, #tpu.memory_space<vmem>>, vector<1x1x1x1x8x4xf32>
    %333 = vector.shape_cast %332 : vector<1x1x1x1x8x4xf32> to vector<8x4xf32>
    %c1_577 = arith.constant 1 : index
    %c2_578 = arith.constant 2 : index
    %c0_579 = arith.constant 0 : index
    %c0_580 = arith.constant 0 : index
    %334 = vector.load %arg2[%c1_577, %c2_578, %c0_579, %c0_580] : memref<3x3x4x4xf32, #tpu.memory_space<vmem>>, vector<1x1x4x4xf32>
    %335 = vector.shape_cast %334 : vector<1x1x4x4xf32> to vector<4x4xf32>
    %cst_581 = arith.constant dense<0.000000e+00> : vector<8x4xf32>
    %336 = tpu.matmul %333, %335, %cst_581 {dimension_numbers = #tpu.dot_dimension_numbers<[1], [0], [0], [1], [0, 0, 1, 1], [], []>} : vector<8x4xf32>, vector<4x4xf32>, vector<8x4xf32> -> vector<8x4xf32>
    %337 = arith.addf %331, %336 : vector<8x4xf32>
    %c0_582 = arith.constant 0 : index
    %c0_583 = arith.constant 0 : index
    %c0_584 = arith.constant 0 : index
    %c6 = arith.constant 6 : index
    %c0_585 = arith.constant 0 : index
    %c0_586 = arith.constant 0 : index
    %338 = vector.load %arg1[%c0_582, %c0_583, %c0_584, %c6, %c0_585, %c0_586] : memref<1x2x2x9x9x4xf32, #tpu.memory_space<vmem>>, vector<1x1x1x1x8x4xf32>
    %339 = vector.shape_cast %338 : vector<1x1x1x1x8x4xf32> to vector<8x4xf32>
    %c2_587 = arith.constant 2 : index
    %c0_588 = arith.constant 0 : index
    %c0_589 = arith.constant 0 : index
    %c0_590 = arith.constant 0 : index
    %340 = vector.load %arg2[%c2_587, %c0_588, %c0_589, %c0_590] : memref<3x3x4x4xf32, #tpu.memory_space<vmem>>, vector<1x1x4x4xf32>
    %341 = vector.shape_cast %340 : vector<1x1x4x4xf32> to vector<4x4xf32>
    %cst_591 = arith.constant dense<0.000000e+00> : vector<8x4xf32>
    %342 = tpu.matmul %339, %341, %cst_591 {dimension_numbers = #tpu.dot_dimension_numbers<[1], [0], [0], [1], [0, 0, 1, 1], [], []>} : vector<8x4xf32>, vector<4x4xf32>, vector<8x4xf32> -> vector<8x4xf32>
    %343 = arith.addf %337, %342 : vector<8x4xf32>
    %c0_592 = arith.constant 0 : index
    %c0_593 = arith.constant 0 : index
    %c1_594 = arith.constant 1 : index
    %c6_595 = arith.constant 6 : index
    %c0_596 = arith.constant 0 : index
    %c0_597 = arith.constant 0 : index
    %344 = vector.load %arg1[%c0_592, %c0_593, %c1_594, %c6_595, %c0_596, %c0_597] : memref<1x2x2x9x9x4xf32, #tpu.memory_space<vmem>>, vector<1x1x1x1x8x4xf32>
    %345 = vector.shape_cast %344 : vector<1x1x1x1x8x4xf32> to vector<8x4xf32>
    %c2_598 = arith.constant 2 : index
    %c1_599 = arith.constant 1 : index
    %c0_600 = arith.constant 0 : index
    %c0_601 = arith.constant 0 : index
    %346 = vector.load %arg2[%c2_598, %c1_599, %c0_600, %c0_601] : memref<3x3x4x4xf32, #tpu.memory_space<vmem>>, vector<1x1x4x4xf32>
    %347 = vector.shape_cast %346 : vector<1x1x4x4xf32> to vector<4x4xf32>
    %cst_602 = arith.constant dense<0.000000e+00> : vector<8x4xf32>
    %348 = tpu.matmul %345, %347, %cst_602 {dimension_numbers = #tpu.dot_dimension_numbers<[1], [0], [0], [1], [0, 0, 1, 1], [], []>} : vector<8x4xf32>, vector<4x4xf32>, vector<8x4xf32> -> vector<8x4xf32>
    %349 = arith.addf %343, %348 : vector<8x4xf32>
    %c0_603 = arith.constant 0 : index
    %c0_604 = arith.constant 0 : index
    %c0_605 = arith.constant 0 : index
    %c6_606 = arith.constant 6 : index
    %c1_607 = arith.constant 1 : index
    %c0_608 = arith.constant 0 : index
    %350 = vector.load %arg1[%c0_603, %c0_604, %c0_605, %c6_606, %c1_607, %c0_608] : memref<1x2x2x9x9x4xf32, #tpu.memory_space<vmem>>, vector<1x1x1x1x8x4xf32>
    %351 = vector.shape_cast %350 : vector<1x1x1x1x8x4xf32> to vector<8x4xf32>
    %c2_609 = arith.constant 2 : index
    %c2_610 = arith.constant 2 : index
    %c0_611 = arith.constant 0 : index
    %c0_612 = arith.constant 0 : index
    %352 = vector.load %arg2[%c2_609, %c2_610, %c0_611, %c0_612] : memref<3x3x4x4xf32, #tpu.memory_space<vmem>>, vector<1x1x4x4xf32>
    %353 = vector.shape_cast %352 : vector<1x1x4x4xf32> to vector<4x4xf32>
    %cst_613 = arith.constant dense<0.000000e+00> : vector<8x4xf32>
    %354 = tpu.matmul %351, %353, %cst_613 {dimension_numbers = #tpu.dot_dimension_numbers<[1], [0], [0], [1], [0, 0, 1, 1], [], []>} : vector<8x4xf32>, vector<4x4xf32>, vector<8x4xf32> -> vector<8x4xf32>
    %355 = arith.addf %349, %354 : vector<8x4xf32>
    %356 = vector.broadcast %0 : vector<1x4xf32> to vector<8x4xf32>
    %357 = arith.addf %355, %356 : vector<8x4xf32>
    %c0_614 = arith.constant 0 : index
    %c5_615 = arith.constant 5 : index
    %c0_616 = arith.constant 0 : index
    %c0_617 = arith.constant 0 : index
    %358 = vector.load %arg4[%c0_614, %c5_615, %c0_616, %c0_617] : memref<1x8x8x4xf32, #tpu.memory_space<vmem>>, vector<1x1x8x4xf32>
    %359 = vector.shape_cast %358 : vector<1x1x8x4xf32> to vector<8x4xf32>
    %360 = vector.shape_cast %357 : vector<8x4xf32> to vector<1x1x8x4xf32>
    tpu.vector_store %arg4[%c0_614, %c5_615, %c0_616, %c0_617], %360 {strides = array<i32>} : memref<1x8x8x4xf32, #tpu.memory_space<vmem>>, vector<1x1x8x4xf32>,
    %cst_618 = arith.constant 0.000000e+00 : f32
    %361 = vector.broadcast %cst_618 : f32 to vector<8x4xf32>
    %c0_619 = arith.constant 0 : index
    %c0_620 = arith.constant 0 : index
    %c0_621 = arith.constant 0 : index
    %c6_622 = arith.constant 6 : index
    %c0_623 = arith.constant 0 : index
    %c0_624 = arith.constant 0 : index
    %362 = vector.load %arg1[%c0_619, %c0_620, %c0_621, %c6_622, %c0_623, %c0_624] : memref<1x2x2x9x9x4xf32, #tpu.memory_space<vmem>>, vector<1x1x1x1x8x4xf32>
    %363 = vector.shape_cast %362 : vector<1x1x1x1x8x4xf32> to vector<8x4xf32>
    %c0_625 = arith.constant 0 : index
    %c0_626 = arith.constant 0 : index
    %c0_627 = arith.constant 0 : index
    %c0_628 = arith.constant 0 : index
    %364 = vector.load %arg2[%c0_625, %c0_626, %c0_627, %c0_628] : memref<3x3x4x4xf32, #tpu.memory_space<vmem>>, vector<1x1x4x4xf32>
    %365 = vector.shape_cast %364 : vector<1x1x4x4xf32> to vector<4x4xf32>
    %cst_629 = arith.constant dense<0.000000e+00> : vector<8x4xf32>
    %366 = tpu.matmul %363, %365, %cst_629 {dimension_numbers = #tpu.dot_dimension_numbers<[1], [0], [0], [1], [0, 0, 1, 1], [], []>} : vector<8x4xf32>, vector<4x4xf32>, vector<8x4xf32> -> vector<8x4xf32>
    %367 = arith.addf %361, %366 : vector<8x4xf32>
    %c0_630 = arith.constant 0 : index
    %c0_631 = arith.constant 0 : index
    %c1_632 = arith.constant 1 : index
    %c6_633 = arith.constant 6 : index
    %c0_634 = arith.constant 0 : index
    %c0_635 = arith.constant 0 : index
    %368 = vector.load %arg1[%c0_630, %c0_631, %c1_632, %c6_633, %c0_634, %c0_635] : memref<1x2x2x9x9x4xf32, #tpu.memory_space<vmem>>, vector<1x1x1x1x8x4xf32>
    %369 = vector.shape_cast %368 : vector<1x1x1x1x8x4xf32> to vector<8x4xf32>
    %c0_636 = arith.constant 0 : index
    %c1_637 = arith.constant 1 : index
    %c0_638 = arith.constant 0 : index
    %c0_639 = arith.constant 0 : index
    %370 = vector.load %arg2[%c0_636, %c1_637, %c0_638, %c0_639] : memref<3x3x4x4xf32, #tpu.memory_space<vmem>>, vector<1x1x4x4xf32>
    %371 = vector.shape_cast %370 : vector<1x1x4x4xf32> to vector<4x4xf32>
    %cst_640 = arith.constant dense<0.000000e+00> : vector<8x4xf32>
    %372 = tpu.matmul %369, %371, %cst_640 {dimension_numbers = #tpu.dot_dimension_numbers<[1], [0], [0], [1], [0, 0, 1, 1], [], []>} : vector<8x4xf32>, vector<4x4xf32>, vector<8x4xf32> -> vector<8x4xf32>
    %373 = arith.addf %367, %372 : vector<8x4xf32>
    %c0_641 = arith.constant 0 : index
    %c0_642 = arith.constant 0 : index
    %c0_643 = arith.constant 0 : index
    %c6_644 = arith.constant 6 : index
    %c1_645 = arith.constant 1 : index
    %c0_646 = arith.constant 0 : index
    %374 = vector.load %arg1[%c0_641, %c0_642, %c0_643, %c6_644, %c1_645, %c0_646] : memref<1x2x2x9x9x4xf32, #tpu.memory_space<vmem>>, vector<1x1x1x1x8x4xf32>
    %375 = vector.shape_cast %374 : vector<1x1x1x1x8x4xf32> to vector<8x4xf32>
    %c0_647 = arith.constant 0 : index
    %c2_648 = arith.constant 2 : index
    %c0_649 = arith.constant 0 : index
    %c0_650 = arith.constant 0 : index
    %376 = vector.load %arg2[%c0_647, %c2_648, %c0_649, %c0_650] : memref<3x3x4x4xf32, #tpu.memory_space<vmem>>, vector<1x1x4x4xf32>
    %377 = vector.shape_cast %376 : vector<1x1x4x4xf32> to vector<4x4xf32>
    %cst_651 = arith.constant dense<0.000000e+00> : vector<8x4xf32>
    %378 = tpu.matmul %375, %377, %cst_651 {dimension_numbers = #tpu.dot_dimension_numbers<[1], [0], [0], [1], [0, 0, 1, 1], [], []>} : vector<8x4xf32>, vector<4x4xf32>, vector<8x4xf32> -> vector<8x4xf32>
    %379 = arith.addf %373, %378 : vector<8x4xf32>
    %c0_652 = arith.constant 0 : index
    %c1_653 = arith.constant 1 : index
    %c0_654 = arith.constant 0 : index
    %c6_655 = arith.constant 6 : index
    %c0_656 = arith.constant 0 : index
    %c0_657 = arith.constant 0 : index
    %380 = vector.load %arg1[%c0_652, %c1_653, %c0_654, %c6_655, %c0_656, %c0_657] : memref<1x2x2x9x9x4xf32, #tpu.memory_space<vmem>>, vector<1x1x1x1x8x4xf32>
    %381 = vector.shape_cast %380 : vector<1x1x1x1x8x4xf32> to vector<8x4xf32>
    %c1_658 = arith.constant 1 : index
    %c0_659 = arith.constant 0 : index
    %c0_660 = arith.constant 0 : index
    %c0_661 = arith.constant 0 : index
    %382 = vector.load %arg2[%c1_658, %c0_659, %c0_660, %c0_661] : memref<3x3x4x4xf32, #tpu.memory_space<vmem>>, vector<1x1x4x4xf32>
    %383 = vector.shape_cast %382 : vector<1x1x4x4xf32> to vector<4x4xf32>
    %cst_662 = arith.constant dense<0.000000e+00> : vector<8x4xf32>
    %384 = tpu.matmul %381, %383, %cst_662 {dimension_numbers = #tpu.dot_dimension_numbers<[1], [0], [0], [1], [0, 0, 1, 1], [], []>} : vector<8x4xf32>, vector<4x4xf32>, vector<8x4xf32> -> vector<8x4xf32>
    %385 = arith.addf %379, %384 : vector<8x4xf32>
    %c0_663 = arith.constant 0 : index
    %c1_664 = arith.constant 1 : index
    %c1_665 = arith.constant 1 : index
    %c6_666 = arith.constant 6 : index
    %c0_667 = arith.constant 0 : index
    %c0_668 = arith.constant 0 : index
    %386 = vector.load %arg1[%c0_663, %c1_664, %c1_665, %c6_666, %c0_667, %c0_668] : memref<1x2x2x9x9x4xf32, #tpu.memory_space<vmem>>, vector<1x1x1x1x8x4xf32>
    %387 = vector.shape_cast %386 : vector<1x1x1x1x8x4xf32> to vector<8x4xf32>
    %c1_669 = arith.constant 1 : index
    %c1_670 = arith.constant 1 : index
    %c0_671 = arith.constant 0 : index
    %c0_672 = arith.constant 0 : index
    %388 = vector.load %arg2[%c1_669, %c1_670, %c0_671, %c0_672] : memref<3x3x4x4xf32, #tpu.memory_space<vmem>>, vector<1x1x4x4xf32>
    %389 = vector.shape_cast %388 : vector<1x1x4x4xf32> to vector<4x4xf32>
    %cst_673 = arith.constant dense<0.000000e+00> : vector<8x4xf32>
    %390 = tpu.matmul %387, %389, %cst_673 {dimension_numbers = #tpu.dot_dimension_numbers<[1], [0], [0], [1], [0, 0, 1, 1], [], []>} : vector<8x4xf32>, vector<4x4xf32>, vector<8x4xf32> -> vector<8x4xf32>
    %391 = arith.addf %385, %390 : vector<8x4xf32>
    %c0_674 = arith.constant 0 : index
    %c1_675 = arith.constant 1 : index
    %c0_676 = arith.constant 0 : index
    %c6_677 = arith.constant 6 : index
    %c1_678 = arith.constant 1 : index
    %c0_679 = arith.constant 0 : index
    %392 = vector.load %arg1[%c0_674, %c1_675, %c0_676, %c6_677, %c1_678, %c0_679] : memref<1x2x2x9x9x4xf32, #tpu.memory_space<vmem>>, vector<1x1x1x1x8x4xf32>
    %393 = vector.shape_cast %392 : vector<1x1x1x1x8x4xf32> to vector<8x4xf32>
    %c1_680 = arith.constant 1 : index
    %c2_681 = arith.constant 2 : index
    %c0_682 = arith.constant 0 : index
    %c0_683 = arith.constant 0 : index
    %394 = vector.load %arg2[%c1_680, %c2_681, %c0_682, %c0_683] : memref<3x3x4x4xf32, #tpu.memory_space<vmem>>, vector<1x1x4x4xf32>
    %395 = vector.shape_cast %394 : vector<1x1x4x4xf32> to vector<4x4xf32>
    %cst_684 = arith.constant dense<0.000000e+00> : vector<8x4xf32>
    %396 = tpu.matmul %393, %395, %cst_684 {dimension_numbers = #tpu.dot_dimension_numbers<[1], [0], [0], [1], [0, 0, 1, 1], [], []>} : vector<8x4xf32>, vector<4x4xf32>, vector<8x4xf32> -> vector<8x4xf32>
    %397 = arith.addf %391, %396 : vector<8x4xf32>
    %c0_685 = arith.constant 0 : index
    %c0_686 = arith.constant 0 : index
    %c0_687 = arith.constant 0 : index
    %c7 = arith.constant 7 : index
    %c0_688 = arith.constant 0 : index
    %c0_689 = arith.constant 0 : index
    %398 = vector.load %arg1[%c0_685, %c0_686, %c0_687, %c7, %c0_688, %c0_689] : memref<1x2x2x9x9x4xf32, #tpu.memory_space<vmem>>, vector<1x1x1x1x8x4xf32>
    %399 = vector.shape_cast %398 : vector<1x1x1x1x8x4xf32> to vector<8x4xf32>
    %c2_690 = arith.constant 2 : index
    %c0_691 = arith.constant 0 : index
    %c0_692 = arith.constant 0 : index
    %c0_693 = arith.constant 0 : index
    %400 = vector.load %arg2[%c2_690, %c0_691, %c0_692, %c0_693] : memref<3x3x4x4xf32, #tpu.memory_space<vmem>>, vector<1x1x4x4xf32>
    %401 = vector.shape_cast %400 : vector<1x1x4x4xf32> to vector<4x4xf32>
    %cst_694 = arith.constant dense<0.000000e+00> : vector<8x4xf32>
    %402 = tpu.matmul %399, %401, %cst_694 {dimension_numbers = #tpu.dot_dimension_numbers<[1], [0], [0], [1], [0, 0, 1, 1], [], []>} : vector<8x4xf32>, vector<4x4xf32>, vector<8x4xf32> -> vector<8x4xf32>
    %403 = arith.addf %397, %402 : vector<8x4xf32>
    %c0_695 = arith.constant 0 : index
    %c0_696 = arith.constant 0 : index
    %c1_697 = arith.constant 1 : index
    %c7_698 = arith.constant 7 : index
    %c0_699 = arith.constant 0 : index
    %c0_700 = arith.constant 0 : index
    %404 = vector.load %arg1[%c0_695, %c0_696, %c1_697, %c7_698, %c0_699, %c0_700] : memref<1x2x2x9x9x4xf32, #tpu.memory_space<vmem>>, vector<1x1x1x1x8x4xf32>
    %405 = vector.shape_cast %404 : vector<1x1x1x1x8x4xf32> to vector<8x4xf32>
    %c2_701 = arith.constant 2 : index
    %c1_702 = arith.constant 1 : index
    %c0_703 = arith.constant 0 : index
    %c0_704 = arith.constant 0 : index
    %406 = vector.load %arg2[%c2_701, %c1_702, %c0_703, %c0_704] : memref<3x3x4x4xf32, #tpu.memory_space<vmem>>, vector<1x1x4x4xf32>
    %407 = vector.shape_cast %406 : vector<1x1x4x4xf32> to vector<4x4xf32>
    %cst_705 = arith.constant dense<0.000000e+00> : vector<8x4xf32>
    %408 = tpu.matmul %405, %407, %cst_705 {dimension_numbers = #tpu.dot_dimension_numbers<[1], [0], [0], [1], [0, 0, 1, 1], [], []>} : vector<8x4xf32>, vector<4x4xf32>, vector<8x4xf32> -> vector<8x4xf32>
    %409 = arith.addf %403, %408 : vector<8x4xf32>
    %c0_706 = arith.constant 0 : index
    %c0_707 = arith.constant 0 : index
    %c0_708 = arith.constant 0 : index
    %c7_709 = arith.constant 7 : index
    %c1_710 = arith.constant 1 : index
    %c0_711 = arith.constant 0 : index
    %410 = vector.load %arg1[%c0_706, %c0_707, %c0_708, %c7_709, %c1_710, %c0_711] : memref<1x2x2x9x9x4xf32, #tpu.memory_space<vmem>>, vector<1x1x1x1x8x4xf32>
    %411 = vector.shape_cast %410 : vector<1x1x1x1x8x4xf32> to vector<8x4xf32>
    %c2_712 = arith.constant 2 : index
    %c2_713 = arith.constant 2 : index
    %c0_714 = arith.constant 0 : index
    %c0_715 = arith.constant 0 : index
    %412 = vector.load %arg2[%c2_712, %c2_713, %c0_714, %c0_715] : memref<3x3x4x4xf32, #tpu.memory_space<vmem>>, vector<1x1x4x4xf32>
    %413 = vector.shape_cast %412 : vector<1x1x4x4xf32> to vector<4x4xf32>
    %cst_716 = arith.constant dense<0.000000e+00> : vector<8x4xf32>
    %414 = tpu.matmul %411, %413, %cst_716 {dimension_numbers = #tpu.dot_dimension_numbers<[1], [0], [0], [1], [0, 0, 1, 1], [], []>} : vector<8x4xf32>, vector<4x4xf32>, vector<8x4xf32> -> vector<8x4xf32>
    %415 = arith.addf %409, %414 : vector<8x4xf32>
    %416 = vector.broadcast %0 : vector<1x4xf32> to vector<8x4xf32>
    %417 = arith.addf %415, %416 : vector<8x4xf32>
    %c0_717 = arith.constant 0 : index
    %c6_718 = arith.constant 6 : index
    %c0_719 = arith.constant 0 : index
    %c0_720 = arith.constant 0 : index
    %418 = vector.load %arg4[%c0_717, %c6_718, %c0_719, %c0_720] : memref<1x8x8x4xf32, #tpu.memory_space<vmem>>, vector<1x1x8x4xf32>
    %419 = vector.shape_cast %418 : vector<1x1x8x4xf32> to vector<8x4xf32>
    %420 = vector.shape_cast %417 : vector<8x4xf32> to vector<1x1x8x4xf32>
    tpu.vector_store %arg4[%c0_717, %c6_718, %c0_719, %c0_720], %420 {strides = array<i32>} : memref<1x8x8x4xf32, #tpu.memory_space<vmem>>, vector<1x1x8x4xf32>,
    %cst_721 = arith.constant 0.000000e+00 : f32
    %421 = vector.broadcast %cst_721 : f32 to vector<8x4xf32>
    %c0_722 = arith.constant 0 : index
    %c0_723 = arith.constant 0 : index
    %c0_724 = arith.constant 0 : index
    %c7_725 = arith.constant 7 : index
    %c0_726 = arith.constant 0 : index
    %c0_727 = arith.constant 0 : index
    %422 = vector.load %arg1[%c0_722, %c0_723, %c0_724, %c7_725, %c0_726, %c0_727] : memref<1x2x2x9x9x4xf32, #tpu.memory_space<vmem>>, vector<1x1x1x1x8x4xf32>
    %423 = vector.shape_cast %422 : vector<1x1x1x1x8x4xf32> to vector<8x4xf32>
    %c0_728 = arith.constant 0 : index
    %c0_729 = arith.constant 0 : index
    %c0_730 = arith.constant 0 : index
    %c0_731 = arith.constant 0 : index
    %424 = vector.load %arg2[%c0_728, %c0_729, %c0_730, %c0_731] : memref<3x3x4x4xf32, #tpu.memory_space<vmem>>, vector<1x1x4x4xf32>
    %425 = vector.shape_cast %424 : vector<1x1x4x4xf32> to vector<4x4xf32>
    %cst_732 = arith.constant dense<0.000000e+00> : vector<8x4xf32>
    %426 = tpu.matmul %423, %425, %cst_732 {dimension_numbers = #tpu.dot_dimension_numbers<[1], [0], [0], [1], [0, 0, 1, 1], [], []>} : vector<8x4xf32>, vector<4x4xf32>, vector<8x4xf32> -> vector<8x4xf32>
    %427 = arith.addf %421, %426 : vector<8x4xf32>
    %c0_733 = arith.constant 0 : index
    %c0_734 = arith.constant 0 : index
    %c1_735 = arith.constant 1 : index
    %c7_736 = arith.constant 7 : index
    %c0_737 = arith.constant 0 : index
    %c0_738 = arith.constant 0 : index
    %428 = vector.load %arg1[%c0_733, %c0_734, %c1_735, %c7_736, %c0_737, %c0_738] : memref<1x2x2x9x9x4xf32, #tpu.memory_space<vmem>>, vector<1x1x1x1x8x4xf32>
    %429 = vector.shape_cast %428 : vector<1x1x1x1x8x4xf32> to vector<8x4xf32>
    %c0_739 = arith.constant 0 : index
    %c1_740 = arith.constant 1 : index
    %c0_741 = arith.constant 0 : index
    %c0_742 = arith.constant 0 : index
    %430 = vector.load %arg2[%c0_739, %c1_740, %c0_741, %c0_742] : memref<3x3x4x4xf32, #tpu.memory_space<vmem>>, vector<1x1x4x4xf32>
    %431 = vector.shape_cast %430 : vector<1x1x4x4xf32> to vector<4x4xf32>
    %cst_743 = arith.constant dense<0.000000e+00> : vector<8x4xf32>
    %432 = tpu.matmul %429, %431, %cst_743 {dimension_numbers = #tpu.dot_dimension_numbers<[1], [0], [0], [1], [0, 0, 1, 1], [], []>} : vector<8x4xf32>, vector<4x4xf32>, vector<8x4xf32> -> vector<8x4xf32>
    %433 = arith.addf %427, %432 : vector<8x4xf32>
    %c0_744 = arith.constant 0 : index
    %c0_745 = arith.constant 0 : index
    %c0_746 = arith.constant 0 : index
    %c7_747 = arith.constant 7 : index
    %c1_748 = arith.constant 1 : index
    %c0_749 = arith.constant 0 : index
    %434 = vector.load %arg1[%c0_744, %c0_745, %c0_746, %c7_747, %c1_748, %c0_749] : memref<1x2x2x9x9x4xf32, #tpu.memory_space<vmem>>, vector<1x1x1x1x8x4xf32>
    %435 = vector.shape_cast %434 : vector<1x1x1x1x8x4xf32> to vector<8x4xf32>
    %c0_750 = arith.constant 0 : index
    %c2_751 = arith.constant 2 : index
    %c0_752 = arith.constant 0 : index
    %c0_753 = arith.constant 0 : index
    %436 = vector.load %arg2[%c0_750, %c2_751, %c0_752, %c0_753] : memref<3x3x4x4xf32, #tpu.memory_space<vmem>>, vector<1x1x4x4xf32>
    %437 = vector.shape_cast %436 : vector<1x1x4x4xf32> to vector<4x4xf32>
    %cst_754 = arith.constant dense<0.000000e+00> : vector<8x4xf32>
    %438 = tpu.matmul %435, %437, %cst_754 {dimension_numbers = #tpu.dot_dimension_numbers<[1], [0], [0], [1], [0, 0, 1, 1], [], []>} : vector<8x4xf32>, vector<4x4xf32>, vector<8x4xf32> -> vector<8x4xf32>
    %439 = arith.addf %433, %438 : vector<8x4xf32>
    %c0_755 = arith.constant 0 : index
    %c1_756 = arith.constant 1 : index
    %c0_757 = arith.constant 0 : index
    %c7_758 = arith.constant 7 : index
    %c0_759 = arith.constant 0 : index
    %c0_760 = arith.constant 0 : index
    %440 = vector.load %arg1[%c0_755, %c1_756, %c0_757, %c7_758, %c0_759, %c0_760] : memref<1x2x2x9x9x4xf32, #tpu.memory_space<vmem>>, vector<1x1x1x1x8x4xf32>
    %441 = vector.shape_cast %440 : vector<1x1x1x1x8x4xf32> to vector<8x4xf32>
    %c1_761 = arith.constant 1 : index
    %c0_762 = arith.constant 0 : index
    %c0_763 = arith.constant 0 : index
    %c0_764 = arith.constant 0 : index
    %442 = vector.load %arg2[%c1_761, %c0_762, %c0_763, %c0_764] : memref<3x3x4x4xf32, #tpu.memory_space<vmem>>, vector<1x1x4x4xf32>
    %443 = vector.shape_cast %442 : vector<1x1x4x4xf32> to vector<4x4xf32>
    %cst_765 = arith.constant dense<0.000000e+00> : vector<8x4xf32>
    %444 = tpu.matmul %441, %443, %cst_765 {dimension_numbers = #tpu.dot_dimension_numbers<[1], [0], [0], [1], [0, 0, 1, 1], [], []>} : vector<8x4xf32>, vector<4x4xf32>, vector<8x4xf32> -> vector<8x4xf32>
    %445 = arith.addf %439, %444 : vector<8x4xf32>
    %c0_766 = arith.constant 0 : index
    %c1_767 = arith.constant 1 : index
    %c1_768 = arith.constant 1 : index
    %c7_769 = arith.constant 7 : index
    %c0_770 = arith.constant 0 : index
    %c0_771 = arith.constant 0 : index
    %446 = vector.load %arg1[%c0_766, %c1_767, %c1_768, %c7_769, %c0_770, %c0_771] : memref<1x2x2x9x9x4xf32, #tpu.memory_space<vmem>>, vector<1x1x1x1x8x4xf32>
    %447 = vector.shape_cast %446 : vector<1x1x1x1x8x4xf32> to vector<8x4xf32>
    %c1_772 = arith.constant 1 : index
    %c1_773 = arith.constant 1 : index
    %c0_774 = arith.constant 0 : index
    %c0_775 = arith.constant 0 : index
    %448 = vector.load %arg2[%c1_772, %c1_773, %c0_774, %c0_775] : memref<3x3x4x4xf32, #tpu.memory_space<vmem>>, vector<1x1x4x4xf32>
    %449 = vector.shape_cast %448 : vector<1x1x4x4xf32> to vector<4x4xf32>
    %cst_776 = arith.constant dense<0.000000e+00> : vector<8x4xf32>
    %450 = tpu.matmul %447, %449, %cst_776 {dimension_numbers = #tpu.dot_dimension_numbers<[1], [0], [0], [1], [0, 0, 1, 1], [], []>} : vector<8x4xf32>, vector<4x4xf32>, vector<8x4xf32> -> vector<8x4xf32>
    %451 = arith.addf %445, %450 : vector<8x4xf32>
    %c0_777 = arith.constant 0 : index
    %c1_778 = arith.constant 1 : index
    %c0_779 = arith.constant 0 : index
    %c7_780 = arith.constant 7 : index
    %c1_781 = arith.constant 1 : index
    %c0_782 = arith.constant 0 : index
    %452 = vector.load %arg1[%c0_777, %c1_778, %c0_779, %c7_780, %c1_781, %c0_782] : memref<1x2x2x9x9x4xf32, #tpu.memory_space<vmem>>, vector<1x1x1x1x8x4xf32>
    %453 = vector.shape_cast %452 : vector<1x1x1x1x8x4xf32> to vector<8x4xf32>
    %c1_783 = arith.constant 1 : index
    %c2_784 = arith.constant 2 : index
    %c0_785 = arith.constant 0 : index
    %c0_786 = arith.constant 0 : index
    %454 = vector.load %arg2[%c1_783, %c2_784, %c0_785, %c0_786] : memref<3x3x4x4xf32, #tpu.memory_space<vmem>>, vector<1x1x4x4xf32>
    %455 = vector.shape_cast %454 : vector<1x1x4x4xf32> to vector<4x4xf32>
    %cst_787 = arith.constant dense<0.000000e+00> : vector<8x4xf32>
    %456 = tpu.matmul %453, %455, %cst_787 {dimension_numbers = #tpu.dot_dimension_numbers<[1], [0], [0], [1], [0, 0, 1, 1], [], []>} : vector<8x4xf32>, vector<4x4xf32>, vector<8x4xf32> -> vector<8x4xf32>
    %457 = arith.addf %451, %456 : vector<8x4xf32>
    %c0_788 = arith.constant 0 : index
    %c0_789 = arith.constant 0 : index
    %c0_790 = arith.constant 0 : index
    %c8 = arith.constant 8 : index
    %c0_791 = arith.constant 0 : index
    %c0_792 = arith.constant 0 : index
    %458 = vector.load %arg1[%c0_788, %c0_789, %c0_790, %c8, %c0_791, %c0_792] : memref<1x2x2x9x9x4xf32, #tpu.memory_space<vmem>>, vector<1x1x1x1x8x4xf32>
    %459 = vector.shape_cast %458 : vector<1x1x1x1x8x4xf32> to vector<8x4xf32>
    %c2_793 = arith.constant 2 : index
    %c0_794 = arith.constant 0 : index
    %c0_795 = arith.constant 0 : index
    %c0_796 = arith.constant 0 : index
    %460 = vector.load %arg2[%c2_793, %c0_794, %c0_795, %c0_796] : memref<3x3x4x4xf32, #tpu.memory_space<vmem>>, vector<1x1x4x4xf32>
    %461 = vector.shape_cast %460 : vector<1x1x4x4xf32> to vector<4x4xf32>
    %cst_797 = arith.constant dense<0.000000e+00> : vector<8x4xf32>
    %462 = tpu.matmul %459, %461, %cst_797 {dimension_numbers = #tpu.dot_dimension_numbers<[1], [0], [0], [1], [0, 0, 1, 1], [], []>} : vector<8x4xf32>, vector<4x4xf32>, vector<8x4xf32> -> vector<8x4xf32>
    %463 = arith.addf %457, %462 : vector<8x4xf32>
    %c0_798 = arith.constant 0 : index
    %c0_799 = arith.constant 0 : index
    %c1_800 = arith.constant 1 : index
    %c8_801 = arith.constant 8 : index
    %c0_802 = arith.constant 0 : index
    %c0_803 = arith.constant 0 : index
    %464 = vector.load %arg1[%c0_798, %c0_799, %c1_800, %c8_801, %c0_802, %c0_803] : memref<1x2x2x9x9x4xf32, #tpu.memory_space<vmem>>, vector<1x1x1x1x8x4xf32>
    %465 = vector.shape_cast %464 : vector<1x1x1x1x8x4xf32> to vector<8x4xf32>
    %c2_804 = arith.constant 2 : index
    %c1_805 = arith.constant 1 : index
    %c0_806 = arith.constant 0 : index
    %c0_807 = arith.constant 0 : index
    %466 = vector.load %arg2[%c2_804, %c1_805, %c0_806, %c0_807] : memref<3x3x4x4xf32, #tpu.memory_space<vmem>>, vector<1x1x4x4xf32>
    %467 = vector.shape_cast %466 : vector<1x1x4x4xf32> to vector<4x4xf32>
    %cst_808 = arith.constant dense<0.000000e+00> : vector<8x4xf32>
    %468 = tpu.matmul %465, %467, %cst_808 {dimension_numbers = #tpu.dot_dimension_numbers<[1], [0], [0], [1], [0, 0, 1, 1], [], []>} : vector<8x4xf32>, vector<4x4xf32>, vector<8x4xf32> -> vector<8x4xf32>
    %469 = arith.addf %463, %468 : vector<8x4xf32>
    %c0_809 = arith.constant 0 : index
    %c0_810 = arith.constant 0 : index
    %c0_811 = arith.constant 0 : index
    %c8_812 = arith.constant 8 : index
    %c1_813 = arith.constant 1 : index
    %c0_814 = arith.constant 0 : index
    %470 = vector.load %arg1[%c0_809, %c0_810, %c0_811, %c8_812, %c1_813, %c0_814] : memref<1x2x2x9x9x4xf32, #tpu.memory_space<vmem>>, vector<1x1x1x1x8x4xf32>
    %471 = vector.shape_cast %470 : vector<1x1x1x1x8x4xf32> to vector<8x4xf32>
    %c2_815 = arith.constant 2 : index
    %c2_816 = arith.constant 2 : index
    %c0_817 = arith.constant 0 : index
    %c0_818 = arith.constant 0 : index
    %472 = vector.load %arg2[%c2_815, %c2_816, %c0_817, %c0_818] : memref<3x3x4x4xf32, #tpu.memory_space<vmem>>, vector<1x1x4x4xf32>
    %473 = vector.shape_cast %472 : vector<1x1x4x4xf32> to vector<4x4xf32>
    %cst_819 = arith.constant dense<0.000000e+00> : vector<8x4xf32>
    %474 = tpu.matmul %471, %473, %cst_819 {dimension_numbers = #tpu.dot_dimension_numbers<[1], [0], [0], [1], [0, 0, 1, 1], [], []>} : vector<8x4xf32>, vector<4x4xf32>, vector<8x4xf32> -> vector<8x4xf32>
    %475 = arith.addf %469, %474 : vector<8x4xf32>
    %476 = vector.broadcast %0 : vector<1x4xf32> to vector<8x4xf32>
    %477 = arith.addf %475, %476 : vector<8x4xf32>
    %c0_820 = arith.constant 0 : index
    %c7_821 = arith.constant 7 : index
    %c0_822 = arith.constant 0 : index
    %c0_823 = arith.constant 0 : index
    %478 = vector.load %arg4[%c0_820, %c7_821, %c0_822, %c0_823] : memref<1x8x8x4xf32, #tpu.memory_space<vmem>>, vector<1x1x8x4xf32>
    %479 = vector.shape_cast %478 : vector<1x1x8x4xf32> to vector<8x4xf32>
    %480 = vector.shape_cast %477 : vector<8x4xf32> to vector<1x1x8x4xf32>
    tpu.vector_store %arg4[%c0_820, %c7_821, %c0_822, %c0_823], %480 {strides = array<i32>} : memref<1x8x8x4xf32, #tpu.memory_space<vmem>>, vector<1x1x8x4xf32>,
    return
  }
  func.func @transform_0(%arg0: i32) -> (i32, i32, i32, i32, i32, i32) {
    %c0_i32 = arith.constant 0 : i32
    %c0_i32_0 = arith.constant 0 : i32
    %c0_i32_1 = arith.constant 0 : i32
    %c0_i32_2 = arith.constant 0 : i32
    %c0_i32_3 = arith.constant 0 : i32
    %c0_i32_4 = arith.constant 0 : i32
    return %arg0, %c0_i32, %c0_i32_0, %c0_i32_1, %c0_i32_2, %c0_i32_3 : i32, i32, i32, i32, i32, i32
  }
  func.func @transform_1(%arg0: i32) -> (i32, i32, i32, i32) {
    %c0_i32 = arith.constant 0 : i32
    %c0_i32_0 = arith.constant 0 : i32
    %c0_i32_1 = arith.constant 0 : i32
    %c0_i32_2 = arith.constant 0 : i32
    %c0_i32_3 = arith.constant 0 : i32
    return %c0_i32, %c0_i32_0, %c0_i32_1, %c0_i32_2 : i32, i32, i32, i32
  }
  func.func @transform_2(%arg0: i32) -> (i32, i32) {
    %c0_i32 = arith.constant 0 : i32
    %c0_i32_0 = arith.constant 0 : i32
    %c0_i32_1 = arith.constant 0 : i32
    return %c0_i32, %c0_i32_0 : i32, i32
  }
  func.func @transform_3(%arg0: i32) -> (i32, i32, i32, i32) {
    %c0_i32 = arith.constant 0 : i32
    %c0_i32_0 = arith.constant 0 : i32
    %c0_i32_1 = arith.constant 0 : i32
    %c0_i32_2 = arith.constant 0 : i32
    return %arg0, %c0_i32, %c0_i32_0, %c0_i32_1 : i32, i32, i32, i32
  }
}

</mosaic_0001>

<llo_original>
// kernel: downsample_forward.1
$region0: #{downsample_forward.1}
  #allocation0 [shape = 'u32[]', space=smem, size = 0x4, offset = 0x4, fixed_abs, tag = 'smem constant byte address 0x4 - core index']
  #allocation1 [shape = 'u32[144,128]{1,0:T(1,128)}', space=vmem, size = 0x12000, scoped, tag = 'internal scratch']
  %s0 = inlined_call_operand.vmem [shape: f32[2,2,2,9,9,4], index: 0, kind: input, shape index: {}]
  %s1 = inlined_call_operand.vmem [shape: f32[3,3,4,4], index: 1, kind: input, shape index: {}]
  %s2 = inlined_call_operand.vmem [shape: f32[1,4], index: 2, kind: input, shape index: {}]
  %s3 = inlined_call_operand.vmem [shape: f32[2,8,8,4], index: 3, kind: output, shape index: {}]
  %s4 = sld [smem:[#allocation0]]
  $region45: #{downsample_forward.1} parent=0
    _
  %s6 = ssub.s32 1, %s4
  %s7 = scalar_select 0, %s6, %s4
  loop: start=0, step=1, limit=4
  $region2: #{downsample_forward.1} parent=0 // loop_pre_header
    _
  $region3: #{downsample_forward.1} parent=0 // loop_header
    %s9 = sphi 0, %s13
    %p10 = scmp.ge.s32.totalorder %s9, 4
    %s19 = sphi 0, %s21
    %s22 = sphi 0, %s19
    %s23 = sphi 0, %s22
    %s39 = sphi 0, %s23
    %s43 = sphi 0, %s43
    %s45 = sphi 0, %s43
    %s46 = sphi 0, %s45
    %s60 = sphi 0, %s46
    %s64 = sphi 0, %s64
    %s66 = sphi 0, %s64
    %s67 = sphi 0, %s66
    %s81 = sphi 0, %s67
    %s87 = sphi 0, %s89
    %s90 = sphi 0, %s87
    %s91 = sphi 0, %s90
    %s107 = sphi 0, %s91
  $region4: #{downsample_forward.1} parent=0 // loop_header_branch
    %12 = sbr.rel (%p10) target = $region8
  $region5: #{downsample_forward.1} parent=0 // loop_body
    %s14 = ssub.s32 %s9, 1
    %s15 = ssub.s32 %s9, 2
    %s16 = sadd.s32 %s9, 1
    %s17 = ssub.s32 %s9, %s16
    %p18 = scmp.eq.s32.totalorder %s17, 0
    %s20 = sadd.s32 %s19, 1
    %s21 = scalar_select %p18, %s19, %s20
    %p24 = pneg %p18
    %p25 = scmp.eq.s32.totalorder %s9, 1
    %p26 = por %p24, %p25
    %p27 = scmp.ne.s32.totalorder %s19, %s22
    %p28 = scmp.eq.s32.totalorder %s9, 0
    %p29 = por %p27, %p28
    %p30 = scmp.ne.s32.totalorder %s19, %s22
    %p31 = scmp.eq.s32.totalorder %s14, 1
    %p32 = por %p30, %p31
    %p33 = scmp.ne.s32.totalorder %s22, %s23
    %p34 = scmp.eq.s32.totalorder %s14, 0
    %p35 = por %p33, %p34
    %p36 = scmp.ne.s32.totalorder %s22, %s23
    %p37 = scmp.eq.s32.totalorder %s15, 1
    %p38 = por %p36, %p37
    %p40 = scmp.ne.s32.totalorder %s23, %s39
    %p41 = scmp.eq.s32.totalorder %s15, 0
    %p42 = por %p40, %p41
    %s44 = sadd.s32 %s43, 1
    %p47 = scmp.eq.s32.totalorder %s9, 1
    %p48 = scmp.ne.s32.totalorder %s43, %s45
    %p49 = scmp.eq.s32.totalorder %s9, 0
    %p50 = por %p48, %p49
    %p51 = scmp.ne.s32.totalorder %s43, %s45
    %p52 = scmp.eq.s32.totalorder %s14, 1
    %p53 = por %p51, %p52
    %p54 = scmp.ne.s32.totalorder %s45, %s46
    %p55 = scmp.eq.s32.totalorder %s14, 0
    %p56 = por %p54, %p55
    %p57 = scmp.ne.s32.totalorder %s45, %s46
    %p58 = scmp.eq.s32.totalorder %s15, 1
    %p59 = por %p57, %p58
    %p61 = scmp.ne.s32.totalorder %s46, %s60
    %p62 = scmp.eq.s32.totalorder %s15, 0
    %p63 = por %p61, %p62
    %s65 = sadd.s32 %s64, 1
    %p68 = scmp.eq.s32.totalorder %s9, 1
    %p69 = scmp.ne.s32.totalorder %s64, %s66
    %p70 = scmp.eq.s32.totalorder %s9, 0
    %p71 = por %p69, %p70
    %p72 = scmp.ne.s32.totalorder %s64, %s66
    %p73 = scmp.eq.s32.totalorder %s14, 1
    %p74 = por %p72, %p73
    %p75 = scmp.ne.s32.totalorder %s66, %s67
    %p76 = scmp.eq.s32.totalorder %s14, 0
    %p77 = por %p75, %p76
    %p78 = scmp.ne.s32.totalorder %s66, %s67
    %p79 = scmp.eq.s32.totalorder %s15, 1
    %p80 = por %p78, %p79
    %p82 = scmp.ne.s32.totalorder %s67, %s81
    %p83 = scmp.eq.s32.totalorder %s15, 0
    %p84 = por %p82, %p83
    %s85 = ssub.s32 %s9, %s16
    %p86 = scmp.eq.s32.totalorder %s85, 0
    %s88 = sadd.s32 %s87, 1
    %s89 = scalar_select %p86, %s87, %s88
    %p92 = pneg %p86
    %p93 = scmp.eq.s32.totalorder %s9, 1
    %p94 = por %p92, %p93
    %p95 = scmp.ne.s32.totalorder %s87, %s90
    %p96 = scmp.eq.s32.totalorder %s9, 0
    %p97 = por %p95, %p96
    %p98 = scmp.ne.s32.totalorder %s87, %s90
    %p99 = scmp.eq.s32.totalorder %s14, 1
    %p100 = por %p98, %p99
    %p101 = scmp.ne.s32.totalorder %s90, %s91
    %p102 = scmp.eq.s32.totalorder %s14, 0
    %p103 = por %p101, %p102
    %p104 = scmp.ne.s32.totalorder %s90, %s91
    %p105 = scmp.eq.s32.totalorder %s15, 1
    %p106 = por %p104, %p105
    %p108 = scmp.ne.s32.totalorder %s91, %s107
    %p109 = scmp.eq.s32.totalorder %s15, 0
    %p110 = por %p108, %p109
    %p111 = scmp.le.s32.totalorder 1, %s9
    %p112 = scmp.lt.s32.totalorder %s9, 3
    %p113 = pnand %p111, %p112
    %p114 = pneg %p113
    // Predicated region
    $region9: #{downsample_forward.1} parent=5 // pred_check
      _
    $region10: #{downsample_forward.1} parent=5 // pred_check_branch
      %116 = sbr.rel (%p113) target = $region12
    $region11: #{downsample_forward.1} parent=5 // pred_region
      %s117 = ssub.s32 %s9, 1
      // Predicated region
      $region13: #{downsample_forward.1} parent=11 // pred_check
        %p118 = pneg %p56
      $region14: #{downsample_forward.1} parent=11 // pred_check_branch
        %120 = sbr.rel (%p118) target = $region16
      $region15: #{downsample_forward.1} parent=11 // pred_region
        _
      $region16: #{downsample_forward.1} parent=11 // pred_fallthru
        _
      // Predicated region
      $region17: #{downsample_forward.1} parent=11 // pred_check
        %p121 = pneg %p77
      $region18: #{downsample_forward.1} parent=11 // pred_check_branch
        %123 = sbr.rel (%p121) target = $region20
      $region19: #{downsample_forward.1} parent=11 // pred_region
        _
      $region20: #{downsample_forward.1} parent=11 // pred_fallthru
        _
    $region12: #{downsample_forward.1} parent=5 // pred_fallthru
      _
    %p124 = scmp.lt.s32.totalorder %s9, 2
    // Predicated region
    $region21: #{downsample_forward.1} parent=5 // pred_check
      %p125 = pneg %p124
    $region22: #{downsample_forward.1} parent=5 // pred_check_branch
      %127 = sbr.rel (%p125) target = $region24
    $region23: #{downsample_forward.1} parent=5 // pred_region
      // Predicated region
      $region25: #{downsample_forward.1} parent=23 // pred_check
        %p128 = pneg %p29
      $region26: #{downsample_forward.1} parent=23 // pred_check_branch
        %130 = sbr.rel (%p128) target = $region28
      $region27: #{downsample_forward.1} parent=23 // pred_region
        %p131 = scmp.lt.s32.totalorder %s9, 1
        %s132 = scalar_select %p131, %s9, 1
        %s133 = smul.addr %s132, 72
        %s134 = smul.addr %s133, 8
        %s135 = scalar_lea.vmem %s0, %s134
      $region28: #{downsample_forward.1} parent=23 // pred_fallthru
        _
    $region24: #{downsample_forward.1} parent=5 // pred_fallthru
      _
    %p136 = scmp.le.s32.totalorder 1, %s9
    %p137 = scmp.lt.s32.totalorder %s9, 3
    %p138 = pnand %p136, %p137
    %p139 = pneg %p138
    // Predicated region
    $region29: #{downsample_forward.1} parent=5 // pred_check
      _
    $region30: #{downsample_forward.1} parent=5 // pred_check_branch
      %141 = sbr.rel (%p138) target = $region32
    $region31: #{downsample_forward.1} parent=5 // pred_region
      %s142 = ssub.s32 %s9, 1
      %p143 = scmp.lt.s32.totalorder %s14, 1
      %s144 = scalar_select %p143, %s14, 1
      %s145 = smul.addr %s144, 72
      %s146 = smul.addr %s145, 8
      %s147 = scalar_lea.vmem %s0, %s146
      %p148 = pneg %p35
      %p149 = pneg %p32
      %p150 = pneg %p56
      %p151 = pneg %p53
      %p152 = pneg %p77
      %p153 = pneg %p74
      %p154 = pneg %p103
      %p155 = pneg %p100
      %p156 = scmp.lt.s32.totalorder %s14, 1
      %s157 = scalar_select %p156, %s14, 1
      %s158 = smul.addr %s157, 8
      %s159 = smul.addr %s158, 8
      %s160 = scalar_lea.vmem %s3, %s159
      %p161 = scmp.lt.s32.totalorder %s14, 1
      %s162 = scalar_select %p161, %s14, 1
      %s163 = smul.addr %s162, 72
      %s164 = smul.addr %s163, 8
      %s165 = scalar_lea.vmem %s0, %s164
      %p166 = scmp.lt.s32.totalorder %s14, 1
      %s167 = scalar_select %p166, %s14, 1
      %s168 = smul.addr %s167, 8
      %s169 = smul.addr %s168, 8
      %s170 = scalar_lea.vmem %s3, %s169
      %v171 = vld [vmem:[%s2] sm:$0x1]
      %v172 = vld [vmem:[%s165] sm:$0xff]
      %v173 = vld [vmem:[%s1] sm:$0xf]
      %s174 = scalar_lea.vmem %s165, 144
      %v175 = vld [vmem:[%s174] sm:$0xff]
      %s176 = scalar_lea.vmem %s1, 4
      %v177 = vld [vmem:[%s176] sm:$0xf]
      %vm178 = vcmask 31744
      %v180 = vsel %vm178, %v175, 0
      %vm182 = vcmask 1043456
      %v184 = vsel %vm182, %v177, 0
      %186 = vmatprep.subr.mxu0 0.0
      %187 = vmatpush1.msra.mxu0 0.0
      %188 = vmatprep.subr.mxu0 0.0
      %189 = vmatpush1.msra.mxu0 0.0
      %190 = vmatprep.subr.mxu0 0.0
      %191 = vmatpush1.msra.mxu0 0.0
      %192 = vmatprep.subr.mxu0 0.0
      %193 = vmatpush1.msra.mxu0 0.0
      %194 = vmatprep.subr.mxu0 0.0
      %195 = vmatpush1.msra.mxu0 0.0
      %196 = vmatprep.subr.mxu0 0.0
      %197 = vmatpush1.msra.mxu0 0.0
      %198 = vmatprep.subr.mxu0 0.0
      %199 = vmatpush1.msra.mxu0 0.0
      %200 = vmatprep.subr.mxu0 0.0
      %201 = vmatpush1.msra.mxu0 0.0
      %202 = vmatprep.subr.mxu0 0.0
      %203 = vmatpush1.msra.mxu0 0.0
      %204 = vmatprep.subr.mxu0 0.0
      %205 = vmatpush1.msra.mxu0 0.0
      %206 = vmatprep.subr.mxu0 0.0
      %207 = vmatpush1.msra.mxu0 0.0
      %208 = vmatprep.subr.mxu0 0.0
      %209 = vmatpush1.msra.mxu0 0.0
      %210 = vmatprep.subr.mxu0 0.0
      %211 = vmatpush1.msra.mxu0 0.0
      %212 = vmatprep.subr.mxu0 0.0
      %213 = vmatpush1.msra.mxu0 0.0
      %214 = vmatprep.subr.mxu0 0.0
      %215 = vmatpush1.msra.mxu0 0.0
      %216 = vmatprep.subr.mxu0 0.0
      %217 = vmatpush1.msra.mxu0 %v184
      %218 = vmatprep.subr.mxu0 0.0
      %219 = vmatpush2.msra.mxu0 0.0
      %220 = vmatprep.subr.mxu0 0.0
      %221 = vmatpush2.msra.mxu0 0.0
      %222 = vmatprep.subr.mxu0 0.0
      %223 = vmatpush2.msra.mxu0 0.0
      %224 = vmatprep.subr.mxu0 0.0
      %225 = vmatpush2.msra.mxu0 0.0
      %226 = vmatprep.subr.mxu0 0.0
      %227 = vmatpush2.msra.mxu0 0.0
      %228 = vmatprep.subr.mxu0 0.0
      %229 = vmatpush2.msra.mxu0 0.0
      %230 = vmatprep.subr.mxu0 0.0
      %231 = vmatpush2.msra.mxu0 0.0
      %232 = vmatprep.subr.mxu0 0.0
      %233 = vmatpush2.msra.mxu0 0.0
      %234 = vmatprep.subr.mxu0 0.0
      %235 = vmatpush2.msra.mxu0 0.0
      %236 = vmatprep.subr.mxu0 0.0
      %237 = vmatpush2.msra.mxu0 0.0
      %238 = vmatprep.subr.mxu0 0.0
      %239 = vmatpush2.msra.mxu0 0.0
      %240 = vmatprep.subr.mxu0 0.0
      %241 = vmatpush2.msra.mxu0 0.0
      %242 = vmatprep.subr.mxu0 0.0
      %243 = vmatpush2.msra.mxu0 0.0
      %244 = vmatprep.subr.mxu0 0.0
      %245 = vmatpush2.msra.mxu0 0.0
      %246 = vmatprep.subr.mxu0 0.0
      %247 = vmatpush2.msra.mxu0 0.0
      %248 = vmatprep.subr.mxu0 0.0
      %249 = vmatpush2.msra.mxu0 0.0
      %250 = vmatprep.mubr.f32.mxu0 0.0
      %251 = vmatmul.mubr.f32.gmra.mxu0 %v180
      %v252 = vpop.f32.mrf.mxu0
      %v253 = vadd.f32 0.0, %v252
      %v254 = vpop.f32.mrf.mxu0
      %255 = vdwg.mxu0
      %v257 = vsel %vm178, %v172, 0
      %v260 = vsel %vm182, %v173, 0
      %262 = vmatprep.subr.mxu0 0.0
      %263 = vmatpush1.msra.mxu0 0.0
      %264 = vmatprep.subr.mxu0 0.0
      %265 = vmatpush1.msra.mxu0 0.0
      %266 = vmatprep.subr.mxu0 0.0
      %267 = vmatpush1.msra.mxu0 0.0
      %268 = vmatprep.subr.mxu0 0.0
      %269 = vmatpush1.msra.mxu0 0.0
      %270 = vmatprep.subr.mxu0 0.0
      %271 = vmatpush1.msra.mxu0 0.0
      %272 = vmatprep.subr.mxu0 0.0
      %273 = vmatpush1.msra.mxu0 0.0
      %274 = vmatprep.subr.mxu0 0.0
      %275 = vmatpush1.msra.mxu0 0.0
      %276 = vmatprep.subr.mxu0 0.0
      %277 = vmatpush1.msra.mxu0 0.0
      %278 = vmatprep.subr.mxu0 0.0
      %279 = vmatpush1.msra.mxu0 0.0
      %280 = vmatprep.subr.mxu0 0.0
      %281 = vmatpush1.msra.mxu0 0.0
      %282 = vmatprep.subr.mxu0 0.0
      %283 = vmatpush1.msra.mxu0 0.0
      %284 = vmatprep.subr.mxu0 0.0
      %285 = vmatpush1.msra.mxu0 0.0
      %286 = vmatprep.subr.mxu0 0.0
      %287 = vmatpush1.msra.mxu0 0.0
      %288 = vmatprep.subr.mxu0 0.0
      %289 = vmatpush1.msra.mxu0 0.0
      %290 = vmatprep.subr.mxu0 0.0
      %291 = vmatpush1.msra.mxu0 0.0
      %292 = vmatprep.subr.mxu0 0.0
      %293 = vmatpush1.msra.mxu0 %v260
      %294 = vmatprep.subr.mxu0 0.0
      %295 = vmatpush2.msra.mxu0 0.0
      %296 = vmatprep.subr.mxu0 0.0
      %297 = vmatpush2.msra.mxu0 0.0
      %298 = vmatprep.subr.mxu0 0.0
      %299 = vmatpush2.msra.mxu0 0.0
      %300 = vmatprep.subr.mxu0 0.0
      %301 = vmatpush2.msra.mxu0 0.0
      %302 = vmatprep.subr.mxu0 0.0
      %303 = vmatpush2.msra.mxu0 0.0
      %304 = vmatprep.subr.mxu0 0.0
      %305 = vmatpush2.msra.mxu0 0.0
      %306 = vmatprep.subr.mxu0 0.0
      %307 = vmatpush2.msra.mxu0 0.0
      %308 = vmatprep.subr.mxu0 0.0
      %309 = vmatpush2.msra.mxu0 0.0
      %310 = vmatprep.subr.mxu0 0.0
      %311 = vmatpush2.msra.mxu0 0.0
      %312 = vmatprep.subr.mxu0 0.0
      %313 = vmatpush2.msra.mxu0 0.0
      %314 = vmatprep.subr.mxu0 0.0
      %315 = vmatpush2.msra.mxu0 0.0
      %316 = vmatprep.subr.mxu0 0.0
      %317 = vmatpush2.msra.mxu0 0.0
      %318 = vmatprep.subr.mxu0 0.0
      %319 = vmatpush2.msra.mxu0 0.0
      %320 = vmatprep.subr.mxu0 0.0
      %321 = vmatpush2.msra.mxu0 0.0
      %322 = vmatprep.subr.mxu0 0.0
      %323 = vmatpush2.msra.mxu0 0.0
      %324 = vmatprep.subr.mxu0 0.0
      %325 = vmatpush2.msra.mxu0 0.0
      %326 = vmatprep.mubr.f32.mxu0 0.0
      %327 = vmatmul.mubr.f32.gmra.mxu0 %v257
      %v328 = vpop.f32.mrf.mxu0
      %v329 = vadd.f32 %v253, %v328
      %v330 = vpop.f32.mrf.mxu0
      %331 = vdwg.mxu0
      %v332 = vld [vmem:[%s165 + $0x1] sm:$0xff]
      %s333 = scalar_lea.vmem %s1, 8
      %v334 = vld [vmem:[%s333] sm:$0xf]
      %v336 = vsel %vm178, %v332, 0
      %v339 = vsel %vm182, %v334, 0
      %341 = vmatprep.subr.mxu0 0.0
      %342 = vmatpush1.msra.mxu0 0.0
      %343 = vmatprep.subr.mxu0 0.0
      %344 = vmatpush1.msra.mxu0 0.0
      %345 = vmatprep.subr.mxu0 0.0
      %346 = vmatpush1.msra.mxu0 0.0
      %347 = vmatprep.subr.mxu0 0.0
      %348 = vmatpush1.msra.mxu0 0.0
      %349 = vmatprep.subr.mxu0 0.0
      %350 = vmatpush1.msra.mxu0 0.0
      %351 = vmatprep.subr.mxu0 0.0
      %352 = vmatpush1.msra.mxu0 0.0
      %353 = vmatprep.subr.mxu0 0.0
      %354 = vmatpush1.msra.mxu0 0.0
      %355 = vmatprep.subr.mxu0 0.0
      %356 = vmatpush1.msra.mxu0 0.0
      %357 = vmatprep.subr.mxu0 0.0
      %358 = vmatpush1.msra.mxu0 0.0
      %359 = vmatprep.subr.mxu0 0.0
      %360 = vmatpush1.msra.mxu0 0.0
      %361 = vmatprep.subr.mxu0 0.0
      %362 = vmatpush1.msra.mxu0 0.0
      %363 = vmatprep.subr.mxu0 0.0
      %364 = vmatpush1.msra.mxu0 0.0
      %365 = vmatprep.subr.mxu0 0.0
      %366 = vmatpush1.msra.mxu0 0.0
      %367 = vmatprep.subr.mxu0 0.0
      %368 = vmatpush1.msra.mxu0 0.0
      %369 = vmatprep.subr.mxu0 0.0
      %370 = vmatpush1.msra.mxu0 0.0
      %371 = vmatprep.subr.mxu0 0.0
      %372 = vmatpush1.msra.mxu0 %v339
      %373 = vmatprep.subr.mxu0 0.0
      %374 = vmatpush2.msra.mxu0 0.0
      %375 = vmatprep.subr.mxu0 0.0
      %376 = vmatpush2.msra.mxu0 0.0
      %377 = vmatprep.subr.mxu0 0.0
      %378 = vmatpush2.msra.mxu0 0.0
      %379 = vmatprep.subr.mxu0 0.0
      %380 = vmatpush2.msra.mxu0 0.0
      %381 = vmatprep.subr.mxu0 0.0
      %382 = vmatpush2.msra.mxu0 0.0
      %383 = vmatprep.subr.mxu0 0.0
      %384 = vmatpush2.msra.mxu0 0.0
      %385 = vmatprep.subr.mxu0 0.0
      %386 = vmatpush2.msra.mxu0 0.0
      %387 = vmatprep.subr.mxu0 0.0
      %388 = vmatpush2.msra.mxu0 0.0
      %389 = vmatprep.subr.mxu0 0.0
      %390 = vmatpush2.msra.mxu0 0.0
      %391 = vmatprep.subr.mxu0 0.0
      %392 = vmatpush2.msra.mxu0 0.0
      %393 = vmatprep.subr.mxu0 0.0
      %394 = vmatpush2.msra.mxu0 0.0
      %395 = vmatprep.subr.mxu0 0.0
      %396 = vmatpush2.msra.mxu0 0.0
      %397 = vmatprep.subr.mxu0 0.0
      %398 = vmatpush2.msra.mxu0 0.0
      %399 = vmatprep.subr.mxu0 0.0
      %400 = vmatpush2.msra.mxu0 0.0
      %401 = vmatprep.subr.mxu0 0.0
      %402 = vmatpush2.msra.mxu0 0.0
      %403 = vmatprep.subr.mxu0 0.0
      %404 = vmatpush2.msra.mxu0 0.0
      %405 = vmatprep.mubr.f32.mxu0 0.0
      %406 = vmatmul.mubr.f32.gmra.mxu0 %v336
      %v407 = vpop.f32.mrf.mxu0
      %v408 = vadd.f32 0.0, %v407
      %v409 = vpop.f32.mrf.mxu0
      %410 = vdwg.mxu0
      %v411 = vadd.f32 %v329, %v408
      %s412 = scalar_lea.vmem %s165, 288
      %v413 = vld [vmem:[%s412] sm:$0xff]
      %s414 = scalar_lea.vmem %s1, 12
      %v415 = vld [vmem:[%s414] sm:$0xf]
      %v417 = vsel %vm178, %v413, 0
      %v420 = vsel %vm182, %v415, 0
      %422 = vmatprep.subr.mxu0 0.0
      %423 = vmatpush1.msra.mxu0 0.0
      %424 = vmatprep.subr.mxu0 0.0
      %425 = vmatpush1.msra.mxu0 0.0
      %426 = vmatprep.subr.mxu0 0.0
      %427 = vmatpush1.msra.mxu0 0.0
      %428 = vmatprep.subr.mxu0 0.0
      %429 = vmatpush1.msra.mxu0 0.0
      %430 = vmatprep.subr.mxu0 0.0
      %431 = vmatpush1.msra.mxu0 0.0
      %432 = vmatprep.subr.mxu0 0.0
      %433 = vmatpush1.msra.mxu0 0.0
      %434 = vmatprep.subr.mxu0 0.0
      %435 = vmatpush1.msra.mxu0 0.0
      %436 = vmatprep.subr.mxu0 0.0
      %437 = vmatpush1.msra.mxu0 0.0
      %438 = vmatprep.subr.mxu0 0.0
      %439 = vmatpush1.msra.mxu0 0.0
      %440 = vmatprep.subr.mxu0 0.0
      %441 = vmatpush1.msra.mxu0 0.0
      %442 = vmatprep.subr.mxu0 0.0
      %443 = vmatpush1.msra.mxu0 0.0
      %444 = vmatprep.subr.mxu0 0.0
      %445 = vmatpush1.msra.mxu0 0.0
      %446 = vmatprep.subr.mxu0 0.0
      %447 = vmatpush1.msra.mxu0 0.0
      %448 = vmatprep.subr.mxu0 0.0
      %449 = vmatpush1.msra.mxu0 0.0
      %450 = vmatprep.subr.mxu0 0.0
      %451 = vmatpush1.msra.mxu0 0.0
      %452 = vmatprep.subr.mxu0 0.0
      %453 = vmatpush1.msra.mxu0 %v420
      %454 = vmatprep.subr.mxu0 0.0
      %455 = vmatpush2.msra.mxu0 0.0
      %456 = vmatprep.subr.mxu0 0.0
      %457 = vmatpush2.msra.mxu0 0.0
      %458 = vmatprep.subr.mxu0 0.0
      %459 = vmatpush2.msra.mxu0 0.0
      %460 = vmatprep.subr.mxu0 0.0
      %461 = vmatpush2.msra.mxu0 0.0
      %462 = vmatprep.subr.mxu0 0.0
      %463 = vmatpush2.msra.mxu0 0.0
      %464 = vmatprep.subr.mxu0 0.0
      %465 = vmatpush2.msra.mxu0 0.0
      %466 = vmatprep.subr.mxu0 0.0
      %467 = vmatpush2.msra.mxu0 0.0
      %468 = vmatprep.subr.mxu0 0.0
      %469 = vmatpush2.msra.mxu0 0.0
      %470 = vmatprep.subr.mxu0 0.0
      %471 = vmatpush2.msra.mxu0 0.0
      %472 = vmatprep.subr.mxu0 0.0
      %473 = vmatpush2.msra.mxu0 0.0
      %474 = vmatprep.subr.mxu0 0.0
      %475 = vmatpush2.msra.mxu0 0.0
      %476 = vmatprep.subr.mxu0 0.0
      %477 = vmatpush2.msra.mxu0 0.0
      %478 = vmatprep.subr.mxu0 0.0
      %479 = vmatpush2.msra.mxu0 0.0
      %480 = vmatprep.subr.mxu0 0.0
      %481 = vmatpush2.msra.mxu0 0.0
      %482 = vmatprep.subr.mxu0 0.0
      %483 = vmatpush2.msra.mxu0 0.0
      %484 = vmatprep.subr.mxu0 0.0
      %485 = vmatpush2.msra.mxu0 0.0
      %486 = vmatprep.mubr.f32.mxu0 0.0
      %487 = vmatmul.mubr.f32.gmra.mxu0 %v417
      %v488 = vpop.f32.mrf.mxu0
      %v489 = vadd.f32 0.0, %v488
      %v490 = vpop.f32.mrf.mxu0
      %491 = vdwg.mxu0
      %v492 = vadd.f32 %v411, %v489
      %s493 = scalar_lea.vmem %s165, 432
      %v494 = vld [vmem:[%s493] sm:$0xff]
      %s495 = scalar_lea.vmem %s1, 16
      %v496 = vld [vmem:[%s495] sm:$0xf]
      %v498 = vsel %vm178, %v494, 0
      %v501 = vsel %vm182, %v496, 0
      %503 = vmatprep.subr.mxu0 0.0
      %504 = vmatpush1.msra.mxu0 0.0
      %505 = vmatprep.subr.mxu0 0.0
      %506 = vmatpush1.msra.mxu0 0.0
      %507 = vmatprep.subr.mxu0 0.0
      %508 = vmatpush1.msra.mxu0 0.0
      %509 = vmatprep.subr.mxu0 0.0
      %510 = vmatpush1.msra.mxu0 0.0
      %511 = vmatprep.subr.mxu0 0.0
      %512 = vmatpush1.msra.mxu0 0.0
      %513 = vmatprep.subr.mxu0 0.0
      %514 = vmatpush1.msra.mxu0 0.0
      %515 = vmatprep.subr.mxu0 0.0
      %516 = vmatpush1.msra.mxu0 0.0
      %517 = vmatprep.subr.mxu0 0.0
      %518 = vmatpush1.msra.mxu0 0.0
      %519 = vmatprep.subr.mxu0 0.0
      %520 = vmatpush1.msra.mxu0 0.0
      %521 = vmatprep.subr.mxu0 0.0
      %522 = vmatpush1.msra.mxu0 0.0
      %523 = vmatprep.subr.mxu0 0.0
      %524 = vmatpush1.msra.mxu0 0.0
      %525 = vmatprep.subr.mxu0 0.0
      %526 = vmatpush1.msra.mxu0 0.0
      %527 = vmatprep.subr.mxu0 0.0
      %528 = vmatpush1.msra.mxu0 0.0
      %529 = vmatprep.subr.mxu0 0.0
      %530 = vmatpush1.msra.mxu0 0.0
      %531 = vmatprep.subr.mxu0 0.0
      %532 = vmatpush1.msra.mxu0 0.0
      %533 = vmatprep.subr.mxu0 0.0
      %534 = vmatpush1.msra.mxu0 %v501
      %535 = vmatprep.subr.mxu0 0.0
      %536 = vmatpush2.msra.mxu0 0.0
      %537 = vmatprep.subr.mxu0 0.0
      %538 = vmatpush2.msra.mxu0 0.0
      %539 = vmatprep.subr.mxu0 0.0
      %540 = vmatpush2.msra.mxu0 0.0
      %541 = vmatprep.subr.mxu0 0.0
      %542 = vmatpush2.msra.mxu0 0.0
      %543 = vmatprep.subr.mxu0 0.0
      %544 = vmatpush2.msra.mxu0 0.0
      %545 = vmatprep.subr.mxu0 0.0
      %546 = vmatpush2.msra.mxu0 0.0
      %547 = vmatprep.subr.mxu0 0.0
      %548 = vmatpush2.msra.mxu0 0.0
      %549 = vmatprep.subr.mxu0 0.0
      %550 = vmatpush2.msra.mxu0 0.0
      %551 = vmatprep.subr.mxu0 0.0
      %552 = vmatpush2.msra.mxu0 0.0
      %553 = vmatprep.subr.mxu0 0.0
      %554 = vmatpush2.msra.mxu0 0.0
      %555 = vmatprep.subr.mxu0 0.0
      %556 = vmatpush2.msra.mxu0 0.0
      %557 = vmatprep.subr.mxu0 0.0
      %558 = vmatpush2.msra.mxu0 0.0
      %559 = vmatprep.subr.mxu0 0.0
      %560 = vmatpush2.msra.mxu0 0.0
      %561 = vmatprep.subr.mxu0 0.0
      %562 = vmatpush2.msra.mxu0 0.0
      %563 = vmatprep.subr.mxu0 0.0
      %564 = vmatpush2.msra.mxu0 0.0
      %565 = vmatprep.subr.mxu0 0.0
      %566 = vmatpush2.msra.mxu0 0.0
      %567 = vmatprep.mubr.f32.mxu0 0.0
      %568 = vmatmul.mubr.f32.gmra.mxu0 %v498
      %v569 = vpop.f32.mrf.mxu0
      %v570 = vadd.f32 0.0, %v569
      %v571 = vpop.f32.mrf.mxu0
      %572 = vdwg.mxu0
      %v573 = vadd.f32 %v492, %v570
      %v574 = vld [vmem:[%s412 + $0x1] sm:$0xff]
      %s575 = scalar_lea.vmem %s1, 20
      %v576 = vld [vmem:[%s575] sm:$0xf]
      %v578 = vsel %vm178, %v574, 0
      %v581 = vsel %vm182, %v576, 0
      %583 = vmatprep.subr.mxu0 0.0
      %584 = vmatpush1.msra.mxu0 0.0
      %585 = vmatprep.subr.mxu0 0.0
      %586 = vmatpush1.msra.mxu0 0.0
      %587 = vmatprep.subr.mxu0 0.0
      %588 = vmatpush1.msra.mxu0 0.0
      %589 = vmatprep.subr.mxu0 0.0
      %590 = vmatpush1.msra.mxu0 0.0
      %591 = vmatprep.subr.mxu0 0.0
      %592 = vmatpush1.msra.mxu0 0.0
      %593 = vmatprep.subr.mxu0 0.0
      %594 = vmatpush1.msra.mxu0 0.0
      %595 = vmatprep.subr.mxu0 0.0
      %596 = vmatpush1.msra.mxu0 0.0
      %597 = vmatprep.subr.mxu0 0.0
      %598 = vmatpush1.msra.mxu0 0.0
      %599 = vmatprep.subr.mxu0 0.0
      %600 = vmatpush1.msra.mxu0 0.0
      %601 = vmatprep.subr.mxu0 0.0
      %602 = vmatpush1.msra.mxu0 0.0
      %603 = vmatprep.subr.mxu0 0.0
      %604 = vmatpush1.msra.mxu0 0.0
      %605 = vmatprep.subr.mxu0 0.0
      %606 = vmatpush1.msra.mxu0 0.0
      %607 = vmatprep.subr.mxu0 0.0
      %608 = vmatpush1.msra.mxu0 0.0
      %609 = vmatprep.subr.mxu0 0.0
      %610 = vmatpush1.msra.mxu0 0.0
      %611 = vmatprep.subr.mxu0 0.0
      %612 = vmatpush1.msra.mxu0 0.0
      %613 = vmatprep.subr.mxu0 0.0
      %614 = vmatpush1.msra.mxu0 %v581
      %615 = vmatprep.subr.mxu0 0.0
      %616 = vmatpush2.msra.mxu0 0.0
      %617 = vmatprep.subr.mxu0 0.0
      %618 = vmatpush2.msra.mxu0 0.0
      %619 = vmatprep.subr.mxu0 0.0
      %620 = vmatpush2.msra.mxu0 0.0
      %621 = vmatprep.subr.mxu0 0.0
      %622 = vmatpush2.msra.mxu0 0.0
      %623 = vmatprep.subr.mxu0 0.0
      %624 = vmatpush2.msra.mxu0 0.0
      %625 = vmatprep.subr.mxu0 0.0
      %626 = vmatpush2.msra.mxu0 0.0
      %627 = vmatprep.subr.mxu0 0.0
      %628 = vmatpush2.msra.mxu0 0.0
      %629 = vmatprep.subr.mxu0 0.0
      %630 = vmatpush2.msra.mxu0 0.0
      %631 = vmatprep.subr.mxu0 0.0
      %632 = vmatpush2.msra.mxu0 0.0
      %633 = vmatprep.subr.mxu0 0.0
      %634 = vmatpush2.msra.mxu0 0.0
      %635 = vmatprep.subr.mxu0 0.0
      %636 = vmatpush2.msra.mxu0 0.0
      %637 = vmatprep.subr.mxu0 0.0
      %638 = vmatpush2.msra.mxu0 0.0
      %639 = vmatprep.subr.mxu0 0.0
      %640 = vmatpush2.msra.mxu0 0.0
      %641 = vmatprep.subr.mxu0 0.0
      %642 = vmatpush2.msra.mxu0 0.0
      %643 = vmatprep.subr.mxu0 0.0
      %644 = vmatpush2.msra.mxu0 0.0
      %645 = vmatprep.subr.mxu0 0.0
      %646 = vmatpush2.msra.mxu0 0.0
      %647 = vmatprep.mubr.f32.mxu0 0.0
      %648 = vmatmul.mubr.f32.gmra.mxu0 %v578
      %v649 = vpop.f32.mrf.mxu0
      %v650 = vadd.f32 0.0, %v649
      %v651 = vpop.f32.mrf.mxu0
      %652 = vdwg.mxu0
      %v653 = vadd.f32 %v573, %v650
      %s654 = scalar_lea.vmem %s165, 16
      %v655 = vld [vmem:[%s654] sm:$0xff]
      %s656 = scalar_lea.vmem %s1, 24
      %v657 = vld [vmem:[%s656] sm:$0xf]
      %v659 = vsel %vm178, %v655, 0
      %v662 = vsel %vm182, %v657, 0
      %664 = vmatprep.subr.mxu0 0.0
      %665 = vmatpush1.msra.mxu0 0.0
      %666 = vmatprep.subr.mxu0 0.0
      %667 = vmatpush1.msra.mxu0 0.0
      %668 = vmatprep.subr.mxu0 0.0
      %669 = vmatpush1.msra.mxu0 0.0
      %670 = vmatprep.subr.mxu0 0.0
      %671 = vmatpush1.msra.mxu0 0.0
      %672 = vmatprep.subr.mxu0 0.0
      %673 = vmatpush1.msra.mxu0 0.0
      %674 = vmatprep.subr.mxu0 0.0
      %675 = vmatpush1.msra.mxu0 0.0
      %676 = vmatprep.subr.mxu0 0.0
      %677 = vmatpush1.msra.mxu0 0.0
      %678 = vmatprep.subr.mxu0 0.0
      %679 = vmatpush1.msra.mxu0 0.0
      %680 = vmatprep.subr.mxu0 0.0
      %681 = vmatpush1.msra.mxu0 0.0
      %682 = vmatprep.subr.mxu0 0.0
      %683 = vmatpush1.msra.mxu0 0.0
      %684 = vmatprep.subr.mxu0 0.0
      %685 = vmatpush1.msra.mxu0 0.0
      %686 = vmatprep.subr.mxu0 0.0
      %687 = vmatpush1.msra.mxu0 0.0
      %688 = vmatprep.subr.mxu0 0.0
      %689 = vmatpush1.msra.mxu0 0.0
      %690 = vmatprep.subr.mxu0 0.0
      %691 = vmatpush1.msra.mxu0 0.0
      %692 = vmatprep.subr.mxu0 0.0
      %693 = vmatpush1.msra.mxu0 0.0
      %694 = vmatprep.subr.mxu0 0.0
      %695 = vmatpush1.msra.mxu0 %v662
      %696 = vmatprep.subr.mxu0 0.0
      %697 = vmatpush2.msra.mxu0 0.0
      %698 = vmatprep.subr.mxu0 0.0
      %699 = vmatpush2.msra.mxu0 0.0
      %700 = vmatprep.subr.mxu0 0.0
      %701 = vmatpush2.msra.mxu0 0.0
      %702 = vmatprep.subr.mxu0 0.0
      %703 = vmatpush2.msra.mxu0 0.0
      %704 = vmatprep.subr.mxu0 0.0
      %705 = vmatpush2.msra.mxu0 0.0
      %706 = vmatprep.subr.mxu0 0.0
      %707 = vmatpush2.msra.mxu0 0.0
      %708 = vmatprep.subr.mxu0 0.0
      %709 = vmatpush2.msra.mxu0 0.0
      %710 = vmatprep.subr.mxu0 0.0
      %711 = vmatpush2.msra.mxu0 0.0
      %712 = vmatprep.subr.mxu0 0.0
      %713 = vmatpush2.msra.mxu0 0.0
      %714 = vmatprep.subr.mxu0 0.0
      %715 = vmatpush2.msra.mxu0 0.0
      %716 = vmatprep.subr.mxu0 0.0
      %717 = vmatpush2.msra.mxu0 0.0
      %718 = vmatprep.subr.mxu0 0.0
      %719 = vmatpush2.msra.mxu0 0.0
      %720 = vmatprep.subr.mxu0 0.0
      %721 = vmatpush2.msra.mxu0 0.0
      %722 = vmatprep.subr.mxu0 0.0
      %723 = vmatpush2.msra.mxu0 0.0
      %724 = vmatprep.subr.mxu0 0.0
      %725 = vmatpush2.msra.mxu0 0.0
      %726 = vmatprep.subr.mxu0 0.0
      %727 = vmatpush2.msra.mxu0 0.0
      %728 = vmatprep.mubr.f32.mxu0 0.0
      %729 = vmatmul.mubr.f32.gmra.mxu0 %v659
      %v730 = vpop.f32.mrf.mxu0
      %v731 = vadd.f32 0.0, %v730
      %v732 = vpop.f32.mrf.mxu0
      %733 = vdwg.mxu0
      %v734 = vadd.f32 %v653, %v731
      %s735 = scalar_lea.vmem %s165, 160
      %v736 = vld [vmem:[%s735] sm:$0xff]
      %s737 = scalar_lea.vmem %s1, 28
      %v738 = vld [vmem:[%s737] sm:$0xf]
      %v740 = vsel %vm178, %v736, 0
      %v743 = vsel %vm182, %v738, 0
      %745 = vmatprep.subr.mxu0 0.0
      %746 = vmatpush1.msra.mxu0 0.0
      %747 = vmatprep.subr.mxu0 0.0
      %748 = vmatpush1.msra.mxu0 0.0
      %749 = vmatprep.subr.mxu0 0.0
      %750 = vmatpush1.msra.mxu0 0.0
      %751 = vmatprep.subr.mxu0 0.0
      %752 = vmatpush1.msra.mxu0 0.0
      %753 = vmatprep.subr.mxu0 0.0
      %754 = vmatpush1.msra.mxu0 0.0
      %755 = vmatprep.subr.mxu0 0.0
      %756 = vmatpush1.msra.mxu0 0.0
      %757 = vmatprep.subr.mxu0 0.0
      %758 = vmatpush1.msra.mxu0 0.0
      %759 = vmatprep.subr.mxu0 0.0
      %760 = vmatpush1.msra.mxu0 0.0
      %761 = vmatprep.subr.mxu0 0.0
      %762 = vmatpush1.msra.mxu0 0.0
      %763 = vmatprep.subr.mxu0 0.0
      %764 = vmatpush1.msra.mxu0 0.0
      %765 = vmatprep.subr.mxu0 0.0
      %766 = vmatpush1.msra.mxu0 0.0
      %767 = vmatprep.subr.mxu0 0.0
      %768 = vmatpush1.msra.mxu0 0.0
      %769 = vmatprep.subr.mxu0 0.0
      %770 = vmatpush1.msra.mxu0 0.0
      %771 = vmatprep.subr.mxu0 0.0
      %772 = vmatpush1.msra.mxu0 0.0
      %773 = vmatprep.subr.mxu0 0.0
      %774 = vmatpush1.msra.mxu0 0.0
      %775 = vmatprep.subr.mxu0 0.0
      %776 = vmatpush1.msra.mxu0 %v743
      %777 = vmatprep.subr.mxu0 0.0
      %778 = vmatpush2.msra.mxu0 0.0
      %779 = vmatprep.subr.mxu0 0.0
      %780 = vmatpush2.msra.mxu0 0.0
      %781 = vmatprep.subr.mxu0 0.0
      %782 = vmatpush2.msra.mxu0 0.0
      %783 = vmatprep.subr.mxu0 0.0
      %784 = vmatpush2.msra.mxu0 0.0
      %785 = vmatprep.subr.mxu0 0.0
      %786 = vmatpush2.msra.mxu0 0.0
      %787 = vmatprep.subr.mxu0 0.0
      %788 = vmatpush2.msra.mxu0 0.0
      %789 = vmatprep.subr.mxu0 0.0
      %790 = vmatpush2.msra.mxu0 0.0
      %791 = vmatprep.subr.mxu0 0.0
      %792 = vmatpush2.msra.mxu0 0.0
      %793 = vmatprep.subr.mxu0 0.0
      %794 = vmatpush2.msra.mxu0 0.0
      %795 = vmatprep.subr.mxu0 0.0
      %796 = vmatpush2.msra.mxu0 0.0
      %797 = vmatprep.subr.mxu0 0.0
      %798 = vmatpush2.msra.mxu0 0.0
      %799 = vmatprep.subr.mxu0 0.0
      %800 = vmatpush2.msra.mxu0 0.0
      %801 = vmatprep.subr.mxu0 0.0
      %802 = vmatpush2.msra.mxu0 0.0
      %803 = vmatprep.subr.mxu0 0.0
      %804 = vmatpush2.msra.mxu0 0.0
      %805 = vmatprep.subr.mxu0 0.0
      %806 = vmatpush2.msra.mxu0 0.0
      %807 = vmatprep.subr.mxu0 0.0
      %808 = vmatpush2.msra.mxu0 0.0
      %809 = vmatprep.mubr.f32.mxu0 0.0
      %810 = vmatmul.mubr.f32.gmra.mxu0 %v740
      %v811 = vpop.f32.mrf.mxu0
      %v812 = vadd.f32 0.0, %v811
      %v813 = vpop.f32.mrf.mxu0
      %814 = vdwg.mxu0
      %v815 = vadd.f32 %v734, %v812
      %v816 = vld [vmem:[%s654 + $0x1] sm:$0xff]
      %s817 = scalar_lea.vmem %s1, 32
      %v818 = vld [vmem:[%s817] sm:$0xf]
      %v820 = vsel %vm178, %v816, 0
      %v823 = vsel %vm182, %v818, 0
      %825 = vmatprep.subr.mxu0 0.0
      %826 = vmatpush1.msra.mxu0 0.0
      %827 = vmatprep.subr.mxu0 0.0
      %828 = vmatpush1.msra.mxu0 0.0
      %829 = vmatprep.subr.mxu0 0.0
      %830 = vmatpush1.msra.mxu0 0.0
      %831 = vmatprep.subr.mxu0 0.0
      %832 = vmatpush1.msra.mxu0 0.0
      %833 = vmatprep.subr.mxu0 0.0
      %834 = vmatpush1.msra.mxu0 0.0
      %835 = vmatprep.subr.mxu0 0.0
      %836 = vmatpush1.msra.mxu0 0.0
      %837 = vmatprep.subr.mxu0 0.0
      %838 = vmatpush1.msra.mxu0 0.0
      %839 = vmatprep.subr.mxu0 0.0
      %840 = vmatpush1.msra.mxu0 0.0
      %841 = vmatprep.subr.mxu0 0.0
      %842 = vmatpush1.msra.mxu0 0.0
      %843 = vmatprep.subr.mxu0 0.0
      %844 = vmatpush1.msra.mxu0 0.0
      %845 = vmatprep.subr.mxu0 0.0
      %846 = vmatpush1.msra.mxu0 0.0
      %847 = vmatprep.subr.mxu0 0.0
      %848 = vmatpush1.msra.mxu0 0.0
      %849 = vmatprep.subr.mxu0 0.0
      %850 = vmatpush1.msra.mxu0 0.0
      %851 = vmatprep.subr.mxu0 0.0
      %852 = vmatpush1.msra.mxu0 0.0
      %853 = vmatprep.subr.mxu0 0.0
      %854 = vmatpush1.msra.mxu0 0.0
      %855 = vmatprep.subr.mxu0 0.0
      %856 = vmatpush1.msra.mxu0 %v823
      %857 = vmatprep.subr.mxu0 0.0
      %858 = vmatpush2.msra.mxu0 0.0
      %859 = vmatprep.subr.mxu0 0.0
      %860 = vmatpush2.msra.mxu0 0.0
      %861 = vmatprep.subr.mxu0 0.0
      %862 = vmatpush2.msra.mxu0 0.0
      %863 = vmatprep.subr.mxu0 0.0
      %864 = vmatpush2.msra.mxu0 0.0
      %865 = vmatprep.subr.mxu0 0.0
      %866 = vmatpush2.msra.mxu0 0.0
      %867 = vmatprep.subr.mxu0 0.0
      %868 = vmatpush2.msra.mxu0 0.0
      %869 = vmatprep.subr.mxu0 0.0
      %870 = vmatpush2.msra.mxu0 0.0
      %871 = vmatprep.subr.mxu0 0.0
      %872 = vmatpush2.msra.mxu0 0.0
      %873 = vmatprep.subr.mxu0 0.0
      %874 = vmatpush2.msra.mxu0 0.0
      %875 = vmatprep.subr.mxu0 0.0
      %876 = vmatpush2.msra.mxu0 0.0
      %877 = vmatprep.subr.mxu0 0.0
      %878 = vmatpush2.msra.mxu0 0.0
      %879 = vmatprep.subr.mxu0 0.0
      %880 = vmatpush2.msra.mxu0 0.0
      %881 = vmatprep.subr.mxu0 0.0
      %882 = vmatpush2.msra.mxu0 0.0
      %883 = vmatprep.subr.mxu0 0.0
      %884 = vmatpush2.msra.mxu0 0.0
      %885 = vmatprep.subr.mxu0 0.0
      %886 = vmatpush2.msra.mxu0 0.0
      %887 = vmatprep.subr.mxu0 0.0
      %888 = vmatpush2.msra.mxu0 0.0
      %889 = vmatprep.mubr.f32.mxu0 0.0
      %890 = vmatmul.mubr.f32.gmra.mxu0 %v820
      %v891 = vpop.f32.mrf.mxu0
      %v892 = vadd.f32 0.0, %v891
      %v893 = vpop.f32.mrf.mxu0
      %894 = vdwg.mxu0
      %v895 = vadd.f32 %v815, %v892
      %v897 = vlaneseq
      %v898 = vshrl.u32 %v897, 7
      %v899 = vsub.s32 0, %v898
      %v900 = vrot.slane %v171, %v899
      %v902 = vadd.f32 %v895, %v900
      %903 = vst.msk [vmem:[%s170] sm:$0xff] %vm178, %v902
      %v904 = vld [vmem:[%s654] sm:$0xff]
      %v905 = vld [vmem:[%s1] sm:$0xf]
      %v906 = vld [vmem:[%s735] sm:$0xff]
      %v907 = vld [vmem:[%s176] sm:$0xf]
      %v909 = vsel %vm178, %v906, 0
      %v912 = vsel %vm182, %v907, 0
      %914 = vmatprep.subr.mxu0 0.0
      %915 = vmatpush1.msra.mxu0 0.0
      %916 = vmatprep.subr.mxu0 0.0
      %917 = vmatpush1.msra.mxu0 0.0
      %918 = vmatprep.subr.mxu0 0.0
      %919 = vmatpush1.msra.mxu0 0.0
      %920 = vmatprep.subr.mxu0 0.0
      %921 = vmatpush1.msra.mxu0 0.0
      %922 = vmatprep.subr.mxu0 0.0
      %923 = vmatpush1.msra.mxu0 0.0
      %924 = vmatprep.subr.mxu0 0.0
      %925 = vmatpush1.msra.mxu0 0.0
      %926 = vmatprep.subr.mxu0 0.0
      %927 = vmatpush1.msra.mxu0 0.0
      %928 = vmatprep.subr.mxu0 0.0
      %929 = vmatpush1.msra.mxu0 0.0
      %930 = vmatprep.subr.mxu0 0.0
      %931 = vmatpush1.msra.mxu0 0.0
      %932 = vmatprep.subr.mxu0 0.0
      %933 = vmatpush1.msra.mxu0 0.0
      %934 = vmatprep.subr.mxu0 0.0
      %935 = vmatpush1.msra.mxu0 0.0
      %936 = vmatprep.subr.mxu0 0.0
      %937 = vmatpush1.msra.mxu0 0.0
      %938 = vmatprep.subr.mxu0 0.0
      %939 = vmatpush1.msra.mxu0 0.0
      %940 = vmatprep.subr.mxu0 0.0
      %941 = vmatpush1.msra.mxu0 0.0
      %942 = vmatprep.subr.mxu0 0.0
      %943 = vmatpush1.msra.mxu0 0.0
      %944 = vmatprep.subr.mxu0 0.0
      %945 = vmatpush1.msra.mxu0 %v912
      %946 = vmatprep.subr.mxu0 0.0
      %947 = vmatpush2.msra.mxu0 0.0
      %948 = vmatprep.subr.mxu0 0.0
      %949 = vmatpush2.msra.mxu0 0.0
      %950 = vmatprep.subr.mxu0 0.0
      %951 = vmatpush2.msra.mxu0 0.0
      %952 = vmatprep.subr.mxu0 0.0
      %953 = vmatpush2.msra.mxu0 0.0
      %954 = vmatprep.subr.mxu0 0.0
      %955 = vmatpush2.msra.mxu0 0.0
      %956 = vmatprep.subr.mxu0 0.0
      %957 = vmatpush2.msra.mxu0 0.0
      %958 = vmatprep.subr.mxu0 0.0
      %959 = vmatpush2.msra.mxu0 0.0
      %960 = vmatprep.subr.mxu0 0.0
      %961 = vmatpush2.msra.mxu0 0.0
      %962 = vmatprep.subr.mxu0 0.0
      %963 = vmatpush2.msra.mxu0 0.0
      %964 = vmatprep.subr.mxu0 0.0
      %965 = vmatpush2.msra.mxu0 0.0
      %966 = vmatprep.subr.mxu0 0.0
      %967 = vmatpush2.msra.mxu0 0.0
      %968 = vmatprep.subr.mxu0 0.0
      %969 = vmatpush2.msra.mxu0 0.0
      %970 = vmatprep.subr.mxu0 0.0
      %971 = vmatpush2.msra.mxu0 0.0
      %972 = vmatprep.subr.mxu0 0.0
      %973 = vmatpush2.msra.mxu0 0.0
      %974 = vmatprep.subr.mxu0 0.0
      %975 = vmatpush2.msra.mxu0 0.0
      %976 = vmatprep.subr.mxu0 0.0
      %977 = vmatpush2.msra.mxu0 0.0
      %978 = vmatprep.mubr.f32.mxu0 0.0
      %979 = vmatmul.mubr.f32.gmra.mxu0 %v909
      %v980 = vpop.f32.mrf.mxu0
      %v981 = vadd.f32 0.0, %v980
      %v982 = vpop.f32.mrf.mxu0
      %983 = vdwg.mxu0
      %v985 = vsel %vm178, %v904, 0
      %v988 = vsel %vm182, %v905, 0
      %990 = vmatprep.subr.mxu0 0.0
      %991 = vmatpush1.msra.mxu0 0.0
      %992 = vmatprep.subr.mxu0 0.0
      %993 = vmatpush1.msra.mxu0 0.0
      %994 = vmatprep.subr.mxu0 0.0
      %995 = vmatpush1.msra.mxu0 0.0
      %996 = vmatprep.subr.mxu0 0.0
      %997 = vmatpush1.msra.mxu0 0.0
      %998 = vmatprep.subr.mxu0 0.0
      %999 = vmatpush1.msra.mxu0 0.0
      %1000 = vmatprep.subr.mxu0 0.0
      %1001 = vmatpush1.msra.mxu0 0.0
      %1002 = vmatprep.subr.mxu0 0.0
      %1003 = vmatpush1.msra.mxu0 0.0
      %1004 = vmatprep.subr.mxu0 0.0
      %1005 = vmatpush1.msra.mxu0 0.0
      %1006 = vmatprep.subr.mxu0 0.0
      %1007 = vmatpush1.msra.mxu0 0.0
      %1008 = vmatprep.subr.mxu0 0.0
      %1009 = vmatpush1.msra.mxu0 0.0
      %1010 = vmatprep.subr.mxu0 0.0
      %1011 = vmatpush1.msra.mxu0 0.0
      %1012 = vmatprep.subr.mxu0 0.0
      %1013 = vmatpush1.msra.mxu0 0.0
      %1014 = vmatprep.subr.mxu0 0.0
      %1015 = vmatpush1.msra.mxu0 0.0
      %1016 = vmatprep.subr.mxu0 0.0
      %1017 = vmatpush1.msra.mxu0 0.0
      %1018 = vmatprep.subr.mxu0 0.0
      %1019 = vmatpush1.msra.mxu0 0.0
      %1020 = vmatprep.subr.mxu0 0.0
      %1021 = vmatpush1.msra.mxu0 %v988
      %1022 = vmatprep.subr.mxu0 0.0
      %1023 = vmatpush2.msra.mxu0 0.0
      %1024 = vmatprep.subr.mxu0 0.0
      %1025 = vmatpush2.msra.mxu0 0.0
      %1026 = vmatprep.subr.mxu0 0.0
      %1027 = vmatpush2.msra.mxu0 0.0
      %1028 = vmatprep.subr.mxu0 0.0
      %1029 = vmatpush2.msra.mxu0 0.0
      %1030 = vmatprep.subr.mxu0 0.0
      %1031 = vmatpush2.msra.mxu0 0.0
      %1032 = vmatprep.subr.mxu0 0.0
      %1033 = vmatpush2.msra.mxu0 0.0
      %1034 = vmatprep.subr.mxu0 0.0
      %1035 = vmatpush2.msra.mxu0 0.0
      %1036 = vmatprep.subr.mxu0 0.0
      %1037 = vmatpush2.msra.mxu0 0.0
      %1038 = vmatprep.subr.mxu0 0.0
      %1039 = vmatpush2.msra.mxu0 0.0
      %1040 = vmatprep.subr.mxu0 0.0
      %1041 = vmatpush2.msra.mxu0 0.0
      %1042 = vmatprep.subr.mxu0 0.0
      %1043 = vmatpush2.msra.mxu0 0.0
      %1044 = vmatprep.subr.mxu0 0.0
      %1045 = vmatpush2.msra.mxu0 0.0
      %1046 = vmatprep.subr.mxu0 0.0
      %1047 = vmatpush2.msra.mxu0 0.0
      %1048 = vmatprep.subr.mxu0 0.0
      %1049 = vmatpush2.msra.mxu0 0.0
      %1050 = vmatprep.subr.mxu0 0.0
      %1051 = vmatpush2.msra.mxu0 0.0
      %1052 = vmatprep.subr.mxu0 0.0
      %1053 = vmatpush2.msra.mxu0 0.0
      %1054 = vmatprep.mubr.f32.mxu0 0.0
      %1055 = vmatmul.mubr.f32.gmra.mxu0 %v985
      %v1056 = vpop.f32.mrf.mxu0
      %v1057 = vadd.f32 %v981, %v1056
      %v1058 = vpop.f32.mrf.mxu0
      %1059 = vdwg.mxu0
      %v1060 = vld [vmem:[%s654 + $0x1] sm:$0xff]
      %v1061 = vld [vmem:[%s333] sm:$0xf]
      %v1063 = vsel %vm178, %v1060, 0
      %v1066 = vsel %vm182, %v1061, 0
      %1068 = vmatprep.subr.mxu0 0.0
      %1069 = vmatpush1.msra.mxu0 0.0
      %1070 = vmatprep.subr.mxu0 0.0
      %1071 = vmatpush1.msra.mxu0 0.0
      %1072 = vmatprep.subr.mxu0 0.0
      %1073 = vmatpush1.msra.mxu0 0.0
      %1074 = vmatprep.subr.mxu0 0.0
      %1075 = vmatpush1.msra.mxu0 0.0
      %1076 = vmatprep.subr.mxu0 0.0
      %1077 = vmatpush1.msra.mxu0 0.0
      %1078 = vmatprep.subr.mxu0 0.0
      %1079 = vmatpush1.msra.mxu0 0.0
      %1080 = vmatprep.subr.mxu0 0.0
      %1081 = vmatpush1.msra.mxu0 0.0
      %1082 = vmatprep.subr.mxu0 0.0
      %1083 = vmatpush1.msra.mxu0 0.0
      %1084 = vmatprep.subr.mxu0 0.0
      %1085 = vmatpush1.msra.mxu0 0.0
      %1086 = vmatprep.subr.mxu0 0.0
      %1087 = vmatpush1.msra.mxu0 0.0
      %1088 = vmatprep.subr.mxu0 0.0
      %1089 = vmatpush1.msra.mxu0 0.0
      %1090 = vmatprep.subr.mxu0 0.0
      %1091 = vmatpush1.msra.mxu0 0.0
      %1092 = vmatprep.subr.mxu0 0.0
      %1093 = vmatpush1.msra.mxu0 0.0
      %1094 = vmatprep.subr.mxu0 0.0
      %1095 = vmatpush1.msra.mxu0 0.0
      %1096 = vmatprep.subr.mxu0 0.0
      %1097 = vmatpush1.msra.mxu0 0.0
      %1098 = vmatprep.subr.mxu0 0.0
      %1099 = vmatpush1.msra.mxu0 %v1066
      %1100 = vmatprep.subr.mxu0 0.0
      %1101 = vmatpush2.msra.mxu0 0.0
      %1102 = vmatprep.subr.mxu0 0.0
      %1103 = vmatpush2.msra.mxu0 0.0
      %1104 = vmatprep.subr.mxu0 0.0
      %1105 = vmatpush2.msra.mxu0 0.0
      %1106 = vmatprep.subr.mxu0 0.0
      %1107 = vmatpush2.msra.mxu0 0.0
      %1108 = vmatprep.subr.mxu0 0.0
      %1109 = vmatpush2.msra.mxu0 0.0
      %1110 = vmatprep.subr.mxu0 0.0
      %1111 = vmatpush2.msra.mxu0 0.0
      %1112 = vmatprep.subr.mxu0 0.0
      %1113 = vmatpush2.msra.mxu0 0.0
      %1114 = vmatprep.subr.mxu0 0.0
      %1115 = vmatpush2.msra.mxu0 0.0
      %1116 = vmatprep.subr.mxu0 0.0
      %1117 = vmatpush2.msra.mxu0 0.0
      %1118 = vmatprep.subr.mxu0 0.0
      %1119 = vmatpush2.msra.mxu0 0.0
      %1120 = vmatprep.subr.mxu0 0.0
      %1121 = vmatpush2.msra.mxu0 0.0
      %1122 = vmatprep.subr.mxu0 0.0
      %1123 = vmatpush2.msra.mxu0 0.0
      %1124 = vmatprep.subr.mxu0 0.0
      %1125 = vmatpush2.msra.mxu0 0.0
      %1126 = vmatprep.subr.mxu0 0.0
      %1127 = vmatpush2.msra.mxu0 0.0
      %1128 = vmatprep.subr.mxu0 0.0
      %1129 = vmatpush2.msra.mxu0 0.0
      %1130 = vmatprep.subr.mxu0 0.0
      %1131 = vmatpush2.msra.mxu0 0.0
      %1132 = vmatprep.mubr.f32.mxu0 0.0
      %1133 = vmatmul.mubr.f32.gmra.mxu0 %v1063
      %v1134 = vpop.f32.mrf.mxu0
      %v1135 = vadd.f32 0.0, %v1134
      %v1136 = vpop.f32.mrf.mxu0
      %1137 = vdwg.mxu0
      %v1138 = vadd.f32 %v1057, %v1135
      %s1139 = scalar_lea.vmem %s165, 304
      %v1140 = vld [vmem:[%s1139] sm:$0xff]
      %v1141 = vld [vmem:[%s414] sm:$0xf]
      %v1143 = vsel %vm178, %v1140, 0
      %v1146 = vsel %vm182, %v1141, 0
      %1148 = vmatprep.subr.mxu0 0.0
      %1149 = vmatpush1.msra.mxu0 0.0
      %1150 = vmatprep.subr.mxu0 0.0
      %1151 = vmatpush1.msra.mxu0 0.0
      %1152 = vmatprep.subr.mxu0 0.0
      %1153 = vmatpush1.msra.mxu0 0.0
      %1154 = vmatprep.subr.mxu0 0.0
      %1155 = vmatpush1.msra.mxu0 0.0
      %1156 = vmatprep.subr.mxu0 0.0
      %1157 = vmatpush1.msra.mxu0 0.0
      %1158 = vmatprep.subr.mxu0 0.0
      %1159 = vmatpush1.msra.mxu0 0.0
      %1160 = vmatprep.subr.mxu0 0.0
      %1161 = vmatpush1.msra.mxu0 0.0
      %1162 = vmatprep.subr.mxu0 0.0
      %1163 = vmatpush1.msra.mxu0 0.0
      %1164 = vmatprep.subr.mxu0 0.0
      %1165 = vmatpush1.msra.mxu0 0.0
      %1166 = vmatprep.subr.mxu0 0.0
      %1167 = vmatpush1.msra.mxu0 0.0
      %1168 = vmatprep.subr.mxu0 0.0
      %1169 = vmatpush1.msra.mxu0 0.0
      %1170 = vmatprep.subr.mxu0 0.0
      %1171 = vmatpush1.msra.mxu0 0.0
      %1172 = vmatprep.subr.mxu0 0.0
      %1173 = vmatpush1.msra.mxu0 0.0
      %1174 = vmatprep.subr.mxu0 0.0
      %1175 = vmatpush1.msra.mxu0 0.0
      %1176 = vmatprep.subr.mxu0 0.0
      %1177 = vmatpush1.msra.mxu0 0.0
      %1178 = vmatprep.subr.mxu0 0.0
      %1179 = vmatpush1.msra.mxu0 %v1146
      %1180 = vmatprep.subr.mxu0 0.0
      %1181 = vmatpush2.msra.mxu0 0.0
      %1182 = vmatprep.subr.mxu0 0.0
      %1183 = vmatpush2.msra.mxu0 0.0
      %1184 = vmatprep.subr.mxu0 0.0
      %1185 = vmatpush2.msra.mxu0 0.0
      %1186 = vmatprep.subr.mxu0 0.0
      %1187 = vmatpush2.msra.mxu0 0.0
      %1188 = vmatprep.subr.mxu0 0.0
      %1189 = vmatpush2.msra.mxu0 0.0
      %1190 = vmatprep.subr.mxu0 0.0
      %1191 = vmatpush2.msra.mxu0 0.0
      %1192 = vmatprep.subr.mxu0 0.0
      %1193 = vmatpush2.msra.mxu0 0.0
      %1194 = vmatprep.subr.mxu0 0.0
      %1195 = vmatpush2.msra.mxu0 0.0
      %1196 = vmatprep.subr.mxu0 0.0
      %1197 = vmatpush2.msra.mxu0 0.0
      %1198 = vmatprep.subr.mxu0 0.0
      %1199 = vmatpush2.msra.mxu0 0.0
      %1200 = vmatprep.subr.mxu0 0.0
      %1201 = vmatpush2.msra.mxu0 0.0
      %1202 = vmatprep.subr.mxu0 0.0
      %1203 = vmatpush2.msra.mxu0 0.0
      %1204 = vmatprep.subr.mxu0 0.0
      %1205 = vmatpush2.msra.mxu0 0.0
      %1206 = vmatprep.subr.mxu0 0.0
      %1207 = vmatpush2.msra.mxu0 0.0
      %1208 = vmatprep.subr.mxu0 0.0
      %1209 = vmatpush2.msra.mxu0 0.0
      %1210 = vmatprep.subr.mxu0 0.0
      %1211 = vmatpush2.msra.mxu0 0.0
      %1212 = vmatprep.mubr.f32.mxu0 0.0
      %1213 = vmatmul.mubr.f32.gmra.mxu0 %v1143
      %v1214 = vpop.f32.mrf.mxu0
      %v1215 = vadd.f32 0.0, %v1214
      %v1216 = vpop.f32.mrf.mxu0
      %1217 = vdwg.mxu0
      %v1218 = vadd.f32 %v1138, %v1215
      %s1219 = scalar_lea.vmem %s165, 448
      %v1220 = vld [vmem:[%s1219] sm:$0xff]
      %v1221 = vld [vmem:[%s495] sm:$0xf]
      %v1223 = vsel %vm178, %v1220, 0
      %v1226 = vsel %vm182, %v1221, 0
      %1228 = vmatprep.subr.mxu0 0.0
      %1229 = vmatpush1.msra.mxu0 0.0
      %1230 = vmatprep.subr.mxu0 0.0
      %1231 = vmatpush1.msra.mxu0 0.0
      %1232 = vmatprep.subr.mxu0 0.0
      %1233 = vmatpush1.msra.mxu0 0.0
      %1234 = vmatprep.subr.mxu0 0.0
      %1235 = vmatpush1.msra.mxu0 0.0
      %1236 = vmatprep.subr.mxu0 0.0
      %1237 = vmatpush1.msra.mxu0 0.0
      %1238 = vmatprep.subr.mxu0 0.0
      %1239 = vmatpush1.msra.mxu0 0.0
      %1240 = vmatprep.subr.mxu0 0.0
      %1241 = vmatpush1.msra.mxu0 0.0
      %1242 = vmatprep.subr.mxu0 0.0
      %1243 = vmatpush1.msra.mxu0 0.0
      %1244 = vmatprep.subr.mxu0 0.0
      %1245 = vmatpush1.msra.mxu0 0.0
      %1246 = vmatprep.subr.mxu0 0.0
      %1247 = vmatpush1.msra.mxu0 0.0
      %1248 = vmatprep.subr.mxu0 0.0
      %1249 = vmatpush1.msra.mxu0 0.0
      %1250 = vmatprep.subr.mxu0 0.0
      %1251 = vmatpush1.msra.mxu0 0.0
      %1252 = vmatprep.subr.mxu0 0.0
      %1253 = vmatpush1.msra.mxu0 0.0
      %1254 = vmatprep.subr.mxu0 0.0
      %1255 = vmatpush1.msra.mxu0 0.0
      %1256 = vmatprep.subr.mxu0 0.0
      %1257 = vmatpush1.msra.mxu0 0.0
      %1258 = vmatprep.subr.mxu0 0.0
      %1259 = vmatpush1.msra.mxu0 %v1226
      %1260 = vmatprep.subr.mxu0 0.0
      %1261 = vmatpush2.msra.mxu0 0.0
      %1262 = vmatprep.subr.mxu0 0.0
      %1263 = vmatpush2.msra.mxu0 0.0
      %1264 = vmatprep.subr.mxu0 0.0
      %1265 = vmatpush2.msra.mxu0 0.0
      %1266 = vmatprep.subr.mxu0 0.0
      %1267 = vmatpush2.msra.mxu0 0.0
      %1268 = vmatprep.subr.mxu0 0.0
      %1269 = vmatpush2.msra.mxu0 0.0
      %1270 = vmatprep.subr.mxu0 0.0
      %1271 = vmatpush2.msra.mxu0 0.0
      %1272 = vmatprep.subr.mxu0 0.0
      %1273 = vmatpush2.msra.mxu0 0.0
      %1274 = vmatprep.subr.mxu0 0.0
      %1275 = vmatpush2.msra.mxu0 0.0
      %1276 = vmatprep.subr.mxu0 0.0
      %1277 = vmatpush2.msra.mxu0 0.0
      %1278 = vmatprep.subr.mxu0 0.0
      %1279 = vmatpush2.msra.mxu0 0.0
      %1280 = vmatprep.subr.mxu0 0.0
      %1281 = vmatpush2.msra.mxu0 0.0
      %1282 = vmatprep.subr.mxu0 0.0
      %1283 = vmatpush2.msra.mxu0 0.0
      %1284 = vmatprep.subr.mxu0 0.0
      %1285 = vmatpush2.msra.mxu0 0.0
      %1286 = vmatprep.subr.mxu0 0.0
      %1287 = vmatpush2.msra.mxu0 0.0
      %1288 = vmatprep.subr.mxu0 0.0
      %1289 = vmatpush2.msra.mxu0 0.0
      %1290 = vmatprep.subr.mxu0 0.0
      %1291 = vmatpush2.msra.mxu0 0.0
      %1292 = vmatprep.mubr.f32.mxu0 0.0
      %1293 = vmatmul.mubr.f32.gmra.mxu0 %v1223
      %v1294 = vpop.f32.mrf.mxu0
      %v1295 = vadd.f32 0.0, %v1294
      %v1296 = vpop.f32.mrf.mxu0
      %1297 = vdwg.mxu0
      %v1298 = vadd.f32 %v1218, %v1295
      %v1299 = vld [vmem:[%s1139 + $0x1] sm:$0xff]
      %v1300 = vld [vmem:[%s575] sm:$0xf]
      %v1302 = vsel %vm178, %v1299, 0
      %v1305 = vsel %vm182, %v1300, 0
      %1307 = vmatprep.subr.mxu0 0.0
      %1308 = vmatpush1.msra.mxu0 0.0
      %1309 = vmatprep.subr.mxu0 0.0
      %1310 = vmatpush1.msra.mxu0 0.0
      %1311 = vmatprep.subr.mxu0 0.0
      %1312 = vmatpush1.msra.mxu0 0.0
      %1313 = vmatprep.subr.mxu0 0.0
      %1314 = vmatpush1.msra.mxu0 0.0
      %1315 = vmatprep.subr.mxu0 0.0
      %1316 = vmatpush1.msra.mxu0 0.0
      %1317 = vmatprep.subr.mxu0 0.0
      %1318 = vmatpush1.msra.mxu0 0.0
      %1319 = vmatprep.subr.mxu0 0.0
      %1320 = vmatpush1.msra.mxu0 0.0
      %1321 = vmatprep.subr.mxu0 0.0
      %1322 = vmatpush1.msra.mxu0 0.0
      %1323 = vmatprep.subr.mxu0 0.0
      %1324 = vmatpush1.msra.mxu0 0.0
      %1325 = vmatprep.subr.mxu0 0.0
      %1326 = vmatpush1.msra.mxu0 0.0
      %1327 = vmatprep.subr.mxu0 0.0
      %1328 = vmatpush1.msra.mxu0 0.0
      %1329 = vmatprep.subr.mxu0 0.0
      %1330 = vmatpush1.msra.mxu0 0.0
      %1331 = vmatprep.subr.mxu0 0.0
      %1332 = vmatpush1.msra.mxu0 0.0
      %1333 = vmatprep.subr.mxu0 0.0
      %1334 = vmatpush1.msra.mxu0 0.0
      %1335 = vmatprep.subr.mxu0 0.0
      %1336 = vmatpush1.msra.mxu0 0.0
      %1337 = vmatprep.subr.mxu0 0.0
      %1338 = vmatpush1.msra.mxu0 %v1305
      %1339 = vmatprep.subr.mxu0 0.0
      %1340 = vmatpush2.msra.mxu0 0.0
      %1341 = vmatprep.subr.mxu0 0.0
      %1342 = vmatpush2.msra.mxu0 0.0
      %1343 = vmatprep.subr.mxu0 0.0
      %1344 = vmatpush2.msra.mxu0 0.0
      %1345 = vmatprep.subr.mxu0 0.0
      %1346 = vmatpush2.msra.mxu0 0.0
      %1347 = vmatprep.subr.mxu0 0.0
      %1348 = vmatpush2.msra.mxu0 0.0
      %1349 = vmatprep.subr.mxu0 0.0
      %1350 = vmatpush2.msra.mxu0 0.0
      %1351 = vmatprep.subr.mxu0 0.0
      %1352 = vmatpush2.msra.mxu0 0.0
      %1353 = vmatprep.subr.mxu0 0.0
      %1354 = vmatpush2.msra.mxu0 0.0
      %1355 = vmatprep.subr.mxu0 0.0
      %1356 = vmatpush2.msra.mxu0 0.0
      %1357 = vmatprep.subr.mxu0 0.0
      %1358 = vmatpush2.msra.mxu0 0.0
      %1359 = vmatprep.subr.mxu0 0.0
      %1360 = vmatpush2.msra.mxu0 0.0
      %1361 = vmatprep.subr.mxu0 0.0
      %1362 = vmatpush2.msra.mxu0 0.0
      %1363 = vmatprep.subr.mxu0 0.0
      %1364 = vmatpush2.msra.mxu0 0.0
      %1365 = vmatprep.subr.mxu0 0.0
      %1366 = vmatpush2.msra.mxu0 0.0
      %1367 = vmatprep.subr.mxu0 0.0
      %1368 = vmatpush2.msra.mxu0 0.0
      %1369 = vmatprep.subr.mxu0 0.0
      %1370 = vmatpush2.msra.mxu0 0.0
      %1371 = vmatprep.mubr.f32.mxu0 0.0
      %1372 = vmatmul.mubr.f32.gmra.mxu0 %v1302
      %v1373 = vpop.f32.mrf.mxu0
      %v1374 = vadd.f32 0.0, %v1373
      %v1375 = vpop.f32.mrf.mxu0
      %1376 = vdwg.mxu0
      %v1377 = vadd.f32 %v1298, %v1374
      %s1378 = scalar_lea.vmem %s165, 32
      %v1379 = vld [vmem:[%s1378] sm:$0xff]
      %v1380 = vld [vmem:[%s656] sm:$0xf]
      %v1382 = vsel %vm178, %v1379, 0
      %v1385 = vsel %vm182, %v1380, 0
      %1387 = vmatprep.subr.mxu0 0.0
      %1388 = vmatpush1.msra.mxu0 0.0
      %1389 = vmatprep.subr.mxu0 0.0
      %1390 = vmatpush1.msra.mxu0 0.0
      %1391 = vmatprep.subr.mxu0 0.0
      %1392 = vmatpush1.msra.mxu0 0.0
      %1393 = vmatprep.subr.mxu0 0.0
      %1394 = vmatpush1.msra.mxu0 0.0
      %1395 = vmatprep.subr.mxu0 0.0
      %1396 = vmatpush1.msra.mxu0 0.0
      %1397 = vmatprep.subr.mxu0 0.0
      %1398 = vmatpush1.msra.mxu0 0.0
      %1399 = vmatprep.subr.mxu0 0.0
      %1400 = vmatpush1.msra.mxu0 0.0
      %1401 = vmatprep.subr.mxu0 0.0
      %1402 = vmatpush1.msra.mxu0 0.0
      %1403 = vmatprep.subr.mxu0 0.0
      %1404 = vmatpush1.msra.mxu0 0.0
      %1405 = vmatprep.subr.mxu0 0.0
      %1406 = vmatpush1.msra.mxu0 0.0
      %1407 = vmatprep.subr.mxu0 0.0
      %1408 = vmatpush1.msra.mxu0 0.0
      %1409 = vmatprep.subr.mxu0 0.0
      %1410 = vmatpush1.msra.mxu0 0.0
      %1411 = vmatprep.subr.mxu0 0.0
      %1412 = vmatpush1.msra.mxu0 0.0
      %1413 = vmatprep.subr.mxu0 0.0
      %1414 = vmatpush1.msra.mxu0 0.0
      %1415 = vmatprep.subr.mxu0 0.0
      %1416 = vmatpush1.msra.mxu0 0.0
      %1417 = vmatprep.subr.mxu0 0.0
      %1418 = vmatpush1.msra.mxu0 %v1385
      %1419 = vmatprep.subr.mxu0 0.0
      %1420 = vmatpush2.msra.mxu0 0.0
      %1421 = vmatprep.subr.mxu0 0.0
      %1422 = vmatpush2.msra.mxu0 0.0
      %1423 = vmatprep.subr.mxu0 0.0
      %1424 = vmatpush2.msra.mxu0 0.0
      %1425 = vmatprep.subr.mxu0 0.0
      %1426 = vmatpush2.msra.mxu0 0.0
      %1427 = vmatprep.subr.mxu0 0.0
      %1428 = vmatpush2.msra.mxu0 0.0
      %1429 = vmatprep.subr.mxu0 0.0
      %1430 = vmatpush2.msra.mxu0 0.0
      %1431 = vmatprep.subr.mxu0 0.0
      %1432 = vmatpush2.msra.mxu0 0.0
      %1433 = vmatprep.subr.mxu0 0.0
      %1434 = vmatpush2.msra.mxu0 0.0
      %1435 = vmatprep.subr.mxu0 0.0
      %1436 = vmatpush2.msra.mxu0 0.0
      %1437 = vmatprep.subr.mxu0 0.0
      %1438 = vmatpush2.msra.mxu0 0.0
      %1439 = vmatprep.subr.mxu0 0.0
      %1440 = vmatpush2.msra.mxu0 0.0
      %1441 = vmatprep.subr.mxu0 0.0
      %1442 = vmatpush2.msra.mxu0 0.0
      %1443 = vmatprep.subr.mxu0 0.0
      %1444 = vmatpush2.msra.mxu0 0.0
      %1445 = vmatprep.subr.mxu0 0.0
      %1446 = vmatpush2.msra.mxu0 0.0
      %1447 = vmatprep.subr.mxu0 0.0
      %1448 = vmatpush2.msra.mxu0 0.0
      %1449 = vmatprep.subr.mxu0 0.0
      %1450 = vmatpush2.msra.mxu0 0.0
      %1451 = vmatprep.mubr.f32.mxu0 0.0
      %1452 = vmatmul.mubr.f32.gmra.mxu0 %v1382
      %v1453 = vpop.f32.mrf.mxu0
      %v1454 = vadd.f32 0.0, %v1453
      %v1455 = vpop.f32.mrf.mxu0
      %1456 = vdwg.mxu0
      %v1457 = vadd.f32 %v1377, %v1454
      %s1458 = scalar_lea.vmem %s165, 176
      %v1459 = vld [vmem:[%s1458] sm:$0xff]
      %v1460 = vld [vmem:[%s737] sm:$0xf]
      %v1462 = vsel %vm178, %v1459, 0
      %v1465 = vsel %vm182, %v1460, 0
      %1467 = vmatprep.subr.mxu0 0.0
      %1468 = vmatpush1.msra.mxu0 0.0
      %1469 = vmatprep.subr.mxu0 0.0
      %1470 = vmatpush1.msra.mxu0 0.0
      %1471 = vmatprep.subr.mxu0 0.0
      %1472 = vmatpush1.msra.mxu0 0.0
      %1473 = vmatprep.subr.mxu0 0.0
      %1474 = vmatpush1.msra.mxu0 0.0
      %1475 = vmatprep.subr.mxu0 0.0
      %1476 = vmatpush1.msra.mxu0 0.0
      %1477 = vmatprep.subr.mxu0 0.0
      %1478 = vmatpush1.msra.mxu0 0.0
      %1479 = vmatprep.subr.mxu0 0.0
      %1480 = vmatpush1.msra.mxu0 0.0
      %1481 = vmatprep.subr.mxu0 0.0
      %1482 = vmatpush1.msra.mxu0 0.0
      %1483 = vmatprep.subr.mxu0 0.0
      %1484 = vmatpush1.msra.mxu0 0.0
      %1485 = vmatprep.subr.mxu0 0.0
      %1486 = vmatpush1.msra.mxu0 0.0
      %1487 = vmatprep.subr.mxu0 0.0
      %1488 = vmatpush1.msra.mxu0 0.0
      %1489 = vmatprep.subr.mxu0 0.0
      %1490 = vmatpush1.msra.mxu0 0.0
      %1491 = vmatprep.subr.mxu0 0.0
      %1492 = vmatpush1.msra.mxu0 0.0
      %1493 = vmatprep.subr.mxu0 0.0
      %1494 = vmatpush1.msra.mxu0 0.0
      %1495 = vmatprep.subr.mxu0 0.0
      %1496 = vmatpush1.msra.mxu0 0.0
      %1497 = vmatprep.subr.mxu0 0.0
      %1498 = vmatpush1.msra.mxu0 %v1465
      %1499 = vmatprep.subr.mxu0 0.0
      %1500 = vmatpush2.msra.mxu0 0.0
      %1501 = vmatprep.subr.mxu0 0.0
      %1502 = vmatpush2.msra.mxu0 0.0
      %1503 = vmatprep.subr.mxu0 0.0
      %1504 = vmatpush2.msra.mxu0 0.0
      %1505 = vmatprep.subr.mxu0 0.0
      %1506 = vmatpush2.msra.mxu0 0.0
      %1507 = vmatprep.subr.mxu0 0.0
      %1508 = vmatpush2.msra.mxu0 0.0
      %1509 = vmatprep.subr.mxu0 0.0
      %1510 = vmatpush2.msra.mxu0 0.0
      %1511 = vmatprep.subr.mxu0 0.0
      %1512 = vmatpush2.msra.mxu0 0.0
      %1513 = vmatprep.subr.mxu0 0.0
      %1514 = vmatpush2.msra.mxu0 0.0
      %1515 = vmatprep.subr.mxu0 0.0
      %1516 = vmatpush2.msra.mxu0 0.0
      %1517 = vmatprep.subr.mxu0 0.0
      %1518 = vmatpush2.msra.mxu0 0.0
      %1519 = vmatprep.subr.mxu0 0.0
      %1520 = vmatpush2.msra.mxu0 0.0
      %1521 = vmatprep.subr.mxu0 0.0
      %1522 = vmatpush2.msra.mxu0 0.0
      %1523 = vmatprep.subr.mxu0 0.0
      %1524 = vmatpush2.msra.mxu0 0.0
      %1525 = vmatprep.subr.mxu0 0.0
      %1526 = vmatpush2.msra.mxu0 0.0
      %1527 = vmatprep.subr.mxu0 0.0
      %1528 = vmatpush2.msra.mxu0 0.0
      %1529 = vmatprep.subr.mxu0 0.0
      %1530 = vmatpush2.msra.mxu0 0.0
      %1531 = vmatprep.mubr.f32.mxu0 0.0
      %1532 = vmatmul.mubr.f32.gmra.mxu0 %v1462
      %v1533 = vpop.f32.mrf.mxu0
      %v1534 = vadd.f32 0.0, %v1533
      %v1535 = vpop.f32.mrf.mxu0
      %1536 = vdwg.mxu0
      %v1537 = vadd.f32 %v1457, %v1534
      %v1538 = vld [vmem:[%s1378 + $0x1] sm:$0xff]
      %v1539 = vld [vmem:[%s817] sm:$0xf]
      %v1541 = vsel %vm178, %v1538, 0
      %v1544 = vsel %vm182, %v1539, 0
      %1546 = vmatprep.subr.mxu0 0.0
      %1547 = vmatpush1.msra.mxu0 0.0
      %1548 = vmatprep.subr.mxu0 0.0
      %1549 = vmatpush1.msra.mxu0 0.0
      %1550 = vmatprep.subr.mxu0 0.0
      %1551 = vmatpush1.msra.mxu0 0.0
      %1552 = vmatprep.subr.mxu0 0.0
      %1553 = vmatpush1.msra.mxu0 0.0
      %1554 = vmatprep.subr.mxu0 0.0
      %1555 = vmatpush1.msra.mxu0 0.0
      %1556 = vmatprep.subr.mxu0 0.0
      %1557 = vmatpush1.msra.mxu0 0.0
      %1558 = vmatprep.subr.mxu0 0.0
      %1559 = vmatpush1.msra.mxu0 0.0
      %1560 = vmatprep.subr.mxu0 0.0
      %1561 = vmatpush1.msra.mxu0 0.0
      %1562 = vmatprep.subr.mxu0 0.0
      %1563 = vmatpush1.msra.mxu0 0.0
      %1564 = vmatprep.subr.mxu0 0.0
      %1565 = vmatpush1.msra.mxu0 0.0
      %1566 = vmatprep.subr.mxu0 0.0
      %1567 = vmatpush1.msra.mxu0 0.0
      %1568 = vmatprep.subr.mxu0 0.0
      %1569 = vmatpush1.msra.mxu0 0.0
      %1570 = vmatprep.subr.mxu0 0.0
      %1571 = vmatpush1.msra.mxu0 0.0
      %1572 = vmatprep.subr.mxu0 0.0
      %1573 = vmatpush1.msra.mxu0 0.0
      %1574 = vmatprep.subr.mxu0 0.0
      %1575 = vmatpush1.msra.mxu0 0.0
      %1576 = vmatprep.subr.mxu0 0.0
      %1577 = vmatpush1.msra.mxu0 %v1544
      %1578 = vmatprep.subr.mxu0 0.0
      %1579 = vmatpush2.msra.mxu0 0.0
      %1580 = vmatprep.subr.mxu0 0.0
      %1581 = vmatpush2.msra.mxu0 0.0
      %1582 = vmatprep.subr.mxu0 0.0
      %1583 = vmatpush2.msra.mxu0 0.0
      %1584 = vmatprep.subr.mxu0 0.0
      %1585 = vmatpush2.msra.mxu0 0.0
      %1586 = vmatprep.subr.mxu0 0.0
      %1587 = vmatpush2.msra.mxu0 0.0
      %1588 = vmatprep.subr.mxu0 0.0
      %1589 = vmatpush2.msra.mxu0 0.0
      %1590 = vmatprep.subr.mxu0 0.0
      %1591 = vmatpush2.msra.mxu0 0.0
      %1592 = vmatprep.subr.mxu0 0.0
      %1593 = vmatpush2.msra.mxu0 0.0
      %1594 = vmatprep.subr.mxu0 0.0
      %1595 = vmatpush2.msra.mxu0 0.0
      %1596 = vmatprep.subr.mxu0 0.0
      %1597 = vmatpush2.msra.mxu0 0.0
      %1598 = vmatprep.subr.mxu0 0.0
      %1599 = vmatpush2.msra.mxu0 0.0
      %1600 = vmatprep.subr.mxu0 0.0
      %1601 = vmatpush2.msra.mxu0 0.0
      %1602 = vmatprep.subr.mxu0 0.0
      %1603 = vmatpush2.msra.mxu0 0.0
      %1604 = vmatprep.subr.mxu0 0.0
      %1605 = vmatpush2.msra.mxu0 0.0
      %1606 = vmatprep.subr.mxu0 0.0
      %1607 = vmatpush2.msra.mxu0 0.0
      %1608 = vmatprep.subr.mxu0 0.0
      %1609 = vmatpush2.msra.mxu0 0.0
      %1610 = vmatprep.mubr.f32.mxu0 0.0
      %1611 = vmatmul.mubr.f32.gmra.mxu0 %v1541
      %v1612 = vpop.f32.mrf.mxu0
      %v1613 = vadd.f32 0.0, %v1612
      %v1614 = vpop.f32.mrf.mxu0
      %1615 = vdwg.mxu0
      %v1616 = vadd.f32 %v1537, %v1613
      %v1617 = vadd.f32 %v1616, %v900
      %s1618 = scalar_lea.vmem %s170, 8
      %1619 = vst.msk [vmem:[%s1618] sm:$0xff] %vm178, %v1617
      %v1620 = vld [vmem:[%s1378] sm:$0xff]
      %v1621 = vld [vmem:[%s1] sm:$0xf]
      %v1622 = vld [vmem:[%s1458] sm:$0xff]
      %v1623 = vld [vmem:[%s176] sm:$0xf]
      %v1625 = vsel %vm178, %v1622, 0
      %v1628 = vsel %vm182, %v1623, 0
      %1630 = vmatprep.subr.mxu0 0.0
      %1631 = vmatpush1.msra.mxu0 0.0
      %1632 = vmatprep.subr.mxu0 0.0
      %1633 = vmatpush1.msra.mxu0 0.0
      %1634 = vmatprep.subr.mxu0 0.0
      %1635 = vmatpush1.msra.mxu0 0.0
      %1636 = vmatprep.subr.mxu0 0.0
      %1637 = vmatpush1.msra.mxu0 0.0
      %1638 = vmatprep.subr.mxu0 0.0
      %1639 = vmatpush1.msra.mxu0 0.0
      %1640 = vmatprep.subr.mxu0 0.0
      %1641 = vmatpush1.msra.mxu0 0.0
      %1642 = vmatprep.subr.mxu0 0.0
      %1643 = vmatpush1.msra.mxu0 0.0
      %1644 = vmatprep.subr.mxu0 0.0
      %1645 = vmatpush1.msra.mxu0 0.0
      %1646 = vmatprep.subr.mxu0 0.0
      %1647 = vmatpush1.msra.mxu0 0.0
      %1648 = vmatprep.subr.mxu0 0.0
      %1649 = vmatpush1.msra.mxu0 0.0
      %1650 = vmatprep.subr.mxu0 0.0
      %1651 = vmatpush1.msra.mxu0 0.0
      %1652 = vmatprep.subr.mxu0 0.0
      %1653 = vmatpush1.msra.mxu0 0.0
      %1654 = vmatprep.subr.mxu0 0.0
      %1655 = vmatpush1.msra.mxu0 0.0
      %1656 = vmatprep.subr.mxu0 0.0
      %1657 = vmatpush1.msra.mxu0 0.0
      %1658 = vmatprep.subr.mxu0 0.0
      %1659 = vmatpush1.msra.mxu0 0.0
      %1660 = vmatprep.subr.mxu0 0.0
      %1661 = vmatpush1.msra.mxu0 %v1628
      %1662 = vmatprep.subr.mxu0 0.0
      %1663 = vmatpush2.msra.mxu0 0.0
      %1664 = vmatprep.subr.mxu0 0.0
      %1665 = vmatpush2.msra.mxu0 0.0
      %1666 = vmatprep.subr.mxu0 0.0
      %1667 = vmatpush2.msra.mxu0 0.0
      %1668 = vmatprep.subr.mxu0 0.0
      %1669 = vmatpush2.msra.mxu0 0.0
      %1670 = vmatprep.subr.mxu0 0.0
      %1671 = vmatpush2.msra.mxu0 0.0
      %1672 = vmatprep.subr.mxu0 0.0
      %1673 = vmatpush2.msra.mxu0 0.0
      %1674 = vmatprep.subr.mxu0 0.0
      %1675 = vmatpush2.msra.mxu0 0.0
      %1676 = vmatprep.subr.mxu0 0.0
      %1677 = vmatpush2.msra.mxu0 0.0
      %1678 = vmatprep.subr.mxu0 0.0
      %1679 = vmatpush2.msra.mxu0 0.0
      %1680 = vmatprep.subr.mxu0 0.0
      %1681 = vmatpush2.msra.mxu0 0.0
      %1682 = vmatprep.subr.mxu0 0.0
      %1683 = vmatpush2.msra.mxu0 0.0
      %1684 = vmatprep.subr.mxu0 0.0
      %1685 = vmatpush2.msra.mxu0 0.0
      %1686 = vmatprep.subr.mxu0 0.0
      %1687 = vmatpush2.msra.mxu0 0.0
      %1688 = vmatprep.subr.mxu0 0.0
      %1689 = vmatpush2.msra.mxu0 0.0
      %1690 = vmatprep.subr.mxu0 0.0
      %1691 = vmatpush2.msra.mxu0 0.0
      %1692 = vmatprep.subr.mxu0 0.0
      %1693 = vmatpush2.msra.mxu0 0.0
      %1694 = vmatprep.mubr.f32.mxu0 0.0
      %1695 = vmatmul.mubr.f32.gmra.mxu0 %v1625
      %v1696 = vpop.f32.mrf.mxu0
      %v1697 = vadd.f32 0.0, %v1696
      %v1698 = vpop.f32.mrf.mxu0
      %1699 = vdwg.mxu0
      %v1701 = vsel %vm178, %v1620, 0
      %v1704 = vsel %vm182, %v1621, 0
      %1706 = vmatprep.subr.mxu0 0.0
      %1707 = vmatpush1.msra.mxu0 0.0
      %1708 = vmatprep.subr.mxu0 0.0
      %1709 = vmatpush1.msra.mxu0 0.0
      %1710 = vmatprep.subr.mxu0 0.0
      %1711 = vmatpush1.msra.mxu0 0.0
      %1712 = vmatprep.subr.mxu0 0.0
      %1713 = vmatpush1.msra.mxu0 0.0
      %1714 = vmatprep.subr.mxu0 0.0
      %1715 = vmatpush1.msra.mxu0 0.0
      %1716 = vmatprep.subr.mxu0 0.0
      %1717 = vmatpush1.msra.mxu0 0.0
      %1718 = vmatprep.subr.mxu0 0.0
      %1719 = vmatpush1.msra.mxu0 0.0
      %1720 = vmatprep.subr.mxu0 0.0
      %1721 = vmatpush1.msra.mxu0 0.0
      %1722 = vmatprep.subr.mxu0 0.0
      %1723 = vmatpush1.msra.mxu0 0.0
      %1724 = vmatprep.subr.mxu0 0.0
      %1725 = vmatpush1.msra.mxu0 0.0
      %1726 = vmatprep.subr.mxu0 0.0
      %1727 = vmatpush1.msra.mxu0 0.0
      %1728 = vmatprep.subr.mxu0 0.0
      %1729 = vmatpush1.msra.mxu0 0.0
      %1730 = vmatprep.subr.mxu0 0.0
      %1731 = vmatpush1.msra.mxu0 0.0
      %1732 = vmatprep.subr.mxu0 0.0
      %1733 = vmatpush1.msra.mxu0 0.0
      %1734 = vmatprep.subr.mxu0 0.0
      %1735 = vmatpush1.msra.mxu0 0.0
      %1736 = vmatprep.subr.mxu0 0.0
      %1737 = vmatpush1.msra.mxu0 %v1704
      %1738 = vmatprep.subr.mxu0 0.0
      %1739 = vmatpush2.msra.mxu0 0.0
      %1740 = vmatprep.subr.mxu0 0.0
      %1741 = vmatpush2.msra.mxu0 0.0
      %1742 = vmatprep.subr.mxu0 0.0
      %1743 = vmatpush2.msra.mxu0 0.0
      %1744 = vmatprep.subr.mxu0 0.0
      %1745 = vmatpush2.msra.mxu0 0.0
      %1746 = vmatprep.subr.mxu0 0.0
      %1747 = vmatpush2.msra.mxu0 0.0
      %1748 = vmatprep.subr.mxu0 0.0
      %1749 = vmatpush2.msra.mxu0 0.0
      %1750 = vmatprep.subr.mxu0 0.0
      %1751 = vmatpush2.msra.mxu0 0.0
      %1752 = vmatprep.subr.mxu0 0.0
      %1753 = vmatpush2.msra.mxu0 0.0
      %1754 = vmatprep.subr.mxu0 0.0
      %1755 = vmatpush2.msra.mxu0 0.0
      %1756 = vmatprep.subr.mxu0 0.0
      %1757 = vmatpush2.msra.mxu0 0.0
      %1758 = vmatprep.subr.mxu0 0.0
      %1759 = vmatpush2.msra.mxu0 0.0
      %1760 = vmatprep.subr.mxu0 0.0
      %1761 = vmatpush2.msra.mxu0 0.0
      %1762 = vmatprep.subr.mxu0 0.0
      %1763 = vmatpush2.msra.mxu0 0.0
      %1764 = vmatprep.subr.mxu0 0.0
      %1765 = vmatpush2.msra.mxu0 0.0
      %1766 = vmatprep.subr.mxu0 0.0
      %1767 = vmatpush2.msra.mxu0 0.0
      %1768 = vmatprep.subr.mxu0 0.0
      %1769 = vmatpush2.msra.mxu0 0.0
      %1770 = vmatprep.mubr.f32.mxu0 0.0
      %1771 = vmatmul.mubr.f32.gmra.mxu0 %v1701
      %v1772 = vpop.f32.mrf.mxu0
      %v1773 = vadd.f32 %v1697, %v1772
      %v1774 = vpop.f32.mrf.mxu0
      %1775 = vdwg.mxu0
      %v1776 = vld [vmem:[%s1378 + $0x1] sm:$0xff]
      %v1777 = vld [vmem:[%s333] sm:$0xf]
      %v1779 = vsel %vm178, %v1776, 0
      %v1782 = vsel %vm182, %v1777, 0
      %1784 = vmatprep.subr.mxu0 0.0
      %1785 = vmatpush1.msra.mxu0 0.0
      %1786 = vmatprep.subr.mxu0 0.0
      %1787 = vmatpush1.msra.mxu0 0.0
      %1788 = vmatprep.subr.mxu0 0.0
      %1789 = vmatpush1.msra.mxu0 0.0
      %1790 = vmatprep.subr.mxu0 0.0
      %1791 = vmatpush1.msra.mxu0 0.0
      %1792 = vmatprep.subr.mxu0 0.0
      %1793 = vmatpush1.msra.mxu0 0.0
      %1794 = vmatprep.subr.mxu0 0.0
      %1795 = vmatpush1.msra.mxu0 0.0
      %1796 = vmatprep.subr.mxu0 0.0
      %1797 = vmatpush1.msra.mxu0 0.0
      %1798 = vmatprep.subr.mxu0 0.0
      %1799 = vmatpush1.msra.mxu0 0.0
      %1800 = vmatprep.subr.mxu0 0.0
      %1801 = vmatpush1.msra.mxu0 0.0
      %1802 = vmatprep.subr.mxu0 0.0
      %1803 = vmatpush1.msra.mxu0 0.0
      %1804 = vmatprep.subr.mxu0 0.0
      %1805 = vmatpush1.msra.mxu0 0.0
      %1806 = vmatprep.subr.mxu0 0.0
      %1807 = vmatpush1.msra.mxu0 0.0
      %1808 = vmatprep.subr.mxu0 0.0
      %1809 = vmatpush1.msra.mxu0 0.0
      %1810 = vmatprep.subr.mxu0 0.0
      %1811 = vmatpush1.msra.mxu0 0.0
      %1812 = vmatprep.subr.mxu0 0.0
      %1813 = vmatpush1.msra.mxu0 0.0
      %1814 = vmatprep.subr.mxu0 0.0
      %1815 = vmatpush1.msra.mxu0 %v1782
      %1816 = vmatprep.subr.mxu0 0.0
      %1817 = vmatpush2.msra.mxu0 0.0
      %1818 = vmatprep.subr.mxu0 0.0
      %1819 = vmatpush2.msra.mxu0 0.0
      %1820 = vmatprep.subr.mxu0 0.0
      %1821 = vmatpush2.msra.mxu0 0.0
      %1822 = vmatprep.subr.mxu0 0.0
      %1823 = vmatpush2.msra.mxu0 0.0
      %1824 = vmatprep.subr.mxu0 0.0
      %1825 = vmatpush2.msra.mxu0 0.0
      %1826 = vmatprep.subr.mxu0 0.0
      %1827 = vmatpush2.msra.mxu0 0.0
      %1828 = vmatprep.subr.mxu0 0.0
      %1829 = vmatpush2.msra.mxu0 0.0
      %1830 = vmatprep.subr.mxu0 0.0
      %1831 = vmatpush2.msra.mxu0 0.0
      %1832 = vmatprep.subr.mxu0 0.0
      %1833 = vmatpush2.msra.mxu0 0.0
      %1834 = vmatprep.subr.mxu0 0.0
      %1835 = vmatpush2.msra.mxu0 0.0
      %1836 = vmatprep.subr.mxu0 0.0
      %1837 = vmatpush2.msra.mxu0 0.0
      %1838 = vmatprep.subr.mxu0 0.0
      %1839 = vmatpush2.msra.mxu0 0.0
      %1840 = vmatprep.subr.mxu0 0.0
      %1841 = vmatpush2.msra.mxu0 0.0
      %1842 = vmatprep.subr.mxu0 0.0
      %1843 = vmatpush2.msra.mxu0 0.0
      %1844 = vmatprep.subr.mxu0 0.0
      %1845 = vmatpush2.msra.mxu0 0.0
      %1846 = vmatprep.subr.mxu0 0.0
      %1847 = vmatpush2.msra.mxu0 0.0
      %1848 = vmatprep.mubr.f32.mxu0 0.0
      %1849 = vmatmul.mubr.f32.gmra.mxu0 %v1779
      %v1850 = vpop.f32.mrf.mxu0
      %v1851 = vadd.f32 0.0, %v1850
      %v1852 = vpop.f32.mrf.mxu0
      %1853 = vdwg.mxu0
      %v1854 = vadd.f32 %v1773, %v1851
      %s1855 = scalar_lea.vmem %s165, 320
      %v1856 = vld [vmem:[%s1855] sm:$0xff]
      %v1857 = vld [vmem:[%s414] sm:$0xf]
      %v1859 = vsel %vm178, %v1856, 0
      %v1862 = vsel %vm182, %v1857, 0
      %1864 = vmatprep.subr.mxu0 0.0
      %1865 = vmatpush1.msra.mxu0 0.0
      %1866 = vmatprep.subr.mxu0 0.0
      %1867 = vmatpush1.msra.mxu0 0.0
      %1868 = vmatprep.subr.mxu0 0.0
      %1869 = vmatpush1.msra.mxu0 0.0
      %1870 = vmatprep.subr.mxu0 0.0
      %1871 = vmatpush1.msra.mxu0 0.0
      %1872 = vmatprep.subr.mxu0 0.0
      %1873 = vmatpush1.msra.mxu0 0.0
      %1874 = vmatprep.subr.mxu0 0.0
      %1875 = vmatpush1.msra.mxu0 0.0
      %1876 = vmatprep.subr.mxu0 0.0
      %1877 = vmatpush1.msra.mxu0 0.0
      %1878 = vmatprep.subr.mxu0 0.0
      %1879 = vmatpush1.msra.mxu0 0.0
      %1880 = vmatprep.subr.mxu0 0.0
      %1881 = vmatpush1.msra.mxu0 0.0
      %1882 = vmatprep.subr.mxu0 0.0
      %1883 = vmatpush1.msra.mxu0 0.0
      %1884 = vmatprep.subr.mxu0 0.0
      %1885 = vmatpush1.msra.mxu0 0.0
      %1886 = vmatprep.subr.mxu0 0.0
      %1887 = vmatpush1.msra.mxu0 0.0
      %1888 = vmatprep.subr.mxu0 0.0
      %1889 = vmatpush1.msra.mxu0 0.0
      %1890 = vmatprep.subr.mxu0 0.0
      %1891 = vmatpush1.msra.mxu0 0.0
      %1892 = vmatprep.subr.mxu0 0.0
      %1893 = vmatpush1.msra.mxu0 0.0
      %1894 = vmatprep.subr.mxu0 0.0
      %1895 = vmatpush1.msra.mxu0 %v1862
      %1896 = vmatprep.subr.mxu0 0.0
      %1897 = vmatpush2.msra.mxu0 0.0
      %1898 = vmatprep.subr.mxu0 0.0
      %1899 = vmatpush2.msra.mxu0 0.0
      %1900 = vmatprep.subr.mxu0 0.0
      %1901 = vmatpush2.msra.mxu0 0.0
      %1902 = vmatprep.subr.mxu0 0.0
      %1903 = vmatpush2.msra.mxu0 0.0
      %1904 = vmatprep.subr.mxu0 0.0
      %1905 = vmatpush2.msra.mxu0 0.0
      %1906 = vmatprep.subr.mxu0 0.0
      %1907 = vmatpush2.msra.mxu0 0.0
      %1908 = vmatprep.subr.mxu0 0.0
      %1909 = vmatpush2.msra.mxu0 0.0
      %1910 = vmatprep.subr.mxu0 0.0
      %1911 = vmatpush2.msra.mxu0 0.0
      %1912 = vmatprep.subr.mxu0 0.0
      %1913 = vmatpush2.msra.mxu0 0.0
      %1914 = vmatprep.subr.mxu0 0.0
      %1915 = vmatpush2.msra.mxu0 0.0
      %1916 = vmatprep.subr.mxu0 0.0
      %1917 = vmatpush2.msra.mxu0 0.0
      %1918 = vmatprep.subr.mxu0 0.0
      %1919 = vmatpush2.msra.mxu0 0.0
      %1920 = vmatprep.subr.mxu0 0.0
      %1921 = vmatpush2.msra.mxu0 0.0
      %1922 = vmatprep.subr.mxu0 0.0
      %1923 = vmatpush2.msra.mxu0 0.0
      %1924 = vmatprep.subr.mxu0 0.0
      %1925 = vmatpush2.msra.mxu0 0.0
      %1926 = vmatprep.subr.mxu0 0.0
      %1927 = vmatpush2.msra.mxu0 0.0
      %1928 = vmatprep.mubr.f32.mxu0 0.0
      %1929 = vmatmul.mubr.f32.gmra.mxu0 %v1859
      %v1930 = vpop.f32.mrf.mxu0
      %v1931 = vadd.f32 0.0, %v1930
      %v1932 = vpop.f32.mrf.mxu0
      %1933 = vdwg.mxu0
      %v1934 = vadd.f32 %v1854, %v1931
      %s1935 = scalar_lea.vmem %s165, 464
      %v1936 = vld [vmem:[%s1935] sm:$0xff]
      %v1937 = vld [vmem:[%s495] sm:$0xf]
      %v1939 = vsel %vm178, %v1936, 0
      %v1942 = vsel %vm182, %v1937, 0
      %1944 = vmatprep.subr.mxu0 0.0
      %1945 = vmatpush1.msra.mxu0 0.0
      %1946 = vmatprep.subr.mxu0 0.0
      %1947 = vmatpush1.msra.mxu0 0.0
      %1948 = vmatprep.subr.mxu0 0.0
      %1949 = vmatpush1.msra.mxu0 0.0
      %1950 = vmatprep.subr.mxu0 0.0
      %1951 = vmatpush1.msra.mxu0 0.0
      %1952 = vmatprep.subr.mxu0 0.0
      %1953 = vmatpush1.msra.mxu0 0.0
      %1954 = vmatprep.subr.mxu0 0.0
      %1955 = vmatpush1.msra.mxu0 0.0
      %1956 = vmatprep.subr.mxu0 0.0
      %1957 = vmatpush1.msra.mxu0 0.0
      %1958 = vmatprep.subr.mxu0 0.0
      %1959 = vmatpush1.msra.mxu0 0.0
      %1960 = vmatprep.subr.mxu0 0.0
      %1961 = vmatpush1.msra.mxu0 0.0
      %1962 = vmatprep.subr.mxu0 0.0
      %1963 = vmatpush1.msra.mxu0 0.0
      %1964 = vmatprep.subr.mxu0 0.0
      %1965 = vmatpush1.msra.mxu0 0.0
      %1966 = vmatprep.subr.mxu0 0.0
      %1967 = vmatpush1.msra.mxu0 0.0
      %1968 = vmatprep.subr.mxu0 0.0
      %1969 = vmatpush1.msra.mxu0 0.0
      %1970 = vmatprep.subr.mxu0 0.0
      %1971 = vmatpush1.msra.mxu0 0.0
      %1972 = vmatprep.subr.mxu0 0.0
      %1973 = vmatpush1.msra.mxu0 0.0
      %1974 = vmatprep.subr.mxu0 0.0
      %1975 = vmatpush1.msra.mxu0 %v1942
      %1976 = vmatprep.subr.mxu0 0.0
      %1977 = vmatpush2.msra.mxu0 0.0
      %1978 = vmatprep.subr.mxu0 0.0
      %1979 = vmatpush2.msra.mxu0 0.0
      %1980 = vmatprep.subr.mxu0 0.0
      %1981 = vmatpush2.msra.mxu0 0.0
      %1982 = vmatprep.subr.mxu0 0.0
      %1983 = vmatpush2.msra.mxu0 0.0
      %1984 = vmatprep.subr.mxu0 0.0
      %1985 = vmatpush2.msra.mxu0 0.0
      %1986 = vmatprep.subr.mxu0 0.0
      %1987 = vmatpush2.msra.mxu0 0.0
      %1988 = vmatprep.subr.mxu0 0.0
      %1989 = vmatpush2.msra.mxu0 0.0
      %1990 = vmatprep.subr.mxu0 0.0
      %1991 = vmatpush2.msra.mxu0 0.0
      %1992 = vmatprep.subr.mxu0 0.0
      %1993 = vmatpush2.msra.mxu0 0.0
      %1994 = vmatprep.subr.mxu0 0.0
      %1995 = vmatpush2.msra.mxu0 0.0
      %1996 = vmatprep.subr.mxu0 0.0
      %1997 = vmatpush2.msra.mxu0 0.0
      %1998 = vmatprep.subr.mxu0 0.0
      %1999 = vmatpush2.msra.mxu0 0.0
      %2000 = vmatprep.subr.mxu0 0.0
      %2001 = vmatpush2.msra.mxu0 0.0
      %2002 = vmatprep.subr.mxu0 0.0
      %2003 = vmatpush2.msra.mxu0 0.0
      %2004 = vmatprep.subr.mxu0 0.0
      %2005 = vmatpush2.msra.mxu0 0.0
      %2006 = vmatprep.subr.mxu0 0.0
      %2007 = vmatpush2.msra.mxu0 0.0
      %2008 = vmatprep.mubr.f32.mxu0 0.0
      %2009 = vmatmul.mubr.f32.gmra.mxu0 %v1939
      %v2010 = vpop.f32.mrf.mxu0
      %v2011 = vadd.f32 0.0, %v2010
      %v2012 = vpop.f32.mrf.mxu0
      %2013 = vdwg.mxu0
      %v2014 = vadd.f32 %v1934, %v2011
      %v2015 = vld [vmem:[%s1855 + $0x1] sm:$0xff]
      %v2016 = vld [vmem:[%s575] sm:$0xf]
      %v2018 = vsel %vm178, %v2015, 0
      %v2021 = vsel %vm182, %v2016, 0
      %2023 = vmatprep.subr.mxu0 0.0
      %2024 = vmatpush1.msra.mxu0 0.0
      %2025 = vmatprep.subr.mxu0 0.0
      %2026 = vmatpush1.msra.mxu0 0.0
      %2027 = vmatprep.subr.mxu0 0.0
      %2028 = vmatpush1.msra.mxu0 0.0
      %2029 = vmatprep.subr.mxu0 0.0
      %2030 = vmatpush1.msra.mxu0 0.0
      %2031 = vmatprep.subr.mxu0 0.0
      %2032 = vmatpush1.msra.mxu0 0.0
      %2033 = vmatprep.subr.mxu0 0.0
      %2034 = vmatpush1.msra.mxu0 0.0
      %2035 = vmatprep.subr.mxu0 0.0
      %2036 = vmatpush1.msra.mxu0 0.0
      %2037 = vmatprep.subr.mxu0 0.0
      %2038 = vmatpush1.msra.mxu0 0.0
      %2039 = vmatprep.subr.mxu0 0.0
      %2040 = vmatpush1.msra.mxu0 0.0
      %2041 = vmatprep.subr.mxu0 0.0
      %2042 = vmatpush1.msra.mxu0 0.0
      %2043 = vmatprep.subr.mxu0 0.0
      %2044 = vmatpush1.msra.mxu0 0.0
      %2045 = vmatprep.subr.mxu0 0.0
      %2046 = vmatpush1.msra.mxu0 0.0
      %2047 = vmatprep.subr.mxu0 0.0
      %2048 = vmatpush1.msra.mxu0 0.0
      %2049 = vmatprep.subr.mxu0 0.0
      %2050 = vmatpush1.msra.mxu0 0.0
      %2051 = vmatprep.subr.mxu0 0.0
      %2052 = vmatpush1.msra.mxu0 0.0
      %2053 = vmatprep.subr.mxu0 0.0
      %2054 = vmatpush1.msra.mxu0 %v2021
      %2055 = vmatprep.subr.mxu0 0.0
      %2056 = vmatpush2.msra.mxu0 0.0
      %2057 = vmatprep.subr.mxu0 0.0
      %2058 = vmatpush2.msra.mxu0 0.0
      %2059 = vmatprep.subr.mxu0 0.0
      %2060 = vmatpush2.msra.mxu0 0.0
      %2061 = vmatprep.subr.mxu0 0.0
      %2062 = vmatpush2.msra.mxu0 0.0
      %2063 = vmatprep.subr.mxu0 0.0
      %2064 = vmatpush2.msra.mxu0 0.0
      %2065 = vmatprep.subr.mxu0 0.0
      %2066 = vmatpush2.msra.mxu0 0.0
      %2067 = vmatprep.subr.mxu0 0.0
      %2068 = vmatpush2.msra.mxu0 0.0
      %2069 = vmatprep.subr.mxu0 0.0
      %2070 = vmatpush2.msra.mxu0 0.0
      %2071 = vmatprep.subr.mxu0 0.0
      %2072 = vmatpush2.msra.mxu0 0.0
      %2073 = vmatprep.subr.mxu0 0.0
      %2074 = vmatpush2.msra.mxu0 0.0
      %2075 = vmatprep.subr.mxu0 0.0
      %2076 = vmatpush2.msra.mxu0 0.0
      %2077 = vmatprep.subr.mxu0 0.0
      %2078 = vmatpush2.msra.mxu0 0.0
      %2079 = vmatprep.subr.mxu0 0.0
      %2080 = vmatpush2.msra.mxu0 0.0
      %2081 = vmatprep.subr.mxu0 0.0
      %2082 = vmatpush2.msra.mxu0 0.0
      %2083 = vmatprep.subr.mxu0 0.0
      %2084 = vmatpush2.msra.mxu0 0.0
      %2085 = vmatprep.subr.mxu0 0.0
      %2086 = vmatpush2.msra.mxu0 0.0
      %2087 = vmatprep.mubr.f32.mxu0 0.0
      %2088 = vmatmul.mubr.f32.gmra.mxu0 %v2018
      %v2089 = vpop.f32.mrf.mxu0
      %v2090 = vadd.f32 0.0, %v2089
      %v2091 = vpop.f32.mrf.mxu0
      %2092 = vdwg.mxu0
      %v2093 = vadd.f32 %v2014, %v2090
      %s2094 = scalar_lea.vmem %s165, 48
      %v2095 = vld [vmem:[%s2094] sm:$0xff]
      %v2096 = vld [vmem:[%s656] sm:$0xf]
      %v2098 = vsel %vm178, %v2095, 0
      %v2101 = vsel %vm182, %v2096, 0
      %2103 = vmatprep.subr.mxu0 0.0
      %2104 = vmatpush1.msra.mxu0 0.0
      %2105 = vmatprep.subr.mxu0 0.0
      %2106 = vmatpush1.msra.mxu0 0.0
      %2107 = vmatprep.subr.mxu0 0.0
      %2108 = vmatpush1.msra.mxu0 0.0
      %2109 = vmatprep.subr.mxu0 0.0
      %2110 = vmatpush1.msra.mxu0 0.0
      %2111 = vmatprep.subr.mxu0 0.0
      %2112 = vmatpush1.msra.mxu0 0.0
      %2113 = vmatprep.subr.mxu0 0.0
      %2114 = vmatpush1.msra.mxu0 0.0
      %2115 = vmatprep.subr.mxu0 0.0
      %2116 = vmatpush1.msra.mxu0 0.0
      %2117 = vmatprep.subr.mxu0 0.0
      %2118 = vmatpush1.msra.mxu0 0.0
      %2119 = vmatprep.subr.mxu0 0.0
      %2120 = vmatpush1.msra.mxu0 0.0
      %2121 = vmatprep.subr.mxu0 0.0
      %2122 = vmatpush1.msra.mxu0 0.0
      %2123 = vmatprep.subr.mxu0 0.0
      %2124 = vmatpush1.msra.mxu0 0.0
      %2125 = vmatprep.subr.mxu0 0.0
      %2126 = vmatpush1.msra.mxu0 0.0
      %2127 = vmatprep.subr.mxu0 0.0
      %2128 = vmatpush1.msra.mxu0 0.0
      %2129 = vmatprep.subr.mxu0 0.0
      %2130 = vmatpush1.msra.mxu0 0.0
      %2131 = vmatprep.subr.mxu0 0.0
      %2132 = vmatpush1.msra.mxu0 0.0
      %2133 = vmatprep.subr.mxu0 0.0
      %2134 = vmatpush1.msra.mxu0 %v2101
      %2135 = vmatprep.subr.mxu0 0.0
      %2136 = vmatpush2.msra.mxu0 0.0
      %2137 = vmatprep.subr.mxu0 0.0
      %2138 = vmatpush2.msra.mxu0 0.0
      %2139 = vmatprep.subr.mxu0 0.0
      %2140 = vmatpush2.msra.mxu0 0.0
      %2141 = vmatprep.subr.mxu0 0.0
      %2142 = vmatpush2.msra.mxu0 0.0
      %2143 = vmatprep.subr.mxu0 0.0
      %2144 = vmatpush2.msra.mxu0 0.0
      %2145 = vmatprep.subr.mxu0 0.0
      %2146 = vmatpush2.msra.mxu0 0.0
      %2147 = vmatprep.subr.mxu0 0.0
      %2148 = vmatpush2.msra.mxu0 0.0
      %2149 = vmatprep.subr.mxu0 0.0
      %2150 = vmatpush2.msra.mxu0 0.0
      %2151 = vmatprep.subr.mxu0 0.0
      %2152 = vmatpush2.msra.mxu0 0.0
      %2153 = vmatprep.subr.mxu0 0.0
      %2154 = vmatpush2.msra.mxu0 0.0
      %2155 = vmatprep.subr.mxu0 0.0
      %2156 = vmatpush2.msra.mxu0 0.0
      %2157 = vmatprep.subr.mxu0 0.0
      %2158 = vmatpush2.msra.mxu0 0.0
      %2159 = vmatprep.subr.mxu0 0.0
      %2160 = vmatpush2.msra.mxu0 0.0
      %2161 = vmatprep.subr.mxu0 0.0
      %2162 = vmatpush2.msra.mxu0 0.0
      %2163 = vmatprep.subr.mxu0 0.0
      %2164 = vmatpush2.msra.mxu0 0.0
      %2165 = vmatprep.subr.mxu0 0.0
      %2166 = vmatpush2.msra.mxu0 0.0
      %2167 = vmatprep.mubr.f32.mxu0 0.0
      %2168 = vmatmul.mubr.f32.gmra.mxu0 %v2098
      %v2169 = vpop.f32.mrf.mxu0
      %v2170 = vadd.f32 0.0, %v2169
      %v2171 = vpop.f32.mrf.mxu0
      %2172 = vdwg.mxu0
      %v2173 = vadd.f32 %v2093, %v2170
      %s2174 = scalar_lea.vmem %s165, 192
      %v2175 = vld [vmem:[%s2174] sm:$0xff]
      %v2176 = vld [vmem:[%s737] sm:$0xf]
      %v2178 = vsel %vm178, %v2175, 0
      %v2181 = vsel %vm182, %v2176, 0
      %2183 = vmatprep.subr.mxu0 0.0
      %2184 = vmatpush1.msra.mxu0 0.0
      %2185 = vmatprep.subr.mxu0 0.0
      %2186 = vmatpush1.msra.mxu0 0.0
      %2187 = vmatprep.subr.mxu0 0.0
      %2188 = vmatpush1.msra.mxu0 0.0
      %2189 = vmatprep.subr.mxu0 0.0
      %2190 = vmatpush1.msra.mxu0 0.0
      %2191 = vmatprep.subr.mxu0 0.0
      %2192 = vmatpush1.msra.mxu0 0.0
      %2193 = vmatprep.subr.mxu0 0.0
      %2194 = vmatpush1.msra.mxu0 0.0
      %2195 = vmatprep.subr.mxu0 0.0
      %2196 = vmatpush1.msra.mxu0 0.0
      %2197 = vmatprep.subr.mxu0 0.0
      %2198 = vmatpush1.msra.mxu0 0.0
      %2199 = vmatprep.subr.mxu0 0.0
      %2200 = vmatpush1.msra.mxu0 0.0
      %2201 = vmatprep.subr.mxu0 0.0
      %2202 = vmatpush1.msra.mxu0 0.0
      %2203 = vmatprep.subr.mxu0 0.0
      %2204 = vmatpush1.msra.mxu0 0.0
      %2205 = vmatprep.subr.mxu0 0.0
      %2206 = vmatpush1.msra.mxu0 0.0
      %2207 = vmatprep.subr.mxu0 0.0
      %2208 = vmatpush1.msra.mxu0 0.0
      %2209 = vmatprep.subr.mxu0 0.0
      %2210 = vmatpush1.msra.mxu0 0.0
      %2211 = vmatprep.subr.mxu0 0.0
      %2212 = vmatpush1.msra.mxu0 0.0
      %2213 = vmatprep.subr.mxu0 0.0
      %2214 = vmatpush1.msra.mxu0 %v2181
      %2215 = vmatprep.subr.mxu0 0.0
      %2216 = vmatpush2.msra.mxu0 0.0
      %2217 = vmatprep.subr.mxu0 0.0
      %2218 = vmatpush2.msra.mxu0 0.0
      %2219 = vmatprep.subr.mxu0 0.0
      %2220 = vmatpush2.msra.mxu0 0.0
      %2221 = vmatprep.subr.mxu0 0.0
      %2222 = vmatpush2.msra.mxu0 0.0
      %2223 = vmatprep.subr.mxu0 0.0
      %2224 = vmatpush2.msra.mxu0 0.0
      %2225 = vmatprep.subr.mxu0 0.0
      %2226 = vmatpush2.msra.mxu0 0.0
      %2227 = vmatprep.subr.mxu0 0.0
      %2228 = vmatpush2.msra.mxu0 0.0
      %2229 = vmatprep.subr.mxu0 0.0
      %2230 = vmatpush2.msra.mxu0 0.0
      %2231 = vmatprep.subr.mxu0 0.0
      %2232 = vmatpush2.msra.mxu0 0.0
      %2233 = vmatprep.subr.mxu0 0.0
      %2234 = vmatpush2.msra.mxu0 0.0
      %2235 = vmatprep.subr.mxu0 0.0
      %2236 = vmatpush2.msra.mxu0 0.0
      %2237 = vmatprep.subr.mxu0 0.0
      %2238 = vmatpush2.msra.mxu0 0.0
      %2239 = vmatprep.subr.mxu0 0.0
      %2240 = vmatpush2.msra.mxu0 0.0
      %2241 = vmatprep.subr.mxu0 0.0
      %2242 = vmatpush2.msra.mxu0 0.0
      %2243 = vmatprep.subr.mxu0 0.0
      %2244 = vmatpush2.msra.mxu0 0.0
      %2245 = vmatprep.subr.mxu0 0.0
      %2246 = vmatpush2.msra.mxu0 0.0
      %2247 = vmatprep.mubr.f32.mxu0 0.0
      %2248 = vmatmul.mubr.f32.gmra.mxu0 %v2178
      %v2249 = vpop.f32.mrf.mxu0
      %v2250 = vadd.f32 0.0, %v2249
      %v2251 = vpop.f32.mrf.mxu0
      %2252 = vdwg.mxu0
      %v2253 = vadd.f32 %v2173, %v2250
      %v2254 = vld [vmem:[%s2094 + $0x1] sm:$0xff]
      %v2255 = vld [vmem:[%s817] sm:$0xf]
      %v2257 = vsel %vm178, %v2254, 0
      %v2260 = vsel %vm182, %v2255, 0
      %2262 = vmatprep.subr.mxu0 0.0
      %2263 = vmatpush1.msra.mxu0 0.0
      %2264 = vmatprep.subr.mxu0 0.0
      %2265 = vmatpush1.msra.mxu0 0.0
      %2266 = vmatprep.subr.mxu0 0.0
      %2267 = vmatpush1.msra.mxu0 0.0
      %2268 = vmatprep.subr.mxu0 0.0
      %2269 = vmatpush1.msra.mxu0 0.0
      %2270 = vmatprep.subr.mxu0 0.0
      %2271 = vmatpush1.msra.mxu0 0.0
      %2272 = vmatprep.subr.mxu0 0.0
      %2273 = vmatpush1.msra.mxu0 0.0
      %2274 = vmatprep.subr.mxu0 0.0
      %2275 = vmatpush1.msra.mxu0 0.0
      %2276 = vmatprep.subr.mxu0 0.0
      %2277 = vmatpush1.msra.mxu0 0.0
      %2278 = vmatprep.subr.mxu0 0.0
      %2279 = vmatpush1.msra.mxu0 0.0
      %2280 = vmatprep.subr.mxu0 0.0
      %2281 = vmatpush1.msra.mxu0 0.0
      %2282 = vmatprep.subr.mxu0 0.0
      %2283 = vmatpush1.msra.mxu0 0.0
      %2284 = vmatprep.subr.mxu0 0.0
      %2285 = vmatpush1.msra.mxu0 0.0
      %2286 = vmatprep.subr.mxu0 0.0
      %2287 = vmatpush1.msra.mxu0 0.0
      %2288 = vmatprep.subr.mxu0 0.0
      %2289 = vmatpush1.msra.mxu0 0.0
      %2290 = vmatprep.subr.mxu0 0.0
      %2291 = vmatpush1.msra.mxu0 0.0
      %2292 = vmatprep.subr.mxu0 0.0
      %2293 = vmatpush1.msra.mxu0 %v2260
      %2294 = vmatprep.subr.mxu0 0.0
      %2295 = vmatpush2.msra.mxu0 0.0
      %2296 = vmatprep.subr.mxu0 0.0
      %2297 = vmatpush2.msra.mxu0 0.0
      %2298 = vmatprep.subr.mxu0 0.0
      %2299 = vmatpush2.msra.mxu0 0.0
      %2300 = vmatprep.subr.mxu0 0.0
      %2301 = vmatpush2.msra.mxu0 0.0
      %2302 = vmatprep.subr.mxu0 0.0
      %2303 = vmatpush2.msra.mxu0 0.0
      %2304 = vmatprep.subr.mxu0 0.0
      %2305 = vmatpush2.msra.mxu0 0.0
      %2306 = vmatprep.subr.mxu0 0.0
      %2307 = vmatpush2.msra.mxu0 0.0
      %2308 = vmatprep.subr.mxu0 0.0
      %2309 = vmatpush2.msra.mxu0 0.0
      %2310 = vmatprep.subr.mxu0 0.0
      %2311 = vmatpush2.msra.mxu0 0.0
      %2312 = vmatprep.subr.mxu0 0.0
      %2313 = vmatpush2.msra.mxu0 0.0
      %2314 = vmatprep.subr.mxu0 0.0
      %2315 = vmatpush2.msra.mxu0 0.0
      %2316 = vmatprep.subr.mxu0 0.0
      %2317 = vmatpush2.msra.mxu0 0.0
      %2318 = vmatprep.subr.mxu0 0.0
      %2319 = vmatpush2.msra.mxu0 0.0
      %2320 = vmatprep.subr.mxu0 0.0
      %2321 = vmatpush2.msra.mxu0 0.0
      %2322 = vmatprep.subr.mxu0 0.0
      %2323 = vmatpush2.msra.mxu0 0.0
      %2324 = vmatprep.subr.mxu0 0.0
      %2325 = vmatpush2.msra.mxu0 0.0
      %2326 = vmatprep.mubr.f32.mxu0 0.0
      %2327 = vmatmul.mubr.f32.gmra.mxu0 %v2257
      %v2328 = vpop.f32.mrf.mxu0
      %v2329 = vadd.f32 0.0, %v2328
      %v2330 = vpop.f32.mrf.mxu0
      %2331 = vdwg.mxu0
      %v2332 = vadd.f32 %v2253, %v2329
      %v2333 = vadd.f32 %v2332, %v900
      %s2334 = scalar_lea.vmem %s170, 16
      %2335 = vst.msk [vmem:[%s2334] sm:$0xff] %vm178, %v2333
      %v2336 = vld [vmem:[%s2094] sm:$0xff]
      %v2337 = vld [vmem:[%s1] sm:$0xf]
      %v2338 = vld [vmem:[%s2174] sm:$0xff]
      %v2339 = vld [vmem:[%s176] sm:$0xf]
      %v2341 = vsel %vm178, %v2338, 0
      %v2344 = vsel %vm182, %v2339, 0
      %2346 = vmatprep.subr.mxu0 0.0
      %2347 = vmatpush1.msra.mxu0 0.0
      %2348 = vmatprep.subr.mxu0 0.0
      %2349 = vmatpush1.msra.mxu0 0.0
      %2350 = vmatprep.subr.mxu0 0.0
      %2351 = vmatpush1.msra.mxu0 0.0
      %2352 = vmatprep.subr.mxu0 0.0
      %2353 = vmatpush1.msra.mxu0 0.0
      %2354 = vmatprep.subr.mxu0 0.0
      %2355 = vmatpush1.msra.mxu0 0.0
      %2356 = vmatprep.subr.mxu0 0.0
      %2357 = vmatpush1.msra.mxu0 0.0
      %2358 = vmatprep.subr.mxu0 0.0
      %2359 = vmatpush1.msra.mxu0 0.0
      %2360 = vmatprep.subr.mxu0 0.0
      %2361 = vmatpush1.msra.mxu0 0.0
      %2362 = vmatprep.subr.mxu0 0.0
      %2363 = vmatpush1.msra.mxu0 0.0
      %2364 = vmatprep.subr.mxu0 0.0
      %2365 = vmatpush1.msra.mxu0 0.0
      %2366 = vmatprep.subr.mxu0 0.0
      %2367 = vmatpush1.msra.mxu0 0.0
      %2368 = vmatprep.subr.mxu0 0.0
      %2369 = vmatpush1.msra.mxu0 0.0
      %2370 = vmatprep.subr.mxu0 0.0
      %2371 = vmatpush1.msra.mxu0 0.0
      %2372 = vmatprep.subr.mxu0 0.0
      %2373 = vmatpush1.msra.mxu0 0.0
      %2374 = vmatprep.subr.mxu0 0.0
      %2375 = vmatpush1.msra.mxu0 0.0
      %2376 = vmatprep.subr.mxu0 0.0
      %2377 = vmatpush1.msra.mxu0 %v2344
      %2378 = vmatprep.subr.mxu0 0.0
      %2379 = vmatpush2.msra.mxu0 0.0
      %2380 = vmatprep.subr.mxu0 0.0
      %2381 = vmatpush2.msra.mxu0 0.0
      %2382 = vmatprep.subr.mxu0 0.0
      %2383 = vmatpush2.msra.mxu0 0.0
      %2384 = vmatprep.subr.mxu0 0.0
      %2385 = vmatpush2.msra.mxu0 0.0
      %2386 = vmatprep.subr.mxu0 0.0
      %2387 = vmatpush2.msra.mxu0 0.0
      %2388 = vmatprep.subr.mxu0 0.0
      %2389 = vmatpush2.msra.mxu0 0.0
      %2390 = vmatprep.subr.mxu0 0.0
      %2391 = vmatpush2.msra.mxu0 0.0
      %2392 = vmatprep.subr.mxu0 0.0
      %2393 = vmatpush2.msra.mxu0 0.0
      %2394 = vmatprep.subr.mxu0 0.0
      %2395 = vmatpush2.msra.mxu0 0.0
      %2396 = vmatprep.subr.mxu0 0.0
      %2397 = vmatpush2.msra.mxu0 0.0
      %2398 = vmatprep.subr.mxu0 0.0
      %2399 = vmatpush2.msra.mxu0 0.0
      %2400 = vmatprep.subr.mxu0 0.0
      %2401 = vmatpush2.msra.mxu0 0.0
      %2402 = vmatprep.subr.mxu0 0.0
      %2403 = vmatpush2.msra.mxu0 0.0
      %2404 = vmatprep.subr.mxu0 0.0
      %2405 = vmatpush2.msra.mxu0 0.0
      %2406 = vmatprep.subr.mxu0 0.0
      %2407 = vmatpush2.msra.mxu0 0.0
      %2408 = vmatprep.subr.mxu0 0.0
      %2409 = vmatpush2.msra.mxu0 0.0
      %2410 = vmatprep.mubr.f32.mxu0 0.0
      %2411 = vmatmul.mubr.f32.gmra.mxu0 %v2341
      %v2412 = vpop.f32.mrf.mxu0
      %v2413 = vadd.f32 0.0, %v2412
      %v2414 = vpop.f32.mrf.mxu0
      %2415 = vdwg.mxu0
      %v2417 = vsel %vm178, %v2336, 0
      %v2420 = vsel %vm182, %v2337, 0
      %2422 = vmatprep.subr.mxu0 0.0
      %2423 = vmatpush1.msra.mxu0 0.0
      %2424 = vmatprep.subr.mxu0 0.0
      %2425 = vmatpush1.msra.mxu0 0.0
      %2426 = vmatprep.subr.mxu0 0.0
      %2427 = vmatpush1.msra.mxu0 0.0
      %2428 = vmatprep.subr.mxu0 0.0
      %2429 = vmatpush1.msra.mxu0 0.0
      %2430 = vmatprep.subr.mxu0 0.0
      %2431 = vmatpush1.msra.mxu0 0.0
      %2432 = vmatprep.subr.mxu0 0.0
      %2433 = vmatpush1.msra.mxu0 0.0
      %2434 = vmatprep.subr.mxu0 0.0
      %2435 = vmatpush1.msra.mxu0 0.0
      %2436 = vmatprep.subr.mxu0 0.0
      %2437 = vmatpush1.msra.mxu0 0.0
      %2438 = vmatprep.subr.mxu0 0.0
      %2439 = vmatpush1.msra.mxu0 0.0
      %2440 = vmatprep.subr.mxu0 0.0
      %2441 = vmatpush1.msra.mxu0 0.0
      %2442 = vmatprep.subr.mxu0 0.0
      %2443 = vmatpush1.msra.mxu0 0.0
      %2444 = vmatprep.subr.mxu0 0.0
      %2445 = vmatpush1.msra.mxu0 0.0
      %2446 = vmatprep.subr.mxu0 0.0
      %2447 = vmatpush1.msra.mxu0 0.0
      %2448 = vmatprep.subr.mxu0 0.0
      %2449 = vmatpush1.msra.mxu0 0.0
      %2450 = vmatprep.subr.mxu0 0.0
      %2451 = vmatpush1.msra.mxu0 0.0
      %2452 = vmatprep.subr.mxu0 0.0
      %2453 = vmatpush1.msra.mxu0 %v2420
      %2454 = vmatprep.subr.mxu0 0.0
      %2455 = vmatpush2.msra.mxu0 0.0
      %2456 = vmatprep.subr.mxu0 0.0
      %2457 = vmatpush2.msra.mxu0 0.0
      %2458 = vmatprep.subr.mxu0 0.0
      %2459 = vmatpush2.msra.mxu0 0.0
      %2460 = vmatprep.subr.mxu0 0.0
      %2461 = vmatpush2.msra.mxu0 0.0
      %2462 = vmatprep.subr.mxu0 0.0
      %2463 = vmatpush2.msra.mxu0 0.0
      %2464 = vmatprep.subr.mxu0 0.0
      %2465 = vmatpush2.msra.mxu0 0.0
      %2466 = vmatprep.subr.mxu0 0.0
      %2467 = vmatpush2.msra.mxu0 0.0
      %2468 = vmatprep.subr.mxu0 0.0
      %2469 = vmatpush2.msra.mxu0 0.0
      %2470 = vmatprep.subr.mxu0 0.0
      %2471 = vmatpush2.msra.mxu0 0.0
      %2472 = vmatprep.subr.mxu0 0.0
      %2473 = vmatpush2.msra.mxu0 0.0
      %2474 = vmatprep.subr.mxu0 0.0
      %2475 = vmatpush2.msra.mxu0 0.0
      %2476 = vmatprep.subr.mxu0 0.0
      %2477 = vmatpush2.msra.mxu0 0.0
      %2478 = vmatprep.subr.mxu0 0.0
      %2479 = vmatpush2.msra.mxu0 0.0
      %2480 = vmatprep.subr.mxu0 0.0
      %2481 = vmatpush2.msra.mxu0 0.0
      %2482 = vmatprep.subr.mxu0 0.0
      %2483 = vmatpush2.msra.mxu0 0.0
      %2484 = vmatprep.subr.mxu0 0.0
      %2485 = vmatpush2.msra.mxu0 0.0
      %2486 = vmatprep.mubr.f32.mxu0 0.0
      %2487 = vmatmul.mubr.f32.gmra.mxu0 %v2417
      %v2488 = vpop.f32.mrf.mxu0
      %v2489 = vadd.f32 %v2413, %v2488
      %v2490 = vpop.f32.mrf.mxu0
      %2491 = vdwg.mxu0
      %v2492 = vld [vmem:[%s2094 + $0x1] sm:$0xff]
      %v2493 = vld [vmem:[%s333] sm:$0xf]
      %v2495 = vsel %vm178, %v2492, 0
      %v2498 = vsel %vm182, %v2493, 0
      %2500 = vmatprep.subr.mxu0 0.0
      %2501 = vmatpush1.msra.mxu0 0.0
      %2502 = vmatprep.subr.mxu0 0.0
      %2503 = vmatpush1.msra.mxu0 0.0
      %2504 = vmatprep.subr.mxu0 0.0
      %2505 = vmatpush1.msra.mxu0 0.0
      %2506 = vmatprep.subr.mxu0 0.0
      %2507 = vmatpush1.msra.mxu0 0.0
      %2508 = vmatprep.subr.mxu0 0.0
      %2509 = vmatpush1.msra.mxu0 0.0
      %2510 = vmatprep.subr.mxu0 0.0
      %2511 = vmatpush1.msra.mxu0 0.0
      %2512 = vmatprep.subr.mxu0 0.0
      %2513 = vmatpush1.msra.mxu0 0.0
      %2514 = vmatprep.subr.mxu0 0.0
      %2515 = vmatpush1.msra.mxu0 0.0
      %2516 = vmatprep.subr.mxu0 0.0
      %2517 = vmatpush1.msra.mxu0 0.0
      %2518 = vmatprep.subr.mxu0 0.0
      %2519 = vmatpush1.msra.mxu0 0.0
      %2520 = vmatprep.subr.mxu0 0.0
      %2521 = vmatpush1.msra.mxu0 0.0
      %2522 = vmatprep.subr.mxu0 0.0
      %2523 = vmatpush1.msra.mxu0 0.0
      %2524 = vmatprep.subr.mxu0 0.0
      %2525 = vmatpush1.msra.mxu0 0.0
      %2526 = vmatprep.subr.mxu0 0.0
      %2527 = vmatpush1.msra.mxu0 0.0
      %2528 = vmatprep.subr.mxu0 0.0
      %2529 = vmatpush1.msra.mxu0 0.0
      %2530 = vmatprep.subr.mxu0 0.0
      %2531 = vmatpush1.msra.mxu0 %v2498
      %2532 = vmatprep.subr.mxu0 0.0
      %2533 = vmatpush2.msra.mxu0 0.0
      %2534 = vmatprep.subr.mxu0 0.0
      %2535 = vmatpush2.msra.mxu0 0.0
      %2536 = vmatprep.subr.mxu0 0.0
      %2537 = vmatpush2.msra.mxu0 0.0
      %2538 = vmatprep.subr.mxu0 0.0
      %2539 = vmatpush2.msra.mxu0 0.0
      %2540 = vmatprep.subr.mxu0 0.0
      %2541 = vmatpush2.msra.mxu0 0.0
      %2542 = vmatprep.subr.mxu0 0.0
      %2543 = vmatpush2.msra.mxu0 0.0
      %2544 = vmatprep.subr.mxu0 0.0
      %2545 = vmatpush2.msra.mxu0 0.0
      %2546 = vmatprep.subr.mxu0 0.0
      %2547 = vmatpush2.msra.mxu0 0.0
      %2548 = vmatprep.subr.mxu0 0.0
      %2549 = vmatpush2.msra.mxu0 0.0
      %2550 = vmatprep.subr.mxu0 0.0
      %2551 = vmatpush2.msra.mxu0 0.0
      %2552 = vmatprep.subr.mxu0 0.0
      %2553 = vmatpush2.msra.mxu0 0.0
      %2554 = vmatprep.subr.mxu0 0.0
      %2555 = vmatpush2.msra.mxu0 0.0
      %2556 = vmatprep.subr.mxu0 0.0
      %2557 = vmatpush2.msra.mxu0 0.0
      %2558 = vmatprep.subr.mxu0 0.0
      %2559 = vmatpush2.msra.mxu0 0.0
      %2560 = vmatprep.subr.mxu0 0.0
      %2561 = vmatpush2.msra.mxu0 0.0
      %2562 = vmatprep.subr.mxu0 0.0
      %2563 = vmatpush2.msra.mxu0 0.0
      %2564 = vmatprep.mubr.f32.mxu0 0.0
      %2565 = vmatmul.mubr.f32.gmra.mxu0 %v2495
      %v2566 = vpop.f32.mrf.mxu0
      %v2567 = vadd.f32 0.0, %v2566
      %v2568 = vpop.f32.mrf.mxu0
      %2569 = vdwg.mxu0
      %v2570 = vadd.f32 %v2489, %v2567
      %s2571 = scalar_lea.vmem %s165, 336
      %v2572 = vld [vmem:[%s2571] sm:$0xff]
      %v2573 = vld [vmem:[%s414] sm:$0xf]
      %v2575 = vsel %vm178, %v2572, 0
      %v2578 = vsel %vm182, %v2573, 0
      %2580 = vmatprep.subr.mxu0 0.0
      %2581 = vmatpush1.msra.mxu0 0.0
      %2582 = vmatprep.subr.mxu0 0.0
      %2583 = vmatpush1.msra.mxu0 0.0
      %2584 = vmatprep.subr.mxu0 0.0
      %2585 = vmatpush1.msra.mxu0 0.0
      %2586 = vmatprep.subr.mxu0 0.0
      %2587 = vmatpush1.msra.mxu0 0.0
      %2588 = vmatprep.subr.mxu0 0.0
      %2589 = vmatpush1.msra.mxu0 0.0
      %2590 = vmatprep.subr.mxu0 0.0
      %2591 = vmatpush1.msra.mxu0 0.0
      %2592 = vmatprep.subr.mxu0 0.0
      %2593 = vmatpush1.msra.mxu0 0.0
      %2594 = vmatprep.subr.mxu0 0.0
      %2595 = vmatpush1.msra.mxu0 0.0
      %2596 = vmatprep.subr.mxu0 0.0
      %2597 = vmatpush1.msra.mxu0 0.0
      %2598 = vmatprep.subr.mxu0 0.0
      %2599 = vmatpush1.msra.mxu0 0.0
      %2600 = vmatprep.subr.mxu0 0.0
      %2601 = vmatpush1.msra.mxu0 0.0
      %2602 = vmatprep.subr.mxu0 0.0
      %2603 = vmatpush1.msra.mxu0 0.0
      %2604 = vmatprep.subr.mxu0 0.0
      %2605 = vmatpush1.msra.mxu0 0.0
      %2606 = vmatprep.subr.mxu0 0.0
      %2607 = vmatpush1.msra.mxu0 0.0
      %2608 = vmatprep.subr.mxu0 0.0
      %2609 = vmatpush1.msra.mxu0 0.0
      %2610 = vmatprep.subr.mxu0 0.0
      %2611 = vmatpush1.msra.mxu0 %v2578
      %2612 = vmatprep.subr.mxu0 0.0
      %2613 = vmatpush2.msra.mxu0 0.0
      %2614 = vmatprep.subr.mxu0 0.0
      %2615 = vmatpush2.msra.mxu0 0.0
      %2616 = vmatprep.subr.mxu0 0.0
      %2617 = vmatpush2.msra.mxu0 0.0
      %2618 = vmatprep.subr.mxu0 0.0
      %2619 = vmatpush2.msra.mxu0 0.0
      %2620 = vmatprep.subr.mxu0 0.0
      %2621 = vmatpush2.msra.mxu0 0.0
      %2622 = vmatprep.subr.mxu0 0.0
      %2623 = vmatpush2.msra.mxu0 0.0
      %2624 = vmatprep.subr.mxu0 0.0
      %2625 = vmatpush2.msra.mxu0 0.0
      %2626 = vmatprep.subr.mxu0 0.0
      %2627 = vmatpush2.msra.mxu0 0.0
      %2628 = vmatprep.subr.mxu0 0.0
      %2629 = vmatpush2.msra.mxu0 0.0
      %2630 = vmatprep.subr.mxu0 0.0
      %2631 = vmatpush2.msra.mxu0 0.0
      %2632 = vmatprep.subr.mxu0 0.0
      %2633 = vmatpush2.msra.mxu0 0.0
      %2634 = vmatprep.subr.mxu0 0.0
      %2635 = vmatpush2.msra.mxu0 0.0
      %2636 = vmatprep.subr.mxu0 0.0
      %2637 = vmatpush2.msra.mxu0 0.0
      %2638 = vmatprep.subr.mxu0 0.0
      %2639 = vmatpush2.msra.mxu0 0.0
      %2640 = vmatprep.subr.mxu0 0.0
      %2641 = vmatpush2.msra.mxu0 0.0
      %2642 = vmatprep.subr.mxu0 0.0
      %2643 = vmatpush2.msra.mxu0 0.0
      %2644 = vmatprep.mubr.f32.mxu0 0.0
      %2645 = vmatmul.mubr.f32.gmra.mxu0 %v2575
      %v2646 = vpop.f32.mrf.mxu0
      %v2647 = vadd.f32 0.0, %v2646
      %v2648 = vpop.f32.mrf.mxu0
      %2649 = vdwg.mxu0
      %v2650 = vadd.f32 %v2570, %v2647
      %s2651 = scalar_lea.vmem %s165, 480
      %v2652 = vld [vmem:[%s2651] sm:$0xff]
      %v2653 = vld [vmem:[%s495] sm:$0xf]
      %v2655 = vsel %vm178, %v2652, 0
      %v2658 = vsel %vm182, %v2653, 0
      %2660 = vmatprep.subr.mxu0 0.0
      %2661 = vmatpush1.msra.mxu0 0.0
      %2662 = vmatprep.subr.mxu0 0.0
      %2663 = vmatpush1.msra.mxu0 0.0
      %2664 = vmatprep.subr.mxu0 0.0
      %2665 = vmatpush1.msra.mxu0 0.0
      %2666 = vmatprep.subr.mxu0 0.0
      %2667 = vmatpush1.msra.mxu0 0.0
      %2668 = vmatprep.subr.mxu0 0.0
      %2669 = vmatpush1.msra.mxu0 0.0
      %2670 = vmatprep.subr.mxu0 0.0
      %2671 = vmatpush1.msra.mxu0 0.0
      %2672 = vmatprep.subr.mxu0 0.0
      %2673 = vmatpush1.msra.mxu0 0.0
      %2674 = vmatprep.subr.mxu0 0.0
      %2675 = vmatpush1.msra.mxu0 0.0
      %2676 = vmatprep.subr.mxu0 0.0
      %2677 = vmatpush1.msra.mxu0 0.0
      %2678 = vmatprep.subr.mxu0 0.0
      %2679 = vmatpush1.msra.mxu0 0.0
      %2680 = vmatprep.subr.mxu0 0.0
      %2681 = vmatpush1.msra.mxu0 0.0
      %2682 = vmatprep.subr.mxu0 0.0
      %2683 = vmatpush1.msra.mxu0 0.0
      %2684 = vmatprep.subr.mxu0 0.0
      %2685 = vmatpush1.msra.mxu0 0.0
      %2686 = vmatprep.subr.mxu0 0.0
      %2687 = vmatpush1.msra.mxu0 0.0
      %2688 = vmatprep.subr.mxu0 0.0
      %2689 = vmatpush1.msra.mxu0 0.0
      %2690 = vmatprep.subr.mxu0 0.0
      %2691 = vmatpush1.msra.mxu0 %v2658
      %2692 = vmatprep.subr.mxu0 0.0
      %2693 = vmatpush2.msra.mxu0 0.0
      %2694 = vmatprep.subr.mxu0 0.0
      %2695 = vmatpush2.msra.mxu0 0.0
      %2696 = vmatprep.subr.mxu0 0.0
      %2697 = vmatpush2.msra.mxu0 0.0
      %2698 = vmatprep.subr.mxu0 0.0
      %2699 = vmatpush2.msra.mxu0 0.0
      %2700 = vmatprep.subr.mxu0 0.0
      %2701 = vmatpush2.msra.mxu0 0.0
      %2702 = vmatprep.subr.mxu0 0.0
      %2703 = vmatpush2.msra.mxu0 0.0
      %2704 = vmatprep.subr.mxu0 0.0
      %2705 = vmatpush2.msra.mxu0 0.0
      %2706 = vmatprep.subr.mxu0 0.0
      %2707 = vmatpush2.msra.mxu0 0.0
      %2708 = vmatprep.subr.mxu0 0.0
      %2709 = vmatpush2.msra.mxu0 0.0
      %2710 = vmatprep.subr.mxu0 0.0
      %2711 = vmatpush2.msra.mxu0 0.0
      %2712 = vmatprep.subr.mxu0 0.0
      %2713 = vmatpush2.msra.mxu0 0.0
      %2714 = vmatprep.subr.mxu0 0.0
      %2715 = vmatpush2.msra.mxu0 0.0
      %2716 = vmatprep.subr.mxu0 0.0
      %2717 = vmatpush2.msra.mxu0 0.0
      %2718 = vmatprep.subr.mxu0 0.0
      %2719 = vmatpush2.msra.mxu0 0.0
      %2720 = vmatprep.subr.mxu0 0.0
      %2721 = vmatpush2.msra.mxu0 0.0
      %2722 = vmatprep.subr.mxu0 0.0
      %2723 = vmatpush2.msra.mxu0 0.0
      %2724 = vmatprep.mubr.f32.mxu0 0.0
      %2725 = vmatmul.mubr.f32.gmra.mxu0 %v2655
      %v2726 = vpop.f32.mrf.mxu0
      %v2727 = vadd.f32 0.0, %v2726
      %v2728 = vpop.f32.mrf.mxu0
      %2729 = vdwg.mxu0
      %v2730 = vadd.f32 %v2650, %v2727
      %v2731 = vld [vmem:[%s2571 + $0x1] sm:$0xff]
      %v2732 = vld [vmem:[%s575] sm:$0xf]
      %v2734 = vsel %vm178, %v2731, 0
      %v2737 = vsel %vm182, %v2732, 0
      %2739 = vmatprep.subr.mxu0 0.0
      %2740 = vmatpush1.msra.mxu0 0.0
      %2741 = vmatprep.subr.mxu0 0.0
      %2742 = vmatpush1.msra.mxu0 0.0
      %2743 = vmatprep.subr.mxu0 0.0
      %2744 = vmatpush1.msra.mxu0 0.0
      %2745 = vmatprep.subr.mxu0 0.0
      %2746 = vmatpush1.msra.mxu0 0.0
      %2747 = vmatprep.subr.mxu0 0.0
      %2748 = vmatpush1.msra.mxu0 0.0
      %2749 = vmatprep.subr.mxu0 0.0
      %2750 = vmatpush1.msra.mxu0 0.0
      %2751 = vmatprep.subr.mxu0 0.0
      %2752 = vmatpush1.msra.mxu0 0.0
      %2753 = vmatprep.subr.mxu0 0.0
      %2754 = vmatpush1.msra.mxu0 0.0
      %2755 = vmatprep.subr.mxu0 0.0
      %2756 = vmatpush1.msra.mxu0 0.0
      %2757 = vmatprep.subr.mxu0 0.0
      %2758 = vmatpush1.msra.mxu0 0.0
      %2759 = vmatprep.subr.mxu0 0.0
      %2760 = vmatpush1.msra.mxu0 0.0
      %2761 = vmatprep.subr.mxu0 0.0
      %2762 = vmatpush1.msra.mxu0 0.0
      %2763 = vmatprep.subr.mxu0 0.0
      %2764 = vmatpush1.msra.mxu0 0.0
      %2765 = vmatprep.subr.mxu0 0.0
      %2766 = vmatpush1.msra.mxu0 0.0
      %2767 = vmatprep.subr.mxu0 0.0
      %2768 = vmatpush1.msra.mxu0 0.0
      %2769 = vmatprep.subr.mxu0 0.0
      %2770 = vmatpush1.msra.mxu0 %v2737
      %2771 = vmatprep.subr.mxu0 0.0
      %2772 = vmatpush2.msra.mxu0 0.0
      %2773 = vmatprep.subr.mxu0 0.0
      %2774 = vmatpush2.msra.mxu0 0.0
      %2775 = vmatprep.subr.mxu0 0.0
      %2776 = vmatpush2.msra.mxu0 0.0
      %2777 = vmatprep.subr.mxu0 0.0
      %2778 = vmatpush2.msra.mxu0 0.0
      %2779 = vmatprep.subr.mxu0 0.0
      %2780 = vmatpush2.msra.mxu0 0.0
      %2781 = vmatprep.subr.mxu0 0.0
      %2782 = vmatpush2.msra.mxu0 0.0
      %2783 = vmatprep.subr.mxu0 0.0
      %2784 = vmatpush2.msra.mxu0 0.0
      %2785 = vmatprep.subr.mxu0 0.0
      %2786 = vmatpush2.msra.mxu0 0.0
      %2787 = vmatprep.subr.mxu0 0.0
      %2788 = vmatpush2.msra.mxu0 0.0
      %2789 = vmatprep.subr.mxu0 0.0
      %2790 = vmatpush2.msra.mxu0 0.0
      %2791 = vmatprep.subr.mxu0 0.0
      %2792 = vmatpush2.msra.mxu0 0.0
      %2793 = vmatprep.subr.mxu0 0.0
      %2794 = vmatpush2.msra.mxu0 0.0
      %2795 = vmatprep.subr.mxu0 0.0
      %2796 = vmatpush2.msra.mxu0 0.0
      %2797 = vmatprep.subr.mxu0 0.0
      %2798 = vmatpush2.msra.mxu0 0.0
      %2799 = vmatprep.subr.mxu0 0.0
      %2800 = vmatpush2.msra.mxu0 0.0
      %2801 = vmatprep.subr.mxu0 0.0
      %2802 = vmatpush2.msra.mxu0 0.0
      %2803 = vmatprep.mubr.f32.mxu0 0.0
      %2804 = vmatmul.mubr.f32.gmra.mxu0 %v2734
      %v2805 = vpop.f32.mrf.mxu0
      %v2806 = vadd.f32 0.0, %v2805
      %v2807 = vpop.f32.mrf.mxu0
      %2808 = vdwg.mxu0
      %v2809 = vadd.f32 %v2730, %v2806
      %s2810 = scalar_lea.vmem %s165, 64
      %v2811 = vld [vmem:[%s2810] sm:$0xff]
      %v2812 = vld [vmem:[%s656] sm:$0xf]
      %v2814 = vsel %vm178, %v2811, 0
      %v2817 = vsel %vm182, %v2812, 0
      %2819 = vmatprep.subr.mxu0 0.0
      %2820 = vmatpush1.msra.mxu0 0.0
      %2821 = vmatprep.subr.mxu0 0.0
      %2822 = vmatpush1.msra.mxu0 0.0
      %2823 = vmatprep.subr.mxu0 0.0
      %2824 = vmatpush1.msra.mxu0 0.0
      %2825 = vmatprep.subr.mxu0 0.0
      %2826 = vmatpush1.msra.mxu0 0.0
      %2827 = vmatprep.subr.mxu0 0.0
      %2828 = vmatpush1.msra.mxu0 0.0
      %2829 = vmatprep.subr.mxu0 0.0
      %2830 = vmatpush1.msra.mxu0 0.0
      %2831 = vmatprep.subr.mxu0 0.0
      %2832 = vmatpush1.msra.mxu0 0.0
      %2833 = vmatprep.subr.mxu0 0.0
      %2834 = vmatpush1.msra.mxu0 0.0
      %2835 = vmatprep.subr.mxu0 0.0
      %2836 = vmatpush1.msra.mxu0 0.0
      %2837 = vmatprep.subr.mxu0 0.0
      %2838 = vmatpush1.msra.mxu0 0.0
      %2839 = vmatprep.subr.mxu0 0.0
      %2840 = vmatpush1.msra.mxu0 0.0
      %2841 = vmatprep.subr.mxu0 0.0
      %2842 = vmatpush1.msra.mxu0 0.0
      %2843 = vmatprep.subr.mxu0 0.0
      %2844 = vmatpush1.msra.mxu0 0.0
      %2845 = vmatprep.subr.mxu0 0.0
      %2846 = vmatpush1.msra.mxu0 0.0
      %2847 = vmatprep.subr.mxu0 0.0
      %2848 = vmatpush1.msra.mxu0 0.0
      %2849 = vmatprep.subr.mxu0 0.0
      %2850 = vmatpush1.msra.mxu0 %v2817
      %2851 = vmatprep.subr.mxu0 0.0
      %2852 = vmatpush2.msra.mxu0 0.0
      %2853 = vmatprep.subr.mxu0 0.0
      %2854 = vmatpush2.msra.mxu0 0.0
      %2855 = vmatprep.subr.mxu0 0.0
      %2856 = vmatpush2.msra.mxu0 0.0
      %2857 = vmatprep.subr.mxu0 0.0
      %2858 = vmatpush2.msra.mxu0 0.0
      %2859 = vmatprep.subr.mxu0 0.0
      %2860 = vmatpush2.msra.mxu0 0.0
      %2861 = vmatprep.subr.mxu0 0.0
      %2862 = vmatpush2.msra.mxu0 0.0
      %2863 = vmatprep.subr.mxu0 0.0
      %2864 = vmatpush2.msra.mxu0 0.0
      %2865 = vmatprep.subr.mxu0 0.0
      %2866 = vmatpush2.msra.mxu0 0.0
      %2867 = vmatprep.subr.mxu0 0.0
      %2868 = vmatpush2.msra.mxu0 0.0
      %2869 = vmatprep.subr.mxu0 0.0
      %2870 = vmatpush2.msra.mxu0 0.0
      %2871 = vmatprep.subr.mxu0 0.0
      %2872 = vmatpush2.msra.mxu0 0.0
      %2873 = vmatprep.subr.mxu0 0.0
      %2874 = vmatpush2.msra.mxu0 0.0
      %2875 = vmatprep.subr.mxu0 0.0
      %2876 = vmatpush2.msra.mxu0 0.0
      %2877 = vmatprep.subr.mxu0 0.0
      %2878 = vmatpush2.msra.mxu0 0.0
      %2879 = vmatprep.subr.mxu0 0.0
      %2880 = vmatpush2.msra.mxu0 0.0
      %2881 = vmatprep.subr.mxu0 0.0
      %2882 = vmatpush2.msra.mxu0 0.0
      %2883 = vmatprep.mubr.f32.mxu0 0.0
      %2884 = vmatmul.mubr.f32.gmra.mxu0 %v2814
      %v2885 = vpop.f32.mrf.mxu0
      %v2886 = vadd.f32 0.0, %v2885
      %v2887 = vpop.f32.mrf.mxu0
      %2888 = vdwg.mxu0
      %v2889 = vadd.f32 %v2809, %v2886
      %s2890 = scalar_lea.vmem %s165, 208
      %v2891 = vld [vmem:[%s2890] sm:$0xff]
      %v2892 = vld [vmem:[%s737] sm:$0xf]
      %v2894 = vsel %vm178, %v2891, 0
      %v2897 = vsel %vm182, %v2892, 0
      %2899 = vmatprep.subr.mxu0 0.0
      %2900 = vmatpush1.msra.mxu0 0.0
      %2901 = vmatprep.subr.mxu0 0.0
      %2902 = vmatpush1.msra.mxu0 0.0
      %2903 = vmatprep.subr.mxu0 0.0
      %2904 = vmatpush1.msra.mxu0 0.0
      %2905 = vmatprep.subr.mxu0 0.0
      %2906 = vmatpush1.msra.mxu0 0.0
      %2907 = vmatprep.subr.mxu0 0.0
      %2908 = vmatpush1.msra.mxu0 0.0
      %2909 = vmatprep.subr.mxu0 0.0
      %2910 = vmatpush1.msra.mxu0 0.0
      %2911 = vmatprep.subr.mxu0 0.0
      %2912 = vmatpush1.msra.mxu0 0.0
      %2913 = vmatprep.subr.mxu0 0.0
      %2914 = vmatpush1.msra.mxu0 0.0
      %2915 = vmatprep.subr.mxu0 0.0
      %2916 = vmatpush1.msra.mxu0 0.0
      %2917 = vmatprep.subr.mxu0 0.0
      %2918 = vmatpush1.msra.mxu0 0.0
      %2919 = vmatprep.subr.mxu0 0.0
      %2920 = vmatpush1.msra.mxu0 0.0
      %2921 = vmatprep.subr.mxu0 0.0
      %2922 = vmatpush1.msra.mxu0 0.0
      %2923 = vmatprep.subr.mxu0 0.0
      %2924 = vmatpush1.msra.mxu0 0.0
      %2925 = vmatprep.subr.mxu0 0.0
      %2926 = vmatpush1.msra.mxu0 0.0
      %2927 = vmatprep.subr.mxu0 0.0
      %2928 = vmatpush1.msra.mxu0 0.0
      %2929 = vmatprep.subr.mxu0 0.0
      %2930 = vmatpush1.msra.mxu0 %v2897
      %2931 = vmatprep.subr.mxu0 0.0
      %2932 = vmatpush2.msra.mxu0 0.0
      %2933 = vmatprep.subr.mxu0 0.0
      %2934 = vmatpush2.msra.mxu0 0.0
      %2935 = vmatprep.subr.mxu0 0.0
      %2936 = vmatpush2.msra.mxu0 0.0
      %2937 = vmatprep.subr.mxu0 0.0
      %2938 = vmatpush2.msra.mxu0 0.0
      %2939 = vmatprep.subr.mxu0 0.0
      %2940 = vmatpush2.msra.mxu0 0.0
      %2941 = vmatprep.subr.mxu0 0.0
      %2942 = vmatpush2.msra.mxu0 0.0
      %2943 = vmatprep.subr.mxu0 0.0
      %2944 = vmatpush2.msra.mxu0 0.0
      %2945 = vmatprep.subr.mxu0 0.0
      %2946 = vmatpush2.msra.mxu0 0.0
      %2947 = vmatprep.subr.mxu0 0.0
      %2948 = vmatpush2.msra.mxu0 0.0
      %2949 = vmatprep.subr.mxu0 0.0
      %2950 = vmatpush2.msra.mxu0 0.0
      %2951 = vmatprep.subr.mxu0 0.0
      %2952 = vmatpush2.msra.mxu0 0.0
      %2953 = vmatprep.subr.mxu0 0.0
      %2954 = vmatpush2.msra.mxu0 0.0
      %2955 = vmatprep.subr.mxu0 0.0
      %2956 = vmatpush2.msra.mxu0 0.0
      %2957 = vmatprep.subr.mxu0 0.0
      %2958 = vmatpush2.msra.mxu0 0.0
      %2959 = vmatprep.subr.mxu0 0.0
      %2960 = vmatpush2.msra.mxu0 0.0
      %2961 = vmatprep.subr.mxu0 0.0
      %2962 = vmatpush2.msra.mxu0 0.0
      %2963 = vmatprep.mubr.f32.mxu0 0.0
      %2964 = vmatmul.mubr.f32.gmra.mxu0 %v2894
      %v2965 = vpop.f32.mrf.mxu0
      %v2966 = vadd.f32 0.0, %v2965
      %v2967 = vpop.f32.mrf.mxu0
      %2968 = vdwg.mxu0
      %v2969 = vadd.f32 %v2889, %v2966
      %v2970 = vld [vmem:[%s2810 + $0x1] sm:$0xff]
      %v2971 = vld [vmem:[%s817] sm:$0xf]
      %v2973 = vsel %vm178, %v2970, 0
      %v2976 = vsel %vm182, %v2971, 0
      %2978 = vmatprep.subr.mxu0 0.0
      %2979 = vmatpush1.msra.mxu0 0.0
      %2980 = vmatprep.subr.mxu0 0.0
      %2981 = vmatpush1.msra.mxu0 0.0
      %2982 = vmatprep.subr.mxu0 0.0
      %2983 = vmatpush1.msra.mxu0 0.0
      %2984 = vmatprep.subr.mxu0 0.0
      %2985 = vmatpush1.msra.mxu0 0.0
      %2986 = vmatprep.subr.mxu0 0.0
      %2987 = vmatpush1.msra.mxu0 0.0
      %2988 = vmatprep.subr.mxu0 0.0
      %2989 = vmatpush1.msra.mxu0 0.0
      %2990 = vmatprep.subr.mxu0 0.0
      %2991 = vmatpush1.msra.mxu0 0.0
      %2992 = vmatprep.subr.mxu0 0.0
      %2993 = vmatpush1.msra.mxu0 0.0
      %2994 = vmatprep.subr.mxu0 0.0
      %2995 = vmatpush1.msra.mxu0 0.0
      %2996 = vmatprep.subr.mxu0 0.0
      %2997 = vmatpush1.msra.mxu0 0.0
      %2998 = vmatprep.subr.mxu0 0.0
      %2999 = vmatpush1.msra.mxu0 0.0
      %3000 = vmatprep.subr.mxu0 0.0
      %3001 = vmatpush1.msra.mxu0 0.0
      %3002 = vmatprep.subr.mxu0 0.0
      %3003 = vmatpush1.msra.mxu0 0.0
      %3004 = vmatprep.subr.mxu0 0.0
      %3005 = vmatpush1.msra.mxu0 0.0
      %3006 = vmatprep.subr.mxu0 0.0
      %3007 = vmatpush1.msra.mxu0 0.0
      %3008 = vmatprep.subr.mxu0 0.0
      %3009 = vmatpush1.msra.mxu0 %v2976
      %3010 = vmatprep.subr.mxu0 0.0
      %3011 = vmatpush2.msra.mxu0 0.0
      %3012 = vmatprep.subr.mxu0 0.0
      %3013 = vmatpush2.msra.mxu0 0.0
      %3014 = vmatprep.subr.mxu0 0.0
      %3015 = vmatpush2.msra.mxu0 0.0
      %3016 = vmatprep.subr.mxu0 0.0
      %3017 = vmatpush2.msra.mxu0 0.0
      %3018 = vmatprep.subr.mxu0 0.0
      %3019 = vmatpush2.msra.mxu0 0.0
      %3020 = vmatprep.subr.mxu0 0.0
      %3021 = vmatpush2.msra.mxu0 0.0
      %3022 = vmatprep.subr.mxu0 0.0
      %3023 = vmatpush2.msra.mxu0 0.0
      %3024 = vmatprep.subr.mxu0 0.0
      %3025 = vmatpush2.msra.mxu0 0.0
      %3026 = vmatprep.subr.mxu0 0.0
      %3027 = vmatpush2.msra.mxu0 0.0
      %3028 = vmatprep.subr.mxu0 0.0
      %3029 = vmatpush2.msra.mxu0 0.0
      %3030 = vmatprep.subr.mxu0 0.0
      %3031 = vmatpush2.msra.mxu0 0.0
      %3032 = vmatprep.subr.mxu0 0.0
      %3033 = vmatpush2.msra.mxu0 0.0
      %3034 = vmatprep.subr.mxu0 0.0
      %3035 = vmatpush2.msra.mxu0 0.0
      %3036 = vmatprep.subr.mxu0 0.0
      %3037 = vmatpush2.msra.mxu0 0.0
      %3038 = vmatprep.subr.mxu0 0.0
      %3039 = vmatpush2.msra.mxu0 0.0
      %3040 = vmatprep.subr.mxu0 0.0
      %3041 = vmatpush2.msra.mxu0 0.0
      %3042 = vmatprep.mubr.f32.mxu0 0.0
      %3043 = vmatmul.mubr.f32.gmra.mxu0 %v2973
      %v3044 = vpop.f32.mrf.mxu0
      %v3045 = vadd.f32 0.0, %v3044
      %v3046 = vpop.f32.mrf.mxu0
      %3047 = vdwg.mxu0
      %v3048 = vadd.f32 %v2969, %v3045
      %v3049 = vadd.f32 %v3048, %v900
      %s3050 = scalar_lea.vmem %s170, 24
      %3051 = vst.msk [vmem:[%s3050] sm:$0xff] %vm178, %v3049
      %v3052 = vld [vmem:[%s2810] sm:$0xff]
      %v3053 = vld [vmem:[%s1] sm:$0xf]
      %v3054 = vld [vmem:[%s2890] sm:$0xff]
      %v3055 = vld [vmem:[%s176] sm:$0xf]
      %v3057 = vsel %vm178, %v3054, 0
      %v3060 = vsel %vm182, %v3055, 0
      %3062 = vmatprep.subr.mxu0 0.0
      %3063 = vmatpush1.msra.mxu0 0.0
      %3064 = vmatprep.subr.mxu0 0.0
      %3065 = vmatpush1.msra.mxu0 0.0
      %3066 = vmatprep.subr.mxu0 0.0
      %3067 = vmatpush1.msra.mxu0 0.0
      %3068 = vmatprep.subr.mxu0 0.0
      %3069 = vmatpush1.msra.mxu0 0.0
      %3070 = vmatprep.subr.mxu0 0.0
      %3071 = vmatpush1.msra.mxu0 0.0
      %3072 = vmatprep.subr.mxu0 0.0
      %3073 = vmatpush1.msra.mxu0 0.0
      %3074 = vmatprep.subr.mxu0 0.0
      %3075 = vmatpush1.msra.mxu0 0.0
      %3076 = vmatprep.subr.mxu0 0.0
      %3077 = vmatpush1.msra.mxu0 0.0
      %3078 = vmatprep.subr.mxu0 0.0
      %3079 = vmatpush1.msra.mxu0 0.0
      %3080 = vmatprep.subr.mxu0 0.0
      %3081 = vmatpush1.msra.mxu0 0.0
      %3082 = vmatprep.subr.mxu0 0.0
      %3083 = vmatpush1.msra.mxu0 0.0
      %3084 = vmatprep.subr.mxu0 0.0
      %3085 = vmatpush1.msra.mxu0 0.0
      %3086 = vmatprep.subr.mxu0 0.0
      %3087 = vmatpush1.msra.mxu0 0.0
      %3088 = vmatprep.subr.mxu0 0.0
      %3089 = vmatpush1.msra.mxu0 0.0
      %3090 = vmatprep.subr.mxu0 0.0
      %3091 = vmatpush1.msra.mxu0 0.0
      %3092 = vmatprep.subr.mxu0 0.0
      %3093 = vmatpush1.msra.mxu0 %v3060
      %3094 = vmatprep.subr.mxu0 0.0
      %3095 = vmatpush2.msra.mxu0 0.0
      %3096 = vmatprep.subr.mxu0 0.0
      %3097 = vmatpush2.msra.mxu0 0.0
      %3098 = vmatprep.subr.mxu0 0.0
      %3099 = vmatpush2.msra.mxu0 0.0
      %3100 = vmatprep.subr.mxu0 0.0
      %3101 = vmatpush2.msra.mxu0 0.0
      %3102 = vmatprep.subr.mxu0 0.0
      %3103 = vmatpush2.msra.mxu0 0.0
      %3104 = vmatprep.subr.mxu0 0.0
      %3105 = vmatpush2.msra.mxu0 0.0
      %3106 = vmatprep.subr.mxu0 0.0
      %3107 = vmatpush2.msra.mxu0 0.0
      %3108 = vmatprep.subr.mxu0 0.0
      %3109 = vmatpush2.msra.mxu0 0.0
      %3110 = vmatprep.subr.mxu0 0.0
      %3111 = vmatpush2.msra.mxu0 0.0
      %3112 = vmatprep.subr.mxu0 0.0
      %3113 = vmatpush2.msra.mxu0 0.0
      %3114 = vmatprep.subr.mxu0 0.0
      %3115 = vmatpush2.msra.mxu0 0.0
      %3116 = vmatprep.subr.mxu0 0.0
      %3117 = vmatpush2.msra.mxu0 0.0
      %3118 = vmatprep.subr.mxu0 0.0
      %3119 = vmatpush2.msra.mxu0 0.0
      %3120 = vmatprep.subr.mxu0 0.0
      %3121 = vmatpush2.msra.mxu0 0.0
      %3122 = vmatprep.subr.mxu0 0.0
      %3123 = vmatpush2.msra.mxu0 0.0
      %3124 = vmatprep.subr.mxu0 0.0
      %3125 = vmatpush2.msra.mxu0 0.0
      %3126 = vmatprep.mubr.f32.mxu0 0.0
      %3127 = vmatmul.mubr.f32.gmra.mxu0 %v3057
      %v3128 = vpop.f32.mrf.mxu0
      %v3129 = vadd.f32 0.0, %v3128
      %v3130 = vpop.f32.mrf.mxu0
      %3131 = vdwg.mxu0
      %v3133 = vsel %vm178, %v3052, 0
      %v3136 = vsel %vm182, %v3053, 0
      %3138 = vmatprep.subr.mxu0 0.0
      %3139 = vmatpush1.msra.mxu0 0.0
      %3140 = vmatprep.subr.mxu0 0.0
      %3141 = vmatpush1.msra.mxu0 0.0
      %3142 = vmatprep.subr.mxu0 0.0
      %3143 = vmatpush1.msra.mxu0 0.0
      %3144 = vmatprep.subr.mxu0 0.0
      %3145 = vmatpush1.msra.mxu0 0.0
      %3146 = vmatprep.subr.mxu0 0.0
      %3147 = vmatpush1.msra.mxu0 0.0
      %3148 = vmatprep.subr.mxu0 0.0
      %3149 = vmatpush1.msra.mxu0 0.0
      %3150 = vmatprep.subr.mxu0 0.0
      %3151 = vmatpush1.msra.mxu0 0.0
      %3152 = vmatprep.subr.mxu0 0.0
      %3153 = vmatpush1.msra.mxu0 0.0
      %3154 = vmatprep.subr.mxu0 0.0
      %3155 = vmatpush1.msra.mxu0 0.0
      %3156 = vmatprep.subr.mxu0 0.0
      %3157 = vmatpush1.msra.mxu0 0.0
      %3158 = vmatprep.subr.mxu0 0.0
      %3159 = vmatpush1.msra.mxu0 0.0
      %3160 = vmatprep.subr.mxu0 0.0
      %3161 = vmatpush1.msra.mxu0 0.0
      %3162 = vmatprep.subr.mxu0 0.0
      %3163 = vmatpush1.msra.mxu0 0.0
      %3164 = vmatprep.subr.mxu0 0.0
      %3165 = vmatpush1.msra.mxu0 0.0
      %3166 = vmatprep.subr.mxu0 0.0
      %3167 = vmatpush1.msra.mxu0 0.0
      %3168 = vmatprep.subr.mxu0 0.0
      %3169 = vmatpush1.msra.mxu0 %v3136
      %3170 = vmatprep.subr.mxu0 0.0
      %3171 = vmatpush2.msra.mxu0 0.0
      %3172 = vmatprep.subr.mxu0 0.0
      %3173 = vmatpush2.msra.mxu0 0.0
      %3174 = vmatprep.subr.mxu0 0.0
      %3175 = vmatpush2.msra.mxu0 0.0
      %3176 = vmatprep.subr.mxu0 0.0
      %3177 = vmatpush2.msra.mxu0 0.0
      %3178 = vmatprep.subr.mxu0 0.0
      %3179 = vmatpush2.msra.mxu0 0.0
      %3180 = vmatprep.subr.mxu0 0.0
      %3181 = vmatpush2.msra.mxu0 0.0
      %3182 = vmatprep.subr.mxu0 0.0
      %3183 = vmatpush2.msra.mxu0 0.0
      %3184 = vmatprep.subr.mxu0 0.0
      %3185 = vmatpush2.msra.mxu0 0.0
      %3186 = vmatprep.subr.mxu0 0.0
      %3187 = vmatpush2.msra.mxu0 0.0
      %3188 = vmatprep.subr.mxu0 0.0
      %3189 = vmatpush2.msra.mxu0 0.0
      %3190 = vmatprep.subr.mxu0 0.0
      %3191 = vmatpush2.msra.mxu0 0.0
      %3192 = vmatprep.subr.mxu0 0.0
      %3193 = vmatpush2.msra.mxu0 0.0
      %3194 = vmatprep.subr.mxu0 0.0
      %3195 = vmatpush2.msra.mxu0 0.0
      %3196 = vmatprep.subr.mxu0 0.0
      %3197 = vmatpush2.msra.mxu0 0.0
      %3198 = vmatprep.subr.mxu0 0.0
      %3199 = vmatpush2.msra.mxu0 0.0
      %3200 = vmatprep.subr.mxu0 0.0
      %3201 = vmatpush2.msra.mxu0 0.0
      %3202 = vmatprep.mubr.f32.mxu0 0.0
      %3203 = vmatmul.mubr.f32.gmra.mxu0 %v3133
      %v3204 = vpop.f32.mrf.mxu0
      %v3205 = vadd.f32 %v3129, %v3204
      %v3206 = vpop.f32.mrf.mxu0
      %3207 = vdwg.mxu0
      %v3208 = vld [vmem:[%s2810 + $0x1] sm:$0xff]
      %v3209 = vld [vmem:[%s333] sm:$0xf]
      %v3211 = vsel %vm178, %v3208, 0
      %v3214 = vsel %vm182, %v3209, 0
      %3216 = vmatprep.subr.mxu0 0.0
      %3217 = vmatpush1.msra.mxu0 0.0
      %3218 = vmatprep.subr.mxu0 0.0
      %3219 = vmatpush1.msra.mxu0 0.0
      %3220 = vmatprep.subr.mxu0 0.0
      %3221 = vmatpush1.msra.mxu0 0.0
      %3222 = vmatprep.subr.mxu0 0.0
      %3223 = vmatpush1.msra.mxu0 0.0
      %3224 = vmatprep.subr.mxu0 0.0
      %3225 = vmatpush1.msra.mxu0 0.0
      %3226 = vmatprep.subr.mxu0 0.0
      %3227 = vmatpush1.msra.mxu0 0.0
      %3228 = vmatprep.subr.mxu0 0.0
      %3229 = vmatpush1.msra.mxu0 0.0
      %3230 = vmatprep.subr.mxu0 0.0
      %3231 = vmatpush1.msra.mxu0 0.0
      %3232 = vmatprep.subr.mxu0 0.0
      %3233 = vmatpush1.msra.mxu0 0.0
      %3234 = vmatprep.subr.mxu0 0.0
      %3235 = vmatpush1.msra.mxu0 0.0
      %3236 = vmatprep.subr.mxu0 0.0
      %3237 = vmatpush1.msra.mxu0 0.0
      %3238 = vmatprep.subr.mxu0 0.0
      %3239 = vmatpush1.msra.mxu0 0.0
      %3240 = vmatprep.subr.mxu0 0.0
      %3241 = vmatpush1.msra.mxu0 0.0
      %3242 = vmatprep.subr.mxu0 0.0
      %3243 = vmatpush1.msra.mxu0 0.0
      %3244 = vmatprep.subr.mxu0 0.0
      %3245 = vmatpush1.msra.mxu0 0.0
      %3246 = vmatprep.subr.mxu0 0.0
      %3247 = vmatpush1.msra.mxu0 %v3214
      %3248 = vmatprep.subr.mxu0 0.0
      %3249 = vmatpush2.msra.mxu0 0.0
      %3250 = vmatprep.subr.mxu0 0.0
      %3251 = vmatpush2.msra.mxu0 0.0
      %3252 = vmatprep.subr.mxu0 0.0
      %3253 = vmatpush2.msra.mxu0 0.0
      %3254 = vmatprep.subr.mxu0 0.0
      %3255 = vmatpush2.msra.mxu0 0.0
      %3256 = vmatprep.subr.mxu0 0.0
      %3257 = vmatpush2.msra.mxu0 0.0
      %3258 = vmatprep.subr.mxu0 0.0
      %3259 = vmatpush2.msra.mxu0 0.0
      %3260 = vmatprep.subr.mxu0 0.0
      %3261 = vmatpush2.msra.mxu0 0.0
      %3262 = vmatprep.subr.mxu0 0.0
      %3263 = vmatpush2.msra.mxu0 0.0
      %3264 = vmatprep.subr.mxu0 0.0
      %3265 = vmatpush2.msra.mxu0 0.0
      %3266 = vmatprep.subr.mxu0 0.0
      %3267 = vmatpush2.msra.mxu0 0.0
      %3268 = vmatprep.subr.mxu0 0.0
      %3269 = vmatpush2.msra.mxu0 0.0
      %3270 = vmatprep.subr.mxu0 0.0
      %3271 = vmatpush2.msra.mxu0 0.0
      %3272 = vmatprep.subr.mxu0 0.0
      %3273 = vmatpush2.msra.mxu0 0.0
      %3274 = vmatprep.subr.mxu0 0.0
      %3275 = vmatpush2.msra.mxu0 0.0
      %3276 = vmatprep.subr.mxu0 0.0
      %3277 = vmatpush2.msra.mxu0 0.0
      %3278 = vmatprep.subr.mxu0 0.0
      %3279 = vmatpush2.msra.mxu0 0.0
      %3280 = vmatprep.mubr.f32.mxu0 0.0
      %3281 = vmatmul.mubr.f32.gmra.mxu0 %v3211
      %v3282 = vpop.f32.mrf.mxu0
      %v3283 = vadd.f32 0.0, %v3282
      %v3284 = vpop.f32.mrf.mxu0
      %3285 = vdwg.mxu0
      %v3286 = vadd.f32 %v3205, %v3283
      %s3287 = scalar_lea.vmem %s165, 352
      %v3288 = vld [vmem:[%s3287] sm:$0xff]
      %v3289 = vld [vmem:[%s414] sm:$0xf]
      %v3291 = vsel %vm178, %v3288, 0
      %v3294 = vsel %vm182, %v3289, 0
      %3296 = vmatprep.subr.mxu0 0.0
      %3297 = vmatpush1.msra.mxu0 0.0
      %3298 = vmatprep.subr.mxu0 0.0
      %3299 = vmatpush1.msra.mxu0 0.0
      %3300 = vmatprep.subr.mxu0 0.0
      %3301 = vmatpush1.msra.mxu0 0.0
      %3302 = vmatprep.subr.mxu0 0.0
      %3303 = vmatpush1.msra.mxu0 0.0
      %3304 = vmatprep.subr.mxu0 0.0
      %3305 = vmatpush1.msra.mxu0 0.0
      %3306 = vmatprep.subr.mxu0 0.0
      %3307 = vmatpush1.msra.mxu0 0.0
      %3308 = vmatprep.subr.mxu0 0.0
      %3309 = vmatpush1.msra.mxu0 0.0
      %3310 = vmatprep.subr.mxu0 0.0
      %3311 = vmatpush1.msra.mxu0 0.0
      %3312 = vmatprep.subr.mxu0 0.0
      %3313 = vmatpush1.msra.mxu0 0.0
      %3314 = vmatprep.subr.mxu0 0.0
      %3315 = vmatpush1.msra.mxu0 0.0
      %3316 = vmatprep.subr.mxu0 0.0
      %3317 = vmatpush1.msra.mxu0 0.0
      %3318 = vmatprep.subr.mxu0 0.0
      %3319 = vmatpush1.msra.mxu0 0.0
      %3320 = vmatprep.subr.mxu0 0.0
      %3321 = vmatpush1.msra.mxu0 0.0
      %3322 = vmatprep.subr.mxu0 0.0
      %3323 = vmatpush1.msra.mxu0 0.0
      %3324 = vmatprep.subr.mxu0 0.0
      %3325 = vmatpush1.msra.mxu0 0.0
      %3326 = vmatprep.subr.mxu0 0.0
      %3327 = vmatpush1.msra.mxu0 %v3294
      %3328 = vmatprep.subr.mxu0 0.0
      %3329 = vmatpush2.msra.mxu0 0.0
      %3330 = vmatprep.subr.mxu0 0.0
      %3331 = vmatpush2.msra.mxu0 0.0
      %3332 = vmatprep.subr.mxu0 0.0
      %3333 = vmatpush2.msra.mxu0 0.0
      %3334 = vmatprep.subr.mxu0 0.0
      %3335 = vmatpush2.msra.mxu0 0.0
      %3336 = vmatprep.subr.mxu0 0.0
      %3337 = vmatpush2.msra.mxu0 0.0
      %3338 = vmatprep.subr.mxu0 0.0
      %3339 = vmatpush2.msra.mxu0 0.0
      %3340 = vmatprep.subr.mxu0 0.0
      %3341 = vmatpush2.msra.mxu0 0.0
      %3342 = vmatprep.subr.mxu0 0.0
      %3343 = vmatpush2.msra.mxu0 0.0
      %3344 = vmatprep.subr.mxu0 0.0
      %3345 = vmatpush2.msra.mxu0 0.0
      %3346 = vmatprep.subr.mxu0 0.0
      %3347 = vmatpush2.msra.mxu0 0.0
      %3348 = vmatprep.subr.mxu0 0.0
      %3349 = vmatpush2.msra.mxu0 0.0
      %3350 = vmatprep.subr.mxu0 0.0
      %3351 = vmatpush2.msra.mxu0 0.0
      %3352 = vmatprep.subr.mxu0 0.0
      %3353 = vmatpush2.msra.mxu0 0.0
      %3354 = vmatprep.subr.mxu0 0.0
      %3355 = vmatpush2.msra.mxu0 0.0
      %3356 = vmatprep.subr.mxu0 0.0
      %3357 = vmatpush2.msra.mxu0 0.0
      %3358 = vmatprep.subr.mxu0 0.0
      %3359 = vmatpush2.msra.mxu0 0.0
      %3360 = vmatprep.mubr.f32.mxu0 0.0
      %3361 = vmatmul.mubr.f32.gmra.mxu0 %v3291
      %v3362 = vpop.f32.mrf.mxu0
      %v3363 = vadd.f32 0.0, %v3362
      %v3364 = vpop.f32.mrf.mxu0
      %3365 = vdwg.mxu0
      %v3366 = vadd.f32 %v3286, %v3363
      %s3367 = scalar_lea.vmem %s165, 496
      %v3368 = vld [vmem:[%s3367] sm:$0xff]
      %v3369 = vld [vmem:[%s495] sm:$0xf]
      %v3371 = vsel %vm178, %v3368, 0
      %v3374 = vsel %vm182, %v3369, 0
      %3376 = vmatprep.subr.mxu0 0.0
      %3377 = vmatpush1.msra.mxu0 0.0
      %3378 = vmatprep.subr.mxu0 0.0
      %3379 = vmatpush1.msra.mxu0 0.0
      %3380 = vmatprep.subr.mxu0 0.0
      %3381 = vmatpush1.msra.mxu0 0.0
      %3382 = vmatprep.subr.mxu0 0.0
      %3383 = vmatpush1.msra.mxu0 0.0
      %3384 = vmatprep.subr.mxu0 0.0
      %3385 = vmatpush1.msra.mxu0 0.0
      %3386 = vmatprep.subr.mxu0 0.0
      %3387 = vmatpush1.msra.mxu0 0.0
      %3388 = vmatprep.subr.mxu0 0.0
      %3389 = vmatpush1.msra.mxu0 0.0
      %3390 = vmatprep.subr.mxu0 0.0
      %3391 = vmatpush1.msra.mxu0 0.0
      %3392 = vmatprep.subr.mxu0 0.0
      %3393 = vmatpush1.msra.mxu0 0.0
      %3394 = vmatprep.subr.mxu0 0.0
      %3395 = vmatpush1.msra.mxu0 0.0
      %3396 = vmatprep.subr.mxu0 0.0
      %3397 = vmatpush1.msra.mxu0 0.0
      %3398 = vmatprep.subr.mxu0 0.0
      %3399 = vmatpush1.msra.mxu0 0.0
      %3400 = vmatprep.subr.mxu0 0.0
      %3401 = vmatpush1.msra.mxu0 0.0
      %3402 = vmatprep.subr.mxu0 0.0
      %3403 = vmatpush1.msra.mxu0 0.0
      %3404 = vmatprep.subr.mxu0 0.0
      %3405 = vmatpush1.msra.mxu0 0.0
      %3406 = vmatprep.subr.mxu0 0.0
      %3407 = vmatpush1.msra.mxu0 %v3374
      %3408 = vmatprep.subr.mxu0 0.0
      %3409 = vmatpush2.msra.mxu0 0.0
      %3410 = vmatprep.subr.mxu0 0.0
      %3411 = vmatpush2.msra.mxu0 0.0
      %3412 = vmatprep.subr.mxu0 0.0
      %3413 = vmatpush2.msra.mxu0 0.0
      %3414 = vmatprep.subr.mxu0 0.0
      %3415 = vmatpush2.msra.mxu0 0.0
      %3416 = vmatprep.subr.mxu0 0.0
      %3417 = vmatpush2.msra.mxu0 0.0
      %3418 = vmatprep.subr.mxu0 0.0
      %3419 = vmatpush2.msra.mxu0 0.0
      %3420 = vmatprep.subr.mxu0 0.0
      %3421 = vmatpush2.msra.mxu0 0.0
      %3422 = vmatprep.subr.mxu0 0.0
      %3423 = vmatpush2.msra.mxu0 0.0
      %3424 = vmatprep.subr.mxu0 0.0
      %3425 = vmatpush2.msra.mxu0 0.0
      %3426 = vmatprep.subr.mxu0 0.0
      %3427 = vmatpush2.msra.mxu0 0.0
      %3428 = vmatprep.subr.mxu0 0.0
      %3429 = vmatpush2.msra.mxu0 0.0
      %3430 = vmatprep.subr.mxu0 0.0
      %3431 = vmatpush2.msra.mxu0 0.0
      %3432 = vmatprep.subr.mxu0 0.0
      %3433 = vmatpush2.msra.mxu0 0.0
      %3434 = vmatprep.subr.mxu0 0.0
      %3435 = vmatpush2.msra.mxu0 0.0
      %3436 = vmatprep.subr.mxu0 0.0
      %3437 = vmatpush2.msra.mxu0 0.0
      %3438 = vmatprep.subr.mxu0 0.0
      %3439 = vmatpush2.msra.mxu0 0.0
      %3440 = vmatprep.mubr.f32.mxu0 0.0
      %3441 = vmatmul.mubr.f32.gmra.mxu0 %v3371
      %v3442 = vpop.f32.mrf.mxu0
      %v3443 = vadd.f32 0.0, %v3442
      %v3444 = vpop.f32.mrf.mxu0
      %3445 = vdwg.mxu0
      %v3446 = vadd.f32 %v3366, %v3443
      %v3447 = vld [vmem:[%s3287 + $0x1] sm:$0xff]
      %v3448 = vld [vmem:[%s575] sm:$0xf]
      %v3450 = vsel %vm178, %v3447, 0
      %v3453 = vsel %vm182, %v3448, 0
      %3455 = vmatprep.subr.mxu0 0.0
      %3456 = vmatpush1.msra.mxu0 0.0
      %3457 = vmatprep.subr.mxu0 0.0
      %3458 = vmatpush1.msra.mxu0 0.0
      %3459 = vmatprep.subr.mxu0 0.0
      %3460 = vmatpush1.msra.mxu0 0.0
      %3461 = vmatprep.subr.mxu0 0.0
      %3462 = vmatpush1.msra.mxu0 0.0
      %3463 = vmatprep.subr.mxu0 0.0
      %3464 = vmatpush1.msra.mxu0 0.0
      %3465 = vmatprep.subr.mxu0 0.0
      %3466 = vmatpush1.msra.mxu0 0.0
      %3467 = vmatprep.subr.mxu0 0.0
      %3468 = vmatpush1.msra.mxu0 0.0
      %3469 = vmatprep.subr.mxu0 0.0
      %3470 = vmatpush1.msra.mxu0 0.0
      %3471 = vmatprep.subr.mxu0 0.0
      %3472 = vmatpush1.msra.mxu0 0.0
      %3473 = vmatprep.subr.mxu0 0.0
      %3474 = vmatpush1.msra.mxu0 0.0
      %3475 = vmatprep.subr.mxu0 0.0
      %3476 = vmatpush1.msra.mxu0 0.0
      %3477 = vmatprep.subr.mxu0 0.0
      %3478 = vmatpush1.msra.mxu0 0.0
      %3479 = vmatprep.subr.mxu0 0.0
      %3480 = vmatpush1.msra.mxu0 0.0
      %3481 = vmatprep.subr.mxu0 0.0
      %3482 = vmatpush1.msra.mxu0 0.0
      %3483 = vmatprep.subr.mxu0 0.0
      %3484 = vmatpush1.msra.mxu0 0.0
      %3485 = vmatprep.subr.mxu0 0.0
      %3486 = vmatpush1.msra.mxu0 %v3453
      %3487 = vmatprep.subr.mxu0 0.0
      %3488 = vmatpush2.msra.mxu0 0.0
      %3489 = vmatprep.subr.mxu0 0.0
      %3490 = vmatpush2.msra.mxu0 0.0
      %3491 = vmatprep.subr.mxu0 0.0
      %3492 = vmatpush2.msra.mxu0 0.0
      %3493 = vmatprep.subr.mxu0 0.0
      %3494 = vmatpush2.msra.mxu0 0.0
      %3495 = vmatprep.subr.mxu0 0.0
      %3496 = vmatpush2.msra.mxu0 0.0
      %3497 = vmatprep.subr.mxu0 0.0
      %3498 = vmatpush2.msra.mxu0 0.0
      %3499 = vmatprep.subr.mxu0 0.0
      %3500 = vmatpush2.msra.mxu0 0.0
      %3501 = vmatprep.subr.mxu0 0.0
      %3502 = vmatpush2.msra.mxu0 0.0
      %3503 = vmatprep.subr.mxu0 0.0
      %3504 = vmatpush2.msra.mxu0 0.0
      %3505 = vmatprep.subr.mxu0 0.0
      %3506 = vmatpush2.msra.mxu0 0.0
      %3507 = vmatprep.subr.mxu0 0.0
      %3508 = vmatpush2.msra.mxu0 0.0
      %3509 = vmatprep.subr.mxu0 0.0
      %3510 = vmatpush2.msra.mxu0 0.0
      %3511 = vmatprep.subr.mxu0 0.0
      %3512 = vmatpush2.msra.mxu0 0.0
      %3513 = vmatprep.subr.mxu0 0.0
      %3514 = vmatpush2.msra.mxu0 0.0
      %3515 = vmatprep.subr.mxu0 0.0
      %3516 = vmatpush2.msra.mxu0 0.0
      %3517 = vmatprep.subr.mxu0 0.0
      %3518 = vmatpush2.msra.mxu0 0.0
      %3519 = vmatprep.mubr.f32.mxu0 0.0
      %3520 = vmatmul.mubr.f32.gmra.mxu0 %v3450
      %v3521 = vpop.f32.mrf.mxu0
      %v3522 = vadd.f32 0.0, %v3521
      %v3523 = vpop.f32.mrf.mxu0
      %3524 = vdwg.mxu0
      %v3525 = vadd.f32 %v3446, %v3522
      %s3526 = scalar_lea.vmem %s165, 80
      %v3527 = vld [vmem:[%s3526] sm:$0xff]
      %v3528 = vld [vmem:[%s656] sm:$0xf]
      %v3530 = vsel %vm178, %v3527, 0
      %v3533 = vsel %vm182, %v3528, 0
      %3535 = vmatprep.subr.mxu0 0.0
      %3536 = vmatpush1.msra.mxu0 0.0
      %3537 = vmatprep.subr.mxu0 0.0
      %3538 = vmatpush1.msra.mxu0 0.0
      %3539 = vmatprep.subr.mxu0 0.0
      %3540 = vmatpush1.msra.mxu0 0.0
      %3541 = vmatprep.subr.mxu0 0.0
      %3542 = vmatpush1.msra.mxu0 0.0
      %3543 = vmatprep.subr.mxu0 0.0
      %3544 = vmatpush1.msra.mxu0 0.0
      %3545 = vmatprep.subr.mxu0 0.0
      %3546 = vmatpush1.msra.mxu0 0.0
      %3547 = vmatprep.subr.mxu0 0.0
      %3548 = vmatpush1.msra.mxu0 0.0
      %3549 = vmatprep.subr.mxu0 0.0
      %3550 = vmatpush1.msra.mxu0 0.0
      %3551 = vmatprep.subr.mxu0 0.0
      %3552 = vmatpush1.msra.mxu0 0.0
      %3553 = vmatprep.subr.mxu0 0.0
      %3554 = vmatpush1.msra.mxu0 0.0
      %3555 = vmatprep.subr.mxu0 0.0
      %3556 = vmatpush1.msra.mxu0 0.0
      %3557 = vmatprep.subr.mxu0 0.0
      %3558 = vmatpush1.msra.mxu0 0.0
      %3559 = vmatprep.subr.mxu0 0.0
      %3560 = vmatpush1.msra.mxu0 0.0
      %3561 = vmatprep.subr.mxu0 0.0
      %3562 = vmatpush1.msra.mxu0 0.0
      %3563 = vmatprep.subr.mxu0 0.0
      %3564 = vmatpush1.msra.mxu0 0.0
      %3565 = vmatprep.subr.mxu0 0.0
      %3566 = vmatpush1.msra.mxu0 %v3533
      %3567 = vmatprep.subr.mxu0 0.0
      %3568 = vmatpush2.msra.mxu0 0.0
      %3569 = vmatprep.subr.mxu0 0.0
      %3570 = vmatpush2.msra.mxu0 0.0
      %3571 = vmatprep.subr.mxu0 0.0
      %3572 = vmatpush2.msra.mxu0 0.0
      %3573 = vmatprep.subr.mxu0 0.0
      %3574 = vmatpush2.msra.mxu0 0.0
      %3575 = vmatprep.subr.mxu0 0.0
      %3576 = vmatpush2.msra.mxu0 0.0
      %3577 = vmatprep.subr.mxu0 0.0
      %3578 = vmatpush2.msra.mxu0 0.0
      %3579 = vmatprep.subr.mxu0 0.0
      %3580 = vmatpush2.msra.mxu0 0.0
      %3581 = vmatprep.subr.mxu0 0.0
      %3582 = vmatpush2.msra.mxu0 0.0
      %3583 = vmatprep.subr.mxu0 0.0
      %3584 = vmatpush2.msra.mxu0 0.0
      %3585 = vmatprep.subr.mxu0 0.0
      %3586 = vmatpush2.msra.mxu0 0.0
      %3587 = vmatprep.subr.mxu0 0.0
      %3588 = vmatpush2.msra.mxu0 0.0
      %3589 = vmatprep.subr.mxu0 0.0
      %3590 = vmatpush2.msra.mxu0 0.0
      %3591 = vmatprep.subr.mxu0 0.0
      %3592 = vmatpush2.msra.mxu0 0.0
      %3593 = vmatprep.subr.mxu0 0.0
      %3594 = vmatpush2.msra.mxu0 0.0
      %3595 = vmatprep.subr.mxu0 0.0
      %3596 = vmatpush2.msra.mxu0 0.0
      %3597 = vmatprep.subr.mxu0 0.0
      %3598 = vmatpush2.msra.mxu0 0.0
      %3599 = vmatprep.mubr.f32.mxu0 0.0
      %3600 = vmatmul.mubr.f32.gmra.mxu0 %v3530
      %v3601 = vpop.f32.mrf.mxu0
      %v3602 = vadd.f32 0.0, %v3601
      %v3603 = vpop.f32.mrf.mxu0
      %3604 = vdwg.mxu0
      %v3605 = vadd.f32 %v3525, %v3602
      %s3606 = scalar_lea.vmem %s165, 224
      %v3607 = vld [vmem:[%s3606] sm:$0xff]
      %v3608 = vld [vmem:[%s737] sm:$0xf]
      %v3610 = vsel %vm178, %v3607, 0
      %v3613 = vsel %vm182, %v3608, 0
      %3615 = vmatprep.subr.mxu0 0.0
      %3616 = vmatpush1.msra.mxu0 0.0
      %3617 = vmatprep.subr.mxu0 0.0
      %3618 = vmatpush1.msra.mxu0 0.0
      %3619 = vmatprep.subr.mxu0 0.0
      %3620 = vmatpush1.msra.mxu0 0.0
      %3621 = vmatprep.subr.mxu0 0.0
      %3622 = vmatpush1.msra.mxu0 0.0
      %3623 = vmatprep.subr.mxu0 0.0
      %3624 = vmatpush1.msra.mxu0 0.0
      %3625 = vmatprep.subr.mxu0 0.0
      %3626 = vmatpush1.msra.mxu0 0.0
      %3627 = vmatprep.subr.mxu0 0.0
      %3628 = vmatpush1.msra.mxu0 0.0
      %3629 = vmatprep.subr.mxu0 0.0
      %3630 = vmatpush1.msra.mxu0 0.0
      %3631 = vmatprep.subr.mxu0 0.0
      %3632 = vmatpush1.msra.mxu0 0.0
      %3633 = vmatprep.subr.mxu0 0.0
      %3634 = vmatpush1.msra.mxu0 0.0
      %3635 = vmatprep.subr.mxu0 0.0
      %3636 = vmatpush1.msra.mxu0 0.0
      %3637 = vmatprep.subr.mxu0 0.0
      %3638 = vmatpush1.msra.mxu0 0.0
      %3639 = vmatprep.subr.mxu0 0.0
      %3640 = vmatpush1.msra.mxu0 0.0
      %3641 = vmatprep.subr.mxu0 0.0
      %3642 = vmatpush1.msra.mxu0 0.0
      %3643 = vmatprep.subr.mxu0 0.0
      %3644 = vmatpush1.msra.mxu0 0.0
      %3645 = vmatprep.subr.mxu0 0.0
      %3646 = vmatpush1.msra.mxu0 %v3613
      %3647 = vmatprep.subr.mxu0 0.0
      %3648 = vmatpush2.msra.mxu0 0.0
      %3649 = vmatprep.subr.mxu0 0.0
      %3650 = vmatpush2.msra.mxu0 0.0
      %3651 = vmatprep.subr.mxu0 0.0
      %3652 = vmatpush2.msra.mxu0 0.0
      %3653 = vmatprep.subr.mxu0 0.0
      %3654 = vmatpush2.msra.mxu0 0.0
      %3655 = vmatprep.subr.mxu0 0.0
      %3656 = vmatpush2.msra.mxu0 0.0
      %3657 = vmatprep.subr.mxu0 0.0
      %3658 = vmatpush2.msra.mxu0 0.0
      %3659 = vmatprep.subr.mxu0 0.0
      %3660 = vmatpush2.msra.mxu0 0.0
      %3661 = vmatprep.subr.mxu0 0.0
      %3662 = vmatpush2.msra.mxu0 0.0
      %3663 = vmatprep.subr.mxu0 0.0
      %3664 = vmatpush2.msra.mxu0 0.0
      %3665 = vmatprep.subr.mxu0 0.0
      %3666 = vmatpush2.msra.mxu0 0.0
      %3667 = vmatprep.subr.mxu0 0.0
      %3668 = vmatpush2.msra.mxu0 0.0
      %3669 = vmatprep.subr.mxu0 0.0
      %3670 = vmatpush2.msra.mxu0 0.0
      %3671 = vmatprep.subr.mxu0 0.0
      %3672 = vmatpush2.msra.mxu0 0.0
      %3673 = vmatprep.subr.mxu0 0.0
      %3674 = vmatpush2.msra.mxu0 0.0
      %3675 = vmatprep.subr.mxu0 0.0
      %3676 = vmatpush2.msra.mxu0 0.0
      %3677 = vmatprep.subr.mxu0 0.0
      %3678 = vmatpush2.msra.mxu0 0.0
      %3679 = vmatprep.mubr.f32.mxu0 0.0
      %3680 = vmatmul.mubr.f32.gmra.mxu0 %v3610
      %v3681 = vpop.f32.mrf.mxu0
      %v3682 = vadd.f32 0.0, %v3681
      %v3683 = vpop.f32.mrf.mxu0
      %3684 = vdwg.mxu0
      %v3685 = vadd.f32 %v3605, %v3682
      %v3686 = vld [vmem:[%s3526 + $0x1] sm:$0xff]
      %v3687 = vld [vmem:[%s817] sm:$0xf]
      %v3689 = vsel %vm178, %v3686, 0
      %v3692 = vsel %vm182, %v3687, 0
      %3694 = vmatprep.subr.mxu0 0.0
      %3695 = vmatpush1.msra.mxu0 0.0
      %3696 = vmatprep.subr.mxu0 0.0
      %3697 = vmatpush1.msra.mxu0 0.0
      %3698 = vmatprep.subr.mxu0 0.0
      %3699 = vmatpush1.msra.mxu0 0.0
      %3700 = vmatprep.subr.mxu0 0.0
      %3701 = vmatpush1.msra.mxu0 0.0
      %3702 = vmatprep.subr.mxu0 0.0
      %3703 = vmatpush1.msra.mxu0 0.0
      %3704 = vmatprep.subr.mxu0 0.0
      %3705 = vmatpush1.msra.mxu0 0.0
      %3706 = vmatprep.subr.mxu0 0.0
      %3707 = vmatpush1.msra.mxu0 0.0
      %3708 = vmatprep.subr.mxu0 0.0
      %3709 = vmatpush1.msra.mxu0 0.0
      %3710 = vmatprep.subr.mxu0 0.0
      %3711 = vmatpush1.msra.mxu0 0.0
      %3712 = vmatprep.subr.mxu0 0.0
      %3713 = vmatpush1.msra.mxu0 0.0
      %3714 = vmatprep.subr.mxu0 0.0
      %3715 = vmatpush1.msra.mxu0 0.0
      %3716 = vmatprep.subr.mxu0 0.0
      %3717 = vmatpush1.msra.mxu0 0.0
      %3718 = vmatprep.subr.mxu0 0.0
      %3719 = vmatpush1.msra.mxu0 0.0
      %3720 = vmatprep.subr.mxu0 0.0
      %3721 = vmatpush1.msra.mxu0 0.0
      %3722 = vmatprep.subr.mxu0 0.0
      %3723 = vmatpush1.msra.mxu0 0.0
      %3724 = vmatprep.subr.mxu0 0.0
      %3725 = vmatpush1.msra.mxu0 %v3692
      %3726 = vmatprep.subr.mxu0 0.0
      %3727 = vmatpush2.msra.mxu0 0.0
      %3728 = vmatprep.subr.mxu0 0.0
      %3729 = vmatpush2.msra.mxu0 0.0
      %3730 = vmatprep.subr.mxu0 0.0
      %3731 = vmatpush2.msra.mxu0 0.0
      %3732 = vmatprep.subr.mxu0 0.0
      %3733 = vmatpush2.msra.mxu0 0.0
      %3734 = vmatprep.subr.mxu0 0.0
      %3735 = vmatpush2.msra.mxu0 0.0
      %3736 = vmatprep.subr.mxu0 0.0
      %3737 = vmatpush2.msra.mxu0 0.0
      %3738 = vmatprep.subr.mxu0 0.0
      %3739 = vmatpush2.msra.mxu0 0.0
      %3740 = vmatprep.subr.mxu0 0.0
      %3741 = vmatpush2.msra.mxu0 0.0
      %3742 = vmatprep.subr.mxu0 0.0
      %3743 = vmatpush2.msra.mxu0 0.0
      %3744 = vmatprep.subr.mxu0 0.0
      %3745 = vmatpush2.msra.mxu0 0.0
      %3746 = vmatprep.subr.mxu0 0.0
      %3747 = vmatpush2.msra.mxu0 0.0
      %3748 = vmatprep.subr.mxu0 0.0
      %3749 = vmatpush2.msra.mxu0 0.0
      %3750 = vmatprep.subr.mxu0 0.0
      %3751 = vmatpush2.msra.mxu0 0.0
      %3752 = vmatprep.subr.mxu0 0.0
      %3753 = vmatpush2.msra.mxu0 0.0
      %3754 = vmatprep.subr.mxu0 0.0
      %3755 = vmatpush2.msra.mxu0 0.0
      %3756 = vmatprep.subr.mxu0 0.0
      %3757 = vmatpush2.msra.mxu0 0.0
      %3758 = vmatprep.mubr.f32.mxu0 0.0
      %3759 = vmatmul.mubr.f32.gmra.mxu0 %v3689
      %v3760 = vpop.f32.mrf.mxu0
      %v3761 = vadd.f32 0.0, %v3760
      %v3762 = vpop.f32.mrf.mxu0
      %3763 = vdwg.mxu0
      %v3764 = vadd.f32 %v3685, %v3761
      %v3765 = vadd.f32 %v3764, %v900
      %s3766 = scalar_lea.vmem %s170, 32
      %3767 = vst.msk [vmem:[%s3766] sm:$0xff] %vm178, %v3765
      %v3768 = vld [vmem:[%s3526] sm:$0xff]
      %v3769 = vld [vmem:[%s1] sm:$0xf]
      %v3770 = vld [vmem:[%s3606] sm:$0xff]
      %v3771 = vld [vmem:[%s176] sm:$0xf]
      %v3773 = vsel %vm178, %v3770, 0
      %v3776 = vsel %vm182, %v3771, 0
      %3778 = vmatprep.subr.mxu0 0.0
      %3779 = vmatpush1.msra.mxu0 0.0
      %3780 = vmatprep.subr.mxu0 0.0
      %3781 = vmatpush1.msra.mxu0 0.0
      %3782 = vmatprep.subr.mxu0 0.0
      %3783 = vmatpush1.msra.mxu0 0.0
      %3784 = vmatprep.subr.mxu0 0.0
      %3785 = vmatpush1.msra.mxu0 0.0
      %3786 = vmatprep.subr.mxu0 0.0
      %3787 = vmatpush1.msra.mxu0 0.0
      %3788 = vmatprep.subr.mxu0 0.0
      %3789 = vmatpush1.msra.mxu0 0.0
      %3790 = vmatprep.subr.mxu0 0.0
      %3791 = vmatpush1.msra.mxu0 0.0
      %3792 = vmatprep.subr.mxu0 0.0
      %3793 = vmatpush1.msra.mxu0 0.0
      %3794 = vmatprep.subr.mxu0 0.0
      %3795 = vmatpush1.msra.mxu0 0.0
      %3796 = vmatprep.subr.mxu0 0.0
      %3797 = vmatpush1.msra.mxu0 0.0
      %3798 = vmatprep.subr.mxu0 0.0
      %3799 = vmatpush1.msra.mxu0 0.0
      %3800 = vmatprep.subr.mxu0 0.0
      %3801 = vmatpush1.msra.mxu0 0.0
      %3802 = vmatprep.subr.mxu0 0.0
      %3803 = vmatpush1.msra.mxu0 0.0
      %3804 = vmatprep.subr.mxu0 0.0
      %3805 = vmatpush1.msra.mxu0 0.0
      %3806 = vmatprep.subr.mxu0 0.0
      %3807 = vmatpush1.msra.mxu0 0.0
      %3808 = vmatprep.subr.mxu0 0.0
      %3809 = vmatpush1.msra.mxu0 %v3776
      %3810 = vmatprep.subr.mxu0 0.0
      %3811 = vmatpush2.msra.mxu0 0.0
      %3812 = vmatprep.subr.mxu0 0.0
      %3813 = vmatpush2.msra.mxu0 0.0
      %3814 = vmatprep.subr.mxu0 0.0
      %3815 = vmatpush2.msra.mxu0 0.0
      %3816 = vmatprep.subr.mxu0 0.0
      %3817 = vmatpush2.msra.mxu0 0.0
      %3818 = vmatprep.subr.mxu0 0.0
      %3819 = vmatpush2.msra.mxu0 0.0
      %3820 = vmatprep.subr.mxu0 0.0
      %3821 = vmatpush2.msra.mxu0 0.0
      %3822 = vmatprep.subr.mxu0 0.0
      %3823 = vmatpush2.msra.mxu0 0.0
      %3824 = vmatprep.subr.mxu0 0.0
      %3825 = vmatpush2.msra.mxu0 0.0
      %3826 = vmatprep.subr.mxu0 0.0
      %3827 = vmatpush2.msra.mxu0 0.0
      %3828 = vmatprep.subr.mxu0 0.0
      %3829 = vmatpush2.msra.mxu0 0.0
      %3830 = vmatprep.subr.mxu0 0.0
      %3831 = vmatpush2.msra.mxu0 0.0
      %3832 = vmatprep.subr.mxu0 0.0
      %3833 = vmatpush2.msra.mxu0 0.0
      %3834 = vmatprep.subr.mxu0 0.0
      %3835 = vmatpush2.msra.mxu0 0.0
      %3836 = vmatprep.subr.mxu0 0.0
      %3837 = vmatpush2.msra.mxu0 0.0
      %3838 = vmatprep.subr.mxu0 0.0
      %3839 = vmatpush2.msra.mxu0 0.0
      %3840 = vmatprep.subr.mxu0 0.0
      %3841 = vmatpush2.msra.mxu0 0.0
      %3842 = vmatprep.mubr.f32.mxu0 0.0
      %3843 = vmatmul.mubr.f32.gmra.mxu0 %v3773
      %v3844 = vpop.f32.mrf.mxu0
      %v3845 = vadd.f32 0.0, %v3844
      %v3846 = vpop.f32.mrf.mxu0
      %3847 = vdwg.mxu0
      %v3849 = vsel %vm178, %v3768, 0
      %v3852 = vsel %vm182, %v3769, 0
      %3854 = vmatprep.subr.mxu0 0.0
      %3855 = vmatpush1.msra.mxu0 0.0
      %3856 = vmatprep.subr.mxu0 0.0
      %3857 = vmatpush1.msra.mxu0 0.0
      %3858 = vmatprep.subr.mxu0 0.0
      %3859 = vmatpush1.msra.mxu0 0.0
      %3860 = vmatprep.subr.mxu0 0.0
      %3861 = vmatpush1.msra.mxu0 0.0
      %3862 = vmatprep.subr.mxu0 0.0
      %3863 = vmatpush1.msra.mxu0 0.0
      %3864 = vmatprep.subr.mxu0 0.0
      %3865 = vmatpush1.msra.mxu0 0.0
      %3866 = vmatprep.subr.mxu0 0.0
      %3867 = vmatpush1.msra.mxu0 0.0
      %3868 = vmatprep.subr.mxu0 0.0
      %3869 = vmatpush1.msra.mxu0 0.0
      %3870 = vmatprep.subr.mxu0 0.0
      %3871 = vmatpush1.msra.mxu0 0.0
      %3872 = vmatprep.subr.mxu0 0.0
      %3873 = vmatpush1.msra.mxu0 0.0
      %3874 = vmatprep.subr.mxu0 0.0
      %3875 = vmatpush1.msra.mxu0 0.0
      %3876 = vmatprep.subr.mxu0 0.0
      %3877 = vmatpush1.msra.mxu0 0.0
      %3878 = vmatprep.subr.mxu0 0.0
      %3879 = vmatpush1.msra.mxu0 0.0
      %3880 = vmatprep.subr.mxu0 0.0
      %3881 = vmatpush1.msra.mxu0 0.0
      %3882 = vmatprep.subr.mxu0 0.0
      %3883 = vmatpush1.msra.mxu0 0.0
      %3884 = vmatprep.subr.mxu0 0.0
      %3885 = vmatpush1.msra.mxu0 %v3852
      %3886 = vmatprep.subr.mxu0 0.0
      %3887 = vmatpush2.msra.mxu0 0.0
      %3888 = vmatprep.subr.mxu0 0.0
      %3889 = vmatpush2.msra.mxu0 0.0
      %3890 = vmatprep.subr.mxu0 0.0
      %3891 = vmatpush2.msra.mxu0 0.0
      %3892 = vmatprep.subr.mxu0 0.0
      %3893 = vmatpush2.msra.mxu0 0.0
      %3894 = vmatprep.subr.mxu0 0.0
      %3895 = vmatpush2.msra.mxu0 0.0
      %3896 = vmatprep.subr.mxu0 0.0
      %3897 = vmatpush2.msra.mxu0 0.0
      %3898 = vmatprep.subr.mxu0 0.0
      %3899 = vmatpush2.msra.mxu0 0.0
      %3900 = vmatprep.subr.mxu0 0.0
      %3901 = vmatpush2.msra.mxu0 0.0
      %3902 = vmatprep.subr.mxu0 0.0
      %3903 = vmatpush2.msra.mxu0 0.0
      %3904 = vmatprep.subr.mxu0 0.0
      %3905 = vmatpush2.msra.mxu0 0.0
      %3906 = vmatprep.subr.mxu0 0.0
      %3907 = vmatpush2.msra.mxu0 0.0
      %3908 = vmatprep.subr.mxu0 0.0
      %3909 = vmatpush2.msra.mxu0 0.0
      %3910 = vmatprep.subr.mxu0 0.0
      %3911 = vmatpush2.msra.mxu0 0.0
      %3912 = vmatprep.subr.mxu0 0.0
      %3913 = vmatpush2.msra.mxu0 0.0
      %3914 = vmatprep.subr.mxu0 0.0
      %3915 = vmatpush2.msra.mxu0 0.0
      %3916 = vmatprep.subr.mxu0 0.0
      %3917 = vmatpush2.msra.mxu0 0.0
      %3918 = vmatprep.mubr.f32.mxu0 0.0
      %3919 = vmatmul.mubr.f32.gmra.mxu0 %v3849
      %v3920 = vpop.f32.mrf.mxu0
      %v3921 = vadd.f32 %v3845, %v3920
      %v3922 = vpop.f32.mrf.mxu0
      %3923 = vdwg.mxu0
      %v3924 = vld [vmem:[%s3526 + $0x1] sm:$0xff]
      %v3925 = vld [vmem:[%s333] sm:$0xf]
      %v3927 = vsel %vm178, %v3924, 0
      %v3930 = vsel %vm182, %v3925, 0
      %3932 = vmatprep.subr.mxu0 0.0
      %3933 = vmatpush1.msra.mxu0 0.0
      %3934 = vmatprep.subr.mxu0 0.0
      %3935 = vmatpush1.msra.mxu0 0.0
      %3936 = vmatprep.subr.mxu0 0.0
      %3937 = vmatpush1.msra.mxu0 0.0
      %3938 = vmatprep.subr.mxu0 0.0
      %3939 = vmatpush1.msra.mxu0 0.0
      %3940 = vmatprep.subr.mxu0 0.0
      %3941 = vmatpush1.msra.mxu0 0.0
      %3942 = vmatprep.subr.mxu0 0.0
      %3943 = vmatpush1.msra.mxu0 0.0
      %3944 = vmatprep.subr.mxu0 0.0
      %3945 = vmatpush1.msra.mxu0 0.0
      %3946 = vmatprep.subr.mxu0 0.0
      %3947 = vmatpush1.msra.mxu0 0.0
      %3948 = vmatprep.subr.mxu0 0.0
      %3949 = vmatpush1.msra.mxu0 0.0
      %3950 = vmatprep.subr.mxu0 0.0
      %3951 = vmatpush1.msra.mxu0 0.0
      %3952 = vmatprep.subr.mxu0 0.0
      %3953 = vmatpush1.msra.mxu0 0.0
      %3954 = vmatprep.subr.mxu0 0.0
      %3955 = vmatpush1.msra.mxu0 0.0
      %3956 = vmatprep.subr.mxu0 0.0
      %3957 = vmatpush1.msra.mxu0 0.0
      %3958 = vmatprep.subr.mxu0 0.0
      %3959 = vmatpush1.msra.mxu0 0.0
      %3960 = vmatprep.subr.mxu0 0.0
      %3961 = vmatpush1.msra.mxu0 0.0
      %3962 = vmatprep.subr.mxu0 0.0
      %3963 = vmatpush1.msra.mxu0 %v3930
      %3964 = vmatprep.subr.mxu0 0.0
      %3965 = vmatpush2.msra.mxu0 0.0
      %3966 = vmatprep.subr.mxu0 0.0
      %3967 = vmatpush2.msra.mxu0 0.0
      %3968 = vmatprep.subr.mxu0 0.0
      %3969 = vmatpush2.msra.mxu0 0.0
      %3970 = vmatprep.subr.mxu0 0.0
      %3971 = vmatpush2.msra.mxu0 0.0
      %3972 = vmatprep.subr.mxu0 0.0
      %3973 = vmatpush2.msra.mxu0 0.0
      %3974 = vmatprep.subr.mxu0 0.0
      %3975 = vmatpush2.msra.mxu0 0.0
      %3976 = vmatprep.subr.mxu0 0.0
      %3977 = vmatpush2.msra.mxu0 0.0
      %3978 = vmatprep.subr.mxu0 0.0
      %3979 = vmatpush2.msra.mxu0 0.0
      %3980 = vmatprep.subr.mxu0 0.0
      %3981 = vmatpush2.msra.mxu0 0.0
      %3982 = vmatprep.subr.mxu0 0.0
      %3983 = vmatpush2.msra.mxu0 0.0
      %3984 = vmatprep.subr.mxu0 0.0
      %3985 = vmatpush2.msra.mxu0 0.0
      %3986 = vmatprep.subr.mxu0 0.0
      %3987 = vmatpush2.msra.mxu0 0.0
      %3988 = vmatprep.subr.mxu0 0.0
      %3989 = vmatpush2.msra.mxu0 0.0
      %3990 = vmatprep.subr.mxu0 0.0
      %3991 = vmatpush2.msra.mxu0 0.0
      %3992 = vmatprep.subr.mxu0 0.0
      %3993 = vmatpush2.msra.mxu0 0.0
      %3994 = vmatprep.subr.mxu0 0.0
      %3995 = vmatpush2.msra.mxu0 0.0
      %3996 = vmatprep.mubr.f32.mxu0 0.0
      %3997 = vmatmul.mubr.f32.gmra.mxu0 %v3927
      %v3998 = vpop.f32.mrf.mxu0
      %v3999 = vadd.f32 0.0, %v3998
      %v4000 = vpop.f32.mrf.mxu0
      %4001 = vdwg.mxu0
      %v4002 = vadd.f32 %v3921, %v3999
      %s4003 = scalar_lea.vmem %s165, 368
      %v4004 = vld [vmem:[%s4003] sm:$0xff]
      %v4005 = vld [vmem:[%s414] sm:$0xf]
      %v4007 = vsel %vm178, %v4004, 0
      %v4010 = vsel %vm182, %v4005, 0
      %4012 = vmatprep.subr.mxu0 0.0
      %4013 = vmatpush1.msra.mxu0 0.0
      %4014 = vmatprep.subr.mxu0 0.0
      %4015 = vmatpush1.msra.mxu0 0.0
      %4016 = vmatprep.subr.mxu0 0.0
      %4017 = vmatpush1.msra.mxu0 0.0
      %4018 = vmatprep.subr.mxu0 0.0
      %4019 = vmatpush1.msra.mxu0 0.0
      %4020 = vmatprep.subr.mxu0 0.0
      %4021 = vmatpush1.msra.mxu0 0.0
      %4022 = vmatprep.subr.mxu0 0.0
      %4023 = vmatpush1.msra.mxu0 0.0
      %4024 = vmatprep.subr.mxu0 0.0
      %4025 = vmatpush1.msra.mxu0 0.0
      %4026 = vmatprep.subr.mxu0 0.0
      %4027 = vmatpush1.msra.mxu0 0.0
      %4028 = vmatprep.subr.mxu0 0.0
      %4029 = vmatpush1.msra.mxu0 0.0
      %4030 = vmatprep.subr.mxu0 0.0
      %4031 = vmatpush1.msra.mxu0 0.0
      %4032 = vmatprep.subr.mxu0 0.0
      %4033 = vmatpush1.msra.mxu0 0.0
      %4034 = vmatprep.subr.mxu0 0.0
      %4035 = vmatpush1.msra.mxu0 0.0
      %4036 = vmatprep.subr.mxu0 0.0
      %4037 = vmatpush1.msra.mxu0 0.0
      %4038 = vmatprep.subr.mxu0 0.0
      %4039 = vmatpush1.msra.mxu0 0.0
      %4040 = vmatprep.subr.mxu0 0.0
      %4041 = vmatpush1.msra.mxu0 0.0
      %4042 = vmatprep.subr.mxu0 0.0
      %4043 = vmatpush1.msra.mxu0 %v4010
      %4044 = vmatprep.subr.mxu0 0.0
      %4045 = vmatpush2.msra.mxu0 0.0
      %4046 = vmatprep.subr.mxu0 0.0
      %4047 = vmatpush2.msra.mxu0 0.0
      %4048 = vmatprep.subr.mxu0 0.0
      %4049 = vmatpush2.msra.mxu0 0.0
      %4050 = vmatprep.subr.mxu0 0.0
      %4051 = vmatpush2.msra.mxu0 0.0
      %4052 = vmatprep.subr.mxu0 0.0
      %4053 = vmatpush2.msra.mxu0 0.0
      %4054 = vmatprep.subr.mxu0 0.0
      %4055 = vmatpush2.msra.mxu0 0.0
      %4056 = vmatprep.subr.mxu0 0.0
      %4057 = vmatpush2.msra.mxu0 0.0
      %4058 = vmatprep.subr.mxu0 0.0
      %4059 = vmatpush2.msra.mxu0 0.0
      %4060 = vmatprep.subr.mxu0 0.0
      %4061 = vmatpush2.msra.mxu0 0.0
      %4062 = vmatprep.subr.mxu0 0.0
      %4063 = vmatpush2.msra.mxu0 0.0
      %4064 = vmatprep.subr.mxu0 0.0
      %4065 = vmatpush2.msra.mxu0 0.0
      %4066 = vmatprep.subr.mxu0 0.0
      %4067 = vmatpush2.msra.mxu0 0.0
      %4068 = vmatprep.subr.mxu0 0.0
      %4069 = vmatpush2.msra.mxu0 0.0
      %4070 = vmatprep.subr.mxu0 0.0
      %4071 = vmatpush2.msra.mxu0 0.0
      %4072 = vmatprep.subr.mxu0 0.0
      %4073 = vmatpush2.msra.mxu0 0.0
      %4074 = vmatprep.subr.mxu0 0.0
      %4075 = vmatpush2.msra.mxu0 0.0
      %4076 = vmatprep.mubr.f32.mxu0 0.0
      %4077 = vmatmul.mubr.f32.gmra.mxu0 %v4007
      %v4078 = vpop.f32.mrf.mxu0
      %v4079 = vadd.f32 0.0, %v4078
      %v4080 = vpop.f32.mrf.mxu0
      %4081 = vdwg.mxu0
      %v4082 = vadd.f32 %v4002, %v4079
      %s4083 = scalar_lea.vmem %s165, 512
      %v4084 = vld [vmem:[%s4083] sm:$0xff]
      %v4085 = vld [vmem:[%s495] sm:$0xf]
      %v4087 = vsel %vm178, %v4084, 0
      %v4090 = vsel %vm182, %v4085, 0
      %4092 = vmatprep.subr.mxu0 0.0
      %4093 = vmatpush1.msra.mxu0 0.0
      %4094 = vmatprep.subr.mxu0 0.0
      %4095 = vmatpush1.msra.mxu0 0.0
      %4096 = vmatprep.subr.mxu0 0.0
      %4097 = vmatpush1.msra.mxu0 0.0
      %4098 = vmatprep.subr.mxu0 0.0
      %4099 = vmatpush1.msra.mxu0 0.0
      %4100 = vmatprep.subr.mxu0 0.0
      %4101 = vmatpush1.msra.mxu0 0.0
      %4102 = vmatprep.subr.mxu0 0.0
      %4103 = vmatpush1.msra.mxu0 0.0
      %4104 = vmatprep.subr.mxu0 0.0
      %4105 = vmatpush1.msra.mxu0 0.0
      %4106 = vmatprep.subr.mxu0 0.0
      %4107 = vmatpush1.msra.mxu0 0.0
      %4108 = vmatprep.subr.mxu0 0.0
      %4109 = vmatpush1.msra.mxu0 0.0
      %4110 = vmatprep.subr.mxu0 0.0
      %4111 = vmatpush1.msra.mxu0 0.0
      %4112 = vmatprep.subr.mxu0 0.0
      %4113 = vmatpush1.msra.mxu0 0.0
      %4114 = vmatprep.subr.mxu0 0.0
      %4115 = vmatpush1.msra.mxu0 0.0
      %4116 = vmatprep.subr.mxu0 0.0
      %4117 = vmatpush1.msra.mxu0 0.0
      %4118 = vmatprep.subr.mxu0 0.0
      %4119 = vmatpush1.msra.mxu0 0.0
      %4120 = vmatprep.subr.mxu0 0.0
      %4121 = vmatpush1.msra.mxu0 0.0
      %4122 = vmatprep.subr.mxu0 0.0
      %4123 = vmatpush1.msra.mxu0 %v4090
      %4124 = vmatprep.subr.mxu0 0.0
      %4125 = vmatpush2.msra.mxu0 0.0
      %4126 = vmatprep.subr.mxu0 0.0
      %4127 = vmatpush2.msra.mxu0 0.0
      %4128 = vmatprep.subr.mxu0 0.0
      %4129 = vmatpush2.msra.mxu0 0.0
      %4130 = vmatprep.subr.mxu0 0.0
      %4131 = vmatpush2.msra.mxu0 0.0
      %4132 = vmatprep.subr.mxu0 0.0
      %4133 = vmatpush2.msra.mxu0 0.0
      %4134 = vmatprep.subr.mxu0 0.0
      %4135 = vmatpush2.msra.mxu0 0.0
      %4136 = vmatprep.subr.mxu0 0.0
      %4137 = vmatpush2.msra.mxu0 0.0
      %4138 = vmatprep.subr.mxu0 0.0
      %4139 = vmatpush2.msra.mxu0 0.0
      %4140 = vmatprep.subr.mxu0 0.0
      %4141 = vmatpush2.msra.mxu0 0.0
      %4142 = vmatprep.subr.mxu0 0.0
      %4143 = vmatpush2.msra.mxu0 0.0
      %4144 = vmatprep.subr.mxu0 0.0
      %4145 = vmatpush2.msra.mxu0 0.0
      %4146 = vmatprep.subr.mxu0 0.0
      %4147 = vmatpush2.msra.mxu0 0.0
      %4148 = vmatprep.subr.mxu0 0.0
      %4149 = vmatpush2.msra.mxu0 0.0
      %4150 = vmatprep.subr.mxu0 0.0
      %4151 = vmatpush2.msra.mxu0 0.0
      %4152 = vmatprep.subr.mxu0 0.0
      %4153 = vmatpush2.msra.mxu0 0.0
      %4154 = vmatprep.subr.mxu0 0.0
      %4155 = vmatpush2.msra.mxu0 0.0
      %4156 = vmatprep.mubr.f32.mxu0 0.0
      %4157 = vmatmul.mubr.f32.gmra.mxu0 %v4087
      %v4158 = vpop.f32.mrf.mxu0
      %v4159 = vadd.f32 0.0, %v4158
      %v4160 = vpop.f32.mrf.mxu0
      %4161 = vdwg.mxu0
      %v4162 = vadd.f32 %v4082, %v4159
      %v4163 = vld [vmem:[%s4003 + $0x1] sm:$0xff]
      %v4164 = vld [vmem:[%s575] sm:$0xf]
      %v4166 = vsel %vm178, %v4163, 0
      %v4169 = vsel %vm182, %v4164, 0
      %4171 = vmatprep.subr.mxu0 0.0
      %4172 = vmatpush1.msra.mxu0 0.0
      %4173 = vmatprep.subr.mxu0 0.0
      %4174 = vmatpush1.msra.mxu0 0.0
      %4175 = vmatprep.subr.mxu0 0.0
      %4176 = vmatpush1.msra.mxu0 0.0
      %4177 = vmatprep.subr.mxu0 0.0
      %4178 = vmatpush1.msra.mxu0 0.0
      %4179 = vmatprep.subr.mxu0 0.0
      %4180 = vmatpush1.msra.mxu0 0.0
      %4181 = vmatprep.subr.mxu0 0.0
      %4182 = vmatpush1.msra.mxu0 0.0
      %4183 = vmatprep.subr.mxu0 0.0
      %4184 = vmatpush1.msra.mxu0 0.0
      %4185 = vmatprep.subr.mxu0 0.0
      %4186 = vmatpush1.msra.mxu0 0.0
      %4187 = vmatprep.subr.mxu0 0.0
      %4188 = vmatpush1.msra.mxu0 0.0
      %4189 = vmatprep.subr.mxu0 0.0
      %4190 = vmatpush1.msra.mxu0 0.0
      %4191 = vmatprep.subr.mxu0 0.0
      %4192 = vmatpush1.msra.mxu0 0.0
      %4193 = vmatprep.subr.mxu0 0.0
      %4194 = vmatpush1.msra.mxu0 0.0
      %4195 = vmatprep.subr.mxu0 0.0
      %4196 = vmatpush1.msra.mxu0 0.0
      %4197 = vmatprep.subr.mxu0 0.0
      %4198 = vmatpush1.msra.mxu0 0.0
      %4199 = vmatprep.subr.mxu0 0.0
      %4200 = vmatpush1.msra.mxu0 0.0
      %4201 = vmatprep.subr.mxu0 0.0
      %4202 = vmatpush1.msra.mxu0 %v4169
      %4203 = vmatprep.subr.mxu0 0.0
      %4204 = vmatpush2.msra.mxu0 0.0
      %4205 = vmatprep.subr.mxu0 0.0
      %4206 = vmatpush2.msra.mxu0 0.0
      %4207 = vmatprep.subr.mxu0 0.0
      %4208 = vmatpush2.msra.mxu0 0.0
      %4209 = vmatprep.subr.mxu0 0.0
      %4210 = vmatpush2.msra.mxu0 0.0
      %4211 = vmatprep.subr.mxu0 0.0
      %4212 = vmatpush2.msra.mxu0 0.0
      %4213 = vmatprep.subr.mxu0 0.0
      %4214 = vmatpush2.msra.mxu0 0.0
      %4215 = vmatprep.subr.mxu0 0.0
      %4216 = vmatpush2.msra.mxu0 0.0
      %4217 = vmatprep.subr.mxu0 0.0
      %4218 = vmatpush2.msra.mxu0 0.0
      %4219 = vmatprep.subr.mxu0 0.0
      %4220 = vmatpush2.msra.mxu0 0.0
      %4221 = vmatprep.subr.mxu0 0.0
      %4222 = vmatpush2.msra.mxu0 0.0
      %4223 = vmatprep.subr.mxu0 0.0
      %4224 = vmatpush2.msra.mxu0 0.0
      %4225 = vmatprep.subr.mxu0 0.0
      %4226 = vmatpush2.msra.mxu0 0.0
      %4227 = vmatprep.subr.mxu0 0.0
      %4228 = vmatpush2.msra.mxu0 0.0
      %4229 = vmatprep.subr.mxu0 0.0
      %4230 = vmatpush2.msra.mxu0 0.0
      %4231 = vmatprep.subr.mxu0 0.0
      %4232 = vmatpush2.msra.mxu0 0.0
      %4233 = vmatprep.subr.mxu0 0.0
      %4234 = vmatpush2.msra.mxu0 0.0
      %4235 = vmatprep.mubr.f32.mxu0 0.0
      %4236 = vmatmul.mubr.f32.gmra.mxu0 %v4166
      %v4237 = vpop.f32.mrf.mxu0
      %v4238 = vadd.f32 0.0, %v4237
      %v4239 = vpop.f32.mrf.mxu0
      %4240 = vdwg.mxu0
      %v4241 = vadd.f32 %v4162, %v4238
      %s4242 = scalar_lea.vmem %s165, 96
      %v4243 = vld [vmem:[%s4242] sm:$0xff]
      %v4244 = vld [vmem:[%s656] sm:$0xf]
      %v4246 = vsel %vm178, %v4243, 0
      %v4249 = vsel %vm182, %v4244, 0
      %4251 = vmatprep.subr.mxu0 0.0
      %4252 = vmatpush1.msra.mxu0 0.0
      %4253 = vmatprep.subr.mxu0 0.0
      %4254 = vmatpush1.msra.mxu0 0.0
      %4255 = vmatprep.subr.mxu0 0.0
      %4256 = vmatpush1.msra.mxu0 0.0
      %4257 = vmatprep.subr.mxu0 0.0
      %4258 = vmatpush1.msra.mxu0 0.0
      %4259 = vmatprep.subr.mxu0 0.0
      %4260 = vmatpush1.msra.mxu0 0.0
      %4261 = vmatprep.subr.mxu0 0.0
      %4262 = vmatpush1.msra.mxu0 0.0
      %4263 = vmatprep.subr.mxu0 0.0
      %4264 = vmatpush1.msra.mxu0 0.0
      %4265 = vmatprep.subr.mxu0 0.0
      %4266 = vmatpush1.msra.mxu0 0.0
      %4267 = vmatprep.subr.mxu0 0.0
      %4268 = vmatpush1.msra.mxu0 0.0
      %4269 = vmatprep.subr.mxu0 0.0
      %4270 = vmatpush1.msra.mxu0 0.0
      %4271 = vmatprep.subr.mxu0 0.0
      %4272 = vmatpush1.msra.mxu0 0.0
      %4273 = vmatprep.subr.mxu0 0.0
      %4274 = vmatpush1.msra.mxu0 0.0
      %4275 = vmatprep.subr.mxu0 0.0
      %4276 = vmatpush1.msra.mxu0 0.0
      %4277 = vmatprep.subr.mxu0 0.0
      %4278 = vmatpush1.msra.mxu0 0.0
      %4279 = vmatprep.subr.mxu0 0.0
      %4280 = vmatpush1.msra.mxu0 0.0
      %4281 = vmatprep.subr.mxu0 0.0
      %4282 = vmatpush1.msra.mxu0 %v4249
      %4283 = vmatprep.subr.mxu0 0.0
      %4284 = vmatpush2.msra.mxu0 0.0
      %4285 = vmatprep.subr.mxu0 0.0
      %4286 = vmatpush2.msra.mxu0 0.0
      %4287 = vmatprep.subr.mxu0 0.0
      %4288 = vmatpush2.msra.mxu0 0.0
      %4289 = vmatprep.subr.mxu0 0.0
      %4290 = vmatpush2.msra.mxu0 0.0
      %4291 = vmatprep.subr.mxu0 0.0
      %4292 = vmatpush2.msra.mxu0 0.0
      %4293 = vmatprep.subr.mxu0 0.0
      %4294 = vmatpush2.msra.mxu0 0.0
      %4295 = vmatprep.subr.mxu0 0.0
      %4296 = vmatpush2.msra.mxu0 0.0
      %4297 = vmatprep.subr.mxu0 0.0
      %4298 = vmatpush2.msra.mxu0 0.0
      %4299 = vmatprep.subr.mxu0 0.0
      %4300 = vmatpush2.msra.mxu0 0.0
      %4301 = vmatprep.subr.mxu0 0.0
      %4302 = vmatpush2.msra.mxu0 0.0
      %4303 = vmatprep.subr.mxu0 0.0
      %4304 = vmatpush2.msra.mxu0 0.0
      %4305 = vmatprep.subr.mxu0 0.0
      %4306 = vmatpush2.msra.mxu0 0.0
      %4307 = vmatprep.subr.mxu0 0.0
      %4308 = vmatpush2.msra.mxu0 0.0
      %4309 = vmatprep.subr.mxu0 0.0
      %4310 = vmatpush2.msra.mxu0 0.0
      %4311 = vmatprep.subr.mxu0 0.0
      %4312 = vmatpush2.msra.mxu0 0.0
      %4313 = vmatprep.subr.mxu0 0.0
      %4314 = vmatpush2.msra.mxu0 0.0
      %4315 = vmatprep.mubr.f32.mxu0 0.0
      %4316 = vmatmul.mubr.f32.gmra.mxu0 %v4246
      %v4317 = vpop.f32.mrf.mxu0
      %v4318 = vadd.f32 0.0, %v4317
      %v4319 = vpop.f32.mrf.mxu0
      %4320 = vdwg.mxu0
      %v4321 = vadd.f32 %v4241, %v4318
      %s4322 = scalar_lea.vmem %s165, 240
      %v4323 = vld [vmem:[%s4322] sm:$0xff]
      %v4324 = vld [vmem:[%s737] sm:$0xf]
      %v4326 = vsel %vm178, %v4323, 0
      %v4329 = vsel %vm182, %v4324, 0
      %4331 = vmatprep.subr.mxu0 0.0
      %4332 = vmatpush1.msra.mxu0 0.0
      %4333 = vmatprep.subr.mxu0 0.0
      %4334 = vmatpush1.msra.mxu0 0.0
      %4335 = vmatprep.subr.mxu0 0.0
      %4336 = vmatpush1.msra.mxu0 0.0
      %4337 = vmatprep.subr.mxu0 0.0
      %4338 = vmatpush1.msra.mxu0 0.0
      %4339 = vmatprep.subr.mxu0 0.0
      %4340 = vmatpush1.msra.mxu0 0.0
      %4341 = vmatprep.subr.mxu0 0.0
      %4342 = vmatpush1.msra.mxu0 0.0
      %4343 = vmatprep.subr.mxu0 0.0
      %4344 = vmatpush1.msra.mxu0 0.0
      %4345 = vmatprep.subr.mxu0 0.0
      %4346 = vmatpush1.msra.mxu0 0.0
      %4347 = vmatprep.subr.mxu0 0.0
      %4348 = vmatpush1.msra.mxu0 0.0
      %4349 = vmatprep.subr.mxu0 0.0
      %4350 = vmatpush1.msra.mxu0 0.0
      %4351 = vmatprep.subr.mxu0 0.0
      %4352 = vmatpush1.msra.mxu0 0.0
      %4353 = vmatprep.subr.mxu0 0.0
      %4354 = vmatpush1.msra.mxu0 0.0
      %4355 = vmatprep.subr.mxu0 0.0
      %4356 = vmatpush1.msra.mxu0 0.0
      %4357 = vmatprep.subr.mxu0 0.0
      %4358 = vmatpush1.msra.mxu0 0.0
      %4359 = vmatprep.subr.mxu0 0.0
      %4360 = vmatpush1.msra.mxu0 0.0
      %4361 = vmatprep.subr.mxu0 0.0
      %4362 = vmatpush1.msra.mxu0 %v4329
      %4363 = vmatprep.subr.mxu0 0.0
      %4364 = vmatpush2.msra.mxu0 0.0
      %4365 = vmatprep.subr.mxu0 0.0
      %4366 = vmatpush2.msra.mxu0 0.0
      %4367 = vmatprep.subr.mxu0 0.0
      %4368 = vmatpush2.msra.mxu0 0.0
      %4369 = vmatprep.subr.mxu0 0.0
      %4370 = vmatpush2.msra.mxu0 0.0
      %4371 = vmatprep.subr.mxu0 0.0
      %4372 = vmatpush2.msra.mxu0 0.0
      %4373 = vmatprep.subr.mxu0 0.0
      %4374 = vmatpush2.msra.mxu0 0.0
      %4375 = vmatprep.subr.mxu0 0.0
      %4376 = vmatpush2.msra.mxu0 0.0
      %4377 = vmatprep.subr.mxu0 0.0
      %4378 = vmatpush2.msra.mxu0 0.0
      %4379 = vmatprep.subr.mxu0 0.0
      %4380 = vmatpush2.msra.mxu0 0.0
      %4381 = vmatprep.subr.mxu0 0.0
      %4382 = vmatpush2.msra.mxu0 0.0
      %4383 = vmatprep.subr.mxu0 0.0
      %4384 = vmatpush2.msra.mxu0 0.0
      %4385 = vmatprep.subr.mxu0 0.0
      %4386 = vmatpush2.msra.mxu0 0.0
      %4387 = vmatprep.subr.mxu0 0.0
      %4388 = vmatpush2.msra.mxu0 0.0
      %4389 = vmatprep.subr.mxu0 0.0
      %4390 = vmatpush2.msra.mxu0 0.0
      %4391 = vmatprep.subr.mxu0 0.0
      %4392 = vmatpush2.msra.mxu0 0.0
      %4393 = vmatprep.subr.mxu0 0.0
      %4394 = vmatpush2.msra.mxu0 0.0
      %4395 = vmatprep.mubr.f32.mxu0 0.0
      %4396 = vmatmul.mubr.f32.gmra.mxu0 %v4326
      %v4397 = vpop.f32.mrf.mxu0
      %v4398 = vadd.f32 0.0, %v4397
      %v4399 = vpop.f32.mrf.mxu0
      %4400 = vdwg.mxu0
      %v4401 = vadd.f32 %v4321, %v4398
      %v4402 = vld [vmem:[%s4242 + $0x1] sm:$0xff]
      %v4403 = vld [vmem:[%s817] sm:$0xf]
      %v4405 = vsel %vm178, %v4402, 0
      %v4408 = vsel %vm182, %v4403, 0
      %4410 = vmatprep.subr.mxu0 0.0
      %4411 = vmatpush1.msra.mxu0 0.0
      %4412 = vmatprep.subr.mxu0 0.0
      %4413 = vmatpush1.msra.mxu0 0.0
      %4414 = vmatprep.subr.mxu0 0.0
      %4415 = vmatpush1.msra.mxu0 0.0
      %4416 = vmatprep.subr.mxu0 0.0
      %4417 = vmatpush1.msra.mxu0 0.0
      %4418 = vmatprep.subr.mxu0 0.0
      %4419 = vmatpush1.msra.mxu0 0.0
      %4420 = vmatprep.subr.mxu0 0.0
      %4421 = vmatpush1.msra.mxu0 0.0
      %4422 = vmatprep.subr.mxu0 0.0
      %4423 = vmatpush1.msra.mxu0 0.0
      %4424 = vmatprep.subr.mxu0 0.0
      %4425 = vmatpush1.msra.mxu0 0.0
      %4426 = vmatprep.subr.mxu0 0.0
      %4427 = vmatpush1.msra.mxu0 0.0
      %4428 = vmatprep.subr.mxu0 0.0
      %4429 = vmatpush1.msra.mxu0 0.0
      %4430 = vmatprep.subr.mxu0 0.0
      %4431 = vmatpush1.msra.mxu0 0.0
      %4432 = vmatprep.subr.mxu0 0.0
      %4433 = vmatpush1.msra.mxu0 0.0
      %4434 = vmatprep.subr.mxu0 0.0
      %4435 = vmatpush1.msra.mxu0 0.0
      %4436 = vmatprep.subr.mxu0 0.0
      %4437 = vmatpush1.msra.mxu0 0.0
      %4438 = vmatprep.subr.mxu0 0.0
      %4439 = vmatpush1.msra.mxu0 0.0
      %4440 = vmatprep.subr.mxu0 0.0
      %4441 = vmatpush1.msra.mxu0 %v4408
      %4442 = vmatprep.subr.mxu0 0.0
      %4443 = vmatpush2.msra.mxu0 0.0
      %4444 = vmatprep.subr.mxu0 0.0
      %4445 = vmatpush2.msra.mxu0 0.0
      %4446 = vmatprep.subr.mxu0 0.0
      %4447 = vmatpush2.msra.mxu0 0.0
      %4448 = vmatprep.subr.mxu0 0.0
      %4449 = vmatpush2.msra.mxu0 0.0
      %4450 = vmatprep.subr.mxu0 0.0
      %4451 = vmatpush2.msra.mxu0 0.0
      %4452 = vmatprep.subr.mxu0 0.0
      %4453 = vmatpush2.msra.mxu0 0.0
      %4454 = vmatprep.subr.mxu0 0.0
      %4455 = vmatpush2.msra.mxu0 0.0
      %4456 = vmatprep.subr.mxu0 0.0
      %4457 = vmatpush2.msra.mxu0 0.0
      %4458 = vmatprep.subr.mxu0 0.0
      %4459 = vmatpush2.msra.mxu0 0.0
      %4460 = vmatprep.subr.mxu0 0.0
      %4461 = vmatpush2.msra.mxu0 0.0
      %4462 = vmatprep.subr.mxu0 0.0
      %4463 = vmatpush2.msra.mxu0 0.0
      %4464 = vmatprep.subr.mxu0 0.0
      %4465 = vmatpush2.msra.mxu0 0.0
      %4466 = vmatprep.subr.mxu0 0.0
      %4467 = vmatpush2.msra.mxu0 0.0
      %4468 = vmatprep.subr.mxu0 0.0
      %4469 = vmatpush2.msra.mxu0 0.0
      %4470 = vmatprep.subr.mxu0 0.0
      %4471 = vmatpush2.msra.mxu0 0.0
      %4472 = vmatprep.subr.mxu0 0.0
      %4473 = vmatpush2.msra.mxu0 0.0
      %4474 = vmatprep.mubr.f32.mxu0 0.0
      %4475 = vmatmul.mubr.f32.gmra.mxu0 %v4405
      %v4476 = vpop.f32.mrf.mxu0
      %v4477 = vadd.f32 0.0, %v4476
      %v4478 = vpop.f32.mrf.mxu0
      %4479 = vdwg.mxu0
      %v4480 = vadd.f32 %v4401, %v4477
      %v4481 = vadd.f32 %v4480, %v900
      %s4482 = scalar_lea.vmem %s170, 40
      %4483 = vst.msk [vmem:[%s4482] sm:$0xff] %vm178, %v4481
      %v4484 = vld [vmem:[%s4242] sm:$0xff]
      %v4485 = vld [vmem:[%s1] sm:$0xf]
      %v4486 = vld [vmem:[%s4322] sm:$0xff]
      %v4487 = vld [vmem:[%s176] sm:$0xf]
      %v4489 = vsel %vm178, %v4486, 0
      %v4492 = vsel %vm182, %v4487, 0
      %4494 = vmatprep.subr.mxu0 0.0
      %4495 = vmatpush1.msra.mxu0 0.0
      %4496 = vmatprep.subr.mxu0 0.0
      %4497 = vmatpush1.msra.mxu0 0.0
      %4498 = vmatprep.subr.mxu0 0.0
      %4499 = vmatpush1.msra.mxu0 0.0
      %4500 = vmatprep.subr.mxu0 0.0
      %4501 = vmatpush1.msra.mxu0 0.0
      %4502 = vmatprep.subr.mxu0 0.0
      %4503 = vmatpush1.msra.mxu0 0.0
      %4504 = vmatprep.subr.mxu0 0.0
      %4505 = vmatpush1.msra.mxu0 0.0
      %4506 = vmatprep.subr.mxu0 0.0
      %4507 = vmatpush1.msra.mxu0 0.0
      %4508 = vmatprep.subr.mxu0 0.0
      %4509 = vmatpush1.msra.mxu0 0.0
      %4510 = vmatprep.subr.mxu0 0.0
      %4511 = vmatpush1.msra.mxu0 0.0
      %4512 = vmatprep.subr.mxu0 0.0
      %4513 = vmatpush1.msra.mxu0 0.0
      %4514 = vmatprep.subr.mxu0 0.0
      %4515 = vmatpush1.msra.mxu0 0.0
      %4516 = vmatprep.subr.mxu0 0.0
      %4517 = vmatpush1.msra.mxu0 0.0
      %4518 = vmatprep.subr.mxu0 0.0
      %4519 = vmatpush1.msra.mxu0 0.0
      %4520 = vmatprep.subr.mxu0 0.0
      %4521 = vmatpush1.msra.mxu0 0.0
      %4522 = vmatprep.subr.mxu0 0.0
      %4523 = vmatpush1.msra.mxu0 0.0
      %4524 = vmatprep.subr.mxu0 0.0
      %4525 = vmatpush1.msra.mxu0 %v4492
      %4526 = vmatprep.subr.mxu0 0.0
      %4527 = vmatpush2.msra.mxu0 0.0
      %4528 = vmatprep.subr.mxu0 0.0
      %4529 = vmatpush2.msra.mxu0 0.0
      %4530 = vmatprep.subr.mxu0 0.0
      %4531 = vmatpush2.msra.mxu0 0.0
      %4532 = vmatprep.subr.mxu0 0.0
      %4533 = vmatpush2.msra.mxu0 0.0
      %4534 = vmatprep.subr.mxu0 0.0
      %4535 = vmatpush2.msra.mxu0 0.0
      %4536 = vmatprep.subr.mxu0 0.0
      %4537 = vmatpush2.msra.mxu0 0.0
      %4538 = vmatprep.subr.mxu0 0.0
      %4539 = vmatpush2.msra.mxu0 0.0
      %4540 = vmatprep.subr.mxu0 0.0
      %4541 = vmatpush2.msra.mxu0 0.0
      %4542 = vmatprep.subr.mxu0 0.0
      %4543 = vmatpush2.msra.mxu0 0.0
      %4544 = vmatprep.subr.mxu0 0.0
      %4545 = vmatpush2.msra.mxu0 0.0
      %4546 = vmatprep.subr.mxu0 0.0
      %4547 = vmatpush2.msra.mxu0 0.0
      %4548 = vmatprep.subr.mxu0 0.0
      %4549 = vmatpush2.msra.mxu0 0.0
      %4550 = vmatprep.subr.mxu0 0.0
      %4551 = vmatpush2.msra.mxu0 0.0
      %4552 = vmatprep.subr.mxu0 0.0
      %4553 = vmatpush2.msra.mxu0 0.0
      %4554 = vmatprep.subr.mxu0 0.0
      %4555 = vmatpush2.msra.mxu0 0.0
      %4556 = vmatprep.subr.mxu0 0.0
      %4557 = vmatpush2.msra.mxu0 0.0
      %4558 = vmatprep.mubr.f32.mxu0 0.0
      %4559 = vmatmul.mubr.f32.gmra.mxu0 %v4489
      %v4560 = vpop.f32.mrf.mxu0
      %v4561 = vadd.f32 0.0, %v4560
      %v4562 = vpop.f32.mrf.mxu0
      %4563 = vdwg.mxu0
      %v4565 = vsel %vm178, %v4484, 0
      %v4568 = vsel %vm182, %v4485, 0
      %4570 = vmatprep.subr.mxu0 0.0
      %4571 = vmatpush1.msra.mxu0 0.0
      %4572 = vmatprep.subr.mxu0 0.0
      %4573 = vmatpush1.msra.mxu0 0.0
      %4574 = vmatprep.subr.mxu0 0.0
      %4575 = vmatpush1.msra.mxu0 0.0
      %4576 = vmatprep.subr.mxu0 0.0
      %4577 = vmatpush1.msra.mxu0 0.0
      %4578 = vmatprep.subr.mxu0 0.0
      %4579 = vmatpush1.msra.mxu0 0.0
      %4580 = vmatprep.subr.mxu0 0.0
      %4581 = vmatpush1.msra.mxu0 0.0
      %4582 = vmatprep.subr.mxu0 0.0
      %4583 = vmatpush1.msra.mxu0 0.0
      %4584 = vmatprep.subr.mxu0 0.0
      %4585 = vmatpush1.msra.mxu0 0.0
      %4586 = vmatprep.subr.mxu0 0.0
      %4587 = vmatpush1.msra.mxu0 0.0
      %4588 = vmatprep.subr.mxu0 0.0
      %4589 = vmatpush1.msra.mxu0 0.0
      %4590 = vmatprep.subr.mxu0 0.0
      %4591 = vmatpush1.msra.mxu0 0.0
      %4592 = vmatprep.subr.mxu0 0.0
      %4593 = vmatpush1.msra.mxu0 0.0
      %4594 = vmatprep.subr.mxu0 0.0
      %4595 = vmatpush1.msra.mxu0 0.0
      %4596 = vmatprep.subr.mxu0 0.0
      %4597 = vmatpush1.msra.mxu0 0.0
      %4598 = vmatprep.subr.mxu0 0.0
      %4599 = vmatpush1.msra.mxu0 0.0
      %4600 = vmatprep.subr.mxu0 0.0
      %4601 = vmatpush1.msra.mxu0 %v4568
      %4602 = vmatprep.subr.mxu0 0.0
      %4603 = vmatpush2.msra.mxu0 0.0
      %4604 = vmatprep.subr.mxu0 0.0
      %4605 = vmatpush2.msra.mxu0 0.0
      %4606 = vmatprep.subr.mxu0 0.0
      %4607 = vmatpush2.msra.mxu0 0.0
      %4608 = vmatprep.subr.mxu0 0.0
      %4609 = vmatpush2.msra.mxu0 0.0
      %4610 = vmatprep.subr.mxu0 0.0
      %4611 = vmatpush2.msra.mxu0 0.0
      %4612 = vmatprep.subr.mxu0 0.0
      %4613 = vmatpush2.msra.mxu0 0.0
      %4614 = vmatprep.subr.mxu0 0.0
      %4615 = vmatpush2.msra.mxu0 0.0
      %4616 = vmatprep.subr.mxu0 0.0
      %4617 = vmatpush2.msra.mxu0 0.0
      %4618 = vmatprep.subr.mxu0 0.0
      %4619 = vmatpush2.msra.mxu0 0.0
      %4620 = vmatprep.subr.mxu0 0.0
      %4621 = vmatpush2.msra.mxu0 0.0
      %4622 = vmatprep.subr.mxu0 0.0
      %4623 = vmatpush2.msra.mxu0 0.0
      %4624 = vmatprep.subr.mxu0 0.0
      %4625 = vmatpush2.msra.mxu0 0.0
      %4626 = vmatprep.subr.mxu0 0.0
      %4627 = vmatpush2.msra.mxu0 0.0
      %4628 = vmatprep.subr.mxu0 0.0
      %4629 = vmatpush2.msra.mxu0 0.0
      %4630 = vmatprep.subr.mxu0 0.0
      %4631 = vmatpush2.msra.mxu0 0.0
      %4632 = vmatprep.subr.mxu0 0.0
      %4633 = vmatpush2.msra.mxu0 0.0
      %4634 = vmatprep.mubr.f32.mxu0 0.0
      %4635 = vmatmul.mubr.f32.gmra.mxu0 %v4565
      %v4636 = vpop.f32.mrf.mxu0
      %v4637 = vadd.f32 %v4561, %v4636
      %v4638 = vpop.f32.mrf.mxu0
      %4639 = vdwg.mxu0
      %v4640 = vld [vmem:[%s4242 + $0x1] sm:$0xff]
      %v4641 = vld [vmem:[%s333] sm:$0xf]
      %v4643 = vsel %vm178, %v4640, 0
      %v4646 = vsel %vm182, %v4641, 0
      %4648 = vmatprep.subr.mxu0 0.0
      %4649 = vmatpush1.msra.mxu0 0.0
      %4650 = vmatprep.subr.mxu0 0.0
      %4651 = vmatpush1.msra.mxu0 0.0
      %4652 = vmatprep.subr.mxu0 0.0
      %4653 = vmatpush1.msra.mxu0 0.0
      %4654 = vmatprep.subr.mxu0 0.0
      %4655 = vmatpush1.msra.mxu0 0.0
      %4656 = vmatprep.subr.mxu0 0.0
      %4657 = vmatpush1.msra.mxu0 0.0
      %4658 = vmatprep.subr.mxu0 0.0
      %4659 = vmatpush1.msra.mxu0 0.0
      %4660 = vmatprep.subr.mxu0 0.0
      %4661 = vmatpush1.msra.mxu0 0.0
      %4662 = vmatprep.subr.mxu0 0.0
      %4663 = vmatpush1.msra.mxu0 0.0
      %4664 = vmatprep.subr.mxu0 0.0
      %4665 = vmatpush1.msra.mxu0 0.0
      %4666 = vmatprep.subr.mxu0 0.0
      %4667 = vmatpush1.msra.mxu0 0.0
      %4668 = vmatprep.subr.mxu0 0.0
      %4669 = vmatpush1.msra.mxu0 0.0
      %4670 = vmatprep.subr.mxu0 0.0
      %4671 = vmatpush1.msra.mxu0 0.0
      %4672 = vmatprep.subr.mxu0 0.0
      %4673 = vmatpush1.msra.mxu0 0.0
      %4674 = vmatprep.subr.mxu0 0.0
      %4675 = vmatpush1.msra.mxu0 0.0
      %4676 = vmatprep.subr.mxu0 0.0
      %4677 = vmatpush1.msra.mxu0 0.0
      %4678 = vmatprep.subr.mxu0 0.0
      %4679 = vmatpush1.msra.mxu0 %v4646
      %4680 = vmatprep.subr.mxu0 0.0
      %4681 = vmatpush2.msra.mxu0 0.0
      %4682 = vmatprep.subr.mxu0 0.0
      %4683 = vmatpush2.msra.mxu0 0.0
      %4684 = vmatprep.subr.mxu0 0.0
      %4685 = vmatpush2.msra.mxu0 0.0
      %4686 = vmatprep.subr.mxu0 0.0
      %4687 = vmatpush2.msra.mxu0 0.0
      %4688 = vmatprep.subr.mxu0 0.0
      %4689 = vmatpush2.msra.mxu0 0.0
      %4690 = vmatprep.subr.mxu0 0.0
      %4691 = vmatpush2.msra.mxu0 0.0
      %4692 = vmatprep.subr.mxu0 0.0
      %4693 = vmatpush2.msra.mxu0 0.0
      %4694 = vmatprep.subr.mxu0 0.0
      %4695 = vmatpush2.msra.mxu0 0.0
      %4696 = vmatprep.subr.mxu0 0.0
      %4697 = vmatpush2.msra.mxu0 0.0
      %4698 = vmatprep.subr.mxu0 0.0
      %4699 = vmatpush2.msra.mxu0 0.0
      %4700 = vmatprep.subr.mxu0 0.0
      %4701 = vmatpush2.msra.mxu0 0.0
      %4702 = vmatprep.subr.mxu0 0.0
      %4703 = vmatpush2.msra.mxu0 0.0
      %4704 = vmatprep.subr.mxu0 0.0
      %4705 = vmatpush2.msra.mxu0 0.0
      %4706 = vmatprep.subr.mxu0 0.0
      %4707 = vmatpush2.msra.mxu0 0.0
      %4708 = vmatprep.subr.mxu0 0.0
      %4709 = vmatpush2.msra.mxu0 0.0
      %4710 = vmatprep.subr.mxu0 0.0
      %4711 = vmatpush2.msra.mxu0 0.0
      %4712 = vmatprep.mubr.f32.mxu0 0.0
      %4713 = vmatmul.mubr.f32.gmra.mxu0 %v4643
      %v4714 = vpop.f32.mrf.mxu0
      %v4715 = vadd.f32 0.0, %v4714
      %v4716 = vpop.f32.mrf.mxu0
      %4717 = vdwg.mxu0
      %v4718 = vadd.f32 %v4637, %v4715
      %s4719 = scalar_lea.vmem %s165, 384
      %v4720 = vld [vmem:[%s4719] sm:$0xff]
      %v4721 = vld [vmem:[%s414] sm:$0xf]
      %v4723 = vsel %vm178, %v4720, 0
      %v4726 = vsel %vm182, %v4721, 0
      %4728 = vmatprep.subr.mxu0 0.0
      %4729 = vmatpush1.msra.mxu0 0.0
      %4730 = vmatprep.subr.mxu0 0.0
      %4731 = vmatpush1.msra.mxu0 0.0
      %4732 = vmatprep.subr.mxu0 0.0
      %4733 = vmatpush1.msra.mxu0 0.0
      %4734 = vmatprep.subr.mxu0 0.0
      %4735 = vmatpush1.msra.mxu0 0.0
      %4736 = vmatprep.subr.mxu0 0.0
      %4737 = vmatpush1.msra.mxu0 0.0
      %4738 = vmatprep.subr.mxu0 0.0
      %4739 = vmatpush1.msra.mxu0 0.0
      %4740 = vmatprep.subr.mxu0 0.0
      %4741 = vmatpush1.msra.mxu0 0.0
      %4742 = vmatprep.subr.mxu0 0.0
      %4743 = vmatpush1.msra.mxu0 0.0
      %4744 = vmatprep.subr.mxu0 0.0
      %4745 = vmatpush1.msra.mxu0 0.0
      %4746 = vmatprep.subr.mxu0 0.0
      %4747 = vmatpush1.msra.mxu0 0.0
      %4748 = vmatprep.subr.mxu0 0.0
      %4749 = vmatpush1.msra.mxu0 0.0
      %4750 = vmatprep.subr.mxu0 0.0
      %4751 = vmatpush1.msra.mxu0 0.0
      %4752 = vmatprep.subr.mxu0 0.0
      %4753 = vmatpush1.msra.mxu0 0.0
      %4754 = vmatprep.subr.mxu0 0.0
      %4755 = vmatpush1.msra.mxu0 0.0
      %4756 = vmatprep.subr.mxu0 0.0
      %4757 = vmatpush1.msra.mxu0 0.0
      %4758 = vmatprep.subr.mxu0 0.0
      %4759 = vmatpush1.msra.mxu0 %v4726
      %4760 = vmatprep.subr.mxu0 0.0
      %4761 = vmatpush2.msra.mxu0 0.0
      %4762 = vmatprep.subr.mxu0 0.0
      %4763 = vmatpush2.msra.mxu0 0.0
      %4764 = vmatprep.subr.mxu0 0.0
      %4765 = vmatpush2.msra.mxu0 0.0
      %4766 = vmatprep.subr.mxu0 0.0
      %4767 = vmatpush2.msra.mxu0 0.0
      %4768 = vmatprep.subr.mxu0 0.0
      %4769 = vmatpush2.msra.mxu0 0.0
      %4770 = vmatprep.subr.mxu0 0.0
      %4771 = vmatpush2.msra.mxu0 0.0
      %4772 = vmatprep.subr.mxu0 0.0
      %4773 = vmatpush2.msra.mxu0 0.0
      %4774 = vmatprep.subr.mxu0 0.0
      %4775 = vmatpush2.msra.mxu0 0.0
      %4776 = vmatprep.subr.mxu0 0.0
      %4777 = vmatpush2.msra.mxu0 0.0
      %4778 = vmatprep.subr.mxu0 0.0
      %4779 = vmatpush2.msra.mxu0 0.0
      %4780 = vmatprep.subr.mxu0 0.0
      %4781 = vmatpush2.msra.mxu0 0.0
      %4782 = vmatprep.subr.mxu0 0.0
      %4783 = vmatpush2.msra.mxu0 0.0
      %4784 = vmatprep.subr.mxu0 0.0
      %4785 = vmatpush2.msra.mxu0 0.0
      %4786 = vmatprep.subr.mxu0 0.0
      %4787 = vmatpush2.msra.mxu0 0.0
      %4788 = vmatprep.subr.mxu0 0.0
      %4789 = vmatpush2.msra.mxu0 0.0
      %4790 = vmatprep.subr.mxu0 0.0
      %4791 = vmatpush2.msra.mxu0 0.0
      %4792 = vmatprep.mubr.f32.mxu0 0.0
      %4793 = vmatmul.mubr.f32.gmra.mxu0 %v4723
      %v4794 = vpop.f32.mrf.mxu0
      %v4795 = vadd.f32 0.0, %v4794
      %v4796 = vpop.f32.mrf.mxu0
      %4797 = vdwg.mxu0
      %v4798 = vadd.f32 %v4718, %v4795
      %s4799 = scalar_lea.vmem %s165, 528
      %v4800 = vld [vmem:[%s4799] sm:$0xff]
      %v4801 = vld [vmem:[%s495] sm:$0xf]
      %v4803 = vsel %vm178, %v4800, 0
      %v4806 = vsel %vm182, %v4801, 0
      %4808 = vmatprep.subr.mxu0 0.0
      %4809 = vmatpush1.msra.mxu0 0.0
      %4810 = vmatprep.subr.mxu0 0.0
      %4811 = vmatpush1.msra.mxu0 0.0
      %4812 = vmatprep.subr.mxu0 0.0
      %4813 = vmatpush1.msra.mxu0 0.0
      %4814 = vmatprep.subr.mxu0 0.0
      %4815 = vmatpush1.msra.mxu0 0.0
      %4816 = vmatprep.subr.mxu0 0.0
      %4817 = vmatpush1.msra.mxu0 0.0
      %4818 = vmatprep.subr.mxu0 0.0
      %4819 = vmatpush1.msra.mxu0 0.0
      %4820 = vmatprep.subr.mxu0 0.0
      %4821 = vmatpush1.msra.mxu0 0.0
      %4822 = vmatprep.subr.mxu0 0.0
      %4823 = vmatpush1.msra.mxu0 0.0
      %4824 = vmatprep.subr.mxu0 0.0
      %4825 = vmatpush1.msra.mxu0 0.0
      %4826 = vmatprep.subr.mxu0 0.0
      %4827 = vmatpush1.msra.mxu0 0.0
      %4828 = vmatprep.subr.mxu0 0.0
      %4829 = vmatpush1.msra.mxu0 0.0
      %4830 = vmatprep.subr.mxu0 0.0
      %4831 = vmatpush1.msra.mxu0 0.0
      %4832 = vmatprep.subr.mxu0 0.0
      %4833 = vmatpush1.msra.mxu0 0.0
      %4834 = vmatprep.subr.mxu0 0.0
      %4835 = vmatpush1.msra.mxu0 0.0
      %4836 = vmatprep.subr.mxu0 0.0
      %4837 = vmatpush1.msra.mxu0 0.0
      %4838 = vmatprep.subr.mxu0 0.0
      %4839 = vmatpush1.msra.mxu0 %v4806
      %4840 = vmatprep.subr.mxu0 0.0
      %4841 = vmatpush2.msra.mxu0 0.0
      %4842 = vmatprep.subr.mxu0 0.0
      %4843 = vmatpush2.msra.mxu0 0.0
      %4844 = vmatprep.subr.mxu0 0.0
      %4845 = vmatpush2.msra.mxu0 0.0
      %4846 = vmatprep.subr.mxu0 0.0
      %4847 = vmatpush2.msra.mxu0 0.0
      %4848 = vmatprep.subr.mxu0 0.0
      %4849 = vmatpush2.msra.mxu0 0.0
      %4850 = vmatprep.subr.mxu0 0.0
      %4851 = vmatpush2.msra.mxu0 0.0
      %4852 = vmatprep.subr.mxu0 0.0
      %4853 = vmatpush2.msra.mxu0 0.0
      %4854 = vmatprep.subr.mxu0 0.0
      %4855 = vmatpush2.msra.mxu0 0.0
      %4856 = vmatprep.subr.mxu0 0.0
      %4857 = vmatpush2.msra.mxu0 0.0
      %4858 = vmatprep.subr.mxu0 0.0
      %4859 = vmatpush2.msra.mxu0 0.0
      %4860 = vmatprep.subr.mxu0 0.0
      %4861 = vmatpush2.msra.mxu0 0.0
      %4862 = vmatprep.subr.mxu0 0.0
      %4863 = vmatpush2.msra.mxu0 0.0
      %4864 = vmatprep.subr.mxu0 0.0
      %4865 = vmatpush2.msra.mxu0 0.0
      %4866 = vmatprep.subr.mxu0 0.0
      %4867 = vmatpush2.msra.mxu0 0.0
      %4868 = vmatprep.subr.mxu0 0.0
      %4869 = vmatpush2.msra.mxu0 0.0
      %4870 = vmatprep.subr.mxu0 0.0
      %4871 = vmatpush2.msra.mxu0 0.0
      %4872 = vmatprep.mubr.f32.mxu0 0.0
      %4873 = vmatmul.mubr.f32.gmra.mxu0 %v4803
      %v4874 = vpop.f32.mrf.mxu0
      %v4875 = vadd.f32 0.0, %v4874
      %v4876 = vpop.f32.mrf.mxu0
      %4877 = vdwg.mxu0
      %v4878 = vadd.f32 %v4798, %v4875
      %v4879 = vld [vmem:[%s4719 + $0x1] sm:$0xff]
      %v4880 = vld [vmem:[%s575] sm:$0xf]
      %v4882 = vsel %vm178, %v4879, 0
      %v4885 = vsel %vm182, %v4880, 0
      %4887 = vmatprep.subr.mxu0 0.0
      %4888 = vmatpush1.msra.mxu0 0.0
      %4889 = vmatprep.subr.mxu0 0.0
      %4890 = vmatpush1.msra.mxu0 0.0
      %4891 = vmatprep.subr.mxu0 0.0
      %4892 = vmatpush1.msra.mxu0 0.0
      %4893 = vmatprep.subr.mxu0 0.0
      %4894 = vmatpush1.msra.mxu0 0.0
      %4895 = vmatprep.subr.mxu0 0.0
      %4896 = vmatpush1.msra.mxu0 0.0
      %4897 = vmatprep.subr.mxu0 0.0
      %4898 = vmatpush1.msra.mxu0 0.0
      %4899 = vmatprep.subr.mxu0 0.0
      %4900 = vmatpush1.msra.mxu0 0.0
      %4901 = vmatprep.subr.mxu0 0.0
      %4902 = vmatpush1.msra.mxu0 0.0
      %4903 = vmatprep.subr.mxu0 0.0
      %4904 = vmatpush1.msra.mxu0 0.0
      %4905 = vmatprep.subr.mxu0 0.0
      %4906 = vmatpush1.msra.mxu0 0.0
      %4907 = vmatprep.subr.mxu0 0.0
      %4908 = vmatpush1.msra.mxu0 0.0
      %4909 = vmatprep.subr.mxu0 0.0
      %4910 = vmatpush1.msra.mxu0 0.0
      %4911 = vmatprep.subr.mxu0 0.0
      %4912 = vmatpush1.msra.mxu0 0.0
      %4913 = vmatprep.subr.mxu0 0.0
      %4914 = vmatpush1.msra.mxu0 0.0
      %4915 = vmatprep.subr.mxu0 0.0
      %4916 = vmatpush1.msra.mxu0 0.0
      %4917 = vmatprep.subr.mxu0 0.0
      %4918 = vmatpush1.msra.mxu0 %v4885
      %4919 = vmatprep.subr.mxu0 0.0
      %4920 = vmatpush2.msra.mxu0 0.0
      %4921 = vmatprep.subr.mxu0 0.0
      %4922 = vmatpush2.msra.mxu0 0.0
      %4923 = vmatprep.subr.mxu0 0.0
      %4924 = vmatpush2.msra.mxu0 0.0
      %4925 = vmatprep.subr.mxu0 0.0
      %4926 = vmatpush2.msra.mxu0 0.0
      %4927 = vmatprep.subr.mxu0 0.0
      %4928 = vmatpush2.msra.mxu0 0.0
      %4929 = vmatprep.subr.mxu0 0.0
      %4930 = vmatpush2.msra.mxu0 0.0
      %4931 = vmatprep.subr.mxu0 0.0
      %4932 = vmatpush2.msra.mxu0 0.0
      %4933 = vmatprep.subr.mxu0 0.0
      %4934 = vmatpush2.msra.mxu0 0.0
      %4935 = vmatprep.subr.mxu0 0.0
      %4936 = vmatpush2.msra.mxu0 0.0
      %4937 = vmatprep.subr.mxu0 0.0
      %4938 = vmatpush2.msra.mxu0 0.0
      %4939 = vmatprep.subr.mxu0 0.0
      %4940 = vmatpush2.msra.mxu0 0.0
      %4941 = vmatprep.subr.mxu0 0.0
      %4942 = vmatpush2.msra.mxu0 0.0
      %4943 = vmatprep.subr.mxu0 0.0
      %4944 = vmatpush2.msra.mxu0 0.0
      %4945 = vmatprep.subr.mxu0 0.0
      %4946 = vmatpush2.msra.mxu0 0.0
      %4947 = vmatprep.subr.mxu0 0.0
      %4948 = vmatpush2.msra.mxu0 0.0
      %4949 = vmatprep.subr.mxu0 0.0
      %4950 = vmatpush2.msra.mxu0 0.0
      %4951 = vmatprep.mubr.f32.mxu0 0.0
      %4952 = vmatmul.mubr.f32.gmra.mxu0 %v4882
      %v4953 = vpop.f32.mrf.mxu0
      %v4954 = vadd.f32 0.0, %v4953
      %v4955 = vpop.f32.mrf.mxu0
      %4956 = vdwg.mxu0
      %v4957 = vadd.f32 %v4878, %v4954
      %s4958 = scalar_lea.vmem %s165, 112
      %v4959 = vld [vmem:[%s4958] sm:$0xff]
      %v4960 = vld [vmem:[%s656] sm:$0xf]
      %v4962 = vsel %vm178, %v4959, 0
      %v4965 = vsel %vm182, %v4960, 0
      %4967 = vmatprep.subr.mxu0 0.0
      %4968 = vmatpush1.msra.mxu0 0.0
      %4969 = vmatprep.subr.mxu0 0.0
      %4970 = vmatpush1.msra.mxu0 0.0
      %4971 = vmatprep.subr.mxu0 0.0
      %4972 = vmatpush1.msra.mxu0 0.0
      %4973 = vmatprep.subr.mxu0 0.0
      %4974 = vmatpush1.msra.mxu0 0.0
      %4975 = vmatprep.subr.mxu0 0.0
      %4976 = vmatpush1.msra.mxu0 0.0
      %4977 = vmatprep.subr.mxu0 0.0
      %4978 = vmatpush1.msra.mxu0 0.0
      %4979 = vmatprep.subr.mxu0 0.0
      %4980 = vmatpush1.msra.mxu0 0.0
      %4981 = vmatprep.subr.mxu0 0.0
      %4982 = vmatpush1.msra.mxu0 0.0
      %4983 = vmatprep.subr.mxu0 0.0
      %4984 = vmatpush1.msra.mxu0 0.0
      %4985 = vmatprep.subr.mxu0 0.0
      %4986 = vmatpush1.msra.mxu0 0.0
      %4987 = vmatprep.subr.mxu0 0.0
      %4988 = vmatpush1.msra.mxu0 0.0
      %4989 = vmatprep.subr.mxu0 0.0
      %4990 = vmatpush1.msra.mxu0 0.0
      %4991 = vmatprep.subr.mxu0 0.0
      %4992 = vmatpush1.msra.mxu0 0.0
      %4993 = vmatprep.subr.mxu0 0.0
      %4994 = vmatpush1.msra.mxu0 0.0
      %4995 = vmatprep.subr.mxu0 0.0
      %4996 = vmatpush1.msra.mxu0 0.0
      %4997 = vmatprep.subr.mxu0 0.0
      %4998 = vmatpush1.msra.mxu0 %v4965
      %4999 = vmatprep.subr.mxu0 0.0
      %5000 = vmatpush2.msra.mxu0 0.0
      %5001 = vmatprep.subr.mxu0 0.0
      %5002 = vmatpush2.msra.mxu0 0.0
      %5003 = vmatprep.subr.mxu0 0.0
      %5004 = vmatpush2.msra.mxu0 0.0
      %5005 = vmatprep.subr.mxu0 0.0
      %5006 = vmatpush2.msra.mxu0 0.0
      %5007 = vmatprep.subr.mxu0 0.0
      %5008 = vmatpush2.msra.mxu0 0.0
      %5009 = vmatprep.subr.mxu0 0.0
      %5010 = vmatpush2.msra.mxu0 0.0
      %5011 = vmatprep.subr.mxu0 0.0
      %5012 = vmatpush2.msra.mxu0 0.0
      %5013 = vmatprep.subr.mxu0 0.0
      %5014 = vmatpush2.msra.mxu0 0.0
      %5015 = vmatprep.subr.mxu0 0.0
      %5016 = vmatpush2.msra.mxu0 0.0
      %5017 = vmatprep.subr.mxu0 0.0
      %5018 = vmatpush2.msra.mxu0 0.0
      %5019 = vmatprep.subr.mxu0 0.0
      %5020 = vmatpush2.msra.mxu0 0.0
      %5021 = vmatprep.subr.mxu0 0.0
      %5022 = vmatpush2.msra.mxu0 0.0
      %5023 = vmatprep.subr.mxu0 0.0
      %5024 = vmatpush2.msra.mxu0 0.0
      %5025 = vmatprep.subr.mxu0 0.0
      %5026 = vmatpush2.msra.mxu0 0.0
      %5027 = vmatprep.subr.mxu0 0.0
      %5028 = vmatpush2.msra.mxu0 0.0
      %5029 = vmatprep.subr.mxu0 0.0
      %5030 = vmatpush2.msra.mxu0 0.0
      %5031 = vmatprep.mubr.f32.mxu0 0.0
      %5032 = vmatmul.mubr.f32.gmra.mxu0 %v4962
      %v5033 = vpop.f32.mrf.mxu0
      %v5034 = vadd.f32 0.0, %v5033
      %v5035 = vpop.f32.mrf.mxu0
      %5036 = vdwg.mxu0
      %v5037 = vadd.f32 %v4957, %v5034
      %s5038 = scalar_lea.vmem %s165, 256
      %v5039 = vld [vmem:[%s5038] sm:$0xff]
      %v5040 = vld [vmem:[%s737] sm:$0xf]
      %v5042 = vsel %vm178, %v5039, 0
      %v5045 = vsel %vm182, %v5040, 0
      %5047 = vmatprep.subr.mxu0 0.0
      %5048 = vmatpush1.msra.mxu0 0.0
      %5049 = vmatprep.subr.mxu0 0.0
      %5050 = vmatpush1.msra.mxu0 0.0
      %5051 = vmatprep.subr.mxu0 0.0
      %5052 = vmatpush1.msra.mxu0 0.0
      %5053 = vmatprep.subr.mxu0 0.0
      %5054 = vmatpush1.msra.mxu0 0.0
      %5055 = vmatprep.subr.mxu0 0.0
      %5056 = vmatpush1.msra.mxu0 0.0
      %5057 = vmatprep.subr.mxu0 0.0
      %5058 = vmatpush1.msra.mxu0 0.0
      %5059 = vmatprep.subr.mxu0 0.0
      %5060 = vmatpush1.msra.mxu0 0.0
      %5061 = vmatprep.subr.mxu0 0.0
      %5062 = vmatpush1.msra.mxu0 0.0
      %5063 = vmatprep.subr.mxu0 0.0
      %5064 = vmatpush1.msra.mxu0 0.0
      %5065 = vmatprep.subr.mxu0 0.0
      %5066 = vmatpush1.msra.mxu0 0.0
      %5067 = vmatprep.subr.mxu0 0.0
      %5068 = vmatpush1.msra.mxu0 0.0
      %5069 = vmatprep.subr.mxu0 0.0
      %5070 = vmatpush1.msra.mxu0 0.0
      %5071 = vmatprep.subr.mxu0 0.0
      %5072 = vmatpush1.msra.mxu0 0.0
      %5073 = vmatprep.subr.mxu0 0.0
      %5074 = vmatpush1.msra.mxu0 0.0
      %5075 = vmatprep.subr.mxu0 0.0
      %5076 = vmatpush1.msra.mxu0 0.0
      %5077 = vmatprep.subr.mxu0 0.0
      %5078 = vmatpush1.msra.mxu0 %v5045
      %5079 = vmatprep.subr.mxu0 0.0
      %5080 = vmatpush2.msra.mxu0 0.0
      %5081 = vmatprep.subr.mxu0 0.0
      %5082 = vmatpush2.msra.mxu0 0.0
      %5083 = vmatprep.subr.mxu0 0.0
      %5084 = vmatpush2.msra.mxu0 0.0
      %5085 = vmatprep.subr.mxu0 0.0
      %5086 = vmatpush2.msra.mxu0 0.0
      %5087 = vmatprep.subr.mxu0 0.0
      %5088 = vmatpush2.msra.mxu0 0.0
      %5089 = vmatprep.subr.mxu0 0.0
      %5090 = vmatpush2.msra.mxu0 0.0
      %5091 = vmatprep.subr.mxu0 0.0
      %5092 = vmatpush2.msra.mxu0 0.0
      %5093 = vmatprep.subr.mxu0 0.0
      %5094 = vmatpush2.msra.mxu0 0.0
      %5095 = vmatprep.subr.mxu0 0.0
      %5096 = vmatpush2.msra.mxu0 0.0
      %5097 = vmatprep.subr.mxu0 0.0
      %5098 = vmatpush2.msra.mxu0 0.0
      %5099 = vmatprep.subr.mxu0 0.0
      %5100 = vmatpush2.msra.mxu0 0.0
      %5101 = vmatprep.subr.mxu0 0.0
      %5102 = vmatpush2.msra.mxu0 0.0
      %5103 = vmatprep.subr.mxu0 0.0
      %5104 = vmatpush2.msra.mxu0 0.0
      %5105 = vmatprep.subr.mxu0 0.0
      %5106 = vmatpush2.msra.mxu0 0.0
      %5107 = vmatprep.subr.mxu0 0.0
      %5108 = vmatpush2.msra.mxu0 0.0
      %5109 = vmatprep.subr.mxu0 0.0
      %5110 = vmatpush2.msra.mxu0 0.0
      %5111 = vmatprep.mubr.f32.mxu0 0.0
      %5112 = vmatmul.mubr.f32.gmra.mxu0 %v5042
      %v5113 = vpop.f32.mrf.mxu0
      %v5114 = vadd.f32 0.0, %v5113
      %v5115 = vpop.f32.mrf.mxu0
      %5116 = vdwg.mxu0
      %v5117 = vadd.f32 %v5037, %v5114
      %v5118 = vld [vmem:[%s4958 + $0x1] sm:$0xff]
      %v5119 = vld [vmem:[%s817] sm:$0xf]
      %v5121 = vsel %vm178, %v5118, 0
      %v5124 = vsel %vm182, %v5119, 0
      %5126 = vmatprep.subr.mxu0 0.0
      %5127 = vmatpush1.msra.mxu0 0.0
      %5128 = vmatprep.subr.mxu0 0.0
      %5129 = vmatpush1.msra.mxu0 0.0
      %5130 = vmatprep.subr.mxu0 0.0
      %5131 = vmatpush1.msra.mxu0 0.0
      %5132 = vmatprep.subr.mxu0 0.0
      %5133 = vmatpush1.msra.mxu0 0.0
      %5134 = vmatprep.subr.mxu0 0.0
      %5135 = vmatpush1.msra.mxu0 0.0
      %5136 = vmatprep.subr.mxu0 0.0
      %5137 = vmatpush1.msra.mxu0 0.0
      %5138 = vmatprep.subr.mxu0 0.0
      %5139 = vmatpush1.msra.mxu0 0.0
      %5140 = vmatprep.subr.mxu0 0.0
      %5141 = vmatpush1.msra.mxu0 0.0
      %5142 = vmatprep.subr.mxu0 0.0
      %5143 = vmatpush1.msra.mxu0 0.0
      %5144 = vmatprep.subr.mxu0 0.0
      %5145 = vmatpush1.msra.mxu0 0.0
      %5146 = vmatprep.subr.mxu0 0.0
      %5147 = vmatpush1.msra.mxu0 0.0
      %5148 = vmatprep.subr.mxu0 0.0
      %5149 = vmatpush1.msra.mxu0 0.0
      %5150 = vmatprep.subr.mxu0 0.0
      %5151 = vmatpush1.msra.mxu0 0.0
      %5152 = vmatprep.subr.mxu0 0.0
      %5153 = vmatpush1.msra.mxu0 0.0
      %5154 = vmatprep.subr.mxu0 0.0
      %5155 = vmatpush1.msra.mxu0 0.0
      %5156 = vmatprep.subr.mxu0 0.0
      %5157 = vmatpush1.msra.mxu0 %v5124
      %5158 = vmatprep.subr.mxu0 0.0
      %5159 = vmatpush2.msra.mxu0 0.0
      %5160 = vmatprep.subr.mxu0 0.0
      %5161 = vmatpush2.msra.mxu0 0.0
      %5162 = vmatprep.subr.mxu0 0.0
      %5163 = vmatpush2.msra.mxu0 0.0
      %5164 = vmatprep.subr.mxu0 0.0
      %5165 = vmatpush2.msra.mxu0 0.0
      %5166 = vmatprep.subr.mxu0 0.0
      %5167 = vmatpush2.msra.mxu0 0.0
      %5168 = vmatprep.subr.mxu0 0.0
      %5169 = vmatpush2.msra.mxu0 0.0
      %5170 = vmatprep.subr.mxu0 0.0
      %5171 = vmatpush2.msra.mxu0 0.0
      %5172 = vmatprep.subr.mxu0 0.0
      %5173 = vmatpush2.msra.mxu0 0.0
      %5174 = vmatprep.subr.mxu0 0.0
      %5175 = vmatpush2.msra.mxu0 0.0
      %5176 = vmatprep.subr.mxu0 0.0
      %5177 = vmatpush2.msra.mxu0 0.0
      %5178 = vmatprep.subr.mxu0 0.0
      %5179 = vmatpush2.msra.mxu0 0.0
      %5180 = vmatprep.subr.mxu0 0.0
      %5181 = vmatpush2.msra.mxu0 0.0
      %5182 = vmatprep.subr.mxu0 0.0
      %5183 = vmatpush2.msra.mxu0 0.0
      %5184 = vmatprep.subr.mxu0 0.0
      %5185 = vmatpush2.msra.mxu0 0.0
      %5186 = vmatprep.subr.mxu0 0.0
      %5187 = vmatpush2.msra.mxu0 0.0
      %5188 = vmatprep.subr.mxu0 0.0
      %5189 = vmatpush2.msra.mxu0 0.0
      %5190 = vmatprep.mubr.f32.mxu0 0.0
      %5191 = vmatmul.mubr.f32.gmra.mxu0 %v5121
      %v5192 = vpop.f32.mrf.mxu0
      %v5193 = vadd.f32 0.0, %v5192
      %v5194 = vpop.f32.mrf.mxu0
      %5195 = vdwg.mxu0
      %v5196 = vadd.f32 %v5117, %v5193
      %v5197 = vadd.f32 %v5196, %v900
      %s5198 = scalar_lea.vmem %s170, 48
      %5199 = vst.msk [vmem:[%s5198] sm:$0xff] %vm178, %v5197
      %v5200 = vld [vmem:[%s4958] sm:$0xff]
      %v5201 = vld [vmem:[%s1] sm:$0xf]
      %v5202 = vld [vmem:[%s5038] sm:$0xff]
      %v5203 = vld [vmem:[%s176] sm:$0xf]
      %v5205 = vsel %vm178, %v5202, 0
      %v5208 = vsel %vm182, %v5203, 0
      %5210 = vmatprep.subr.mxu0 0.0
      %5211 = vmatpush1.msra.mxu0 0.0
      %5212 = vmatprep.subr.mxu0 0.0
      %5213 = vmatpush1.msra.mxu0 0.0
      %5214 = vmatprep.subr.mxu0 0.0
      %5215 = vmatpush1.msra.mxu0 0.0
      %5216 = vmatprep.subr.mxu0 0.0
      %5217 = vmatpush1.msra.mxu0 0.0
      %5218 = vmatprep.subr.mxu0 0.0
      %5219 = vmatpush1.msra.mxu0 0.0
      %5220 = vmatprep.subr.mxu0 0.0
      %5221 = vmatpush1.msra.mxu0 0.0
      %5222 = vmatprep.subr.mxu0 0.0
      %5223 = vmatpush1.msra.mxu0 0.0
      %5224 = vmatprep.subr.mxu0 0.0
      %5225 = vmatpush1.msra.mxu0 0.0
      %5226 = vmatprep.subr.mxu0 0.0
      %5227 = vmatpush1.msra.mxu0 0.0
      %5228 = vmatprep.subr.mxu0 0.0
      %5229 = vmatpush1.msra.mxu0 0.0
      %5230 = vmatprep.subr.mxu0 0.0
      %5231 = vmatpush1.msra.mxu0 0.0
      %5232 = vmatprep.subr.mxu0 0.0
      %5233 = vmatpush1.msra.mxu0 0.0
      %5234 = vmatprep.subr.mxu0 0.0
      %5235 = vmatpush1.msra.mxu0 0.0
      %5236 = vmatprep.subr.mxu0 0.0
      %5237 = vmatpush1.msra.mxu0 0.0
      %5238 = vmatprep.subr.mxu0 0.0
      %5239 = vmatpush1.msra.mxu0 0.0
      %5240 = vmatprep.subr.mxu0 0.0
      %5241 = vmatpush1.msra.mxu0 %v5208
      %5242 = vmatprep.subr.mxu0 0.0
      %5243 = vmatpush2.msra.mxu0 0.0
      %5244 = vmatprep.subr.mxu0 0.0
      %5245 = vmatpush2.msra.mxu0 0.0
      %5246 = vmatprep.subr.mxu0 0.0
      %5247 = vmatpush2.msra.mxu0 0.0
      %5248 = vmatprep.subr.mxu0 0.0
      %5249 = vmatpush2.msra.mxu0 0.0
      %5250 = vmatprep.subr.mxu0 0.0
      %5251 = vmatpush2.msra.mxu0 0.0
      %5252 = vmatprep.subr.mxu0 0.0
      %5253 = vmatpush2.msra.mxu0 0.0
      %5254 = vmatprep.subr.mxu0 0.0
      %5255 = vmatpush2.msra.mxu0 0.0
      %5256 = vmatprep.subr.mxu0 0.0
      %5257 = vmatpush2.msra.mxu0 0.0
      %5258 = vmatprep.subr.mxu0 0.0
      %5259 = vmatpush2.msra.mxu0 0.0
      %5260 = vmatprep.subr.mxu0 0.0
      %5261 = vmatpush2.msra.mxu0 0.0
      %5262 = vmatprep.subr.mxu0 0.0
      %5263 = vmatpush2.msra.mxu0 0.0
      %5264 = vmatprep.subr.mxu0 0.0
      %5265 = vmatpush2.msra.mxu0 0.0
      %5266 = vmatprep.subr.mxu0 0.0
      %5267 = vmatpush2.msra.mxu0 0.0
      %5268 = vmatprep.subr.mxu0 0.0
      %5269 = vmatpush2.msra.mxu0 0.0
      %5270 = vmatprep.subr.mxu0 0.0
      %5271 = vmatpush2.msra.mxu0 0.0
      %5272 = vmatprep.subr.mxu0 0.0
      %5273 = vmatpush2.msra.mxu0 0.0
      %5274 = vmatprep.mubr.f32.mxu0 0.0
      %5275 = vmatmul.mubr.f32.gmra.mxu0 %v5205
      %v5276 = vpop.f32.mrf.mxu0
      %v5277 = vadd.f32 0.0, %v5276
      %v5278 = vpop.f32.mrf.mxu0
      %5279 = vdwg.mxu0
      %v5281 = vsel %vm178, %v5200, 0
      %v5284 = vsel %vm182, %v5201, 0
      %5286 = vmatprep.subr.mxu0 0.0
      %5287 = vmatpush1.msra.mxu0 0.0
      %5288 = vmatprep.subr.mxu0 0.0
      %5289 = vmatpush1.msra.mxu0 0.0
      %5290 = vmatprep.subr.mxu0 0.0
      %5291 = vmatpush1.msra.mxu0 0.0
      %5292 = vmatprep.subr.mxu0 0.0
      %5293 = vmatpush1.msra.mxu0 0.0
      %5294 = vmatprep.subr.mxu0 0.0
      %5295 = vmatpush1.msra.mxu0 0.0
      %5296 = vmatprep.subr.mxu0 0.0
      %5297 = vmatpush1.msra.mxu0 0.0
      %5298 = vmatprep.subr.mxu0 0.0
      %5299 = vmatpush1.msra.mxu0 0.0
      %5300 = vmatprep.subr.mxu0 0.0
      %5301 = vmatpush1.msra.mxu0 0.0
      %5302 = vmatprep.subr.mxu0 0.0
      %5303 = vmatpush1.msra.mxu0 0.0
      %5304 = vmatprep.subr.mxu0 0.0
      %5305 = vmatpush1.msra.mxu0 0.0
      %5306 = vmatprep.subr.mxu0 0.0
      %5307 = vmatpush1.msra.mxu0 0.0
      %5308 = vmatprep.subr.mxu0 0.0
      %5309 = vmatpush1.msra.mxu0 0.0
      %5310 = vmatprep.subr.mxu0 0.0
      %5311 = vmatpush1.msra.mxu0 0.0
      %5312 = vmatprep.subr.mxu0 0.0
      %5313 = vmatpush1.msra.mxu0 0.0
      %5314 = vmatprep.subr.mxu0 0.0
      %5315 = vmatpush1.msra.mxu0 0.0
      %5316 = vmatprep.subr.mxu0 0.0
      %5317 = vmatpush1.msra.mxu0 %v5284
      %5318 = vmatprep.subr.mxu0 0.0
      %5319 = vmatpush2.msra.mxu0 0.0
      %5320 = vmatprep.subr.mxu0 0.0
      %5321 = vmatpush2.msra.mxu0 0.0
      %5322 = vmatprep.subr.mxu0 0.0
      %5323 = vmatpush2.msra.mxu0 0.0
      %5324 = vmatprep.subr.mxu0 0.0
      %5325 = vmatpush2.msra.mxu0 0.0
      %5326 = vmatprep.subr.mxu0 0.0
      %5327 = vmatpush2.msra.mxu0 0.0
      %5328 = vmatprep.subr.mxu0 0.0
      %5329 = vmatpush2.msra.mxu0 0.0
      %5330 = vmatprep.subr.mxu0 0.0
      %5331 = vmatpush2.msra.mxu0 0.0
      %5332 = vmatprep.subr.mxu0 0.0
      %5333 = vmatpush2.msra.mxu0 0.0
      %5334 = vmatprep.subr.mxu0 0.0
      %5335 = vmatpush2.msra.mxu0 0.0
      %5336 = vmatprep.subr.mxu0 0.0
      %5337 = vmatpush2.msra.mxu0 0.0
      %5338 = vmatprep.subr.mxu0 0.0
      %5339 = vmatpush2.msra.mxu0 0.0
      %5340 = vmatprep.subr.mxu0 0.0
      %5341 = vmatpush2.msra.mxu0 0.0
      %5342 = vmatprep.subr.mxu0 0.0
      %5343 = vmatpush2.msra.mxu0 0.0
      %5344 = vmatprep.subr.mxu0 0.0
      %5345 = vmatpush2.msra.mxu0 0.0
      %5346 = vmatprep.subr.mxu0 0.0
      %5347 = vmatpush2.msra.mxu0 0.0
      %5348 = vmatprep.subr.mxu0 0.0
      %5349 = vmatpush2.msra.mxu0 0.0
      %5350 = vmatprep.mubr.f32.mxu0 0.0
      %5351 = vmatmul.mubr.f32.gmra.mxu0 %v5281
      %v5352 = vpop.f32.mrf.mxu0
      %v5353 = vadd.f32 %v5277, %v5352
      %v5354 = vpop.f32.mrf.mxu0
      %5355 = vdwg.mxu0
      %v5356 = vld [vmem:[%s4958 + $0x1] sm:$0xff]
      %v5357 = vld [vmem:[%s333] sm:$0xf]
      %v5359 = vsel %vm178, %v5356, 0
      %v5362 = vsel %vm182, %v5357, 0
      %5364 = vmatprep.subr.mxu0 0.0
      %5365 = vmatpush1.msra.mxu0 0.0
      %5366 = vmatprep.subr.mxu0 0.0
      %5367 = vmatpush1.msra.mxu0 0.0
      %5368 = vmatprep.subr.mxu0 0.0
      %5369 = vmatpush1.msra.mxu0 0.0
      %5370 = vmatprep.subr.mxu0 0.0
      %5371 = vmatpush1.msra.mxu0 0.0
      %5372 = vmatprep.subr.mxu0 0.0
      %5373 = vmatpush1.msra.mxu0 0.0
      %5374 = vmatprep.subr.mxu0 0.0
      %5375 = vmatpush1.msra.mxu0 0.0
      %5376 = vmatprep.subr.mxu0 0.0
      %5377 = vmatpush1.msra.mxu0 0.0
      %5378 = vmatprep.subr.mxu0 0.0
      %5379 = vmatpush1.msra.mxu0 0.0
      %5380 = vmatprep.subr.mxu0 0.0
      %5381 = vmatpush1.msra.mxu0 0.0
      %5382 = vmatprep.subr.mxu0 0.0
      %5383 = vmatpush1.msra.mxu0 0.0
      %5384 = vmatprep.subr.mxu0 0.0
      %5385 = vmatpush1.msra.mxu0 0.0
      %5386 = vmatprep.subr.mxu0 0.0
      %5387 = vmatpush1.msra.mxu0 0.0
      %5388 = vmatprep.subr.mxu0 0.0
      %5389 = vmatpush1.msra.mxu0 0.0
      %5390 = vmatprep.subr.mxu0 0.0
      %5391 = vmatpush1.msra.mxu0 0.0
      %5392 = vmatprep.subr.mxu0 0.0
      %5393 = vmatpush1.msra.mxu0 0.0
      %5394 = vmatprep.subr.mxu0 0.0
      %5395 = vmatpush1.msra.mxu0 %v5362
      %5396 = vmatprep.subr.mxu0 0.0
      %5397 = vmatpush2.msra.mxu0 0.0
      %5398 = vmatprep.subr.mxu0 0.0
      %5399 = vmatpush2.msra.mxu0 0.0
      %5400 = vmatprep.subr.mxu0 0.0
      %5401 = vmatpush2.msra.mxu0 0.0
      %5402 = vmatprep.subr.mxu0 0.0
      %5403 = vmatpush2.msra.mxu0 0.0
      %5404 = vmatprep.subr.mxu0 0.0
      %5405 = vmatpush2.msra.mxu0 0.0
      %5406 = vmatprep.subr.mxu0 0.0
      %5407 = vmatpush2.msra.mxu0 0.0
      %5408 = vmatprep.subr.mxu0 0.0
      %5409 = vmatpush2.msra.mxu0 0.0
      %5410 = vmatprep.subr.mxu0 0.0
      %5411 = vmatpush2.msra.mxu0 0.0
      %5412 = vmatprep.subr.mxu0 0.0
      %5413 = vmatpush2.msra.mxu0 0.0
      %5414 = vmatprep.subr.mxu0 0.0
      %5415 = vmatpush2.msra.mxu0 0.0
      %5416 = vmatprep.subr.mxu0 0.0
      %5417 = vmatpush2.msra.mxu0 0.0
      %5418 = vmatprep.subr.mxu0 0.0
      %5419 = vmatpush2.msra.mxu0 0.0
      %5420 = vmatprep.subr.mxu0 0.0
      %5421 = vmatpush2.msra.mxu0 0.0
      %5422 = vmatprep.subr.mxu0 0.0
      %5423 = vmatpush2.msra.mxu0 0.0
      %5424 = vmatprep.subr.mxu0 0.0
      %5425 = vmatpush2.msra.mxu0 0.0
      %5426 = vmatprep.subr.mxu0 0.0
      %5427 = vmatpush2.msra.mxu0 0.0
      %5428 = vmatprep.mubr.f32.mxu0 0.0
      %5429 = vmatmul.mubr.f32.gmra.mxu0 %v5359
      %v5430 = vpop.f32.mrf.mxu0
      %v5431 = vadd.f32 0.0, %v5430
      %v5432 = vpop.f32.mrf.mxu0
      %5433 = vdwg.mxu0
      %v5434 = vadd.f32 %v5353, %v5431
      %s5435 = scalar_lea.vmem %s165, 400
      %v5436 = vld [vmem:[%s5435] sm:$0xff]
      %v5437 = vld [vmem:[%s414] sm:$0xf]
      %v5439 = vsel %vm178, %v5436, 0
      %v5442 = vsel %vm182, %v5437, 0
      %5444 = vmatprep.subr.mxu0 0.0
      %5445 = vmatpush1.msra.mxu0 0.0
      %5446 = vmatprep.subr.mxu0 0.0
      %5447 = vmatpush1.msra.mxu0 0.0
      %5448 = vmatprep.subr.mxu0 0.0
      %5449 = vmatpush1.msra.mxu0 0.0
      %5450 = vmatprep.subr.mxu0 0.0
      %5451 = vmatpush1.msra.mxu0 0.0
      %5452 = vmatprep.subr.mxu0 0.0
      %5453 = vmatpush1.msra.mxu0 0.0
      %5454 = vmatprep.subr.mxu0 0.0
      %5455 = vmatpush1.msra.mxu0 0.0
      %5456 = vmatprep.subr.mxu0 0.0
      %5457 = vmatpush1.msra.mxu0 0.0
      %5458 = vmatprep.subr.mxu0 0.0
      %5459 = vmatpush1.msra.mxu0 0.0
      %5460 = vmatprep.subr.mxu0 0.0
      %5461 = vmatpush1.msra.mxu0 0.0
      %5462 = vmatprep.subr.mxu0 0.0
      %5463 = vmatpush1.msra.mxu0 0.0
      %5464 = vmatprep.subr.mxu0 0.0
      %5465 = vmatpush1.msra.mxu0 0.0
      %5466 = vmatprep.subr.mxu0 0.0
      %5467 = vmatpush1.msra.mxu0 0.0
      %5468 = vmatprep.subr.mxu0 0.0
      %5469 = vmatpush1.msra.mxu0 0.0
      %5470 = vmatprep.subr.mxu0 0.0
      %5471 = vmatpush1.msra.mxu0 0.0
      %5472 = vmatprep.subr.mxu0 0.0
      %5473 = vmatpush1.msra.mxu0 0.0
      %5474 = vmatprep.subr.mxu0 0.0
      %5475 = vmatpush1.msra.mxu0 %v5442
      %5476 = vmatprep.subr.mxu0 0.0
      %5477 = vmatpush2.msra.mxu0 0.0
      %5478 = vmatprep.subr.mxu0 0.0
      %5479 = vmatpush2.msra.mxu0 0.0
      %5480 = vmatprep.subr.mxu0 0.0
      %5481 = vmatpush2.msra.mxu0 0.0
      %5482 = vmatprep.subr.mxu0 0.0
      %5483 = vmatpush2.msra.mxu0 0.0
      %5484 = vmatprep.subr.mxu0 0.0
      %5485 = vmatpush2.msra.mxu0 0.0
      %5486 = vmatprep.subr.mxu0 0.0
      %5487 = vmatpush2.msra.mxu0 0.0
      %5488 = vmatprep.subr.mxu0 0.0
      %5489 = vmatpush2.msra.mxu0 0.0
      %5490 = vmatprep.subr.mxu0 0.0
      %5491 = vmatpush2.msra.mxu0 0.0
      %5492 = vmatprep.subr.mxu0 0.0
      %5493 = vmatpush2.msra.mxu0 0.0
      %5494 = vmatprep.subr.mxu0 0.0
      %5495 = vmatpush2.msra.mxu0 0.0
      %5496 = vmatprep.subr.mxu0 0.0
      %5497 = vmatpush2.msra.mxu0 0.0
      %5498 = vmatprep.subr.mxu0 0.0
      %5499 = vmatpush2.msra.mxu0 0.0
      %5500 = vmatprep.subr.mxu0 0.0
      %5501 = vmatpush2.msra.mxu0 0.0
      %5502 = vmatprep.subr.mxu0 0.0
      %5503 = vmatpush2.msra.mxu0 0.0
      %5504 = vmatprep.subr.mxu0 0.0
      %5505 = vmatpush2.msra.mxu0 0.0
      %5506 = vmatprep.subr.mxu0 0.0
      %5507 = vmatpush2.msra.mxu0 0.0
      %5508 = vmatprep.mubr.f32.mxu0 0.0
      %5509 = vmatmul.mubr.f32.gmra.mxu0 %v5439
      %v5510 = vpop.f32.mrf.mxu0
      %v5511 = vadd.f32 0.0, %v5510
      %v5512 = vpop.f32.mrf.mxu0
      %5513 = vdwg.mxu0
      %v5514 = vadd.f32 %v5434, %v5511
      %s5515 = scalar_lea.vmem %s165, 544
      %v5516 = vld [vmem:[%s5515] sm:$0xff]
      %v5517 = vld [vmem:[%s495] sm:$0xf]
      %v5519 = vsel %vm178, %v5516, 0
      %v5522 = vsel %vm182, %v5517, 0
      %5524 = vmatprep.subr.mxu0 0.0
      %5525 = vmatpush1.msra.mxu0 0.0
      %5526 = vmatprep.subr.mxu0 0.0
      %5527 = vmatpush1.msra.mxu0 0.0
      %5528 = vmatprep.subr.mxu0 0.0
      %5529 = vmatpush1.msra.mxu0 0.0
      %5530 = vmatprep.subr.mxu0 0.0
      %5531 = vmatpush1.msra.mxu0 0.0
      %5532 = vmatprep.subr.mxu0 0.0
      %5533 = vmatpush1.msra.mxu0 0.0
      %5534 = vmatprep.subr.mxu0 0.0
      %5535 = vmatpush1.msra.mxu0 0.0
      %5536 = vmatprep.subr.mxu0 0.0
      %5537 = vmatpush1.msra.mxu0 0.0
      %5538 = vmatprep.subr.mxu0 0.0
      %5539 = vmatpush1.msra.mxu0 0.0
      %5540 = vmatprep.subr.mxu0 0.0
      %5541 = vmatpush1.msra.mxu0 0.0
      %5542 = vmatprep.subr.mxu0 0.0
      %5543 = vmatpush1.msra.mxu0 0.0
      %5544 = vmatprep.subr.mxu0 0.0
      %5545 = vmatpush1.msra.mxu0 0.0
      %5546 = vmatprep.subr.mxu0 0.0
      %5547 = vmatpush1.msra.mxu0 0.0
      %5548 = vmatprep.subr.mxu0 0.0
      %5549 = vmatpush1.msra.mxu0 0.0
      %5550 = vmatprep.subr.mxu0 0.0
      %5551 = vmatpush1.msra.mxu0 0.0
      %5552 = vmatprep.subr.mxu0 0.0
      %5553 = vmatpush1.msra.mxu0 0.0
      %5554 = vmatprep.subr.mxu0 0.0
      %5555 = vmatpush1.msra.mxu0 %v5522
      %5556 = vmatprep.subr.mxu0 0.0
      %5557 = vmatpush2.msra.mxu0 0.0
      %5558 = vmatprep.subr.mxu0 0.0
      %5559 = vmatpush2.msra.mxu0 0.0
      %5560 = vmatprep.subr.mxu0 0.0
      %5561 = vmatpush2.msra.mxu0 0.0
      %5562 = vmatprep.subr.mxu0 0.0
      %5563 = vmatpush2.msra.mxu0 0.0
      %5564 = vmatprep.subr.mxu0 0.0
      %5565 = vmatpush2.msra.mxu0 0.0
      %5566 = vmatprep.subr.mxu0 0.0
      %5567 = vmatpush2.msra.mxu0 0.0
      %5568 = vmatprep.subr.mxu0 0.0
      %5569 = vmatpush2.msra.mxu0 0.0
      %5570 = vmatprep.subr.mxu0 0.0
      %5571 = vmatpush2.msra.mxu0 0.0
      %5572 = vmatprep.subr.mxu0 0.0
      %5573 = vmatpush2.msra.mxu0 0.0
      %5574 = vmatprep.subr.mxu0 0.0
      %5575 = vmatpush2.msra.mxu0 0.0
      %5576 = vmatprep.subr.mxu0 0.0
      %5577 = vmatpush2.msra.mxu0 0.0
      %5578 = vmatprep.subr.mxu0 0.0
      %5579 = vmatpush2.msra.mxu0 0.0
      %5580 = vmatprep.subr.mxu0 0.0
      %5581 = vmatpush2.msra.mxu0 0.0
      %5582 = vmatprep.subr.mxu0 0.0
      %5583 = vmatpush2.msra.mxu0 0.0
      %5584 = vmatprep.subr.mxu0 0.0
      %5585 = vmatpush2.msra.mxu0 0.0
      %5586 = vmatprep.subr.mxu0 0.0
      %5587 = vmatpush2.msra.mxu0 0.0
      %5588 = vmatprep.mubr.f32.mxu0 0.0
      %5589 = vmatmul.mubr.f32.gmra.mxu0 %v5519
      %v5590 = vpop.f32.mrf.mxu0
      %v5591 = vadd.f32 0.0, %v5590
      %v5592 = vpop.f32.mrf.mxu0
      %5593 = vdwg.mxu0
      %v5594 = vadd.f32 %v5514, %v5591
      %v5595 = vld [vmem:[%s5435 + $0x1] sm:$0xff]
      %v5596 = vld [vmem:[%s575] sm:$0xf]
      %v5598 = vsel %vm178, %v5595, 0
      %v5601 = vsel %vm182, %v5596, 0
      %5603 = vmatprep.subr.mxu0 0.0
      %5604 = vmatpush1.msra.mxu0 0.0
      %5605 = vmatprep.subr.mxu0 0.0
      %5606 = vmatpush1.msra.mxu0 0.0
      %5607 = vmatprep.subr.mxu0 0.0
      %5608 = vmatpush1.msra.mxu0 0.0
      %5609 = vmatprep.subr.mxu0 0.0
      %5610 = vmatpush1.msra.mxu0 0.0
      %5611 = vmatprep.subr.mxu0 0.0
      %5612 = vmatpush1.msra.mxu0 0.0
      %5613 = vmatprep.subr.mxu0 0.0
      %5614 = vmatpush1.msra.mxu0 0.0
      %5615 = vmatprep.subr.mxu0 0.0
      %5616 = vmatpush1.msra.mxu0 0.0
      %5617 = vmatprep.subr.mxu0 0.0
      %5618 = vmatpush1.msra.mxu0 0.0
      %5619 = vmatprep.subr.mxu0 0.0
      %5620 = vmatpush1.msra.mxu0 0.0
      %5621 = vmatprep.subr.mxu0 0.0
      %5622 = vmatpush1.msra.mxu0 0.0
      %5623 = vmatprep.subr.mxu0 0.0
      %5624 = vmatpush1.msra.mxu0 0.0
      %5625 = vmatprep.subr.mxu0 0.0
      %5626 = vmatpush1.msra.mxu0 0.0
      %5627 = vmatprep.subr.mxu0 0.0
      %5628 = vmatpush1.msra.mxu0 0.0
      %5629 = vmatprep.subr.mxu0 0.0
      %5630 = vmatpush1.msra.mxu0 0.0
      %5631 = vmatprep.subr.mxu0 0.0
      %5632 = vmatpush1.msra.mxu0 0.0
      %5633 = vmatprep.subr.mxu0 0.0
      %5634 = vmatpush1.msra.mxu0 %v5601
      %5635 = vmatprep.subr.mxu0 0.0
      %5636 = vmatpush2.msra.mxu0 0.0
      %5637 = vmatprep.subr.mxu0 0.0
      %5638 = vmatpush2.msra.mxu0 0.0
      %5639 = vmatprep.subr.mxu0 0.0
      %5640 = vmatpush2.msra.mxu0 0.0
      %5641 = vmatprep.subr.mxu0 0.0
      %5642 = vmatpush2.msra.mxu0 0.0
      %5643 = vmatprep.subr.mxu0 0.0
      %5644 = vmatpush2.msra.mxu0 0.0
      %5645 = vmatprep.subr.mxu0 0.0
      %5646 = vmatpush2.msra.mxu0 0.0
      %5647 = vmatprep.subr.mxu0 0.0
      %5648 = vmatpush2.msra.mxu0 0.0
      %5649 = vmatprep.subr.mxu0 0.0
      %5650 = vmatpush2.msra.mxu0 0.0
      %5651 = vmatprep.subr.mxu0 0.0
      %5652 = vmatpush2.msra.mxu0 0.0
      %5653 = vmatprep.subr.mxu0 0.0
      %5654 = vmatpush2.msra.mxu0 0.0
      %5655 = vmatprep.subr.mxu0 0.0
      %5656 = vmatpush2.msra.mxu0 0.0
      %5657 = vmatprep.subr.mxu0 0.0
      %5658 = vmatpush2.msra.mxu0 0.0
      %5659 = vmatprep.subr.mxu0 0.0
      %5660 = vmatpush2.msra.mxu0 0.0
      %5661 = vmatprep.subr.mxu0 0.0
      %5662 = vmatpush2.msra.mxu0 0.0
      %5663 = vmatprep.subr.mxu0 0.0
      %5664 = vmatpush2.msra.mxu0 0.0
      %5665 = vmatprep.subr.mxu0 0.0
      %5666 = vmatpush2.msra.mxu0 0.0
      %5667 = vmatprep.mubr.f32.mxu0 0.0
      %5668 = vmatmul.mubr.f32.gmra.mxu0 %v5598
      %v5669 = vpop.f32.mrf.mxu0
      %v5670 = vadd.f32 0.0, %v5669
      %v5671 = vpop.f32.mrf.mxu0
      %5672 = vdwg.mxu0
      %v5673 = vadd.f32 %v5594, %v5670
      %s5674 = scalar_lea.vmem %s165, 128
      %v5675 = vld [vmem:[%s5674] sm:$0xff]
      %v5676 = vld [vmem:[%s656] sm:$0xf]
      %v5678 = vsel %vm178, %v5675, 0
      %v5681 = vsel %vm182, %v5676, 0
      %5683 = vmatprep.subr.mxu0 0.0
      %5684 = vmatpush1.msra.mxu0 0.0
      %5685 = vmatprep.subr.mxu0 0.0
      %5686 = vmatpush1.msra.mxu0 0.0
      %5687 = vmatprep.subr.mxu0 0.0
      %5688 = vmatpush1.msra.mxu0 0.0
      %5689 = vmatprep.subr.mxu0 0.0
      %5690 = vmatpush1.msra.mxu0 0.0
      %5691 = vmatprep.subr.mxu0 0.0
      %5692 = vmatpush1.msra.mxu0 0.0
      %5693 = vmatprep.subr.mxu0 0.0
      %5694 = vmatpush1.msra.mxu0 0.0
      %5695 = vmatprep.subr.mxu0 0.0
      %5696 = vmatpush1.msra.mxu0 0.0
      %5697 = vmatprep.subr.mxu0 0.0
      %5698 = vmatpush1.msra.mxu0 0.0
      %5699 = vmatprep.subr.mxu0 0.0
      %5700 = vmatpush1.msra.mxu0 0.0
      %5701 = vmatprep.subr.mxu0 0.0
      %5702 = vmatpush1.msra.mxu0 0.0
      %5703 = vmatprep.subr.mxu0 0.0
      %5704 = vmatpush1.msra.mxu0 0.0
      %5705 = vmatprep.subr.mxu0 0.0
      %5706 = vmatpush1.msra.mxu0 0.0
      %5707 = vmatprep.subr.mxu0 0.0
      %5708 = vmatpush1.msra.mxu0 0.0
      %5709 = vmatprep.subr.mxu0 0.0
      %5710 = vmatpush1.msra.mxu0 0.0
      %5711 = vmatprep.subr.mxu0 0.0
      %5712 = vmatpush1.msra.mxu0 0.0
      %5713 = vmatprep.subr.mxu0 0.0
      %5714 = vmatpush1.msra.mxu0 %v5681
      %5715 = vmatprep.subr.mxu0 0.0
      %5716 = vmatpush2.msra.mxu0 0.0
      %5717 = vmatprep.subr.mxu0 0.0
      %5718 = vmatpush2.msra.mxu0 0.0
      %5719 = vmatprep.subr.mxu0 0.0
      %5720 = vmatpush2.msra.mxu0 0.0
      %5721 = vmatprep.subr.mxu0 0.0
      %5722 = vmatpush2.msra.mxu0 0.0
      %5723 = vmatprep.subr.mxu0 0.0
      %5724 = vmatpush2.msra.mxu0 0.0
      %5725 = vmatprep.subr.mxu0 0.0
      %5726 = vmatpush2.msra.mxu0 0.0
      %5727 = vmatprep.subr.mxu0 0.0
      %5728 = vmatpush2.msra.mxu0 0.0
      %5729 = vmatprep.subr.mxu0 0.0
      %5730 = vmatpush2.msra.mxu0 0.0
      %5731 = vmatprep.subr.mxu0 0.0
      %5732 = vmatpush2.msra.mxu0 0.0
      %5733 = vmatprep.subr.mxu0 0.0
      %5734 = vmatpush2.msra.mxu0 0.0
      %5735 = vmatprep.subr.mxu0 0.0
      %5736 = vmatpush2.msra.mxu0 0.0
      %5737 = vmatprep.subr.mxu0 0.0
      %5738 = vmatpush2.msra.mxu0 0.0
      %5739 = vmatprep.subr.mxu0 0.0
      %5740 = vmatpush2.msra.mxu0 0.0
      %5741 = vmatprep.subr.mxu0 0.0
      %5742 = vmatpush2.msra.mxu0 0.0
      %5743 = vmatprep.subr.mxu0 0.0
      %5744 = vmatpush2.msra.mxu0 0.0
      %5745 = vmatprep.subr.mxu0 0.0
      %5746 = vmatpush2.msra.mxu0 0.0
      %5747 = vmatprep.mubr.f32.mxu0 0.0
      %5748 = vmatmul.mubr.f32.gmra.mxu0 %v5678
      %v5749 = vpop.f32.mrf.mxu0
      %v5750 = vadd.f32 0.0, %v5749
      %v5751 = vpop.f32.mrf.mxu0
      %5752 = vdwg.mxu0
      %v5753 = vadd.f32 %v5673, %v5750
      %s5754 = scalar_lea.vmem %s165, 272
      %v5755 = vld [vmem:[%s5754] sm:$0xff]
      %v5756 = vld [vmem:[%s737] sm:$0xf]
      %v5758 = vsel %vm178, %v5755, 0
      %v5761 = vsel %vm182, %v5756, 0
      %5763 = vmatprep.subr.mxu0 0.0
      %5764 = vmatpush1.msra.mxu0 0.0
      %5765 = vmatprep.subr.mxu0 0.0
      %5766 = vmatpush1.msra.mxu0 0.0
      %5767 = vmatprep.subr.mxu0 0.0
      %5768 = vmatpush1.msra.mxu0 0.0
      %5769 = vmatprep.subr.mxu0 0.0
      %5770 = vmatpush1.msra.mxu0 0.0
      %5771 = vmatprep.subr.mxu0 0.0
      %5772 = vmatpush1.msra.mxu0 0.0
      %5773 = vmatprep.subr.mxu0 0.0
      %5774 = vmatpush1.msra.mxu0 0.0
      %5775 = vmatprep.subr.mxu0 0.0
      %5776 = vmatpush1.msra.mxu0 0.0
      %5777 = vmatprep.subr.mxu0 0.0
      %5778 = vmatpush1.msra.mxu0 0.0
      %5779 = vmatprep.subr.mxu0 0.0
      %5780 = vmatpush1.msra.mxu0 0.0
      %5781 = vmatprep.subr.mxu0 0.0
      %5782 = vmatpush1.msra.mxu0 0.0
      %5783 = vmatprep.subr.mxu0 0.0
      %5784 = vmatpush1.msra.mxu0 0.0
      %5785 = vmatprep.subr.mxu0 0.0
      %5786 = vmatpush1.msra.mxu0 0.0
      %5787 = vmatprep.subr.mxu0 0.0
      %5788 = vmatpush1.msra.mxu0 0.0
      %5789 = vmatprep.subr.mxu0 0.0
      %5790 = vmatpush1.msra.mxu0 0.0
      %5791 = vmatprep.subr.mxu0 0.0
      %5792 = vmatpush1.msra.mxu0 0.0
      %5793 = vmatprep.subr.mxu0 0.0
      %5794 = vmatpush1.msra.mxu0 %v5761
      %5795 = vmatprep.subr.mxu0 0.0
      %5796 = vmatpush2.msra.mxu0 0.0
      %5797 = vmatprep.subr.mxu0 0.0
      %5798 = vmatpush2.msra.mxu0 0.0
      %5799 = vmatprep.subr.mxu0 0.0
      %5800 = vmatpush2.msra.mxu0 0.0
      %5801 = vmatprep.subr.mxu0 0.0
      %5802 = vmatpush2.msra.mxu0 0.0
      %5803 = vmatprep.subr.mxu0 0.0
      %5804 = vmatpush2.msra.mxu0 0.0
      %5805 = vmatprep.subr.mxu0 0.0
      %5806 = vmatpush2.msra.mxu0 0.0
      %5807 = vmatprep.subr.mxu0 0.0
      %5808 = vmatpush2.msra.mxu0 0.0
      %5809 = vmatprep.subr.mxu0 0.0
      %5810 = vmatpush2.msra.mxu0 0.0
      %5811 = vmatprep.subr.mxu0 0.0
      %5812 = vmatpush2.msra.mxu0 0.0
      %5813 = vmatprep.subr.mxu0 0.0
      %5814 = vmatpush2.msra.mxu0 0.0
      %5815 = vmatprep.subr.mxu0 0.0
      %5816 = vmatpush2.msra.mxu0 0.0
      %5817 = vmatprep.subr.mxu0 0.0
      %5818 = vmatpush2.msra.mxu0 0.0
      %5819 = vmatprep.subr.mxu0 0.0
      %5820 = vmatpush2.msra.mxu0 0.0
      %5821 = vmatprep.subr.mxu0 0.0
      %5822 = vmatpush2.msra.mxu0 0.0
      %5823 = vmatprep.subr.mxu0 0.0
      %5824 = vmatpush2.msra.mxu0 0.0
      %5825 = vmatprep.subr.mxu0 0.0
      %5826 = vmatpush2.msra.mxu0 0.0
      %5827 = vmatprep.mubr.f32.mxu0 0.0
      %5828 = vmatmul.mubr.f32.gmra.mxu0 %v5758
      %v5829 = vpop.f32.mrf.mxu0
      %v5830 = vadd.f32 0.0, %v5829
      %v5831 = vpop.f32.mrf.mxu0
      %5832 = vdwg.mxu0
      %v5833 = vadd.f32 %v5753, %v5830
      %v5834 = vld [vmem:[%s5674 + $0x1] sm:$0xff]
      %v5835 = vld [vmem:[%s817] sm:$0xf]
      %v5837 = vsel %vm178, %v5834, 0
      %v5840 = vsel %vm182, %v5835, 0
      %5842 = vmatprep.subr.mxu0 0.0
      %5843 = vmatpush1.msra.mxu0 0.0
      %5844 = vmatprep.subr.mxu0 0.0
      %5845 = vmatpush1.msra.mxu0 0.0
      %5846 = vmatprep.subr.mxu0 0.0
      %5847 = vmatpush1.msra.mxu0 0.0
      %5848 = vmatprep.subr.mxu0 0.0
      %5849 = vmatpush1.msra.mxu0 0.0
      %5850 = vmatprep.subr.mxu0 0.0
      %5851 = vmatpush1.msra.mxu0 0.0
      %5852 = vmatprep.subr.mxu0 0.0
      %5853 = vmatpush1.msra.mxu0 0.0
      %5854 = vmatprep.subr.mxu0 0.0
      %5855 = vmatpush1.msra.mxu0 0.0
      %5856 = vmatprep.subr.mxu0 0.0
      %5857 = vmatpush1.msra.mxu0 0.0
      %5858 = vmatprep.subr.mxu0 0.0
      %5859 = vmatpush1.msra.mxu0 0.0
      %5860 = vmatprep.subr.mxu0 0.0
      %5861 = vmatpush1.msra.mxu0 0.0
      %5862 = vmatprep.subr.mxu0 0.0
      %5863 = vmatpush1.msra.mxu0 0.0
      %5864 = vmatprep.subr.mxu0 0.0
      %5865 = vmatpush1.msra.mxu0 0.0
      %5866 = vmatprep.subr.mxu0 0.0
      %5867 = vmatpush1.msra.mxu0 0.0
      %5868 = vmatprep.subr.mxu0 0.0
      %5869 = vmatpush1.msra.mxu0 0.0
      %5870 = vmatprep.subr.mxu0 0.0
      %5871 = vmatpush1.msra.mxu0 0.0
      %5872 = vmatprep.subr.mxu0 0.0
      %5873 = vmatpush1.msra.mxu0 %v5840
      %5874 = vmatprep.subr.mxu0 0.0
      %5875 = vmatpush2.msra.mxu0 0.0
      %5876 = vmatprep.subr.mxu0 0.0
      %5877 = vmatpush2.msra.mxu0 0.0
      %5878 = vmatprep.subr.mxu0 0.0
      %5879 = vmatpush2.msra.mxu0 0.0
      %5880 = vmatprep.subr.mxu0 0.0
      %5881 = vmatpush2.msra.mxu0 0.0
      %5882 = vmatprep.subr.mxu0 0.0
      %5883 = vmatpush2.msra.mxu0 0.0
      %5884 = vmatprep.subr.mxu0 0.0
      %5885 = vmatpush2.msra.mxu0 0.0
      %5886 = vmatprep.subr.mxu0 0.0
      %5887 = vmatpush2.msra.mxu0 0.0
      %5888 = vmatprep.subr.mxu0 0.0
      %5889 = vmatpush2.msra.mxu0 0.0
      %5890 = vmatprep.subr.mxu0 0.0
      %5891 = vmatpush2.msra.mxu0 0.0
      %5892 = vmatprep.subr.mxu0 0.0
      %5893 = vmatpush2.msra.mxu0 0.0
      %5894 = vmatprep.subr.mxu0 0.0
      %5895 = vmatpush2.msra.mxu0 0.0
      %5896 = vmatprep.subr.mxu0 0.0
      %5897 = vmatpush2.msra.mxu0 0.0
      %5898 = vmatprep.subr.mxu0 0.0
      %5899 = vmatpush2.msra.mxu0 0.0
      %5900 = vmatprep.subr.mxu0 0.0
      %5901 = vmatpush2.msra.mxu0 0.0
      %5902 = vmatprep.subr.mxu0 0.0
      %5903 = vmatpush2.msra.mxu0 0.0
      %5904 = vmatprep.subr.mxu0 0.0
      %5905 = vmatpush2.msra.mxu0 0.0
      %5906 = vmatprep.mubr.f32.mxu0 0.0
      %5907 = vmatmul.mubr.f32.gmra.mxu0 %v5837
      %v5908 = vpop.f32.mrf.mxu0
      %v5909 = vadd.f32 0.0, %v5908
      %v5910 = vpop.f32.mrf.mxu0
      %5911 = vdwg.mxu0
      %v5912 = vadd.f32 %v5833, %v5909
      %v5913 = vadd.f32 %v5912, %v900
      %s5914 = scalar_lea.vmem %s170, 56
      %5915 = vst.msk [vmem:[%s5914] sm:$0xff] %vm178, %v5913
      %p5916 = scmp.lt.s32.totalorder %s14, 1
      %s5917 = scalar_select %p5916, %s14, 1
      %s5918 = smul.addr %s5917, 8
      %s5919 = smul.addr %s5918, 8
      %s5920 = scalar_lea.vmem %s3, %s5919
      // Predicated region
      $region33: #{downsample_forward.1} parent=31 // pred_check
        %p5921 = pneg %p100
      $region34: #{downsample_forward.1} parent=31 // pred_check_branch
        %5923 = sbr.rel (%p5921) target = $region36
      $region35: #{downsample_forward.1} parent=31 // pred_region
        _
      $region36: #{downsample_forward.1} parent=31 // pred_fallthru
        _
    $region32: #{downsample_forward.1} parent=5 // pred_fallthru
      _
    %p5924 = scmp.le.s32.totalorder 2, %s9
    // Predicated region
    $region37: #{downsample_forward.1} parent=5 // pred_check
      %p5925 = pneg %p5924
    $region38: #{downsample_forward.1} parent=5 // pred_check_branch
      %5927 = sbr.rel (%p5925) target = $region40
    $region39: #{downsample_forward.1} parent=5 // pred_region
      %s5928 = ssub.s32 %s9, 2
      // Predicated region
      $region41: #{downsample_forward.1} parent=39 // pred_check
        %p5929 = pneg %p106
      $region42: #{downsample_forward.1} parent=39 // pred_check_branch
        %5931 = sbr.rel (%p5929) target = $region44
      $region43: #{downsample_forward.1} parent=39 // pred_region
        %p5932 = scmp.lt.s32.totalorder %s15, 1
        %s5933 = scalar_select %p5932, %s15, 1
        %s5934 = smul.addr %s5933, 8
        %s5935 = smul.addr %s5934, 8
        %s5936 = scalar_lea.vmem %s3, %s5935
      $region44: #{downsample_forward.1} parent=39 // pred_fallthru
        _
    $region40: #{downsample_forward.1} parent=5 // pred_fallthru
      _
  $region6: #{downsample_forward.1} parent=0 // loop_footer
    %s13 = sadd.s32 1, %s9
  $region7: #{downsample_forward.1} parent=0 // loop_footer_branch
    %8 = sbr.rel target = $region3
  $region8: #{downsample_forward.1} parent=0 // loop_exit
    _

</llo_original>
